<compile_context>
chip_gen: v6e
topology: v6e:2x2x1
jax: 0.10.0
libtpu: 0.0.40
codegen_flags: <defaults>
</compile_context>

<pallas_src>
import functools

import jax
import jax.numpy as jnp
from jax.experimental import pallas as pl
from jax.experimental.pallas import tpu as pltpu

CMID = 256  # conv1 output channels (CorrEncoder hidden width)


def _round_up(x, m):
    return (x + m - 1) // m * m


def _pick_row_tile(h, wp, bsz, target_pixels=2048):
    """Row tile: ~target_pixels per step, but keep >= 2 grid steps overall."""
    th = max(1, min(h, target_pixels // wp))
    while bsz * ((h + th - 1) // th) < 2 and th > 1:
        th = (th + 1) // 2
    return th


# ----------------------------------------------------------------------------
# Fused kernel: conv1x1(2->256)+ReLU  ->  conv3x3(256->129)+ReLU
# Grid = (B, cdiv(H, TH)). One invocation produces TH output rows of one image
# (full padded width wp; junk columns cropped in the wrapper).
# ----------------------------------------------------------------------------
def _fused_corr_kernel(th, w, wp, h, c_out,
                       x_ref, w1_ref, b1_ref, w2_ref, b2_ref,
                       o_ref, mid_ref):
    t = pl.program_id(1)
    q = (th + 2) * wp          # pixels in the (row-tile + 1-row halo) window
    p = th * wp                # output pixels incl. junk columns [w, wp)

    # ---- conv1 (1x1, 2->256) + bias + ReLU on the VPU (f32) ----------------
    xw = x_ref[pl.ds(t * th, th + 2), :, :]              # (th+2, wp, 2) f32
    x2 = xw.reshape(q, 2)                                 # free (wp % 8 == 0)
    mid = (x2[:, 0:1] * w1_ref[0:1, :]
           + x2[:, 1:2] * w1_ref[1:2, :]
           + b1_ref[...])
    mid = jnp.maximum(mid, 0.0)                           # (q, 256) f32

    # ---- conv2 zero padding: in-kernel border mask (valid rows/cols only) --
    row_g = (jax.lax.broadcasted_iota(jnp.int32, (th + 2, wp, 1), 0)
             .reshape(q, 1) + t * th)                     # padded-global row
    col_g = (jax.lax.broadcasted_iota(jnp.int32, (th + 2, wp, 1), 1)
             .reshape(q, 1))                              # padded column
    keep = (row_g >= 1) & (row_g <= h) & (col_g >= 1) & (col_g <= w)
    mid = jnp.where(keep, mid, 0.0)

    mid_ref[pl.ds(0, q), :] = mid.astype(jnp.bfloat16)
    mid_ref[pl.ds(q, 8), :] = jnp.zeros((8, CMID), jnp.bfloat16)  # slack rows
    # NOTE: dy=2,dx=2 taps read up to row q+1; the 8 zeroed slack rows keep
    # those reads in-bounds and finite.  Preserve this if wp/tile math changes.

    # ---- conv2 (3x3, pad=1): 9 offset matmuls, single merged (256,129) W ---
    # out[r, c] = sum_{dy,dx} mid[r+dy, c+dx] @ w2[dy*3+dx]
    acc = jnp.zeros((p, c_out), jnp.float32)
    for dy in range(3):
        for dx in range(3):
            k = dy * 3 + dx
            mtap = mid_ref[pl.ds(dy * wp + dx, p), :]     # (p, 256) bf16
            acc = acc + jnp.dot(mtap, w2_ref[k],
                                preferred_element_type=jnp.float32)

    out = jnp.maximum(acc + b2_ref[...], 0.0)             # (p, 129) f32
    o_ref[...] = out.reshape(th, wp, c_out)                # dense, unmasked


# ----------------------------------------------------------------------------
# Wrapper: FpTTC's `corr = conv_corr(corr); ini_scale, corr = corr[:,:1], corr[:,1:]`
# ----------------------------------------------------------------------------
def fpttc_conv_corr_split(corr_nchw, params):
    """corr_nchw: (B, 2, H, W) f32 -> (ini_scale (B,1,H,W), corr (B,128,H,W))."""
    w1, b1, w2, b2 = params
    bsz, cin, h, w = corr_nchw.shape
    assert cin == 2, "CorrEncoder expects a 2-channel correlation input"
    c_out = w2.shape[-1]

    wp = _round_up(w + 2, 8)          # padded row stride (keeps reshapes free)
    th = _pick_row_tile(h, wp, bsz)   # output rows per grid step
    nt = (h + th - 1) // th
    q = (th + 2) * wp
    hp = nt * th + 2                  # padded input rows (halo + tail slack)

    # NCHW -> NHWC + 1-pixel halo + right/bottom pad.  Only the 2-channel raw
    # input is padded (negligible); the 256-ch intermediate stays in VMEM.
    x = jnp.transpose(corr_nchw, (0, 2, 3, 1)).astype(jnp.float32)
    x = jnp.pad(x, ((0, 0), (1, hp - h - 1), (1, wp - (w + 1)), (0, 0)))

    kernel = functools.partial(_fused_corr_kernel, th, w, wp, h, c_out)

    flops = (2 * 9 * bsz * nt * th * wp * CMID * c_out      # conv2 taps (MXU)
             + 2 * bsz * nt * q * cin * CMID)               # conv1 (VPU)
    bytes_accessed = (x.size * 4 + w1.size * 4 + b1.size * 4
                      + w2.size * 2 + b2.size * 4
                      + bsz * h * wp * c_out * 4)

    out = pl.pallas_call(
        kernel,
        out_shape=jax.ShapeDtypeStruct((bsz, h, wp, c_out), jnp.float32),
        grid_spec=pltpu.PrefetchScalarGridSpec(
            num_scalar_prefetch=0,
            grid=(bsz, nt),
            in_specs=[
                pl.BlockSpec((None, hp, wp, 2), lambda b, t: (b, 0, 0, 0)),
                pl.BlockSpec((2, CMID), lambda b, t: (0, 0)),
                pl.BlockSpec((1, CMID), lambda b, t: (0, 0)),
                pl.BlockSpec((9, CMID, c_out), lambda b, t: (0, 0, 0)),
                pl.BlockSpec((1, c_out), lambda b, t: (0, 0)),
            ],
            out_specs=pl.BlockSpec((None, th, wp, c_out),
                                   lambda b, t: (b, t, 0, 0)),
            scratch_shapes=[pltpu.VMEM((q + 8, CMID), jnp.bfloat16)],
        ),
        compiler_params=pltpu.CompilerParams(
            dimension_semantics=("parallel", "parallel")),
        cost_estimate=pl.CostEstimate(flops=flops, transcendentals=0,
                                      bytes_accessed=bytes_accessed),
    )(x, w1, b1, w2, b2)

    # Crop junk columns, go back to NCHW, split channel 0 (ini_scale).
    out = out[:, :, :w, :]
    out_nchw = jnp.transpose(out, (0, 3, 1, 2))          # (B, 129, H, W)
    return out_nchw[:, 0:1], out_nchw[:, 1:]


# ----------------------------------------------------------------------------
# Synthetic parameters (kernel layout).  For real checkpoints:
#   convc1.weight (256,2,1,1)   -> w1 = weight[:, :, 0, 0].T           (2,256) f32
#   convc1.bias   (256,)        -> b1 = bias[None, :]                  (1,256) f32
#   convc2.weight (129,256,3,3) -> w2 = weight.transpose(2,3,1,0).reshape(9,256,129) bf16
#   convc2.bias   (129,)        -> b2 = bias[None, :]                  (1,129) f32
# (output channel 0 = ini_scale, channels 1.. = corr; split in the wrapper)
# ----------------------------------------------------------------------------
def init_params(key, dim_in=2, dim_mid=CMID, dim_out=129):
    k1, k2, k3, k4 = jax.random.split(key, 4)
    s1 = 1.0 / (dim_in ** 0.5)
    s2 = 1.0 / ((dim_mid * 9) ** 0.5)
    w1 = jax.random.uniform(k1, (dim_in, dim_mid), jnp.float32, -s1, s1)
    b1 = jax.random.uniform(k2, (1, dim_mid), jnp.float32, -s1, s1)
    w2 = jax.random.uniform(k3, (9, dim_mid, dim_out), jnp.float32, -s2, s2)
    b2 = jax.random.uniform(k4, (1, dim_out), jnp.float32, -s2, s2)
    return w1, b1, w2.astype(jnp.bfloat16), b2


def _reference(corr_nchw, params):
    """Pure-JAX reference mirroring the kernel's precision (f32 conv1,
    bf16-rounded mid/weights for conv2 with f32 accumulation)."""
    w1, b1, w2, b2 = params
    x = jnp.transpose(corr_nchw, (0, 2, 3, 1)).astype(jnp.float32)
    mid = jnp.maximum(jnp.einsum('bhwc,ck->bhwk', x, w1) + b1[0], 0.0)
    mid = mid.astype(jnp.bfloat16).astype(jnp.float32)
    midp = jnp.pad(mid, ((0, 0), (1, 1), (1, 1), (0, 0)))
    bsz, h, w, _ = x.shape
    acc = jnp.zeros((bsz, h, w, w2.shape[-1]), jnp.float32)
    for dy in range(3):
        for dx in range(3):
            k = dy * 3 + dx
            patch = midp[:, dy:dy + h, dx:dx + w, :]
            acc = acc + jnp.einsum('bhwc,ck->bhwk', patch,
                                   w2[k].astype(jnp.float32))
    out = jnp.maximum(acc + b2[0], 0.0)
    out_nchw = jnp.transpose(out, (0, 3, 1, 2))
    return out_nchw[:, 0:1], out_nchw[:, 1:]


if __name__ == "__main__":
    # FpTTC defaults: feature_channels=128 -> conv_corr: 2 -> 256 -> 129 channels.
    B, Cin, H, W = 2, 2, 16, 16
    feature_channels = 128
    dim_out = feature_channels + 1

    key = jax.random.PRNGKey(0)
    kx, kp = jax.random.split(key)
    corr_in = jax.random.normal(kx, (B, Cin, H, W), jnp.float32)
    params = init_params(kp, dim_in=Cin, dim_mid=CMID, dim_out=dim_out)

    ini_scale, corr_out = jax.jit(fpttc_conv_corr_split)(corr_in, params)
    jax.block_until_ready((ini_scale, corr_out))

    ref_scale, ref_corr = _reference(corr_in, params)

    assert ini_scale.shape == (B, 1, H, W)
    assert corr_out.shape == (B, feature_channels, H, W)
    assert bool(jnp.all(jnp.isfinite(ini_scale)))
    assert bool(jnp.all(jnp.isfinite(corr_out)))
    err_s = float(jnp.max(jnp.abs(ini_scale - ref_scale)))
    err_c = float(jnp.max(jnp.abs(corr_out - ref_corr)))
    assert err_s < 5e-3 and err_c < 5e-3, (err_s, err_c)
    print("KERNEL_OK")
</pallas_src>

<mosaic_0001>
module attributes {stable_mosaic.version = 11 : i64} {
  func.func @_fused_corr_kernel(%arg0: i32, %arg1: i32, %arg2: memref<1x18x24x2xf32, #tpu.memory_space<vmem>>, %arg3: memref<2x256xf32, #tpu.memory_space<vmem>>, %arg4: memref<1x256xf32, #tpu.memory_space<vmem>>, %arg5: memref<9x256x129xbf16, #tpu.memory_space<vmem>>, %arg6: memref<1x129xf32, #tpu.memory_space<vmem>>, %arg7: memref<1x16x24x129xf32, #tpu.memory_space<vmem>>, %arg8: memref<440x256xbf16, #tpu.memory_space<vmem>>) attributes {dimension_semantics = [#tpu.dimension_semantics<parallel>, #tpu.dimension_semantics<parallel>], iteration_bounds = array<i64: 2, 1>, scalar_prefetch = 0 : i64, scratch_operands = 1 : i64, tpu.core_type = #tpu.core_type<tc>, window_params = [{transform_indices = @transform_0, window_bounds = array<i64: 1, 18, 24, 2>}, {pipeline_mode = #tpu.pipeline_mode<synchronous>, transform_indices = @transform_1, window_bounds = array<i64: 2, 256>}, {pipeline_mode = #tpu.pipeline_mode<synchronous>, transform_indices = @transform_2, window_bounds = array<i64: 1, 256>}, {pipeline_mode = #tpu.pipeline_mode<synchronous>, transform_indices = @transform_3, window_bounds = array<i64: 9, 256, 129>}, {pipeline_mode = #tpu.pipeline_mode<synchronous>, transform_indices = @transform_4, window_bounds = array<i64: 1, 129>}, {transform_indices = @transform_5, window_bounds = array<i64: 1, 16, 24, 129>}]} {
    %c16_i32 = arith.constant 16 : i32
    %0 = arith.muli %arg1, %c16_i32 : i32
    %c0 = arith.constant 0 : index
    %1 = arith.index_cast %0 : i32 to index
    %c0_0 = arith.constant 0 : index
    %c0_1 = arith.constant 0 : index
    %2 = vector.load %arg2[%c0, %1, %c0_0, %c0_1] : memref<1x18x24x2xf32, #tpu.memory_space<vmem>>, vector<1x18x24x2xf32>
    %3 = vector.shape_cast %2 : vector<1x18x24x2xf32> to vector<18x24x2xf32>
    %4 = vector.shape_cast %3 : vector<18x24x2xf32> to vector<432x2xf32>
    %5 = vector.extract_strided_slice %4 {offsets = [0, 0], sizes = [432, 1], strides = [1, 1]} : vector<432x2xf32> to vector<432x1xf32>
    %c0_2 = arith.constant 0 : index
    %c0_3 = arith.constant 0 : index
    %6 = vector.load %arg3[%c0_2, %c0_3] : memref<2x256xf32, #tpu.memory_space<vmem>>, vector<1x256xf32>
    %7 = vector.broadcast %5 : vector<432x1xf32> to vector<432x256xf32>
    %8 = vector.broadcast %6 : vector<1x256xf32> to vector<432x256xf32>
    %9 = arith.mulf %7, %8 : vector<432x256xf32>
    %10 = vector.extract_strided_slice %4 {offsets = [0, 1], sizes = [432, 1], strides = [1, 1]} : vector<432x2xf32> to vector<432x1xf32>
    %c1 = arith.constant 1 : index
    %c0_4 = arith.constant 0 : index
    %11 = vector.load %arg3[%c1, %c0_4] : memref<2x256xf32, #tpu.memory_space<vmem>>, vector<1x256xf32>
    %12 = vector.broadcast %10 : vector<432x1xf32> to vector<432x256xf32>
    %13 = vector.broadcast %11 : vector<1x256xf32> to vector<432x256xf32>
    %14 = arith.mulf %12, %13 : vector<432x256xf32>
    %15 = arith.addf %9, %14 : vector<432x256xf32>
    %c0_5 = arith.constant 0 : index
    %c0_6 = arith.constant 0 : index
    %16 = vector.load %arg4[%c0_5, %c0_6] : memref<1x256xf32, #tpu.memory_space<vmem>>, vector<1x256xf32>
    %17 = vector.broadcast %16 : vector<1x256xf32> to vector<432x256xf32>
    %18 = arith.addf %15, %17 : vector<432x256xf32>
    %cst = arith.constant 0.000000e+00 : f32
    %19 = vector.broadcast %cst : f32 to vector<432x256xf32>
    %20 = arith.maximumf %18, %19 : vector<432x256xf32>
    %21 = tpu.iota {dimensions = array<i32: 0>} : vector<18x24x1xi32>
    %22 = vector.shape_cast %21 : vector<18x24x1xi32> to vector<432x1xi32>
    %c16_i32_7 = arith.constant 16 : i32
    %23 = arith.muli %arg1, %c16_i32_7 : i32
    %24 = vector.broadcast %23 : i32 to vector<432x1xi32>
    %25 = arith.addi %22, %24 : vector<432x1xi32>
    %26 = tpu.iota {dimensions = array<i32: 1>} : vector<18x24x1xi32>
    %27 = vector.shape_cast %26 : vector<18x24x1xi32> to vector<432x1xi32>
    %c1_i32 = arith.constant 1 : i32
    %28 = vector.broadcast %c1_i32 : i32 to vector<432x1xi32>
    %29 = arith.cmpi sge, %25, %28 : vector<432x1xi32>
    %c16_i32_8 = arith.constant 16 : i32
    %30 = vector.broadcast %c16_i32_8 : i32 to vector<432x1xi32>
    %31 = arith.cmpi sle, %25, %30 : vector<432x1xi32>
    %32 = arith.andi %29, %31 : vector<432x1xi1>
    %c1_i32_9 = arith.constant 1 : i32
    %33 = vector.broadcast %c1_i32_9 : i32 to vector<432x1xi32>
    %34 = arith.cmpi sge, %27, %33 : vector<432x1xi32>
    %35 = arith.andi %32, %34 : vector<432x1xi1>
    %c16_i32_10 = arith.constant 16 : i32
    %36 = vector.broadcast %c16_i32_10 : i32 to vector<432x1xi32>
    %37 = arith.cmpi sle, %27, %36 : vector<432x1xi32>
    %38 = arith.andi %35, %37 : vector<432x1xi1>
    %cst_11 = arith.constant 0.000000e+00 : f32
    %39 = vector.shape_cast %38 : vector<432x1xi1> to vector<432x1xi1>
    %40 = vector.broadcast %39 : vector<432x1xi1> to vector<432x256xi1>
    %41 = vector.broadcast %cst_11 : f32 to vector<432x256xf32>
    %42 = arith.select %40, %20, %41 : vector<432x256xi1>, vector<432x256xf32>
    %43 = arith.truncf %42 : vector<432x256xf32> to vector<432x256xbf16>
    %c0_12 = arith.constant 0 : index
    %c0_13 = arith.constant 0 : index
    %44 = vector.load %arg8[%c0_12, %c0_13] : memref<440x256xbf16, #tpu.memory_space<vmem>>, vector<432x256xbf16>
    tpu.vector_store %arg8[%c0_12, %c0_13], %43 {strides = array<i32>} : memref<440x256xbf16, #tpu.memory_space<vmem>>, vector<432x256xbf16>,
    %cst_14 = arith.constant 0.000000e+00 : bf16
    %45 = vector.broadcast %cst_14 : bf16 to vector<8x256xbf16>
    %c432 = arith.constant 432 : index
    %c0_15 = arith.constant 0 : index
    %46 = vector.load %arg8[%c432, %c0_15] : memref<440x256xbf16, #tpu.memory_space<vmem>>, vector<8x256xbf16>
    tpu.vector_store %arg8[%c432, %c0_15], %45 {strides = array<i32>} : memref<440x256xbf16, #tpu.memory_space<vmem>>, vector<8x256xbf16>,
    %cst_16 = arith.constant 0.000000e+00 : f32
    %47 = vector.broadcast %cst_16 : f32 to vector<384x129xf32>
    %c0_17 = arith.constant 0 : index
    %c0_18 = arith.constant 0 : index
    %48 = vector.load %arg8[%c0_17, %c0_18] : memref<440x256xbf16, #tpu.memory_space<vmem>>, vector<384x256xbf16>
    %c0_19 = arith.constant 0 : index
    %c0_20 = arith.constant 0 : index
    %c0_21 = arith.constant 0 : index
    %49 = vector.load %arg5[%c0_19, %c0_20, %c0_21] : memref<9x256x129xbf16, #tpu.memory_space<vmem>>, vector<1x256x129xbf16>
    %50 = vector.shape_cast %49 : vector<1x256x129xbf16> to vector<256x129xbf16>
    %cst_22 = arith.constant dense<0.000000e+00> : vector<384x129xf32>
    %51 = tpu.matmul %48, %50, %cst_22 {dimension_numbers = #tpu.dot_dimension_numbers<[1], [0], [0], [1], [0, 0, 1, 1], [], []>} : vector<384x256xbf16>, vector<256x129xbf16>, vector<384x129xf32> -> vector<384x129xf32>
    %52 = arith.addf %47, %51 : vector<384x129xf32>
    %c1_23 = arith.constant 1 : index
    %c0_24 = arith.constant 0 : index
    %53 = vector.load %arg8[%c1_23, %c0_24] : memref<440x256xbf16, #tpu.memory_space<vmem>>, vector<384x256xbf16>
    %c1_25 = arith.constant 1 : index
    %c0_26 = arith.constant 0 : index
    %c0_27 = arith.constant 0 : index
    %54 = vector.load %arg5[%c1_25, %c0_26, %c0_27] : memref<9x256x129xbf16, #tpu.memory_space<vmem>>, vector<1x256x129xbf16>
    %55 = vector.shape_cast %54 : vector<1x256x129xbf16> to vector<256x129xbf16>
    %cst_28 = arith.constant dense<0.000000e+00> : vector<384x129xf32>
    %56 = tpu.matmul %53, %55, %cst_28 {dimension_numbers = #tpu.dot_dimension_numbers<[1], [0], [0], [1], [0, 0, 1, 1], [], []>} : vector<384x256xbf16>, vector<256x129xbf16>, vector<384x129xf32> -> vector<384x129xf32>
    %57 = arith.addf %52, %56 : vector<384x129xf32>
    %c2 = arith.constant 2 : index
    %c0_29 = arith.constant 0 : index
    %58 = vector.load %arg8[%c2, %c0_29] : memref<440x256xbf16, #tpu.memory_space<vmem>>, vector<384x256xbf16>
    %c2_30 = arith.constant 2 : index
    %c0_31 = arith.constant 0 : index
    %c0_32 = arith.constant 0 : index
    %59 = vector.load %arg5[%c2_30, %c0_31, %c0_32] : memref<9x256x129xbf16, #tpu.memory_space<vmem>>, vector<1x256x129xbf16>
    %60 = vector.shape_cast %59 : vector<1x256x129xbf16> to vector<256x129xbf16>
    %cst_33 = arith.constant dense<0.000000e+00> : vector<384x129xf32>
    %61 = tpu.matmul %58, %60, %cst_33 {dimension_numbers = #tpu.dot_dimension_numbers<[1], [0], [0], [1], [0, 0, 1, 1], [], []>} : vector<384x256xbf16>, vector<256x129xbf16>, vector<384x129xf32> -> vector<384x129xf32>
    %62 = arith.addf %57, %61 : vector<384x129xf32>
    %c24 = arith.constant 24 : index
    %c0_34 = arith.constant 0 : index
    %63 = vector.load %arg8[%c24, %c0_34] : memref<440x256xbf16, #tpu.memory_space<vmem>>, vector<384x256xbf16>
    %c3 = arith.constant 3 : index
    %c0_35 = arith.constant 0 : index
    %c0_36 = arith.constant 0 : index
    %64 = vector.load %arg5[%c3, %c0_35, %c0_36] : memref<9x256x129xbf16, #tpu.memory_space<vmem>>, vector<1x256x129xbf16>
    %65 = vector.shape_cast %64 : vector<1x256x129xbf16> to vector<256x129xbf16>
    %cst_37 = arith.constant dense<0.000000e+00> : vector<384x129xf32>
    %66 = tpu.matmul %63, %65, %cst_37 {dimension_numbers = #tpu.dot_dimension_numbers<[1], [0], [0], [1], [0, 0, 1, 1], [], []>} : vector<384x256xbf16>, vector<256x129xbf16>, vector<384x129xf32> -> vector<384x129xf32>
    %67 = arith.addf %62, %66 : vector<384x129xf32>
    %c25 = arith.constant 25 : index
    %c0_38 = arith.constant 0 : index
    %68 = vector.load %arg8[%c25, %c0_38] : memref<440x256xbf16, #tpu.memory_space<vmem>>, vector<384x256xbf16>
    %c4 = arith.constant 4 : index
    %c0_39 = arith.constant 0 : index
    %c0_40 = arith.constant 0 : index
    %69 = vector.load %arg5[%c4, %c0_39, %c0_40] : memref<9x256x129xbf16, #tpu.memory_space<vmem>>, vector<1x256x129xbf16>
    %70 = vector.shape_cast %69 : vector<1x256x129xbf16> to vector<256x129xbf16>
    %cst_41 = arith.constant dense<0.000000e+00> : vector<384x129xf32>
    %71 = tpu.matmul %68, %70, %cst_41 {dimension_numbers = #tpu.dot_dimension_numbers<[1], [0], [0], [1], [0, 0, 1, 1], [], []>} : vector<384x256xbf16>, vector<256x129xbf16>, vector<384x129xf32> -> vector<384x129xf32>
    %72 = arith.addf %67, %71 : vector<384x129xf32>
    %c26 = arith.constant 26 : index
    %c0_42 = arith.constant 0 : index
    %73 = vector.load %arg8[%c26, %c0_42] : memref<440x256xbf16, #tpu.memory_space<vmem>>, vector<384x256xbf16>
    %c5 = arith.constant 5 : index
    %c0_43 = arith.constant 0 : index
    %c0_44 = arith.constant 0 : index
    %74 = vector.load %arg5[%c5, %c0_43, %c0_44] : memref<9x256x129xbf16, #tpu.memory_space<vmem>>, vector<1x256x129xbf16>
    %75 = vector.shape_cast %74 : vector<1x256x129xbf16> to vector<256x129xbf16>
    %cst_45 = arith.constant dense<0.000000e+00> : vector<384x129xf32>
    %76 = tpu.matmul %73, %75, %cst_45 {dimension_numbers = #tpu.dot_dimension_numbers<[1], [0], [0], [1], [0, 0, 1, 1], [], []>} : vector<384x256xbf16>, vector<256x129xbf16>, vector<384x129xf32> -> vector<384x129xf32>
    %77 = arith.addf %72, %76 : vector<384x129xf32>
    %c48 = arith.constant 48 : index
    %c0_46 = arith.constant 0 : index
    %78 = vector.load %arg8[%c48, %c0_46] : memref<440x256xbf16, #tpu.memory_space<vmem>>, vector<384x256xbf16>
    %c6 = arith.constant 6 : index
    %c0_47 = arith.constant 0 : index
    %c0_48 = arith.constant 0 : index
    %79 = vector.load %arg5[%c6, %c0_47, %c0_48] : memref<9x256x129xbf16, #tpu.memory_space<vmem>>, vector<1x256x129xbf16>
    %80 = vector.shape_cast %79 : vector<1x256x129xbf16> to vector<256x129xbf16>
    %cst_49 = arith.constant dense<0.000000e+00> : vector<384x129xf32>
    %81 = tpu.matmul %78, %80, %cst_49 {dimension_numbers = #tpu.dot_dimension_numbers<[1], [0], [0], [1], [0, 0, 1, 1], [], []>} : vector<384x256xbf16>, vector<256x129xbf16>, vector<384x129xf32> -> vector<384x129xf32>
    %82 = arith.addf %77, %81 : vector<384x129xf32>
    %c49 = arith.constant 49 : index
    %c0_50 = arith.constant 0 : index
    %83 = vector.load %arg8[%c49, %c0_50] : memref<440x256xbf16, #tpu.memory_space<vmem>>, vector<384x256xbf16>
    %c7 = arith.constant 7 : index
    %c0_51 = arith.constant 0 : index
    %c0_52 = arith.constant 0 : index
    %84 = vector.load %arg5[%c7, %c0_51, %c0_52] : memref<9x256x129xbf16, #tpu.memory_space<vmem>>, vector<1x256x129xbf16>
    %85 = vector.shape_cast %84 : vector<1x256x129xbf16> to vector<256x129xbf16>
    %cst_53 = arith.constant dense<0.000000e+00> : vector<384x129xf32>
    %86 = tpu.matmul %83, %85, %cst_53 {dimension_numbers = #tpu.dot_dimension_numbers<[1], [0], [0], [1], [0, 0, 1, 1], [], []>} : vector<384x256xbf16>, vector<256x129xbf16>, vector<384x129xf32> -> vector<384x129xf32>
    %87 = arith.addf %82, %86 : vector<384x129xf32>
    %c50 = arith.constant 50 : index
    %c0_54 = arith.constant 0 : index
    %88 = vector.load %arg8[%c50, %c0_54] : memref<440x256xbf16, #tpu.memory_space<vmem>>, vector<384x256xbf16>
    %c8 = arith.constant 8 : index
    %c0_55 = arith.constant 0 : index
    %c0_56 = arith.constant 0 : index
    %89 = vector.load %arg5[%c8, %c0_55, %c0_56] : memref<9x256x129xbf16, #tpu.memory_space<vmem>>, vector<1x256x129xbf16>
    %90 = vector.shape_cast %89 : vector<1x256x129xbf16> to vector<256x129xbf16>
    %cst_57 = arith.constant dense<0.000000e+00> : vector<384x129xf32>
    %91 = tpu.matmul %88, %90, %cst_57 {dimension_numbers = #tpu.dot_dimension_numbers<[1], [0], [0], [1], [0, 0, 1, 1], [], []>} : vector<384x256xbf16>, vector<256x129xbf16>, vector<384x129xf32> -> vector<384x129xf32>
    %92 = arith.addf %87, %91 : vector<384x129xf32>
    %c0_58 = arith.constant 0 : index
    %c0_59 = arith.constant 0 : index
    %93 = vector.load %arg6[%c0_58, %c0_59] : memref<1x129xf32, #tpu.memory_space<vmem>>, vector<1x129xf32>
    %94 = vector.broadcast %93 : vector<1x129xf32> to vector<384x129xf32>
    %95 = arith.addf %92, %94 : vector<384x129xf32>
    %cst_60 = arith.constant 0.000000e+00 : f32
    %96 = vector.broadcast %cst_60 : f32 to vector<384x129xf32>
    %97 = arith.maximumf %95, %96 : vector<384x129xf32>
    %98 = vector.shape_cast %97 : vector<384x129xf32> to vector<16x24x129xf32>
    %c0_61 = arith.constant 0 : index
    %c0_62 = arith.constant 0 : index
    %c0_63 = arith.constant 0 : index
    %c0_64 = arith.constant 0 : index
    %99 = vector.load %arg7[%c0_61, %c0_62, %c0_63, %c0_64] : memref<1x16x24x129xf32, #tpu.memory_space<vmem>>, vector<1x16x24x129xf32>
    %100 = vector.shape_cast %99 : vector<1x16x24x129xf32> to vector<16x24x129xf32>
    %101 = vector.shape_cast %98 : vector<16x24x129xf32> to vector<1x16x24x129xf32>
    tpu.vector_store %arg7[%c0_61, %c0_62, %c0_63, %c0_64], %101 {strides = array<i32>} : memref<1x16x24x129xf32, #tpu.memory_space<vmem>>, vector<1x16x24x129xf32>,
    return
  }
  func.func @transform_0(%arg0: i32, %arg1: i32) -> (i32, i32, i32, i32) {
    %c0_i32 = arith.constant 0 : i32
    %c0_i32_0 = arith.constant 0 : i32
    %c0_i32_1 = arith.constant 0 : i32
    %c0_i32_2 = arith.constant 0 : i32
    return %arg0, %c0_i32, %c0_i32_0, %c0_i32_1 : i32, i32, i32, i32
  }
  func.func @transform_1(%arg0: i32, %arg1: i32) -> (i32, i32) {
    %c0_i32 = arith.constant 0 : i32
    %c0_i32_0 = arith.constant 0 : i32
    %c0_i32_1 = arith.constant 0 : i32
    return %c0_i32, %c0_i32_0 : i32, i32
  }
  func.func @transform_2(%arg0: i32, %arg1: i32) -> (i32, i32) {
    %c0_i32 = arith.constant 0 : i32
    %c0_i32_0 = arith.constant 0 : i32
    %c0_i32_1 = arith.constant 0 : i32
    return %c0_i32, %c0_i32_0 : i32, i32
  }
  func.func @transform_3(%arg0: i32, %arg1: i32) -> (i32, i32, i32) {
    %c0_i32 = arith.constant 0 : i32
    %c0_i32_0 = arith.constant 0 : i32
    %c0_i32_1 = arith.constant 0 : i32
    %c0_i32_2 = arith.constant 0 : i32
    return %c0_i32, %c0_i32_0, %c0_i32_1 : i32, i32, i32
  }
  func.func @transform_4(%arg0: i32, %arg1: i32) -> (i32, i32) {
    %c0_i32 = arith.constant 0 : i32
    %c0_i32_0 = arith.constant 0 : i32
    %c0_i32_1 = arith.constant 0 : i32
    return %c0_i32, %c0_i32_0 : i32, i32
  }
  func.func @transform_5(%arg0: i32, %arg1: i32) -> (i32, i32, i32, i32) {
    %c0_i32 = arith.constant 0 : i32
    %c0_i32_0 = arith.constant 0 : i32
    %c0_i32_1 = arith.constant 0 : i32
    return %arg0, %arg1, %c0_i32, %c0_i32_0 : i32, i32, i32, i32
  }
}

</mosaic_0001>

<llo_original>
// kernel: fpttc_conv_corr_split.1
$region0: #{fpttc_conv_corr_split.1}
  #allocation0 [shape = 'u32[]', space=smem, size = 0x4, offset = 0x4, fixed_abs, tag = 'smem constant byte address 0x4 - core index']
  #allocation1 [shape = 'u32[144,128]{1,0:T(1,128)}', space=vmem, size = 0x12000, scoped, tag = 'internal scratch']
  #allocation2 [shape = 'bf16[440,256]{1,0:T(8,128)(2,1)}', space=vmem, size = 0x37000, scoped, tag = 'scratch operand']
  %s0 = inlined_call_operand.vmem [shape: f32[2,18,24,2], index: 0, kind: input, shape index: {}]
  %s1 = inlined_call_operand.vmem [shape: f32[2,256], index: 1, kind: input, shape index: {}]
  %s2 = inlined_call_operand.vmem [shape: f32[1,256], index: 2, kind: input, shape index: {}]
  %s3 = inlined_call_operand.vmem [shape: bf16[9,256,129], index: 3, kind: input, shape index: {}]
  %s4 = inlined_call_operand.vmem [shape: f32[1,129], index: 4, kind: input, shape index: {}]
  %s5 = inlined_call_operand.vmem [shape: f32[2,16,24,129], index: 5, kind: output, shape index: {}]
  %s6 = sld [smem:[#allocation0]]
  $region53: #{fpttc_conv_corr_split.1} parent=0
    _
  %s8 = ssub.s32 1, %s6
  %s9 = scalar_select 0, %s8, %s6
  loop: start=0, step=1, limit=4
  $region2: #{fpttc_conv_corr_split.1} parent=0 // loop_pre_header
    _
  $region3: #{fpttc_conv_corr_split.1} parent=0 // loop_header
    %s11 = sphi 0, %s15
    %p12 = scmp.ge.s32.totalorder %s11, 4
    %s18 = sphi 0, %s30
    %s19 = sphi 0, %s26
    %s20 = sphi 0, %s18
    %s21 = sphi 0, %s19
    %s22 = sphi 0, %s20
    %s23 = sphi 0, %s21
    %s33 = sphi 0, %s35
    %s36 = sphi 0, %s33
    %s37 = sphi 0, %s36
    %s53 = sphi 0, %s37
    %s57 = sphi 0, %s57
    %s59 = sphi 0, %s57
    %s60 = sphi 0, %s59
    %s74 = sphi 0, %s60
    %s78 = sphi 0, %s78
    %s80 = sphi 0, %s78
    %s81 = sphi 0, %s80
    %s95 = sphi 0, %s81
    %s99 = sphi 0, %s99
    %s101 = sphi 0, %s99
    %s102 = sphi 0, %s101
    %s116 = sphi 0, %s102
    %s120 = sphi 0, %s120
    %s122 = sphi 0, %s120
    %s123 = sphi 0, %s122
    %s137 = sphi 0, %s123
    %s145 = sphi 0, %s147
    %s148 = sphi 0, %s145
    %s149 = sphi 0, %s148
    %s165 = sphi 0, %s149
  $region4: #{fpttc_conv_corr_split.1} parent=0 // loop_header_branch
    %14 = sbr.rel (%p12) target = $region8
  $region5: #{fpttc_conv_corr_split.1} parent=0 // loop_body
    %s16 = ssub.s32 %s11, 1
    %s17 = ssub.s32 %s11, 2
    %s24 = sadd.s32 1, %s19
    %p25 = scmp.ge.s32.totalorder %s24, 1
    %s26 = scalar_select %p25, 0, %s24
    %s27 = sadd.s32 1, %s18
    %s28 = scalar_select %p25, %s27, %s18
    %p29 = scmp.ge.s32.totalorder %s28, 2
    %s30 = scalar_select %p29, 0, %s28
    %s31 = ssub.s32 %s18, %s30
    %p32 = scmp.eq.s32.totalorder %s31, 0
    %s34 = sadd.s32 %s33, 1
    %s35 = scalar_select %p32, %s33, %s34
    %p38 = pneg %p32
    %p39 = scmp.eq.s32.totalorder %s11, 1
    %p40 = por %p38, %p39
    %p41 = scmp.ne.s32.totalorder %s33, %s36
    %p42 = scmp.eq.s32.totalorder %s11, 0
    %p43 = por %p41, %p42
    %p44 = scmp.ne.s32.totalorder %s33, %s36
    %p45 = scmp.eq.s32.totalorder %s16, 1
    %p46 = por %p44, %p45
    %p47 = scmp.ne.s32.totalorder %s36, %s37
    %p48 = scmp.eq.s32.totalorder %s16, 0
    %p49 = por %p47, %p48
    %p50 = scmp.ne.s32.totalorder %s36, %s37
    %p51 = scmp.eq.s32.totalorder %s17, 1
    %p52 = por %p50, %p51
    %p54 = scmp.ne.s32.totalorder %s37, %s53
    %p55 = scmp.eq.s32.totalorder %s17, 0
    %p56 = por %p54, %p55
    %s58 = sadd.s32 %s57, 1
    %p61 = scmp.eq.s32.totalorder %s11, 1
    %p62 = scmp.ne.s32.totalorder %s57, %s59
    %p63 = scmp.eq.s32.totalorder %s11, 0
    %p64 = por %p62, %p63
    %p65 = scmp.ne.s32.totalorder %s57, %s59
    %p66 = scmp.eq.s32.totalorder %s16, 1
    %p67 = por %p65, %p66
    %p68 = scmp.ne.s32.totalorder %s59, %s60
    %p69 = scmp.eq.s32.totalorder %s16, 0
    %p70 = por %p68, %p69
    %p71 = scmp.ne.s32.totalorder %s59, %s60
    %p72 = scmp.eq.s32.totalorder %s17, 1
    %p73 = por %p71, %p72
    %p75 = scmp.ne.s32.totalorder %s60, %s74
    %p76 = scmp.eq.s32.totalorder %s17, 0
    %p77 = por %p75, %p76
    %s79 = sadd.s32 %s78, 1
    %p82 = scmp.eq.s32.totalorder %s11, 1
    %p83 = scmp.ne.s32.totalorder %s78, %s80
    %p84 = scmp.eq.s32.totalorder %s11, 0
    %p85 = por %p83, %p84
    %p86 = scmp.ne.s32.totalorder %s78, %s80
    %p87 = scmp.eq.s32.totalorder %s16, 1
    %p88 = por %p86, %p87
    %p89 = scmp.ne.s32.totalorder %s80, %s81
    %p90 = scmp.eq.s32.totalorder %s16, 0
    %p91 = por %p89, %p90
    %p92 = scmp.ne.s32.totalorder %s80, %s81
    %p93 = scmp.eq.s32.totalorder %s17, 1
    %p94 = por %p92, %p93
    %p96 = scmp.ne.s32.totalorder %s81, %s95
    %p97 = scmp.eq.s32.totalorder %s17, 0
    %p98 = por %p96, %p97
    %s100 = sadd.s32 %s99, 1
    %p103 = scmp.eq.s32.totalorder %s11, 1
    %p104 = scmp.ne.s32.totalorder %s99, %s101
    %p105 = scmp.eq.s32.totalorder %s11, 0
    %p106 = por %p104, %p105
    %p107 = scmp.ne.s32.totalorder %s99, %s101
    %p108 = scmp.eq.s32.totalorder %s16, 1
    %p109 = por %p107, %p108
    %p110 = scmp.ne.s32.totalorder %s101, %s102
    %p111 = scmp.eq.s32.totalorder %s16, 0
    %p112 = por %p110, %p111
    %p113 = scmp.ne.s32.totalorder %s101, %s102
    %p114 = scmp.eq.s32.totalorder %s17, 1
    %p115 = por %p113, %p114
    %p117 = scmp.ne.s32.totalorder %s102, %s116
    %p118 = scmp.eq.s32.totalorder %s17, 0
    %p119 = por %p117, %p118
    %s121 = sadd.s32 %s120, 1
    %p124 = scmp.eq.s32.totalorder %s11, 1
    %p125 = scmp.ne.s32.totalorder %s120, %s122
    %p126 = scmp.eq.s32.totalorder %s11, 0
    %p127 = por %p125, %p126
    %p128 = scmp.ne.s32.totalorder %s120, %s122
    %p129 = scmp.eq.s32.totalorder %s16, 1
    %p130 = por %p128, %p129
    %p131 = scmp.ne.s32.totalorder %s122, %s123
    %p132 = scmp.eq.s32.totalorder %s16, 0
    %p133 = por %p131, %p132
    %p134 = scmp.ne.s32.totalorder %s122, %s123
    %p135 = scmp.eq.s32.totalorder %s17, 1
    %p136 = por %p134, %p135
    %p138 = scmp.ne.s32.totalorder %s123, %s137
    %p139 = scmp.eq.s32.totalorder %s17, 0
    %p140 = por %p138, %p139
    %s141 = ssub.s32 %s18, %s30
    %s142 = ssub.s32 %s19, %s26
    %s143 = sor.u32 %s141, %s142
    %p144 = scmp.eq.s32.totalorder %s143, 0
    %s146 = sadd.s32 %s145, 1
    %s147 = scalar_select %p144, %s145, %s146
    %p150 = pneg %p144
    %p151 = scmp.eq.s32.totalorder %s11, 1
    %p152 = por %p150, %p151
    %p153 = scmp.ne.s32.totalorder %s145, %s148
    %p154 = scmp.eq.s32.totalorder %s11, 0
    %p155 = por %p153, %p154
    %p156 = scmp.ne.s32.totalorder %s145, %s148
    %p157 = scmp.eq.s32.totalorder %s16, 1
    %p158 = por %p156, %p157
    %p159 = scmp.ne.s32.totalorder %s148, %s149
    %p160 = scmp.eq.s32.totalorder %s16, 0
    %p161 = por %p159, %p160
    %p162 = scmp.ne.s32.totalorder %s148, %s149
    %p163 = scmp.eq.s32.totalorder %s17, 1
    %p164 = por %p162, %p163
    %p166 = scmp.ne.s32.totalorder %s149, %s165
    %p167 = scmp.eq.s32.totalorder %s17, 0
    %p168 = por %p166, %p167
    %p169 = scmp.le.s32.totalorder 1, %s11
    %p170 = scmp.lt.s32.totalorder %s11, 3
    %p171 = pnand %p169, %p170
    %p172 = pneg %p171
    // Predicated region
    $region9: #{fpttc_conv_corr_split.1} parent=5 // pred_check
      _
    $region10: #{fpttc_conv_corr_split.1} parent=5 // pred_check_branch
      %174 = sbr.rel (%p171) target = $region12
    $region11: #{fpttc_conv_corr_split.1} parent=5 // pred_region
      %s175 = ssub.s32 %s11, 1
      // Predicated region
      $region13: #{fpttc_conv_corr_split.1} parent=11 // pred_check
        %p176 = pneg %p70
      $region14: #{fpttc_conv_corr_split.1} parent=11 // pred_check_branch
        %178 = sbr.rel (%p176) target = $region16
      $region15: #{fpttc_conv_corr_split.1} parent=11 // pred_region
        _
      $region16: #{fpttc_conv_corr_split.1} parent=11 // pred_fallthru
        _
      // Predicated region
      $region17: #{fpttc_conv_corr_split.1} parent=11 // pred_check
        %p179 = pneg %p91
      $region18: #{fpttc_conv_corr_split.1} parent=11 // pred_check_branch
        %181 = sbr.rel (%p179) target = $region20
      $region19: #{fpttc_conv_corr_split.1} parent=11 // pred_region
        _
      $region20: #{fpttc_conv_corr_split.1} parent=11 // pred_fallthru
        _
      // Predicated region
      $region21: #{fpttc_conv_corr_split.1} parent=11 // pred_check
        %p182 = pneg %p112
      $region22: #{fpttc_conv_corr_split.1} parent=11 // pred_check_branch
        %184 = sbr.rel (%p182) target = $region24
      $region23: #{fpttc_conv_corr_split.1} parent=11 // pred_region
        _
      $region24: #{fpttc_conv_corr_split.1} parent=11 // pred_fallthru
        _
      // Predicated region
      $region25: #{fpttc_conv_corr_split.1} parent=11 // pred_check
        %p185 = pneg %p133
      $region26: #{fpttc_conv_corr_split.1} parent=11 // pred_check_branch
        %187 = sbr.rel (%p185) target = $region28
      $region27: #{fpttc_conv_corr_split.1} parent=11 // pred_region
        _
      $region28: #{fpttc_conv_corr_split.1} parent=11 // pred_fallthru
        _
    $region12: #{fpttc_conv_corr_split.1} parent=5 // pred_fallthru
      _
    %p188 = scmp.lt.s32.totalorder %s11, 2
    // Predicated region
    $region29: #{fpttc_conv_corr_split.1} parent=5 // pred_check
      %p189 = pneg %p188
    $region30: #{fpttc_conv_corr_split.1} parent=5 // pred_check_branch
      %191 = sbr.rel (%p189) target = $region32
    $region31: #{fpttc_conv_corr_split.1} parent=5 // pred_region
      // Predicated region
      $region33: #{fpttc_conv_corr_split.1} parent=31 // pred_check
        %p192 = pneg %p43
      $region34: #{fpttc_conv_corr_split.1} parent=31 // pred_check_branch
        %194 = sbr.rel (%p192) target = $region36
      $region35: #{fpttc_conv_corr_split.1} parent=31 // pred_region
        %p195 = scmp.lt.s32.totalorder %s18, 1
        %s196 = scalar_select %p195, %s18, 1
        %s197 = smul.addr %s196, 54
        %s198 = smul.addr %s197, 8
        %s199 = scalar_lea.vmem %s0, %s198
      $region36: #{fpttc_conv_corr_split.1} parent=31 // pred_fallthru
        _
    $region32: #{fpttc_conv_corr_split.1} parent=5 // pred_fallthru
      _
    %p200 = scmp.le.s32.totalorder 1, %s11
    %p201 = scmp.lt.s32.totalorder %s11, 3
    %p202 = pnand %p200, %p201
    %p203 = pneg %p202
    // Predicated region
    $region37: #{fpttc_conv_corr_split.1} parent=5 // pred_check
      _
    $region38: #{fpttc_conv_corr_split.1} parent=5 // pred_check_branch
      %205 = sbr.rel (%p202) target = $region40
    $region39: #{fpttc_conv_corr_split.1} parent=5 // pred_region
      %s206 = ssub.s32 %s11, 1
      %p207 = scmp.lt.s32.totalorder %s20, 1
      %s208 = scalar_select %p207, %s20, 1
      %s209 = smul.addr %s208, 54
      %s210 = smul.addr %s209, 8
      %s211 = scalar_lea.vmem %s0, %s210
      %p212 = pneg %p49
      %p213 = pneg %p46
      %p214 = pneg %p70
      %p215 = pneg %p67
      %p216 = pneg %p91
      %p217 = pneg %p88
      %p218 = pneg %p112
      %p219 = pneg %p109
      %p220 = pneg %p133
      %p221 = pneg %p130
      %p222 = pneg %p161
      %p223 = pneg %p158
      %s224 = smul.u32 16, %s21
      %p225 = scmp.lt.s32.totalorder %s20, 1
      %s226 = scalar_select %p225, %s20, 1
      %p227 = scmp.lt.s32.totalorder %s224, 15
      %s228 = scalar_select %p227, %s224, 15
      %s229 = smul.addr %s228, 6
      %s230 = smul.addr %s226, 96
      %s231 = sadd.s32 %s229, %s230
      %s232 = smul.addr %s231, 8
      %s233 = scalar_lea.vmem %s5, %s232
      %p234 = scmp.lt.s32.totalorder %s20, 1
      %s235 = scalar_select %p234, %s20, 1
      %s236 = smul.addr %s235, 54
      %s237 = smul.addr %s236, 8
      %s238 = scalar_lea.vmem %s0, %s237
      %s239 = smul.u32 16, %s21
      %p240 = scmp.lt.s32.totalorder %s20, 1
      %s241 = scalar_select %p240, %s20, 1
      %p242 = scmp.lt.s32.totalorder %s239, 15
      %s243 = scalar_select %p242, %s239, 15
      %s244 = smul.addr %s243, 6
      %s245 = smul.addr %s241, 96
      %s246 = sadd.s32 %s244, %s245
      %s247 = smul.addr %s246, 8
      %s248 = scalar_lea.vmem %s5, %s247
      %s249 = smul.u32 16, %s21
      %s251 = smul.u32 %s21, 16
      %s252 = smul.u32 %s251, 24
      %s253 = scalar_lea.vmem %s238, %s252
      %v254 = vld [vmem:[%s253] sm:$0xff]
      %v255 = vld [vmem:[%s253 + $0x8] sm:$0xff]
      %v256 = vld [vmem:[%s253 + $0x10] sm:$0xff]
      %v257 = vld [vmem:[%s253 + $0x18] sm:$0xff]
      %v258 = vld [vmem:[%s253 + $0x20] sm:$0xff]
      %v259 = vld [vmem:[%s253 + $0x28] sm:$0xff]
      %v260 = vld [vmem:[%s253 + $0x30] sm:$0xff]
      %v261 = vld [vmem:[%s253 + $0x38] sm:$0xff]
      %v262 = vld [vmem:[%s253 + $0x40] sm:$0xff]
      %v263 = vld [vmem:[%s253 + $0x48] sm:$0xff]
      %v264 = vld [vmem:[%s253 + $0x50] sm:$0xff]
      %v265 = vld [vmem:[%s253 + $0x58] sm:$0xff]
      %v266 = vld [vmem:[%s253 + $0x60] sm:$0xff]
      %v267 = vld [vmem:[%s253 + $0x68] sm:$0xff]
      %v268 = vld [vmem:[%s253 + $0x70] sm:$0xff]
      %v269 = vld [vmem:[%s253 + $0x78] sm:$0xff]
      %v270 = vld [vmem:[%s253 + $0x80] sm:$0xff]
      %v271 = vld [vmem:[%s253 + $0x88] sm:$0xff]
      %v272 = vld [vmem:[%s253 + $0x90] sm:$0xff]
      %v273 = vld [vmem:[%s253 + $0x98] sm:$0xff]
      %v274 = vld [vmem:[%s253 + $0xa0] sm:$0xff]
      %v275 = vld [vmem:[%s253 + $0xa8] sm:$0xff]
      %v276 = vld [vmem:[%s253 + $0xb0] sm:$0xff]
      %v277 = vld [vmem:[%s253 + $0xb8] sm:$0xff]
      %v278 = vld [vmem:[%s253 + $0xc0] sm:$0xff]
      %v279 = vld [vmem:[%s253 + $0xc8] sm:$0xff]
      %v280 = vld [vmem:[%s253 + $0xd0] sm:$0xff]
      %v281 = vld [vmem:[%s253 + $0xd8] sm:$0xff]
      %v282 = vld [vmem:[%s253 + $0xe0] sm:$0xff]
      %v283 = vld [vmem:[%s253 + $0xe8] sm:$0xff]
      %v284 = vld [vmem:[%s253 + $0xf0] sm:$0xff]
      %v285 = vld [vmem:[%s253 + $0xf8] sm:$0xff]
      %v286 = vld [vmem:[%s253 + $0x100] sm:$0xff]
      %v287 = vld [vmem:[%s253 + $0x108] sm:$0xff]
      %v288 = vld [vmem:[%s253 + $0x110] sm:$0xff]
      %v289 = vld [vmem:[%s253 + $0x118] sm:$0xff]
      %v290 = vld [vmem:[%s253 + $0x120] sm:$0xff]
      %v291 = vld [vmem:[%s253 + $0x128] sm:$0xff]
      %v292 = vld [vmem:[%s253 + $0x130] sm:$0xff]
      %v293 = vld [vmem:[%s253 + $0x138] sm:$0xff]
      %v294 = vld [vmem:[%s253 + $0x140] sm:$0xff]
      %v295 = vld [vmem:[%s253 + $0x148] sm:$0xff]
      %v296 = vld [vmem:[%s253 + $0x150] sm:$0xff]
      %v297 = vld [vmem:[%s253 + $0x158] sm:$0xff]
      %v298 = vld [vmem:[%s253 + $0x160] sm:$0xff]
      %v299 = vld [vmem:[%s253 + $0x168] sm:$0xff]
      %v300 = vld [vmem:[%s253 + $0x170] sm:$0xff]
      %v301 = vld [vmem:[%s253 + $0x178] sm:$0xff]
      %v302 = vld [vmem:[%s253 + $0x180] sm:$0xff]
      %v303 = vld [vmem:[%s253 + $0x188] sm:$0xff]
      %v304 = vld [vmem:[%s253 + $0x190] sm:$0xff]
      %v305 = vld [vmem:[%s253 + $0x198] sm:$0xff]
      %v306 = vld [vmem:[%s253 + $0x1a0] sm:$0xff]
      %v307 = vld [vmem:[%s253 + $0x1a8] sm:$0xff]
      %v308 = vld [vmem:[%s1] ss:$2 sm:$0x3]
      %310 = vset.pattern.permute.xlu0 0
      %311 = vperm.xlu0 %310, %v254
      %v312 = vpop.permute.xlu0 %311
      %315 = vset.pattern.permute.xlu0 0
      %316 = vperm.xlu0 %315, %v255
      %v317 = vpop.permute.xlu0 %316
      %320 = vset.pattern.permute.xlu0 0
      %321 = vperm.xlu0 %320, %v256
      %v322 = vpop.permute.xlu0 %321
      %325 = vset.pattern.permute.xlu0 0
      %326 = vperm.xlu0 %325, %v257
      %v327 = vpop.permute.xlu0 %326
      %330 = vset.pattern.permute.xlu0 0
      %331 = vperm.xlu0 %330, %v258
      %v332 = vpop.permute.xlu0 %331
      %335 = vset.pattern.permute.xlu0 0
      %336 = vperm.xlu0 %335, %v259
      %v337 = vpop.permute.xlu0 %336
      %340 = vset.pattern.permute.xlu0 0
      %341 = vperm.xlu0 %340, %v260
      %v342 = vpop.permute.xlu0 %341
      %345 = vset.pattern.permute.xlu0 0
      %346 = vperm.xlu0 %345, %v261
      %v347 = vpop.permute.xlu0 %346
      %350 = vset.pattern.permute.xlu0 0
      %351 = vperm.xlu0 %350, %v262
      %v352 = vpop.permute.xlu0 %351
      %355 = vset.pattern.permute.xlu0 0
      %356 = vperm.xlu0 %355, %v263
      %v357 = vpop.permute.xlu0 %356
      %360 = vset.pattern.permute.xlu0 0
      %361 = vperm.xlu0 %360, %v264
      %v362 = vpop.permute.xlu0 %361
      %365 = vset.pattern.permute.xlu0 0
      %366 = vperm.xlu0 %365, %v265
      %v367 = vpop.permute.xlu0 %366
      %370 = vset.pattern.permute.xlu0 0
      %371 = vperm.xlu0 %370, %v266
      %v372 = vpop.permute.xlu0 %371
      %375 = vset.pattern.permute.xlu0 0
      %376 = vperm.xlu0 %375, %v267
      %v377 = vpop.permute.xlu0 %376
      %380 = vset.pattern.permute.xlu0 0
      %381 = vperm.xlu0 %380, %v268
      %v382 = vpop.permute.xlu0 %381
      %385 = vset.pattern.permute.xlu0 0
      %386 = vperm.xlu0 %385, %v269
      %v387 = vpop.permute.xlu0 %386
      %390 = vset.pattern.permute.xlu0 0
      %391 = vperm.xlu0 %390, %v270
      %v392 = vpop.permute.xlu0 %391
      %395 = vset.pattern.permute.xlu0 0
      %396 = vperm.xlu0 %395, %v271
      %v397 = vpop.permute.xlu0 %396
      %400 = vset.pattern.permute.xlu0 0
      %401 = vperm.xlu0 %400, %v272
      %v402 = vpop.permute.xlu0 %401
      %405 = vset.pattern.permute.xlu0 0
      %406 = vperm.xlu0 %405, %v273
      %v407 = vpop.permute.xlu0 %406
      %410 = vset.pattern.permute.xlu0 0
      %411 = vperm.xlu0 %410, %v274
      %v412 = vpop.permute.xlu0 %411
      %415 = vset.pattern.permute.xlu0 0
      %416 = vperm.xlu0 %415, %v275
      %v417 = vpop.permute.xlu0 %416
      %420 = vset.pattern.permute.xlu0 0
      %421 = vperm.xlu0 %420, %v276
      %v422 = vpop.permute.xlu0 %421
      %425 = vset.pattern.permute.xlu0 0
      %426 = vperm.xlu0 %425, %v277
      %v427 = vpop.permute.xlu0 %426
      %430 = vset.pattern.permute.xlu0 0
      %431 = vperm.xlu0 %430, %v278
      %v432 = vpop.permute.xlu0 %431
      %435 = vset.pattern.permute.xlu0 0
      %436 = vperm.xlu0 %435, %v279
      %v437 = vpop.permute.xlu0 %436
      %440 = vset.pattern.permute.xlu0 0
      %441 = vperm.xlu0 %440, %v280
      %v442 = vpop.permute.xlu0 %441
      %445 = vset.pattern.permute.xlu0 0
      %446 = vperm.xlu0 %445, %v281
      %v447 = vpop.permute.xlu0 %446
      %450 = vset.pattern.permute.xlu0 0
      %451 = vperm.xlu0 %450, %v282
      %v452 = vpop.permute.xlu0 %451
      %455 = vset.pattern.permute.xlu0 0
      %456 = vperm.xlu0 %455, %v283
      %v457 = vpop.permute.xlu0 %456
      %460 = vset.pattern.permute.xlu0 0
      %461 = vperm.xlu0 %460, %v284
      %v462 = vpop.permute.xlu0 %461
      %465 = vset.pattern.permute.xlu0 0
      %466 = vperm.xlu0 %465, %v285
      %v467 = vpop.permute.xlu0 %466
      %470 = vset.pattern.permute.xlu0 0
      %471 = vperm.xlu0 %470, %v286
      %v472 = vpop.permute.xlu0 %471
      %475 = vset.pattern.permute.xlu0 0
      %476 = vperm.xlu0 %475, %v287
      %v477 = vpop.permute.xlu0 %476
      %480 = vset.pattern.permute.xlu0 0
      %481 = vperm.xlu0 %480, %v288
      %v482 = vpop.permute.xlu0 %481
      %485 = vset.pattern.permute.xlu0 0
      %486 = vperm.xlu0 %485, %v289
      %v487 = vpop.permute.xlu0 %486
      %490 = vset.pattern.permute.xlu0 0
      %491 = vperm.xlu0 %490, %v290
      %v492 = vpop.permute.xlu0 %491
      %495 = vset.pattern.permute.xlu0 0
      %496 = vperm.xlu0 %495, %v291
      %v497 = vpop.permute.xlu0 %496
      %500 = vset.pattern.permute.xlu0 0
      %501 = vperm.xlu0 %500, %v292
      %v502 = vpop.permute.xlu0 %501
      %505 = vset.pattern.permute.xlu0 0
      %506 = vperm.xlu0 %505, %v293
      %v507 = vpop.permute.xlu0 %506
      %510 = vset.pattern.permute.xlu0 0
      %511 = vperm.xlu0 %510, %v294
      %v512 = vpop.permute.xlu0 %511
      %515 = vset.pattern.permute.xlu0 0
      %516 = vperm.xlu0 %515, %v295
      %v517 = vpop.permute.xlu0 %516
      %520 = vset.pattern.permute.xlu0 0
      %521 = vperm.xlu0 %520, %v296
      %v522 = vpop.permute.xlu0 %521
      %525 = vset.pattern.permute.xlu0 0
      %526 = vperm.xlu0 %525, %v297
      %v527 = vpop.permute.xlu0 %526
      %530 = vset.pattern.permute.xlu0 0
      %531 = vperm.xlu0 %530, %v298
      %v532 = vpop.permute.xlu0 %531
      %535 = vset.pattern.permute.xlu0 0
      %536 = vperm.xlu0 %535, %v299
      %v537 = vpop.permute.xlu0 %536
      %540 = vset.pattern.permute.xlu0 0
      %541 = vperm.xlu0 %540, %v300
      %v542 = vpop.permute.xlu0 %541
      %545 = vset.pattern.permute.xlu0 0
      %546 = vperm.xlu0 %545, %v301
      %v547 = vpop.permute.xlu0 %546
      %550 = vset.pattern.permute.xlu0 0
      %551 = vperm.xlu0 %550, %v302
      %v552 = vpop.permute.xlu0 %551
      %555 = vset.pattern.permute.xlu0 0
      %556 = vperm.xlu0 %555, %v303
      %v557 = vpop.permute.xlu0 %556
      %560 = vset.pattern.permute.xlu0 0
      %561 = vperm.xlu0 %560, %v304
      %v562 = vpop.permute.xlu0 %561
      %565 = vset.pattern.permute.xlu0 0
      %566 = vperm.xlu0 %565, %v305
      %v567 = vpop.permute.xlu0 %566
      %570 = vset.pattern.permute.xlu0 0
      %571 = vperm.xlu0 %570, %v306
      %v572 = vpop.permute.xlu0 %571
      %575 = vset.pattern.permute.xlu0 0
      %576 = vperm.xlu0 %575, %v307
      %v577 = vpop.permute.xlu0 %576
      %v580 = vlaneseq
      %v581 = vshrl.u32 %v580, 7
      %v582 = vsub.s32 0, %v581
      %v583 = vrot.slane %v308, %v582
      %v584 = vlaneseq
      %v585 = vshrl.u32 %v584, 7
      %v586 = vsub.s32 1, %v585
      %v587 = vrot.slane %v308, %v586
      %v590 = vmul.f32 %v312, %v583
      %v591 = vmul.f32 %v312, %v587
      %v592 = vmul.f32 %v317, %v583
      %v593 = vmul.f32 %v317, %v587
      %v594 = vmul.f32 %v322, %v583
      %v595 = vmul.f32 %v322, %v587
      %v596 = vmul.f32 %v327, %v583
      %v597 = vmul.f32 %v327, %v587
      %v598 = vmul.f32 %v332, %v583
      %v599 = vmul.f32 %v332, %v587
      %v600 = vmul.f32 %v337, %v583
      %v601 = vmul.f32 %v337, %v587
      %v602 = vmul.f32 %v342, %v583
      %v603 = vmul.f32 %v342, %v587
      %v604 = vmul.f32 %v347, %v583
      %v605 = vmul.f32 %v347, %v587
      %v606 = vmul.f32 %v352, %v583
      %v607 = vmul.f32 %v352, %v587
      %v608 = vmul.f32 %v357, %v583
      %v609 = vmul.f32 %v357, %v587
      %v610 = vmul.f32 %v362, %v583
      %v611 = vmul.f32 %v362, %v587
      %v612 = vmul.f32 %v367, %v583
      %v613 = vmul.f32 %v367, %v587
      %v614 = vmul.f32 %v372, %v583
      %v615 = vmul.f32 %v372, %v587
      %v616 = vmul.f32 %v377, %v583
      %v617 = vmul.f32 %v377, %v587
      %v618 = vmul.f32 %v382, %v583
      %v619 = vmul.f32 %v382, %v587
      %v620 = vmul.f32 %v387, %v583
      %v621 = vmul.f32 %v387, %v587
      %v622 = vmul.f32 %v392, %v583
      %v623 = vmul.f32 %v392, %v587
      %v624 = vmul.f32 %v397, %v583
      %v625 = vmul.f32 %v397, %v587
      %v626 = vmul.f32 %v402, %v583
      %v627 = vmul.f32 %v402, %v587
      %v628 = vmul.f32 %v407, %v583
      %v629 = vmul.f32 %v407, %v587
      %v630 = vmul.f32 %v412, %v583
      %v631 = vmul.f32 %v412, %v587
      %v632 = vmul.f32 %v417, %v583
      %v633 = vmul.f32 %v417, %v587
      %v634 = vmul.f32 %v422, %v583
      %v635 = vmul.f32 %v422, %v587
      %v636 = vmul.f32 %v427, %v583
      %v637 = vmul.f32 %v427, %v587
      %v638 = vmul.f32 %v432, %v583
      %v639 = vmul.f32 %v432, %v587
      %v640 = vmul.f32 %v437, %v583
      %v641 = vmul.f32 %v437, %v587
      %v642 = vmul.f32 %v442, %v583
      %v643 = vmul.f32 %v442, %v587
      %v644 = vmul.f32 %v447, %v583
      %v645 = vmul.f32 %v447, %v587
      %v646 = vmul.f32 %v452, %v583
      %v647 = vmul.f32 %v452, %v587
      %v648 = vmul.f32 %v457, %v583
      %v649 = vmul.f32 %v457, %v587
      %v650 = vmul.f32 %v462, %v583
      %v651 = vmul.f32 %v462, %v587
      %v652 = vmul.f32 %v467, %v583
      %v653 = vmul.f32 %v467, %v587
      %v654 = vmul.f32 %v472, %v583
      %v655 = vmul.f32 %v472, %v587
      %v656 = vmul.f32 %v477, %v583
      %v657 = vmul.f32 %v477, %v587
      %v658 = vmul.f32 %v482, %v583
      %v659 = vmul.f32 %v482, %v587
      %v660 = vmul.f32 %v487, %v583
      %v661 = vmul.f32 %v487, %v587
      %v662 = vmul.f32 %v492, %v583
      %v663 = vmul.f32 %v492, %v587
      %v664 = vmul.f32 %v497, %v583
      %v665 = vmul.f32 %v497, %v587
      %v666 = vmul.f32 %v502, %v583
      %v667 = vmul.f32 %v502, %v587
      %v668 = vmul.f32 %v507, %v583
      %v669 = vmul.f32 %v507, %v587
      %v670 = vmul.f32 %v512, %v583
      %v671 = vmul.f32 %v512, %v587
      %v672 = vmul.f32 %v517, %v583
      %v673 = vmul.f32 %v517, %v587
      %v674 = vmul.f32 %v522, %v583
      %v675 = vmul.f32 %v522, %v587
      %v676 = vmul.f32 %v527, %v583
      %v677 = vmul.f32 %v527, %v587
      %v678 = vmul.f32 %v532, %v583
      %v679 = vmul.f32 %v532, %v587
      %v680 = vmul.f32 %v537, %v583
      %v681 = vmul.f32 %v537, %v587
      %v682 = vmul.f32 %v542, %v583
      %v683 = vmul.f32 %v542, %v587
      %v684 = vmul.f32 %v547, %v583
      %v685 = vmul.f32 %v547, %v587
      %v686 = vmul.f32 %v552, %v583
      %v687 = vmul.f32 %v552, %v587
      %v688 = vmul.f32 %v557, %v583
      %v689 = vmul.f32 %v557, %v587
      %v690 = vmul.f32 %v562, %v583
      %v691 = vmul.f32 %v562, %v587
      %v692 = vmul.f32 %v567, %v583
      %v693 = vmul.f32 %v567, %v587
      %v694 = vmul.f32 %v572, %v583
      %v695 = vmul.f32 %v572, %v587
      %v696 = vmul.f32 %v577, %v583
      %v697 = vmul.f32 %v577, %v587
      %s698 = scalar_lea.vmem %s1, 1
      %v699 = vld [vmem:[%s698] ss:$2 sm:$0x3]
      %700 = vset.pattern.permute.xlu0 1
      %701 = vperm.xlu0 %700, %v254
      %v702 = vpop.permute.xlu0 %701
      %704 = vset.pattern.permute.xlu0 1
      %705 = vperm.xlu0 %704, %v255
      %v706 = vpop.permute.xlu0 %705
      %708 = vset.pattern.permute.xlu0 1
      %709 = vperm.xlu0 %708, %v256
      %v710 = vpop.permute.xlu0 %709
      %712 = vset.pattern.permute.xlu0 1
      %713 = vperm.xlu0 %712, %v257
      %v714 = vpop.permute.xlu0 %713
      %716 = vset.pattern.permute.xlu0 1
      %717 = vperm.xlu0 %716, %v258
      %v718 = vpop.permute.xlu0 %717
      %720 = vset.pattern.permute.xlu0 1
      %721 = vperm.xlu0 %720, %v259
      %v722 = vpop.permute.xlu0 %721
      %724 = vset.pattern.permute.xlu0 1
      %725 = vperm.xlu0 %724, %v260
      %v726 = vpop.permute.xlu0 %725
      %728 = vset.pattern.permute.xlu0 1
      %729 = vperm.xlu0 %728, %v261
      %v730 = vpop.permute.xlu0 %729
      %732 = vset.pattern.permute.xlu0 1
      %733 = vperm.xlu0 %732, %v262
      %v734 = vpop.permute.xlu0 %733
      %736 = vset.pattern.permute.xlu0 1
      %737 = vperm.xlu0 %736, %v263
      %v738 = vpop.permute.xlu0 %737
      %740 = vset.pattern.permute.xlu0 1
      %741 = vperm.xlu0 %740, %v264
      %v742 = vpop.permute.xlu0 %741
      %744 = vset.pattern.permute.xlu0 1
      %745 = vperm.xlu0 %744, %v265
      %v746 = vpop.permute.xlu0 %745
      %748 = vset.pattern.permute.xlu0 1
      %749 = vperm.xlu0 %748, %v266
      %v750 = vpop.permute.xlu0 %749
      %752 = vset.pattern.permute.xlu0 1
      %753 = vperm.xlu0 %752, %v267
      %v754 = vpop.permute.xlu0 %753
      %756 = vset.pattern.permute.xlu0 1
      %757 = vperm.xlu0 %756, %v268
      %v758 = vpop.permute.xlu0 %757
      %760 = vset.pattern.permute.xlu0 1
      %761 = vperm.xlu0 %760, %v269
      %v762 = vpop.permute.xlu0 %761
      %764 = vset.pattern.permute.xlu0 1
      %765 = vperm.xlu0 %764, %v270
      %v766 = vpop.permute.xlu0 %765
      %768 = vset.pattern.permute.xlu0 1
      %769 = vperm.xlu0 %768, %v271
      %v770 = vpop.permute.xlu0 %769
      %772 = vset.pattern.permute.xlu0 1
      %773 = vperm.xlu0 %772, %v272
      %v774 = vpop.permute.xlu0 %773
      %776 = vset.pattern.permute.xlu0 1
      %777 = vperm.xlu0 %776, %v273
      %v778 = vpop.permute.xlu0 %777
      %780 = vset.pattern.permute.xlu0 1
      %781 = vperm.xlu0 %780, %v274
      %v782 = vpop.permute.xlu0 %781
      %784 = vset.pattern.permute.xlu0 1
      %785 = vperm.xlu0 %784, %v275
      %v786 = vpop.permute.xlu0 %785
      %788 = vset.pattern.permute.xlu0 1
      %789 = vperm.xlu0 %788, %v276
      %v790 = vpop.permute.xlu0 %789
      %792 = vset.pattern.permute.xlu0 1
      %793 = vperm.xlu0 %792, %v277
      %v794 = vpop.permute.xlu0 %793
      %796 = vset.pattern.permute.xlu0 1
      %797 = vperm.xlu0 %796, %v278
      %v798 = vpop.permute.xlu0 %797
      %800 = vset.pattern.permute.xlu0 1
      %801 = vperm.xlu0 %800, %v279
      %v802 = vpop.permute.xlu0 %801
      %804 = vset.pattern.permute.xlu0 1
      %805 = vperm.xlu0 %804, %v280
      %v806 = vpop.permute.xlu0 %805
      %808 = vset.pattern.permute.xlu0 1
      %809 = vperm.xlu0 %808, %v281
      %v810 = vpop.permute.xlu0 %809
      %812 = vset.pattern.permute.xlu0 1
      %813 = vperm.xlu0 %812, %v282
      %v814 = vpop.permute.xlu0 %813
      %816 = vset.pattern.permute.xlu0 1
      %817 = vperm.xlu0 %816, %v283
      %v818 = vpop.permute.xlu0 %817
      %820 = vset.pattern.permute.xlu0 1
      %821 = vperm.xlu0 %820, %v284
      %v822 = vpop.permute.xlu0 %821
      %824 = vset.pattern.permute.xlu0 1
      %825 = vperm.xlu0 %824, %v285
      %v826 = vpop.permute.xlu0 %825
      %828 = vset.pattern.permute.xlu0 1
      %829 = vperm.xlu0 %828, %v286
      %v830 = vpop.permute.xlu0 %829
      %832 = vset.pattern.permute.xlu0 1
      %833 = vperm.xlu0 %832, %v287
      %v834 = vpop.permute.xlu0 %833
      %836 = vset.pattern.permute.xlu0 1
      %837 = vperm.xlu0 %836, %v288
      %v838 = vpop.permute.xlu0 %837
      %840 = vset.pattern.permute.xlu0 1
      %841 = vperm.xlu0 %840, %v289
      %v842 = vpop.permute.xlu0 %841
      %844 = vset.pattern.permute.xlu0 1
      %845 = vperm.xlu0 %844, %v290
      %v846 = vpop.permute.xlu0 %845
      %848 = vset.pattern.permute.xlu0 1
      %849 = vperm.xlu0 %848, %v291
      %v850 = vpop.permute.xlu0 %849
      %852 = vset.pattern.permute.xlu0 1
      %853 = vperm.xlu0 %852, %v292
      %v854 = vpop.permute.xlu0 %853
      %856 = vset.pattern.permute.xlu0 1
      %857 = vperm.xlu0 %856, %v293
      %v858 = vpop.permute.xlu0 %857
      %860 = vset.pattern.permute.xlu0 1
      %861 = vperm.xlu0 %860, %v294
      %v862 = vpop.permute.xlu0 %861
      %864 = vset.pattern.permute.xlu0 1
      %865 = vperm.xlu0 %864, %v295
      %v866 = vpop.permute.xlu0 %865
      %868 = vset.pattern.permute.xlu0 1
      %869 = vperm.xlu0 %868, %v296
      %v870 = vpop.permute.xlu0 %869
      %872 = vset.pattern.permute.xlu0 1
      %873 = vperm.xlu0 %872, %v297
      %v874 = vpop.permute.xlu0 %873
      %876 = vset.pattern.permute.xlu0 1
      %877 = vperm.xlu0 %876, %v298
      %v878 = vpop.permute.xlu0 %877
      %880 = vset.pattern.permute.xlu0 1
      %881 = vperm.xlu0 %880, %v299
      %v882 = vpop.permute.xlu0 %881
      %884 = vset.pattern.permute.xlu0 1
      %885 = vperm.xlu0 %884, %v300
      %v886 = vpop.permute.xlu0 %885
      %888 = vset.pattern.permute.xlu0 1
      %889 = vperm.xlu0 %888, %v301
      %v890 = vpop.permute.xlu0 %889
      %892 = vset.pattern.permute.xlu0 1
      %893 = vperm.xlu0 %892, %v302
      %v894 = vpop.permute.xlu0 %893
      %896 = vset.pattern.permute.xlu0 1
      %897 = vperm.xlu0 %896, %v303
      %v898 = vpop.permute.xlu0 %897
      %900 = vset.pattern.permute.xlu0 1
      %901 = vperm.xlu0 %900, %v304
      %v902 = vpop.permute.xlu0 %901
      %904 = vset.pattern.permute.xlu0 1
      %905 = vperm.xlu0 %904, %v305
      %v906 = vpop.permute.xlu0 %905
      %908 = vset.pattern.permute.xlu0 1
      %909 = vperm.xlu0 %908, %v306
      %v910 = vpop.permute.xlu0 %909
      %912 = vset.pattern.permute.xlu0 1
      %913 = vperm.xlu0 %912, %v307
      %v914 = vpop.permute.xlu0 %913
      %v917 = vlaneseq
      %v918 = vshrl.u32 %v917, 7
      %v919 = vsub.s32 0, %v918
      %v920 = vrot.slane %v699, %v919
      %v921 = vlaneseq
      %v922 = vshrl.u32 %v921, 7
      %v923 = vsub.s32 1, %v922
      %v924 = vrot.slane %v699, %v923
      %v927 = vmul.f32 %v702, %v920
      %v928 = vmul.f32 %v702, %v924
      %v929 = vmul.f32 %v706, %v920
      %v930 = vmul.f32 %v706, %v924
      %v931 = vmul.f32 %v710, %v920
      %v932 = vmul.f32 %v710, %v924
      %v933 = vmul.f32 %v714, %v920
      %v934 = vmul.f32 %v714, %v924
      %v935 = vmul.f32 %v718, %v920
      %v936 = vmul.f32 %v718, %v924
      %v937 = vmul.f32 %v722, %v920
      %v938 = vmul.f32 %v722, %v924
      %v939 = vmul.f32 %v726, %v920
      %v940 = vmul.f32 %v726, %v924
      %v941 = vmul.f32 %v730, %v920
      %v942 = vmul.f32 %v730, %v924
      %v943 = vmul.f32 %v734, %v920
      %v944 = vmul.f32 %v734, %v924
      %v945 = vmul.f32 %v738, %v920
      %v946 = vmul.f32 %v738, %v924
      %v947 = vmul.f32 %v742, %v920
      %v948 = vmul.f32 %v742, %v924
      %v949 = vmul.f32 %v746, %v920
      %v950 = vmul.f32 %v746, %v924
      %v951 = vmul.f32 %v750, %v920
      %v952 = vmul.f32 %v750, %v924
      %v953 = vmul.f32 %v754, %v920
      %v954 = vmul.f32 %v754, %v924
      %v955 = vmul.f32 %v758, %v920
      %v956 = vmul.f32 %v758, %v924
      %v957 = vmul.f32 %v762, %v920
      %v958 = vmul.f32 %v762, %v924
      %v959 = vmul.f32 %v766, %v920
      %v960 = vmul.f32 %v766, %v924
      %v961 = vmul.f32 %v770, %v920
      %v962 = vmul.f32 %v770, %v924
      %v963 = vmul.f32 %v774, %v920
      %v964 = vmul.f32 %v774, %v924
      %v965 = vmul.f32 %v778, %v920
      %v966 = vmul.f32 %v778, %v924
      %v967 = vmul.f32 %v782, %v920
      %v968 = vmul.f32 %v782, %v924
      %v969 = vmul.f32 %v786, %v920
      %v970 = vmul.f32 %v786, %v924
      %v971 = vmul.f32 %v790, %v920
      %v972 = vmul.f32 %v790, %v924
      %v973 = vmul.f32 %v794, %v920
      %v974 = vmul.f32 %v794, %v924
      %v975 = vmul.f32 %v798, %v920
      %v976 = vmul.f32 %v798, %v924
      %v977 = vmul.f32 %v802, %v920
      %v978 = vmul.f32 %v802, %v924
      %v979 = vmul.f32 %v806, %v920
      %v980 = vmul.f32 %v806, %v924
      %v981 = vmul.f32 %v810, %v920
      %v982 = vmul.f32 %v810, %v924
      %v983 = vmul.f32 %v814, %v920
      %v984 = vmul.f32 %v814, %v924
      %v985 = vmul.f32 %v818, %v920
      %v986 = vmul.f32 %v818, %v924
      %v987 = vmul.f32 %v822, %v920
      %v988 = vmul.f32 %v822, %v924
      %v989 = vmul.f32 %v826, %v920
      %v990 = vmul.f32 %v826, %v924
      %v991 = vmul.f32 %v830, %v920
      %v992 = vmul.f32 %v830, %v924
      %v993 = vmul.f32 %v834, %v920
      %v994 = vmul.f32 %v834, %v924
      %v995 = vmul.f32 %v838, %v920
      %v996 = vmul.f32 %v838, %v924
      %v997 = vmul.f32 %v842, %v920
      %v998 = vmul.f32 %v842, %v924
      %v999 = vmul.f32 %v846, %v920
      %v1000 = vmul.f32 %v846, %v924
      %v1001 = vmul.f32 %v850, %v920
      %v1002 = vmul.f32 %v850, %v924
      %v1003 = vmul.f32 %v854, %v920
      %v1004 = vmul.f32 %v854, %v924
      %v1005 = vmul.f32 %v858, %v920
      %v1006 = vmul.f32 %v858, %v924
      %v1007 = vmul.f32 %v862, %v920
      %v1008 = vmul.f32 %v862, %v924
      %v1009 = vmul.f32 %v866, %v920
      %v1010 = vmul.f32 %v866, %v924
      %v1011 = vmul.f32 %v870, %v920
      %v1012 = vmul.f32 %v870, %v924
      %v1013 = vmul.f32 %v874, %v920
      %v1014 = vmul.f32 %v874, %v924
      %v1015 = vmul.f32 %v878, %v920
      %v1016 = vmul.f32 %v878, %v924
      %v1017 = vmul.f32 %v882, %v920
      %v1018 = vmul.f32 %v882, %v924
      %v1019 = vmul.f32 %v886, %v920
      %v1020 = vmul.f32 %v886, %v924
      %v1021 = vmul.f32 %v890, %v920
      %v1022 = vmul.f32 %v890, %v924
      %v1023 = vmul.f32 %v894, %v920
      %v1024 = vmul.f32 %v894, %v924
      %v1025 = vmul.f32 %v898, %v920
      %v1026 = vmul.f32 %v898, %v924
      %v1027 = vmul.f32 %v902, %v920
      %v1028 = vmul.f32 %v902, %v924
      %v1029 = vmul.f32 %v906, %v920
      %v1030 = vmul.f32 %v906, %v924
      %v1031 = vmul.f32 %v910, %v920
      %v1032 = vmul.f32 %v910, %v924
      %v1033 = vmul.f32 %v914, %v920
      %v1034 = vmul.f32 %v914, %v924
      %v1035 = vadd.f32 %v590, %v927
      %v1036 = vadd.f32 %v591, %v928
      %v1037 = vadd.f32 %v592, %v929
      %v1038 = vadd.f32 %v593, %v930
      %v1039 = vadd.f32 %v594, %v931
      %v1040 = vadd.f32 %v595, %v932
      %v1041 = vadd.f32 %v596, %v933
      %v1042 = vadd.f32 %v597, %v934
      %v1043 = vadd.f32 %v598, %v935
      %v1044 = vadd.f32 %v599, %v936
      %v1045 = vadd.f32 %v600, %v937
      %v1046 = vadd.f32 %v601, %v938
      %v1047 = vadd.f32 %v602, %v939
      %v1048 = vadd.f32 %v603, %v940
      %v1049 = vadd.f32 %v604, %v941
      %v1050 = vadd.f32 %v605, %v942
      %v1051 = vadd.f32 %v606, %v943
      %v1052 = vadd.f32 %v607, %v944
      %v1053 = vadd.f32 %v608, %v945
      %v1054 = vadd.f32 %v609, %v946
      %v1055 = vadd.f32 %v610, %v947
      %v1056 = vadd.f32 %v611, %v948
      %v1057 = vadd.f32 %v612, %v949
      %v1058 = vadd.f32 %v613, %v950
      %v1059 = vadd.f32 %v614, %v951
      %v1060 = vadd.f32 %v615, %v952
      %v1061 = vadd.f32 %v616, %v953
      %v1062 = vadd.f32 %v617, %v954
      %v1063 = vadd.f32 %v618, %v955
      %v1064 = vadd.f32 %v619, %v956
      %v1065 = vadd.f32 %v620, %v957
      %v1066 = vadd.f32 %v621, %v958
      %v1067 = vadd.f32 %v622, %v959
      %v1068 = vadd.f32 %v623, %v960
      %v1069 = vadd.f32 %v624, %v961
      %v1070 = vadd.f32 %v625, %v962
      %v1071 = vadd.f32 %v626, %v963
      %v1072 = vadd.f32 %v627, %v964
      %v1073 = vadd.f32 %v628, %v965
      %v1074 = vadd.f32 %v629, %v966
      %v1075 = vadd.f32 %v630, %v967
      %v1076 = vadd.f32 %v631, %v968
      %v1077 = vadd.f32 %v632, %v969
      %v1078 = vadd.f32 %v633, %v970
      %v1079 = vadd.f32 %v634, %v971
      %v1080 = vadd.f32 %v635, %v972
      %v1081 = vadd.f32 %v636, %v973
      %v1082 = vadd.f32 %v637, %v974
      %v1083 = vadd.f32 %v638, %v975
      %v1084 = vadd.f32 %v639, %v976
      %v1085 = vadd.f32 %v640, %v977
      %v1086 = vadd.f32 %v641, %v978
      %v1087 = vadd.f32 %v642, %v979
      %v1088 = vadd.f32 %v643, %v980
      %v1089 = vadd.f32 %v644, %v981
      %v1090 = vadd.f32 %v645, %v982
      %v1091 = vadd.f32 %v646, %v983
      %v1092 = vadd.f32 %v647, %v984
      %v1093 = vadd.f32 %v648, %v985
      %v1094 = vadd.f32 %v649, %v986
      %v1095 = vadd.f32 %v650, %v987
      %v1096 = vadd.f32 %v651, %v988
      %v1097 = vadd.f32 %v652, %v989
      %v1098 = vadd.f32 %v653, %v990
      %v1099 = vadd.f32 %v654, %v991
      %v1100 = vadd.f32 %v655, %v992
      %v1101 = vadd.f32 %v656, %v993
      %v1102 = vadd.f32 %v657, %v994
      %v1103 = vadd.f32 %v658, %v995
      %v1104 = vadd.f32 %v659, %v996
      %v1105 = vadd.f32 %v660, %v997
      %v1106 = vadd.f32 %v661, %v998
      %v1107 = vadd.f32 %v662, %v999
      %v1108 = vadd.f32 %v663, %v1000
      %v1109 = vadd.f32 %v664, %v1001
      %v1110 = vadd.f32 %v665, %v1002
      %v1111 = vadd.f32 %v666, %v1003
      %v1112 = vadd.f32 %v667, %v1004
      %v1113 = vadd.f32 %v668, %v1005
      %v1114 = vadd.f32 %v669, %v1006
      %v1115 = vadd.f32 %v670, %v1007
      %v1116 = vadd.f32 %v671, %v1008
      %v1117 = vadd.f32 %v672, %v1009
      %v1118 = vadd.f32 %v673, %v1010
      %v1119 = vadd.f32 %v674, %v1011
      %v1120 = vadd.f32 %v675, %v1012
      %v1121 = vadd.f32 %v676, %v1013
      %v1122 = vadd.f32 %v677, %v1014
      %v1123 = vadd.f32 %v678, %v1015
      %v1124 = vadd.f32 %v679, %v1016
      %v1125 = vadd.f32 %v680, %v1017
      %v1126 = vadd.f32 %v681, %v1018
      %v1127 = vadd.f32 %v682, %v1019
      %v1128 = vadd.f32 %v683, %v1020
      %v1129 = vadd.f32 %v684, %v1021
      %v1130 = vadd.f32 %v685, %v1022
      %v1131 = vadd.f32 %v686, %v1023
      %v1132 = vadd.f32 %v687, %v1024
      %v1133 = vadd.f32 %v688, %v1025
      %v1134 = vadd.f32 %v689, %v1026
      %v1135 = vadd.f32 %v690, %v1027
      %v1136 = vadd.f32 %v691, %v1028
      %v1137 = vadd.f32 %v692, %v1029
      %v1138 = vadd.f32 %v693, %v1030
      %v1139 = vadd.f32 %v694, %v1031
      %v1140 = vadd.f32 %v695, %v1032
      %v1141 = vadd.f32 %v696, %v1033
      %v1142 = vadd.f32 %v697, %v1034
      %v1143 = vld [vmem:[%s2] sm:$0x3]
      %v1145 = vlaneseq
      %v1146 = vshrl.u32 %v1145, 7
      %v1147 = vsub.s32 0, %v1146
      %v1148 = vrot.slane %v1143, %v1147
      %v1149 = vlaneseq
      %v1150 = vshrl.u32 %v1149, 7
      %v1151 = vsub.s32 1, %v1150
      %v1152 = vrot.slane %v1143, %v1151
      %v1155 = vadd.f32 %v1035, %v1148
      %v1156 = vadd.f32 %v1036, %v1152
      %v1157 = vadd.f32 %v1037, %v1148
      %v1158 = vadd.f32 %v1038, %v1152
      %v1159 = vadd.f32 %v1039, %v1148
      %v1160 = vadd.f32 %v1040, %v1152
      %v1161 = vadd.f32 %v1041, %v1148
      %v1162 = vadd.f32 %v1042, %v1152
      %v1163 = vadd.f32 %v1043, %v1148
      %v1164 = vadd.f32 %v1044, %v1152
      %v1165 = vadd.f32 %v1045, %v1148
      %v1166 = vadd.f32 %v1046, %v1152
      %v1167 = vadd.f32 %v1047, %v1148
      %v1168 = vadd.f32 %v1048, %v1152
      %v1169 = vadd.f32 %v1049, %v1148
      %v1170 = vadd.f32 %v1050, %v1152
      %v1171 = vadd.f32 %v1051, %v1148
      %v1172 = vadd.f32 %v1052, %v1152
      %v1173 = vadd.f32 %v1053, %v1148
      %v1174 = vadd.f32 %v1054, %v1152
      %v1175 = vadd.f32 %v1055, %v1148
      %v1176 = vadd.f32 %v1056, %v1152
      %v1177 = vadd.f32 %v1057, %v1148
      %v1178 = vadd.f32 %v1058, %v1152
      %v1179 = vadd.f32 %v1059, %v1148
      %v1180 = vadd.f32 %v1060, %v1152
      %v1181 = vadd.f32 %v1061, %v1148
      %v1182 = vadd.f32 %v1062, %v1152
      %v1183 = vadd.f32 %v1063, %v1148
      %v1184 = vadd.f32 %v1064, %v1152
      %v1185 = vadd.f32 %v1065, %v1148
      %v1186 = vadd.f32 %v1066, %v1152
      %v1187 = vadd.f32 %v1067, %v1148
      %v1188 = vadd.f32 %v1068, %v1152
      %v1189 = vadd.f32 %v1069, %v1148
      %v1190 = vadd.f32 %v1070, %v1152
      %v1191 = vadd.f32 %v1071, %v1148
      %v1192 = vadd.f32 %v1072, %v1152
      %v1193 = vadd.f32 %v1073, %v1148
      %v1194 = vadd.f32 %v1074, %v1152
      %v1195 = vadd.f32 %v1075, %v1148
      %v1196 = vadd.f32 %v1076, %v1152
      %v1197 = vadd.f32 %v1077, %v1148
      %v1198 = vadd.f32 %v1078, %v1152
      %v1199 = vadd.f32 %v1079, %v1148
      %v1200 = vadd.f32 %v1080, %v1152
      %v1201 = vadd.f32 %v1081, %v1148
      %v1202 = vadd.f32 %v1082, %v1152
      %v1203 = vadd.f32 %v1083, %v1148
      %v1204 = vadd.f32 %v1084, %v1152
      %v1205 = vadd.f32 %v1085, %v1148
      %v1206 = vadd.f32 %v1086, %v1152
      %v1207 = vadd.f32 %v1087, %v1148
      %v1208 = vadd.f32 %v1088, %v1152
      %v1209 = vadd.f32 %v1089, %v1148
      %v1210 = vadd.f32 %v1090, %v1152
      %v1211 = vadd.f32 %v1091, %v1148
      %v1212 = vadd.f32 %v1092, %v1152
      %v1213 = vadd.f32 %v1093, %v1148
      %v1214 = vadd.f32 %v1094, %v1152
      %v1215 = vadd.f32 %v1095, %v1148
      %v1216 = vadd.f32 %v1096, %v1152
      %v1217 = vadd.f32 %v1097, %v1148
      %v1218 = vadd.f32 %v1098, %v1152
      %v1219 = vadd.f32 %v1099, %v1148
      %v1220 = vadd.f32 %v1100, %v1152
      %v1221 = vadd.f32 %v1101, %v1148
      %v1222 = vadd.f32 %v1102, %v1152
      %v1223 = vadd.f32 %v1103, %v1148
      %v1224 = vadd.f32 %v1104, %v1152
      %v1225 = vadd.f32 %v1105, %v1148
      %v1226 = vadd.f32 %v1106, %v1152
      %v1227 = vadd.f32 %v1107, %v1148
      %v1228 = vadd.f32 %v1108, %v1152
      %v1229 = vadd.f32 %v1109, %v1148
      %v1230 = vadd.f32 %v1110, %v1152
      %v1231 = vadd.f32 %v1111, %v1148
      %v1232 = vadd.f32 %v1112, %v1152
      %v1233 = vadd.f32 %v1113, %v1148
      %v1234 = vadd.f32 %v1114, %v1152
      %v1235 = vadd.f32 %v1115, %v1148
      %v1236 = vadd.f32 %v1116, %v1152
      %v1237 = vadd.f32 %v1117, %v1148
      %v1238 = vadd.f32 %v1118, %v1152
      %v1239 = vadd.f32 %v1119, %v1148
      %v1240 = vadd.f32 %v1120, %v1152
      %v1241 = vadd.f32 %v1121, %v1148
      %v1242 = vadd.f32 %v1122, %v1152
      %v1243 = vadd.f32 %v1123, %v1148
      %v1244 = vadd.f32 %v1124, %v1152
      %v1245 = vadd.f32 %v1125, %v1148
      %v1246 = vadd.f32 %v1126, %v1152
      %v1247 = vadd.f32 %v1127, %v1148
      %v1248 = vadd.f32 %v1128, %v1152
      %v1249 = vadd.f32 %v1129, %v1148
      %v1250 = vadd.f32 %v1130, %v1152
      %v1251 = vadd.f32 %v1131, %v1148
      %v1252 = vadd.f32 %v1132, %v1152
      %v1253 = vadd.f32 %v1133, %v1148
      %v1254 = vadd.f32 %v1134, %v1152
      %v1255 = vadd.f32 %v1135, %v1148
      %v1256 = vadd.f32 %v1136, %v1152
      %v1257 = vadd.f32 %v1137, %v1148
      %v1258 = vadd.f32 %v1138, %v1152
      %v1259 = vadd.f32 %v1139, %v1148
      %v1260 = vadd.f32 %v1140, %v1152
      %v1261 = vadd.f32 %v1141, %v1148
      %v1262 = vadd.f32 %v1142, %v1152
      %v1263 = vmax.f32 %v1155, 0.0
      %v1264 = vmax.f32 %v1156, 0.0
      %v1265 = vmax.f32 %v1157, 0.0
      %v1266 = vmax.f32 %v1158, 0.0
      %v1267 = vmax.f32 %v1159, 0.0
      %v1268 = vmax.f32 %v1160, 0.0
      %v1269 = vmax.f32 %v1161, 0.0
      %v1270 = vmax.f32 %v1162, 0.0
      %v1271 = vmax.f32 %v1163, 0.0
      %v1272 = vmax.f32 %v1164, 0.0
      %v1273 = vmax.f32 %v1165, 0.0
      %v1274 = vmax.f32 %v1166, 0.0
      %v1275 = vmax.f32 %v1167, 0.0
      %v1276 = vmax.f32 %v1168, 0.0
      %v1277 = vmax.f32 %v1169, 0.0
      %v1278 = vmax.f32 %v1170, 0.0
      %v1279 = vmax.f32 %v1171, 0.0
      %v1280 = vmax.f32 %v1172, 0.0
      %v1281 = vmax.f32 %v1173, 0.0
      %v1282 = vmax.f32 %v1174, 0.0
      %v1283 = vmax.f32 %v1175, 0.0
      %v1284 = vmax.f32 %v1176, 0.0
      %v1285 = vmax.f32 %v1177, 0.0
      %v1286 = vmax.f32 %v1178, 0.0
      %v1287 = vmax.f32 %v1179, 0.0
      %v1288 = vmax.f32 %v1180, 0.0
      %v1289 = vmax.f32 %v1181, 0.0
      %v1290 = vmax.f32 %v1182, 0.0
      %v1291 = vmax.f32 %v1183, 0.0
      %v1292 = vmax.f32 %v1184, 0.0
      %v1293 = vmax.f32 %v1185, 0.0
      %v1294 = vmax.f32 %v1186, 0.0
      %v1295 = vmax.f32 %v1187, 0.0
      %v1296 = vmax.f32 %v1188, 0.0
      %v1297 = vmax.f32 %v1189, 0.0
      %v1298 = vmax.f32 %v1190, 0.0
      %v1299 = vmax.f32 %v1191, 0.0
      %v1300 = vmax.f32 %v1192, 0.0
      %v1301 = vmax.f32 %v1193, 0.0
      %v1302 = vmax.f32 %v1194, 0.0
      %v1303 = vmax.f32 %v1195, 0.0
      %v1304 = vmax.f32 %v1196, 0.0
      %v1305 = vmax.f32 %v1197, 0.0
      %v1306 = vmax.f32 %v1198, 0.0
      %v1307 = vmax.f32 %v1199, 0.0
      %v1308 = vmax.f32 %v1200, 0.0
      %v1309 = vmax.f32 %v1201, 0.0
      %v1310 = vmax.f32 %v1202, 0.0
      %v1311 = vmax.f32 %v1203, 0.0
      %v1312 = vmax.f32 %v1204, 0.0
      %v1313 = vmax.f32 %v1205, 0.0
      %v1314 = vmax.f32 %v1206, 0.0
      %v1315 = vmax.f32 %v1207, 0.0
      %v1316 = vmax.f32 %v1208, 0.0
      %v1317 = vmax.f32 %v1209, 0.0
      %v1318 = vmax.f32 %v1210, 0.0
      %v1319 = vmax.f32 %v1211, 0.0
      %v1320 = vmax.f32 %v1212, 0.0
      %v1321 = vmax.f32 %v1213, 0.0
      %v1322 = vmax.f32 %v1214, 0.0
      %v1323 = vmax.f32 %v1215, 0.0
      %v1324 = vmax.f32 %v1216, 0.0
      %v1325 = vmax.f32 %v1217, 0.0
      %v1326 = vmax.f32 %v1218, 0.0
      %v1327 = vmax.f32 %v1219, 0.0
      %v1328 = vmax.f32 %v1220, 0.0
      %v1329 = vmax.f32 %v1221, 0.0
      %v1330 = vmax.f32 %v1222, 0.0
      %v1331 = vmax.f32 %v1223, 0.0
      %v1332 = vmax.f32 %v1224, 0.0
      %v1333 = vmax.f32 %v1225, 0.0
      %v1334 = vmax.f32 %v1226, 0.0
      %v1335 = vmax.f32 %v1227, 0.0
      %v1336 = vmax.f32 %v1228, 0.0
      %v1337 = vmax.f32 %v1229, 0.0
      %v1338 = vmax.f32 %v1230, 0.0
      %v1339 = vmax.f32 %v1231, 0.0
      %v1340 = vmax.f32 %v1232, 0.0
      %v1341 = vmax.f32 %v1233, 0.0
      %v1342 = vmax.f32 %v1234, 0.0
      %v1343 = vmax.f32 %v1235, 0.0
      %v1344 = vmax.f32 %v1236, 0.0
      %v1345 = vmax.f32 %v1237, 0.0
      %v1346 = vmax.f32 %v1238, 0.0
      %v1347 = vmax.f32 %v1239, 0.0
      %v1348 = vmax.f32 %v1240, 0.0
      %v1349 = vmax.f32 %v1241, 0.0
      %v1350 = vmax.f32 %v1242, 0.0
      %v1351 = vmax.f32 %v1243, 0.0
      %v1352 = vmax.f32 %v1244, 0.0
      %v1353 = vmax.f32 %v1245, 0.0
      %v1354 = vmax.f32 %v1246, 0.0
      %v1355 = vmax.f32 %v1247, 0.0
      %v1356 = vmax.f32 %v1248, 0.0
      %v1357 = vmax.f32 %v1249, 0.0
      %v1358 = vmax.f32 %v1250, 0.0
      %v1359 = vmax.f32 %v1251, 0.0
      %v1360 = vmax.f32 %v1252, 0.0
      %v1361 = vmax.f32 %v1253, 0.0
      %v1362 = vmax.f32 %v1254, 0.0
      %v1363 = vmax.f32 %v1255, 0.0
      %v1364 = vmax.f32 %v1256, 0.0
      %v1365 = vmax.f32 %v1257, 0.0
      %v1366 = vmax.f32 %v1258, 0.0
      %v1367 = vmax.f32 %v1259, 0.0
      %v1368 = vmax.f32 %v1260, 0.0
      %v1369 = vmax.f32 %v1261, 0.0
      %v1370 = vmax.f32 %v1262, 0.0
      %v1371 = vstv %s251
      %v1372 = vadd.s32 %v1371, 1
      %v1373 = vadd.s32 %v1371, 2
      %v1374 = vadd.s32 %v1371, 3
      %v1375 = vadd.s32 %v1371, 4
      %v1376 = vadd.s32 %v1371, 5
      %v1377 = vadd.s32 %v1371, 6
      %v1378 = vadd.s32 %v1371, 7
      %v1379 = vadd.s32 %v1371, 8
      %v1380 = vadd.s32 %v1371, 9
      %v1381 = vadd.s32 %v1371, 10
      %v1382 = vadd.s32 %v1371, 11
      %v1383 = vadd.s32 %v1371, 12
      %v1384 = vadd.s32 %v1371, 13
      %v1385 = vadd.s32 %v1371, 14
      %v1386 = vadd.s32 %v1371, 15
      %v1387 = vadd.s32 %v1371, 16
      %v1388 = vadd.s32 %v1371, 17
      %v1389 = vlaneseq
      %v1390 = vshrl.u32 %v1389, 7
      %v1391 = vadd.s32 %v1390, 8
      %v1392 = vadd.s32 %v1390, 16
      %vm1393 = vcmp.ge.s32.totalorder %v1371, 1
      %vm1394 = vcmp.ge.s32.totalorder %v1372, 1
      %vm1395 = vcmp.ge.s32.totalorder %v1373, 1
      %vm1396 = vcmp.ge.s32.totalorder %v1374, 1
      %vm1397 = vcmp.ge.s32.totalorder %v1375, 1
      %vm1398 = vcmp.ge.s32.totalorder %v1376, 1
      %vm1399 = vcmp.ge.s32.totalorder %v1377, 1
      %vm1400 = vcmp.ge.s32.totalorder %v1378, 1
      %vm1401 = vcmp.ge.s32.totalorder %v1379, 1
      %vm1402 = vcmp.ge.s32.totalorder %v1380, 1
      %vm1403 = vcmp.ge.s32.totalorder %v1381, 1
      %vm1404 = vcmp.ge.s32.totalorder %v1382, 1
      %vm1405 = vcmp.ge.s32.totalorder %v1383, 1
      %vm1406 = vcmp.ge.s32.totalorder %v1384, 1
      %vm1407 = vcmp.ge.s32.totalorder %v1385, 1
      %vm1408 = vcmp.ge.s32.totalorder %v1386, 1
      %vm1409 = vcmp.ge.s32.totalorder %v1387, 1
      %vm1410 = vcmp.ge.s32.totalorder %v1388, 1
      %vm1411 = vcmp.le.s32.totalorder %v1371, 16
      %vm1412 = vcmp.le.s32.totalorder %v1372, 16
      %vm1413 = vcmp.le.s32.totalorder %v1373, 16
      %vm1414 = vcmp.le.s32.totalorder %v1374, 16
      %vm1415 = vcmp.le.s32.totalorder %v1375, 16
      %vm1416 = vcmp.le.s32.totalorder %v1376, 16
      %vm1417 = vcmp.le.s32.totalorder %v1377, 16
      %vm1418 = vcmp.le.s32.totalorder %v1378, 16
      %vm1419 = vcmp.le.s32.totalorder %v1379, 16
      %vm1420 = vcmp.le.s32.totalorder %v1380, 16
      %vm1421 = vcmp.le.s32.totalorder %v1381, 16
      %vm1422 = vcmp.le.s32.totalorder %v1382, 16
      %vm1423 = vcmp.le.s32.totalorder %v1383, 16
      %vm1424 = vcmp.le.s32.totalorder %v1384, 16
      %vm1425 = vcmp.le.s32.totalorder %v1385, 16
      %vm1426 = vcmp.le.s32.totalorder %v1386, 16
      %vm1427 = vcmp.le.s32.totalorder %v1387, 16
      %vm1428 = vcmp.le.s32.totalorder %v1388, 16
      %vm1429 = vmand %vm1393, %vm1411
      %vm1430 = vmand %vm1394, %vm1412
      %vm1431 = vmand %vm1395, %vm1413
      %vm1432 = vmand %vm1396, %vm1414
      %vm1433 = vmand %vm1397, %vm1415
      %vm1434 = vmand %vm1398, %vm1416
      %vm1435 = vmand %vm1399, %vm1417
      %vm1436 = vmand %vm1400, %vm1418
      %vm1437 = vmand %vm1401, %vm1419
      %vm1438 = vmand %vm1402, %vm1420
      %vm1439 = vmand %vm1403, %vm1421
      %vm1440 = vmand %vm1404, %vm1422
      %vm1441 = vmand %vm1405, %vm1423
      %vm1442 = vmand %vm1406, %vm1424
      %vm1443 = vmand %vm1407, %vm1425
      %vm1444 = vmand %vm1408, %vm1426
      %vm1445 = vmand %vm1409, %vm1427
      %vm1446 = vmand %vm1410, %vm1428
      %vm1447 = vcmp.ge.s32.totalorder %v1390, 1
      %vm1448 = vcmp.ge.s32.totalorder %v1391, 1
      %vm1449 = vcmp.ge.s32.totalorder %v1392, 1
      %vm1450 = vmand %vm1429, %vm1447
      %vm1451 = vmand %vm1429, %vm1448
      %vm1452 = vmand %vm1429, %vm1449
      %vm1453 = vmand %vm1430, %vm1447
      %vm1454 = vmand %vm1430, %vm1448
      %vm1455 = vmand %vm1430, %vm1449
      %vm1456 = vmand %vm1431, %vm1447
      %vm1457 = vmand %vm1431, %vm1448
      %vm1458 = vmand %vm1431, %vm1449
      %vm1459 = vmand %vm1432, %vm1447
      %vm1460 = vmand %vm1432, %vm1448
      %vm1461 = vmand %vm1432, %vm1449
      %vm1462 = vmand %vm1433, %vm1447
      %vm1463 = vmand %vm1433, %vm1448
      %vm1464 = vmand %vm1433, %vm1449
      %vm1465 = vmand %vm1434, %vm1447
      %vm1466 = vmand %vm1434, %vm1448
      %vm1467 = vmand %vm1434, %vm1449
      %vm1468 = vmand %vm1435, %vm1447
      %vm1469 = vmand %vm1435, %vm1448
      %vm1470 = vmand %vm1435, %vm1449
      %vm1471 = vmand %vm1436, %vm1447
      %vm1472 = vmand %vm1436, %vm1448
      %vm1473 = vmand %vm1436, %vm1449
      %vm1474 = vmand %vm1437, %vm1447
      %vm1475 = vmand %vm1437, %vm1448
      %vm1476 = vmand %vm1437, %vm1449
      %vm1477 = vmand %vm1438, %vm1447
      %vm1478 = vmand %vm1438, %vm1448
      %vm1479 = vmand %vm1438, %vm1449
      %vm1480 = vmand %vm1439, %vm1447
      %vm1481 = vmand %vm1439, %vm1448
      %vm1482 = vmand %vm1439, %vm1449
      %vm1483 = vmand %vm1440, %vm1447
      %vm1484 = vmand %vm1440, %vm1448
      %vm1485 = vmand %vm1440, %vm1449
      %vm1486 = vmand %vm1441, %vm1447
      %vm1487 = vmand %vm1441, %vm1448
      %vm1488 = vmand %vm1441, %vm1449
      %vm1489 = vmand %vm1442, %vm1447
      %vm1490 = vmand %vm1442, %vm1448
      %vm1491 = vmand %vm1442, %vm1449
      %vm1492 = vmand %vm1443, %vm1447
      %vm1493 = vmand %vm1443, %vm1448
      %vm1494 = vmand %vm1443, %vm1449
      %vm1495 = vmand %vm1444, %vm1447
      %vm1496 = vmand %vm1444, %vm1448
      %vm1497 = vmand %vm1444, %vm1449
      %vm1498 = vmand %vm1445, %vm1447
      %vm1499 = vmand %vm1445, %vm1448
      %vm1500 = vmand %vm1445, %vm1449
      %vm1501 = vmand %vm1446, %vm1447
      %vm1502 = vmand %vm1446, %vm1448
      %vm1503 = vmand %vm1446, %vm1449
      %vm1504 = vcmp.le.s32.totalorder %v1390, 16
      %vm1505 = vcmp.le.s32.totalorder %v1391, 16
      %vm1506 = vcmp.le.s32.totalorder %v1392, 16
      %vm1507 = vmand %vm1450, %vm1504
      %vm1508 = vmand %vm1451, %vm1505
      %vm1509 = vmand %vm1452, %vm1506
      %vm1510 = vmand %vm1453, %vm1504
      %vm1511 = vmand %vm1454, %vm1505
      %vm1512 = vmand %vm1455, %vm1506
      %vm1513 = vmand %vm1456, %vm1504
      %vm1514 = vmand %vm1457, %vm1505
      %vm1515 = vmand %vm1458, %vm1506
      %vm1516 = vmand %vm1459, %vm1504
      %vm1517 = vmand %vm1460, %vm1505
      %vm1518 = vmand %vm1461, %vm1506
      %vm1519 = vmand %vm1462, %vm1504
      %vm1520 = vmand %vm1463, %vm1505
      %vm1521 = vmand %vm1464, %vm1506
      %vm1522 = vmand %vm1465, %vm1504
      %vm1523 = vmand %vm1466, %vm1505
      %vm1524 = vmand %vm1467, %vm1506
      %vm1525 = vmand %vm1468, %vm1504
      %vm1526 = vmand %vm1469, %vm1505
      %vm1527 = vmand %vm1470, %vm1506
      %vm1528 = vmand %vm1471, %vm1504
      %vm1529 = vmand %vm1472, %vm1505
      %vm1530 = vmand %vm1473, %vm1506
      %vm1531 = vmand %vm1474, %vm1504
      %vm1532 = vmand %vm1475, %vm1505
      %vm1533 = vmand %vm1476, %vm1506
      %vm1534 = vmand %vm1477, %vm1504
      %vm1535 = vmand %vm1478, %vm1505
      %vm1536 = vmand %vm1479, %vm1506
      %vm1537 = vmand %vm1480, %vm1504
      %vm1538 = vmand %vm1481, %vm1505
      %vm1539 = vmand %vm1482, %vm1506
      %vm1540 = vmand %vm1483, %vm1504
      %vm1541 = vmand %vm1484, %vm1505
      %vm1542 = vmand %vm1485, %vm1506
      %vm1543 = vmand %vm1486, %vm1504
      %vm1544 = vmand %vm1487, %vm1505
      %vm1545 = vmand %vm1488, %vm1506
      %vm1546 = vmand %vm1489, %vm1504
      %vm1547 = vmand %vm1490, %vm1505
      %vm1548 = vmand %vm1491, %vm1506
      %vm1549 = vmand %vm1492, %vm1504
      %vm1550 = vmand %vm1493, %vm1505
      %vm1551 = vmand %vm1494, %vm1506
      %vm1552 = vmand %vm1495, %vm1504
      %vm1553 = vmand %vm1496, %vm1505
      %vm1554 = vmand %vm1497, %vm1506
      %vm1555 = vmand %vm1498, %vm1504
      %vm1556 = vmand %vm1499, %vm1505
      %vm1557 = vmand %vm1500, %vm1506
      %vm1558 = vmand %vm1501, %vm1504
      %vm1559 = vmand %vm1502, %vm1505
      %vm1560 = vmand %vm1503, %vm1506
      %v1561 = vsel %vm1507, 1, 0
      %v1562 = vsel %vm1508, 1, 0
      %v1563 = vsel %vm1509, 1, 0
      %v1564 = vsel %vm1510, 1, 0
      %v1565 = vsel %vm1511, 1, 0
      %v1566 = vsel %vm1512, 1, 0
      %v1567 = vsel %vm1513, 1, 0
      %v1568 = vsel %vm1514, 1, 0
      %v1569 = vsel %vm1515, 1, 0
      %v1570 = vsel %vm1516, 1, 0
      %v1571 = vsel %vm1517, 1, 0
      %v1572 = vsel %vm1518, 1, 0
      %v1573 = vsel %vm1519, 1, 0
      %v1574 = vsel %vm1520, 1, 0
      %v1575 = vsel %vm1521, 1, 0
      %v1576 = vsel %vm1522, 1, 0
      %v1577 = vsel %vm1523, 1, 0
      %v1578 = vsel %vm1524, 1, 0
      %v1579 = vsel %vm1525, 1, 0
      %v1580 = vsel %vm1526, 1, 0
      %v1581 = vsel %vm1527, 1, 0
      %v1582 = vsel %vm1528, 1, 0
      %v1583 = vsel %vm1529, 1, 0
      %v1584 = vsel %vm1530, 1, 0
      %v1585 = vsel %vm1531, 1, 0
      %v1586 = vsel %vm1532, 1, 0
      %v1587 = vsel %vm1533, 1, 0
      %v1588 = vsel %vm1534, 1, 0
      %v1589 = vsel %vm1535, 1, 0
      %v1590 = vsel %vm1536, 1, 0
      %v1591 = vsel %vm1537, 1, 0
      %v1592 = vsel %vm1538, 1, 0
      %v1593 = vsel %vm1539, 1, 0
      %v1594 = vsel %vm1540, 1, 0
      %v1595 = vsel %vm1541, 1, 0
      %v1596 = vsel %vm1542, 1, 0
      %v1597 = vsel %vm1543, 1, 0
      %v1598 = vsel %vm1544, 1, 0
      %v1599 = vsel %vm1545, 1, 0
      %v1600 = vsel %vm1546, 1, 0
      %v1601 = vsel %vm1547, 1, 0
      %v1602 = vsel %vm1548, 1, 0
      %v1603 = vsel %vm1549, 1, 0
      %v1604 = vsel %vm1550, 1, 0
      %v1605 = vsel %vm1551, 1, 0
      %v1606 = vsel %vm1552, 1, 0
      %v1607 = vsel %vm1553, 1, 0
      %v1608 = vsel %vm1554, 1, 0
      %v1609 = vsel %vm1555, 1, 0
      %v1610 = vsel %vm1556, 1, 0
      %v1611 = vsel %vm1557, 1, 0
      %v1612 = vsel %vm1558, 1, 0
      %v1613 = vsel %vm1559, 1, 0
      %v1614 = vsel %vm1560, 1, 0
      %vm1615 = vcmp.eq.s32.totalorder %v1561, 1
      %vm1616 = vcmp.eq.s32.totalorder %v1562, 1
      %vm1617 = vcmp.eq.s32.totalorder %v1563, 1
      %vm1618 = vcmp.eq.s32.totalorder %v1564, 1
      %vm1619 = vcmp.eq.s32.totalorder %v1565, 1
      %vm1620 = vcmp.eq.s32.totalorder %v1566, 1
      %vm1621 = vcmp.eq.s32.totalorder %v1567, 1
      %vm1622 = vcmp.eq.s32.totalorder %v1568, 1
      %vm1623 = vcmp.eq.s32.totalorder %v1569, 1
      %vm1624 = vcmp.eq.s32.totalorder %v1570, 1
      %vm1625 = vcmp.eq.s32.totalorder %v1571, 1
      %vm1626 = vcmp.eq.s32.totalorder %v1572, 1
      %vm1627 = vcmp.eq.s32.totalorder %v1573, 1
      %vm1628 = vcmp.eq.s32.totalorder %v1574, 1
      %vm1629 = vcmp.eq.s32.totalorder %v1575, 1
      %vm1630 = vcmp.eq.s32.totalorder %v1576, 1
      %vm1631 = vcmp.eq.s32.totalorder %v1577, 1
      %vm1632 = vcmp.eq.s32.totalorder %v1578, 1
      %vm1633 = vcmp.eq.s32.totalorder %v1579, 1
      %vm1634 = vcmp.eq.s32.totalorder %v1580, 1
      %vm1635 = vcmp.eq.s32.totalorder %v1581, 1
      %vm1636 = vcmp.eq.s32.totalorder %v1582, 1
      %vm1637 = vcmp.eq.s32.totalorder %v1583, 1
      %vm1638 = vcmp.eq.s32.totalorder %v1584, 1
      %vm1639 = vcmp.eq.s32.totalorder %v1585, 1
      %vm1640 = vcmp.eq.s32.totalorder %v1586, 1
      %vm1641 = vcmp.eq.s32.totalorder %v1587, 1
      %vm1642 = vcmp.eq.s32.totalorder %v1588, 1
      %vm1643 = vcmp.eq.s32.totalorder %v1589, 1
      %vm1644 = vcmp.eq.s32.totalorder %v1590, 1
      %vm1645 = vcmp.eq.s32.totalorder %v1591, 1
      %vm1646 = vcmp.eq.s32.totalorder %v1592, 1
      %vm1647 = vcmp.eq.s32.totalorder %v1593, 1
      %vm1648 = vcmp.eq.s32.totalorder %v1594, 1
      %vm1649 = vcmp.eq.s32.totalorder %v1595, 1
      %vm1650 = vcmp.eq.s32.totalorder %v1596, 1
      %vm1651 = vcmp.eq.s32.totalorder %v1597, 1
      %vm1652 = vcmp.eq.s32.totalorder %v1598, 1
      %vm1653 = vcmp.eq.s32.totalorder %v1599, 1
      %vm1654 = vcmp.eq.s32.totalorder %v1600, 1
      %vm1655 = vcmp.eq.s32.totalorder %v1601, 1
      %vm1656 = vcmp.eq.s32.totalorder %v1602, 1
      %vm1657 = vcmp.eq.s32.totalorder %v1603, 1
      %vm1658 = vcmp.eq.s32.totalorder %v1604, 1
      %vm1659 = vcmp.eq.s32.totalorder %v1605, 1
      %vm1660 = vcmp.eq.s32.totalorder %v1606, 1
      %vm1661 = vcmp.eq.s32.totalorder %v1607, 1
      %vm1662 = vcmp.eq.s32.totalorder %v1608, 1
      %vm1663 = vcmp.eq.s32.totalorder %v1609, 1
      %vm1664 = vcmp.eq.s32.totalorder %v1610, 1
      %vm1665 = vcmp.eq.s32.totalorder %v1611, 1
      %vm1666 = vcmp.eq.s32.totalorder %v1612, 1
      %vm1667 = vcmp.eq.s32.totalorder %v1613, 1
      %vm1668 = vcmp.eq.s32.totalorder %v1614, 1
      %v1669 = vsel %vm1615, %v1263, 0.0
      %v1670 = vsel %vm1615, %v1264, 0.0
      %v1671 = vsel %vm1616, %v1265, 0.0
      %v1672 = vsel %vm1616, %v1266, 0.0
      %v1673 = vsel %vm1617, %v1267, 0.0
      %v1674 = vsel %vm1617, %v1268, 0.0
      %v1675 = vsel %vm1618, %v1269, 0.0
      %v1676 = vsel %vm1618, %v1270, 0.0
      %v1677 = vsel %vm1619, %v1271, 0.0
      %v1678 = vsel %vm1619, %v1272, 0.0
      %v1679 = vsel %vm1620, %v1273, 0.0
      %v1680 = vsel %vm1620, %v1274, 0.0
      %v1681 = vsel %vm1621, %v1275, 0.0
      %v1682 = vsel %vm1621, %v1276, 0.0
      %v1683 = vsel %vm1622, %v1277, 0.0
      %v1684 = vsel %vm1622, %v1278, 0.0
      %v1685 = vsel %vm1623, %v1279, 0.0
      %v1686 = vsel %vm1623, %v1280, 0.0
      %v1687 = vsel %vm1624, %v1281, 0.0
      %v1688 = vsel %vm1624, %v1282, 0.0
      %v1689 = vsel %vm1625, %v1283, 0.0
      %v1690 = vsel %vm1625, %v1284, 0.0
      %v1691 = vsel %vm1626, %v1285, 0.0
      %v1692 = vsel %vm1626, %v1286, 0.0
      %v1693 = vsel %vm1627, %v1287, 0.0
      %v1694 = vsel %vm1627, %v1288, 0.0
      %v1695 = vsel %vm1628, %v1289, 0.0
      %v1696 = vsel %vm1628, %v1290, 0.0
      %v1697 = vsel %vm1629, %v1291, 0.0
      %v1698 = vsel %vm1629, %v1292, 0.0
      %v1699 = vsel %vm1630, %v1293, 0.0
      %v1700 = vsel %vm1630, %v1294, 0.0
      %v1701 = vsel %vm1631, %v1295, 0.0
      %v1702 = vsel %vm1631, %v1296, 0.0
      %v1703 = vsel %vm1632, %v1297, 0.0
      %v1704 = vsel %vm1632, %v1298, 0.0
      %v1705 = vsel %vm1633, %v1299, 0.0
      %v1706 = vsel %vm1633, %v1300, 0.0
      %v1707 = vsel %vm1634, %v1301, 0.0
      %v1708 = vsel %vm1634, %v1302, 0.0
      %v1709 = vsel %vm1635, %v1303, 0.0
      %v1710 = vsel %vm1635, %v1304, 0.0
      %v1711 = vsel %vm1636, %v1305, 0.0
      %v1712 = vsel %vm1636, %v1306, 0.0
      %v1713 = vsel %vm1637, %v1307, 0.0
      %v1714 = vsel %vm1637, %v1308, 0.0
      %v1715 = vsel %vm1638, %v1309, 0.0
      %v1716 = vsel %vm1638, %v1310, 0.0
      %v1717 = vsel %vm1639, %v1311, 0.0
      %v1718 = vsel %vm1639, %v1312, 0.0
      %v1719 = vsel %vm1640, %v1313, 0.0
      %v1720 = vsel %vm1640, %v1314, 0.0
      %v1721 = vsel %vm1641, %v1315, 0.0
      %v1722 = vsel %vm1641, %v1316, 0.0
      %v1723 = vsel %vm1642, %v1317, 0.0
      %v1724 = vsel %vm1642, %v1318, 0.0
      %v1725 = vsel %vm1643, %v1319, 0.0
      %v1726 = vsel %vm1643, %v1320, 0.0
      %v1727 = vsel %vm1644, %v1321, 0.0
      %v1728 = vsel %vm1644, %v1322, 0.0
      %v1729 = vsel %vm1645, %v1323, 0.0
      %v1730 = vsel %vm1645, %v1324, 0.0
      %v1731 = vsel %vm1646, %v1325, 0.0
      %v1732 = vsel %vm1646, %v1326, 0.0
      %v1733 = vsel %vm1647, %v1327, 0.0
      %v1734 = vsel %vm1647, %v1328, 0.0
      %v1735 = vsel %vm1648, %v1329, 0.0
      %v1736 = vsel %vm1648, %v1330, 0.0
      %v1737 = vsel %vm1649, %v1331, 0.0
      %v1738 = vsel %vm1649, %v1332, 0.0
      %v1739 = vsel %vm1650, %v1333, 0.0
      %v1740 = vsel %vm1650, %v1334, 0.0
      %v1741 = vsel %vm1651, %v1335, 0.0
      %v1742 = vsel %vm1651, %v1336, 0.0
      %v1743 = vsel %vm1652, %v1337, 0.0
      %v1744 = vsel %vm1652, %v1338, 0.0
      %v1745 = vsel %vm1653, %v1339, 0.0
      %v1746 = vsel %vm1653, %v1340, 0.0
      %v1747 = vsel %vm1654, %v1341, 0.0
      %v1748 = vsel %vm1654, %v1342, 0.0
      %v1749 = vsel %vm1655, %v1343, 0.0
      %v1750 = vsel %vm1655, %v1344, 0.0
      %v1751 = vsel %vm1656, %v1345, 0.0
      %v1752 = vsel %vm1656, %v1346, 0.0
      %v1753 = vsel %vm1657, %v1347, 0.0
      %v1754 = vsel %vm1657, %v1348, 0.0
      %v1755 = vsel %vm1658, %v1349, 0.0
      %v1756 = vsel %vm1658, %v1350, 0.0
      %v1757 = vsel %vm1659, %v1351, 0.0
      %v1758 = vsel %vm1659, %v1352, 0.0
      %v1759 = vsel %vm1660, %v1353, 0.0
      %v1760 = vsel %vm1660, %v1354, 0.0
      %v1761 = vsel %vm1661, %v1355, 0.0
      %v1762 = vsel %vm1661, %v1356, 0.0
      %v1763 = vsel %vm1662, %v1357, 0.0
      %v1764 = vsel %vm1662, %v1358, 0.0
      %v1765 = vsel %vm1663, %v1359, 0.0
      %v1766 = vsel %vm1663, %v1360, 0.0
      %v1767 = vsel %vm1664, %v1361, 0.0
      %v1768 = vsel %vm1664, %v1362, 0.0
      %v1769 = vsel %vm1665, %v1363, 0.0
      %v1770 = vsel %vm1665, %v1364, 0.0
      %v1771 = vsel %vm1666, %v1365, 0.0
      %v1772 = vsel %vm1666, %v1366, 0.0
      %v1773 = vsel %vm1667, %v1367, 0.0
      %v1774 = vsel %vm1667, %v1368, 0.0
      %v1775 = vsel %vm1668, %v1369, 0.0
      %v1776 = vsel %vm1668, %v1370, 0.0
      %v1777 = vpack.c.bf16 %v1671, %v1669
      %v1778 = vpack.c.bf16 %v1672, %v1670
      %v1779 = vpack.c.bf16 %v1675, %v1673
      %v1780 = vpack.c.bf16 %v1676, %v1674
      %v1781 = vpack.c.bf16 %v1679, %v1677
      %v1782 = vpack.c.bf16 %v1680, %v1678
      %v1783 = vpack.c.bf16 %v1683, %v1681
      %v1784 = vpack.c.bf16 %v1684, %v1682
      %v1785 = vpack.c.bf16 %v1687, %v1685
      %v1786 = vpack.c.bf16 %v1688, %v1686
      %v1787 = vpack.c.bf16 %v1691, %v1689
      %v1788 = vpack.c.bf16 %v1692, %v1690
      %v1789 = vpack.c.bf16 %v1695, %v1693
      %v1790 = vpack.c.bf16 %v1696, %v1694
      %v1791 = vpack.c.bf16 %v1699, %v1697
      %v1792 = vpack.c.bf16 %v1700, %v1698
      %v1793 = vpack.c.bf16 %v1703, %v1701
      %v1794 = vpack.c.bf16 %v1704, %v1702
      %v1795 = vpack.c.bf16 %v1707, %v1705
      %v1796 = vpack.c.bf16 %v1708, %v1706
      %v1797 = vpack.c.bf16 %v1711, %v1709
      %v1798 = vpack.c.bf16 %v1712, %v1710
      %v1799 = vpack.c.bf16 %v1715, %v1713
      %v1800 = vpack.c.bf16 %v1716, %v1714
      %v1801 = vpack.c.bf16 %v1719, %v1717
      %v1802 = vpack.c.bf16 %v1720, %v1718
      %v1803 = vpack.c.bf16 %v1723, %v1721
      %v1804 = vpack.c.bf16 %v1724, %v1722
      %v1805 = vpack.c.bf16 %v1727, %v1725
      %v1806 = vpack.c.bf16 %v1728, %v1726
      %v1807 = vpack.c.bf16 %v1731, %v1729
      %v1808 = vpack.c.bf16 %v1732, %v1730
      %v1809 = vpack.c.bf16 %v1735, %v1733
      %v1810 = vpack.c.bf16 %v1736, %v1734
      %v1811 = vpack.c.bf16 %v1739, %v1737
      %v1812 = vpack.c.bf16 %v1740, %v1738
      %v1813 = vpack.c.bf16 %v1743, %v1741
      %v1814 = vpack.c.bf16 %v1744, %v1742
      %v1815 = vpack.c.bf16 %v1747, %v1745
      %v1816 = vpack.c.bf16 %v1748, %v1746
      %v1817 = vpack.c.bf16 %v1751, %v1749
      %v1818 = vpack.c.bf16 %v1752, %v1750
      %v1819 = vpack.c.bf16 %v1755, %v1753
      %v1820 = vpack.c.bf16 %v1756, %v1754
      %v1821 = vpack.c.bf16 %v1759, %v1757
      %v1822 = vpack.c.bf16 %v1760, %v1758
      %v1823 = vpack.c.bf16 %v1763, %v1761
      %v1824 = vpack.c.bf16 %v1764, %v1762
      %v1825 = vpack.c.bf16 %v1767, %v1765
      %v1826 = vpack.c.bf16 %v1768, %v1766
      %v1827 = vpack.c.bf16 %v1771, %v1769
      %v1828 = vpack.c.bf16 %v1772, %v1770
      %v1829 = vpack.c.bf16 %v1775, %v1773
      %v1830 = vpack.c.bf16 %v1776, %v1774
      %v1885 = vunpack.c.l.b16 %v1777
      %v1886 = vunpack.c.l.b16 %v1778
      %v1887 = vunpack.c.h.b16 %v1777
      %v1888 = vunpack.c.h.b16 %v1778
      %v1889 = vunpack.c.l.b16 %v1779
      %v1890 = vunpack.c.l.b16 %v1780
      %v1891 = vunpack.c.h.b16 %v1779
      %v1892 = vunpack.c.h.b16 %v1780
      %v1893 = vunpack.c.l.b16 %v1781
      %v1894 = vunpack.c.l.b16 %v1782
      %v1895 = vunpack.c.h.b16 %v1781
      %v1896 = vunpack.c.h.b16 %v1782
      %v1897 = vunpack.c.l.b16 %v1783
      %v1898 = vunpack.c.l.b16 %v1784
      %v1899 = vunpack.c.h.b16 %v1783
      %v1900 = vunpack.c.h.b16 %v1784
      %v1901 = vunpack.c.l.b16 %v1785
      %v1902 = vunpack.c.l.b16 %v1786
      %v1903 = vunpack.c.h.b16 %v1785
      %v1904 = vunpack.c.h.b16 %v1786
      %v1905 = vunpack.c.l.b16 %v1787
      %v1906 = vunpack.c.l.b16 %v1788
      %v1907 = vunpack.c.h.b16 %v1787
      %v1908 = vunpack.c.h.b16 %v1788
      %v1909 = vunpack.c.l.b16 %v1789
      %v1910 = vunpack.c.l.b16 %v1790
      %v1911 = vunpack.c.h.b16 %v1789
      %v1912 = vunpack.c.h.b16 %v1790
      %v1913 = vunpack.c.l.b16 %v1791
      %v1914 = vunpack.c.l.b16 %v1792
      %v1915 = vunpack.c.h.b16 %v1791
      %v1916 = vunpack.c.h.b16 %v1792
      %v1917 = vunpack.c.l.b16 %v1793
      %v1918 = vunpack.c.l.b16 %v1794
      %v1919 = vunpack.c.h.b16 %v1793
      %v1920 = vunpack.c.h.b16 %v1794
      %v1921 = vunpack.c.l.b16 %v1795
      %v1922 = vunpack.c.l.b16 %v1796
      %v1923 = vunpack.c.h.b16 %v1795
      %v1924 = vunpack.c.h.b16 %v1796
      %v1925 = vunpack.c.l.b16 %v1797
      %v1926 = vunpack.c.l.b16 %v1798
      %v1927 = vunpack.c.h.b16 %v1797
      %v1928 = vunpack.c.h.b16 %v1798
      %v1929 = vunpack.c.l.b16 %v1799
      %v1930 = vunpack.c.l.b16 %v1800
      %v1931 = vunpack.c.h.b16 %v1799
      %v1932 = vunpack.c.h.b16 %v1800
      %v1933 = vunpack.c.l.b16 %v1801
      %v1934 = vunpack.c.l.b16 %v1802
      %v1935 = vunpack.c.h.b16 %v1801
      %v1936 = vunpack.c.h.b16 %v1802
      %v1937 = vunpack.c.l.b16 %v1803
      %v1938 = vunpack.c.l.b16 %v1804
      %v1939 = vunpack.c.h.b16 %v1803
      %v1940 = vunpack.c.h.b16 %v1804
      %v1941 = vunpack.c.l.b16 %v1805
      %v1942 = vunpack.c.l.b16 %v1806
      %v1943 = vunpack.c.h.b16 %v1805
      %v1944 = vunpack.c.h.b16 %v1806
      %v1945 = vunpack.c.l.b16 %v1807
      %v1946 = vunpack.c.l.b16 %v1808
      %v1947 = vunpack.c.h.b16 %v1807
      %v1948 = vunpack.c.h.b16 %v1808
      %v1949 = vunpack.c.l.b16 %v1809
      %v1950 = vunpack.c.l.b16 %v1810
      %v1951 = vunpack.c.h.b16 %v1809
      %v1952 = vunpack.c.h.b16 %v1810
      %v1953 = vunpack.c.l.b16 %v1811
      %v1954 = vunpack.c.l.b16 %v1812
      %v1955 = vunpack.c.h.b16 %v1811
      %v1956 = vunpack.c.h.b16 %v1812
      %v1957 = vunpack.c.l.b16 %v1813
      %v1958 = vunpack.c.l.b16 %v1814
      %v1959 = vunpack.c.h.b16 %v1813
      %v1960 = vunpack.c.h.b16 %v1814
      %v1961 = vunpack.c.l.b16 %v1815
      %v1962 = vunpack.c.l.b16 %v1816
      %v1963 = vunpack.c.h.b16 %v1815
      %v1964 = vunpack.c.h.b16 %v1816
      %v1965 = vunpack.c.l.b16 %v1817
      %v1966 = vunpack.c.l.b16 %v1818
      %v1967 = vunpack.c.h.b16 %v1817
      %v1968 = vunpack.c.h.b16 %v1818
      %v1969 = vunpack.c.l.b16 %v1819
      %v1970 = vunpack.c.l.b16 %v1820
      %v1971 = vunpack.c.h.b16 %v1819
      %v1972 = vunpack.c.h.b16 %v1820
      %v1973 = vunpack.c.l.b16 %v1821
      %v1974 = vunpack.c.l.b16 %v1822
      %v1975 = vunpack.c.h.b16 %v1821
      %v1976 = vunpack.c.h.b16 %v1822
      %v1977 = vunpack.c.l.b16 %v1823
      %v1978 = vunpack.c.l.b16 %v1824
      %v1979 = vunpack.c.h.b16 %v1823
      %v1980 = vunpack.c.h.b16 %v1824
      %v1981 = vunpack.c.l.b16 %v1825
      %v1982 = vunpack.c.l.b16 %v1826
      %v1983 = vunpack.c.h.b16 %v1825
      %v1984 = vunpack.c.h.b16 %v1826
      %v1985 = vunpack.c.l.b16 %v1827
      %v1986 = vunpack.c.l.b16 %v1828
      %v1987 = vunpack.c.h.b16 %v1827
      %v1988 = vunpack.c.h.b16 %v1828
      %v1989 = vunpack.c.l.b16 %v1829
      %v1990 = vunpack.c.l.b16 %v1830
      %v1991 = vunpack.c.h.b16 %v1829
      %v1992 = vunpack.c.h.b16 %v1830
      %v1993 = vpack.c.b16 %v1886, %v1885
      %v1994 = vpack.c.b16 %v1888, %v1887
      %v1995 = vpack.c.b16 %v1890, %v1889
      %v1996 = vpack.c.b16 %v1892, %v1891
      %v1997 = vpack.c.b16 %v1894, %v1893
      %v1998 = vpack.c.b16 %v1896, %v1895
      %v1999 = vpack.c.b16 %v1898, %v1897
      %v2000 = vpack.c.b16 %v1900, %v1899
      %v2001 = vpack.c.b16 %v1902, %v1901
      %v2002 = vpack.c.b16 %v1904, %v1903
      %v2003 = vpack.c.b16 %v1906, %v1905
      %v2004 = vpack.c.b16 %v1908, %v1907
      %v2005 = vpack.c.b16 %v1910, %v1909
      %v2006 = vpack.c.b16 %v1912, %v1911
      %v2007 = vpack.c.b16 %v1914, %v1913
      %v2008 = vpack.c.b16 %v1916, %v1915
      %v2009 = vpack.c.b16 %v1918, %v1917
      %v2010 = vpack.c.b16 %v1920, %v1919
      %v2011 = vpack.c.b16 %v1922, %v1921
      %v2012 = vpack.c.b16 %v1924, %v1923
      %v2013 = vpack.c.b16 %v1926, %v1925
      %v2014 = vpack.c.b16 %v1928, %v1927
      %v2015 = vpack.c.b16 %v1930, %v1929
      %v2016 = vpack.c.b16 %v1932, %v1931
      %v2017 = vpack.c.b16 %v1934, %v1933
      %v2018 = vpack.c.b16 %v1936, %v1935
      %v2019 = vpack.c.b16 %v1938, %v1937
      %v2020 = vpack.c.b16 %v1940, %v1939
      %v2021 = vpack.c.b16 %v1942, %v1941
      %v2022 = vpack.c.b16 %v1944, %v1943
      %v2023 = vpack.c.b16 %v1946, %v1945
      %v2024 = vpack.c.b16 %v1948, %v1947
      %v2025 = vpack.c.b16 %v1950, %v1949
      %v2026 = vpack.c.b16 %v1952, %v1951
      %v2027 = vpack.c.b16 %v1954, %v1953
      %v2028 = vpack.c.b16 %v1956, %v1955
      %v2029 = vpack.c.b16 %v1958, %v1957
      %v2030 = vpack.c.b16 %v1960, %v1959
      %v2031 = vpack.c.b16 %v1962, %v1961
      %v2032 = vpack.c.b16 %v1964, %v1963
      %v2033 = vpack.c.b16 %v1966, %v1965
      %v2034 = vpack.c.b16 %v1968, %v1967
      %v2035 = vpack.c.b16 %v1970, %v1969
      %v2036 = vpack.c.b16 %v1972, %v1971
      %v2037 = vpack.c.b16 %v1974, %v1973
      %v2038 = vpack.c.b16 %v1976, %v1975
      %v2039 = vpack.c.b16 %v1978, %v1977
      %v2040 = vpack.c.b16 %v1980, %v1979
      %v2041 = vpack.c.b16 %v1982, %v1981
      %v2042 = vpack.c.b16 %v1984, %v1983
      %v2043 = vpack.c.b16 %v1986, %v1985
      %v2044 = vpack.c.b16 %v1988, %v1987
      %v2045 = vpack.c.b16 %v1990, %v1989
      %v2046 = vpack.c.b16 %v1992, %v1991
      %2101 = vst [vmem:[#allocation2] sm:$0xff] %v1993
      %2102 = vst [vmem:[#allocation2 + $0x8] sm:$0xff] %v1994
      %2103 = vst [vmem:[#allocation2 + $0x10] sm:$0xff] %v1995
      %2104 = vst [vmem:[#allocation2 + $0x18] sm:$0xff] %v1996
      %2105 = vst [vmem:[#allocation2 + $0x20] sm:$0xff] %v1997
      %2106 = vst [vmem:[#allocation2 + $0x28] sm:$0xff] %v1998
      %2107 = vst [vmem:[#allocation2 + $0x30] sm:$0xff] %v1999
      %2108 = vst [vmem:[#allocation2 + $0x38] sm:$0xff] %v2000
      %2109 = vst [vmem:[#allocation2 + $0x40] sm:$0xff] %v2001
      %2110 = vst [vmem:[#allocation2 + $0x48] sm:$0xff] %v2002
      %2111 = vst [vmem:[#allocation2 + $0x50] sm:$0xff] %v2003
      %2112 = vst [vmem:[#allocation2 + $0x58] sm:$0xff] %v2004
      %2113 = vst [vmem:[#allocation2 + $0x60] sm:$0xff] %v2005
      %2114 = vst [vmem:[#allocation2 + $0x68] sm:$0xff] %v2006
      %2115 = vst [vmem:[#allocation2 + $0x70] sm:$0xff] %v2007
      %2116 = vst [vmem:[#allocation2 + $0x78] sm:$0xff] %v2008
      %2117 = vst [vmem:[#allocation2 + $0x80] sm:$0xff] %v2009
      %2118 = vst [vmem:[#allocation2 + $0x88] sm:$0xff] %v2010
      %2119 = vst [vmem:[#allocation2 + $0x90] sm:$0xff] %v2011
      %2120 = vst [vmem:[#allocation2 + $0x98] sm:$0xff] %v2012
      %2121 = vst [vmem:[#allocation2 + $0xa0] sm:$0xff] %v2013
      %2122 = vst [vmem:[#allocation2 + $0xa8] sm:$0xff] %v2014
      %2123 = vst [vmem:[#allocation2 + $0xb0] sm:$0xff] %v2015
      %2124 = vst [vmem:[#allocation2 + $0xb8] sm:$0xff] %v2016
      %2125 = vst [vmem:[#allocation2 + $0xc0] sm:$0xff] %v2017
      %2126 = vst [vmem:[#allocation2 + $0xc8] sm:$0xff] %v2018
      %2127 = vst [vmem:[#allocation2 + $0xd0] sm:$0xff] %v2019
      %2128 = vst [vmem:[#allocation2 + $0xd8] sm:$0xff] %v2020
      %2129 = vst [vmem:[#allocation2 + $0xe0] sm:$0xff] %v2021
      %2130 = vst [vmem:[#allocation2 + $0xe8] sm:$0xff] %v2022
      %2131 = vst [vmem:[#allocation2 + $0xf0] sm:$0xff] %v2023
      %2132 = vst [vmem:[#allocation2 + $0xf8] sm:$0xff] %v2024
      %2133 = vst [vmem:[#allocation2 + $0x100] sm:$0xff] %v2025
      %2134 = vst [vmem:[#allocation2 + $0x108] sm:$0xff] %v2026
      %2135 = vst [vmem:[#allocation2 + $0x110] sm:$0xff] %v2027
      %2136 = vst [vmem:[#allocation2 + $0x118] sm:$0xff] %v2028
      %2137 = vst [vmem:[#allocation2 + $0x120] sm:$0xff] %v2029
      %2138 = vst [vmem:[#allocation2 + $0x128] sm:$0xff] %v2030
      %2139 = vst [vmem:[#allocation2 + $0x130] sm:$0xff] %v2031
      %2140 = vst [vmem:[#allocation2 + $0x138] sm:$0xff] %v2032
      %2141 = vst [vmem:[#allocation2 + $0x140] sm:$0xff] %v2033
      %2142 = vst [vmem:[#allocation2 + $0x148] sm:$0xff] %v2034
      %2143 = vst [vmem:[#allocation2 + $0x150] sm:$0xff] %v2035
      %2144 = vst [vmem:[#allocation2 + $0x158] sm:$0xff] %v2036
      %2145 = vst [vmem:[#allocation2 + $0x160] sm:$0xff] %v2037
      %2146 = vst [vmem:[#allocation2 + $0x168] sm:$0xff] %v2038
      %2147 = vst [vmem:[#allocation2 + $0x170] sm:$0xff] %v2039
      %2148 = vst [vmem:[#allocation2 + $0x178] sm:$0xff] %v2040
      %2149 = vst [vmem:[#allocation2 + $0x180] sm:$0xff] %v2041
      %2150 = vst [vmem:[#allocation2 + $0x188] sm:$0xff] %v2042
      %2151 = vst [vmem:[#allocation2 + $0x190] sm:$0xff] %v2043
      %2152 = vst [vmem:[#allocation2 + $0x198] sm:$0xff] %v2044
      %2153 = vst [vmem:[#allocation2 + $0x1a0] sm:$0xff] %v2045
      %2154 = vst [vmem:[#allocation2 + $0x1a8] sm:$0xff] %v2046
      %2155 = vst [vmem:[#allocation2 + $0x1b0] sm:$0xff] 0
      %v2156 = vld [vmem:[#allocation2] sm:$0xff]
      %v2157 = vld [vmem:[#allocation2 + $0x8] sm:$0xff]
      %v2158 = vld [vmem:[#allocation2 + $0x10] sm:$0xff]
      %v2159 = vld [vmem:[#allocation2 + $0x18] sm:$0xff]
      %v2160 = vld [vmem:[#allocation2 + $0x20] sm:$0xff]
      %v2161 = vld [vmem:[#allocation2 + $0x28] sm:$0xff]
      %v2162 = vld [vmem:[#allocation2 + $0x30] sm:$0xff]
      %v2163 = vld [vmem:[#allocation2 + $0x38] sm:$0xff]
      %v2164 = vld [vmem:[#allocation2 + $0x40] sm:$0xff]
      %v2165 = vld [vmem:[#allocation2 + $0x48] sm:$0xff]
      %v2166 = vld [vmem:[#allocation2 + $0x50] sm:$0xff]
      %v2167 = vld [vmem:[#allocation2 + $0x58] sm:$0xff]
      %v2168 = vld [vmem:[#allocation2 + $0x60] sm:$0xff]
      %v2169 = vld [vmem:[#allocation2 + $0x68] sm:$0xff]
      %v2170 = vld [vmem:[#allocation2 + $0x70] sm:$0xff]
      %v2171 = vld [vmem:[#allocation2 + $0x78] sm:$0xff]
      %v2172 = vld [vmem:[#allocation2 + $0x80] sm:$0xff]
      %v2173 = vld [vmem:[#allocation2 + $0x88] sm:$0xff]
      %v2174 = vld [vmem:[#allocation2 + $0x90] sm:$0xff]
      %v2175 = vld [vmem:[#allocation2 + $0x98] sm:$0xff]
      %v2176 = vld [vmem:[#allocation2 + $0xa0] sm:$0xff]
      %v2177 = vld [vmem:[#allocation2 + $0xa8] sm:$0xff]
      %v2178 = vld [vmem:[#allocation2 + $0xb0] sm:$0xff]
      %v2179 = vld [vmem:[#allocation2 + $0xb8] sm:$0xff]
      %v2180 = vld [vmem:[#allocation2 + $0xc0] sm:$0xff]
      %v2181 = vld [vmem:[#allocation2 + $0xc8] sm:$0xff]
      %v2182 = vld [vmem:[#allocation2 + $0xd0] sm:$0xff]
      %v2183 = vld [vmem:[#allocation2 + $0xd8] sm:$0xff]
      %v2184 = vld [vmem:[#allocation2 + $0xe0] sm:$0xff]
      %v2185 = vld [vmem:[#allocation2 + $0xe8] sm:$0xff]
      %v2186 = vld [vmem:[#allocation2 + $0xf0] sm:$0xff]
      %v2187 = vld [vmem:[#allocation2 + $0xf8] sm:$0xff]
      %v2188 = vld [vmem:[#allocation2 + $0x100] sm:$0xff]
      %v2189 = vld [vmem:[#allocation2 + $0x108] sm:$0xff]
      %v2190 = vld [vmem:[#allocation2 + $0x110] sm:$0xff]
      %v2191 = vld [vmem:[#allocation2 + $0x118] sm:$0xff]
      %v2192 = vld [vmem:[#allocation2 + $0x120] sm:$0xff]
      %v2193 = vld [vmem:[#allocation2 + $0x128] sm:$0xff]
      %v2194 = vld [vmem:[#allocation2 + $0x130] sm:$0xff]
      %v2195 = vld [vmem:[#allocation2 + $0x138] sm:$0xff]
      %v2196 = vld [vmem:[#allocation2 + $0x140] sm:$0xff]
      %v2197 = vld [vmem:[#allocation2 + $0x148] sm:$0xff]
      %v2198 = vld [vmem:[#allocation2 + $0x150] sm:$0xff]
      %v2199 = vld [vmem:[#allocation2 + $0x158] sm:$0xff]
      %v2200 = vld [vmem:[#allocation2 + $0x160] sm:$0xff]
      %v2201 = vld [vmem:[#allocation2 + $0x168] sm:$0xff]
      %v2202 = vld [vmem:[#allocation2 + $0x170] sm:$0xff]
      %v2203 = vld [vmem:[#allocation2 + $0x178] sm:$0xff]
      %v2204 = vld [vmem:[%s3] sm:$0xff]
      %v2205 = vld [vmem:[%s3 + $0x8] sm:$0xff]
      %v2206 = vld [vmem:[%s3 + $0x10] sm:$0xff]
      %v2207 = vld [vmem:[%s3 + $0x18] sm:$0xff]
      %v2208 = vld [vmem:[%s3 + $0x20] sm:$0xff]
      %v2209 = vld [vmem:[%s3 + $0x28] sm:$0xff]
      %v2210 = vld [vmem:[%s3 + $0x30] sm:$0xff]
      %v2211 = vld [vmem:[%s3 + $0x38] sm:$0xff]
      %v2212 = vld [vmem:[%s3 + $0x40] sm:$0xff]
      %v2213 = vld [vmem:[%s3 + $0x48] sm:$0xff]
      %v2214 = vld [vmem:[%s3 + $0x50] sm:$0xff]
      %v2215 = vld [vmem:[%s3 + $0x58] sm:$0xff]
      %v2216 = vld [vmem:[%s3 + $0x60] sm:$0xff]
      %v2217 = vld [vmem:[%s3 + $0x68] sm:$0xff]
      %v2218 = vld [vmem:[%s3 + $0x70] sm:$0xff]
      %v2219 = vld [vmem:[%s3 + $0x78] sm:$0xff]
      %v2220 = vld [vmem:[%s3 + $0x80] sm:$0xff]
      %v2221 = vld [vmem:[%s3 + $0x88] sm:$0xff]
      %v2222 = vld [vmem:[%s3 + $0x90] sm:$0xff]
      %v2223 = vld [vmem:[%s3 + $0x98] sm:$0xff]
      %v2224 = vld [vmem:[%s3 + $0xa0] sm:$0xff]
      %v2225 = vld [vmem:[%s3 + $0xa8] sm:$0xff]
      %v2226 = vld [vmem:[%s3 + $0xb0] sm:$0xff]
      %v2227 = vld [vmem:[%s3 + $0xb8] sm:$0xff]
      %v2228 = vld [vmem:[%s3 + $0xc0] sm:$0xff]
      %v2229 = vld [vmem:[%s3 + $0xc8] sm:$0xff]
      %v2230 = vld [vmem:[%s3 + $0xd0] sm:$0xff]
      %v2231 = vld [vmem:[%s3 + $0xd8] sm:$0xff]
      %v2232 = vld [vmem:[%s3 + $0xe0] sm:$0xff]
      %v2233 = vld [vmem:[%s3 + $0xe8] sm:$0xff]
      %v2234 = vld [vmem:[%s3 + $0xf0] sm:$0xff]
      %v2235 = vld [vmem:[%s3 + $0xf8] sm:$0xff]
      %v2236 = vld [vmem:[#allocation2 + $0x180] sm:$0x11]
      %s2237 = scalar_lea.vmem %s3, 256
      %v2238 = vld [vmem:[%s2237] sm:$0xff]
      %v2239 = vld [vmem:[%s2237 + $0x8] sm:$0xff]
      %v2240 = vld [vmem:[%s2237 + $0x10] sm:$0xff]
      %v2241 = vld [vmem:[%s2237 + $0x18] sm:$0xff]
      %v2242 = vld [vmem:[%s2237 + $0x20] sm:$0xff]
      %v2243 = vld [vmem:[%s2237 + $0x28] sm:$0xff]
      %v2244 = vld [vmem:[%s2237 + $0x30] sm:$0xff]
      %v2245 = vld [vmem:[%s2237 + $0x38] sm:$0xff]
      %v2246 = vld [vmem:[%s2237 + $0x40] sm:$0xff]
      %v2247 = vld [vmem:[%s2237 + $0x48] sm:$0xff]
      %v2248 = vld [vmem:[%s2237 + $0x50] sm:$0xff]
      %v2249 = vld [vmem:[%s2237 + $0x58] sm:$0xff]
      %v2250 = vld [vmem:[%s2237 + $0x60] sm:$0xff]
      %v2251 = vld [vmem:[%s2237 + $0x68] sm:$0xff]
      %v2252 = vld [vmem:[%s2237 + $0x70] sm:$0xff]
      %v2253 = vld [vmem:[%s2237 + $0x78] sm:$0xff]
      %v2254 = vld [vmem:[%s2237 + $0x80] sm:$0xff]
      %v2255 = vld [vmem:[%s2237 + $0x88] sm:$0xff]
      %v2256 = vld [vmem:[%s2237 + $0x90] sm:$0xff]
      %v2257 = vld [vmem:[%s2237 + $0x98] sm:$0xff]
      %v2258 = vld [vmem:[%s2237 + $0xa0] sm:$0xff]
      %v2259 = vld [vmem:[%s2237 + $0xa8] sm:$0xff]
      %v2260 = vld [vmem:[%s2237 + $0xb0] sm:$0xff]
      %v2261 = vld [vmem:[%s2237 + $0xb8] sm:$0xff]
      %v2262 = vld [vmem:[%s2237 + $0xc0] sm:$0xff]
      %v2263 = vld [vmem:[%s2237 + $0xc8] sm:$0xff]
      %v2264 = vld [vmem:[%s2237 + $0xd0] sm:$0xff]
      %v2265 = vld [vmem:[%s2237 + $0xd8] sm:$0xff]
      %v2266 = vld [vmem:[%s2237 + $0xe0] sm:$0xff]
      %v2267 = vld [vmem:[%s2237 + $0xe8] sm:$0xff]
      %v2268 = vld [vmem:[%s2237 + $0xf0] sm:$0xff]
      %v2269 = vld [vmem:[%s2237 + $0xf8] sm:$0xff]
      %v2319 = vunpack.c.l.b16 %v2156
      %v2320 = vunpack.c.h.b16 %v2156
      %v2321 = vunpack.c.l.b16 %v2157
      %v2322 = vunpack.c.h.b16 %v2157
      %v2323 = vunpack.c.l.b16 %v2158
      %v2324 = vunpack.c.h.b16 %v2158
      %v2325 = vunpack.c.l.b16 %v2159
      %v2326 = vunpack.c.h.b16 %v2159
      %v2327 = vunpack.c.l.b16 %v2160
      %v2328 = vunpack.c.h.b16 %v2160
      %v2329 = vunpack.c.l.b16 %v2161
      %v2330 = vunpack.c.h.b16 %v2161
      %v2331 = vunpack.c.l.b16 %v2162
      %v2332 = vunpack.c.h.b16 %v2162
      %v2333 = vunpack.c.l.b16 %v2163
      %v2334 = vunpack.c.h.b16 %v2163
      %v2335 = vunpack.c.l.b16 %v2164
      %v2336 = vunpack.c.h.b16 %v2164
      %v2337 = vunpack.c.l.b16 %v2165
      %v2338 = vunpack.c.h.b16 %v2165
      %v2339 = vunpack.c.l.b16 %v2166
      %v2340 = vunpack.c.h.b16 %v2166
      %v2341 = vunpack.c.l.b16 %v2167
      %v2342 = vunpack.c.h.b16 %v2167
      %v2343 = vunpack.c.l.b16 %v2168
      %v2344 = vunpack.c.h.b16 %v2168
      %v2345 = vunpack.c.l.b16 %v2169
      %v2346 = vunpack.c.h.b16 %v2169
      %v2347 = vunpack.c.l.b16 %v2170
      %v2348 = vunpack.c.h.b16 %v2170
      %v2349 = vunpack.c.l.b16 %v2171
      %v2350 = vunpack.c.h.b16 %v2171
      %v2351 = vunpack.c.l.b16 %v2172
      %v2352 = vunpack.c.h.b16 %v2172
      %v2353 = vunpack.c.l.b16 %v2173
      %v2354 = vunpack.c.h.b16 %v2173
      %v2355 = vunpack.c.l.b16 %v2174
      %v2356 = vunpack.c.h.b16 %v2174
      %v2357 = vunpack.c.l.b16 %v2175
      %v2358 = vunpack.c.h.b16 %v2175
      %v2359 = vunpack.c.l.b16 %v2176
      %v2360 = vunpack.c.h.b16 %v2176
      %v2361 = vunpack.c.l.b16 %v2177
      %v2362 = vunpack.c.h.b16 %v2177
      %v2363 = vunpack.c.l.b16 %v2178
      %v2364 = vunpack.c.h.b16 %v2178
      %v2365 = vunpack.c.l.b16 %v2179
      %v2366 = vunpack.c.h.b16 %v2179
      %v2367 = vunpack.c.l.b16 %v2180
      %v2368 = vunpack.c.h.b16 %v2180
      %v2369 = vunpack.c.l.b16 %v2181
      %v2370 = vunpack.c.h.b16 %v2181
      %v2371 = vunpack.c.l.b16 %v2182
      %v2372 = vunpack.c.h.b16 %v2182
      %v2373 = vunpack.c.l.b16 %v2183
      %v2374 = vunpack.c.h.b16 %v2183
      %v2375 = vunpack.c.l.b16 %v2184
      %v2376 = vunpack.c.h.b16 %v2184
      %v2377 = vunpack.c.l.b16 %v2185
      %v2378 = vunpack.c.h.b16 %v2185
      %v2379 = vunpack.c.l.b16 %v2186
      %v2380 = vunpack.c.h.b16 %v2186
      %v2381 = vunpack.c.l.b16 %v2187
      %v2382 = vunpack.c.h.b16 %v2187
      %v2383 = vunpack.c.l.b16 %v2188
      %v2384 = vunpack.c.h.b16 %v2188
      %v2385 = vunpack.c.l.b16 %v2189
      %v2386 = vunpack.c.h.b16 %v2189
      %v2387 = vunpack.c.l.b16 %v2190
      %v2388 = vunpack.c.h.b16 %v2190
      %v2389 = vunpack.c.l.b16 %v2191
      %v2390 = vunpack.c.h.b16 %v2191
      %v2391 = vunpack.c.l.b16 %v2192
      %v2392 = vunpack.c.h.b16 %v2192
      %v2393 = vunpack.c.l.b16 %v2193
      %v2394 = vunpack.c.h.b16 %v2193
      %v2395 = vunpack.c.l.b16 %v2194
      %v2396 = vunpack.c.h.b16 %v2194
      %v2397 = vunpack.c.l.b16 %v2195
      %v2398 = vunpack.c.h.b16 %v2195
      %v2399 = vunpack.c.l.b16 %v2196
      %v2400 = vunpack.c.h.b16 %v2196
      %v2401 = vunpack.c.l.b16 %v2197
      %v2402 = vunpack.c.h.b16 %v2197
      %v2403 = vunpack.c.l.b16 %v2198
      %v2404 = vunpack.c.h.b16 %v2198
      %v2405 = vunpack.c.l.b16 %v2199
      %v2406 = vunpack.c.h.b16 %v2199
      %v2407 = vunpack.c.l.b16 %v2200
      %v2408 = vunpack.c.h.b16 %v2200
      %v2409 = vunpack.c.l.b16 %v2201
      %v2410 = vunpack.c.h.b16 %v2201
      %v2411 = vunpack.c.l.b16 %v2202
      %v2412 = vunpack.c.h.b16 %v2202
      %v2413 = vunpack.c.l.b16 %v2203
      %v2414 = vunpack.c.h.b16 %v2203
      %v2415 = vunpack.c.l.b16 %v2236
      %v2416 = vunpack.c.h.b16 %v2236
      %v2417 = vpack.c.b16 %v2321, %v2319
      %v2418 = vpack.c.b16 %v2322, %v2320
      %v2419 = vpack.c.b16 %v2325, %v2323
      %v2420 = vpack.c.b16 %v2326, %v2324
      %v2421 = vpack.c.b16 %v2329, %v2327
      %v2422 = vpack.c.b16 %v2330, %v2328
      %v2423 = vpack.c.b16 %v2333, %v2331
      %v2424 = vpack.c.b16 %v2334, %v2332
      %v2425 = vpack.c.b16 %v2337, %v2335
      %v2426 = vpack.c.b16 %v2338, %v2336
      %v2427 = vpack.c.b16 %v2341, %v2339
      %v2428 = vpack.c.b16 %v2342, %v2340
      %v2429 = vpack.c.b16 %v2345, %v2343
      %v2430 = vpack.c.b16 %v2346, %v2344
      %v2431 = vpack.c.b16 %v2349, %v2347
      %v2432 = vpack.c.b16 %v2350, %v2348
      %v2433 = vpack.c.b16 %v2353, %v2351
      %v2434 = vpack.c.b16 %v2354, %v2352
      %v2435 = vpack.c.b16 %v2357, %v2355
      %v2436 = vpack.c.b16 %v2358, %v2356
      %v2437 = vpack.c.b16 %v2361, %v2359
      %v2438 = vpack.c.b16 %v2362, %v2360
      %v2439 = vpack.c.b16 %v2365, %v2363
      %v2440 = vpack.c.b16 %v2366, %v2364
      %v2441 = vpack.c.b16 %v2369, %v2367
      %v2442 = vpack.c.b16 %v2370, %v2368
      %v2443 = vpack.c.b16 %v2373, %v2371
      %v2444 = vpack.c.b16 %v2374, %v2372
      %v2445 = vpack.c.b16 %v2377, %v2375
      %v2446 = vpack.c.b16 %v2378, %v2376
      %v2447 = vpack.c.b16 %v2381, %v2379
      %v2448 = vpack.c.b16 %v2382, %v2380
      %v2449 = vpack.c.b16 %v2385, %v2383
      %v2450 = vpack.c.b16 %v2386, %v2384
      %v2451 = vpack.c.b16 %v2389, %v2387
      %v2452 = vpack.c.b16 %v2390, %v2388
      %v2453 = vpack.c.b16 %v2393, %v2391
      %v2454 = vpack.c.b16 %v2394, %v2392
      %v2455 = vpack.c.b16 %v2397, %v2395
      %v2456 = vpack.c.b16 %v2398, %v2396
      %v2457 = vpack.c.b16 %v2401, %v2399
      %v2458 = vpack.c.b16 %v2402, %v2400
      %v2459 = vpack.c.b16 %v2405, %v2403
      %v2460 = vpack.c.b16 %v2406, %v2404
      %v2461 = vpack.c.b16 %v2409, %v2407
      %v2462 = vpack.c.b16 %v2410, %v2408
      %v2463 = vpack.c.b16 %v2413, %v2411
      %v2464 = vpack.c.b16 %v2414, %v2412
      %v2465 = vpack.c.b16 %v2415, %v2415
      %v2466 = vpack.c.b16 %v2416, %v2416
      %vm2467 = vsmask.f32 7424
      %v2469 = vshrl.u32 %v2417, 16
      %v2471 = vshll.u32 %v2417, 16
      %v2473 = vrot.slane %v2471, 1
      %v2474 = vor.u32 %v2469, %v2473
      %v2476 = vshll.u32 %v2419, 16
      %v2478 = vrot.slane %v2476, 1
      %v2479 = vsel %vm2467, %v2474, %v2478
      %v2481 = vshrl.u32 %v2418, 16
      %v2483 = vshll.u32 %v2418, 16
      %v2485 = vrot.slane %v2483, 1
      %v2486 = vor.u32 %v2481, %v2485
      %v2488 = vshll.u32 %v2420, 16
      %v2490 = vrot.slane %v2488, 1
      %v2491 = vsel %vm2467, %v2486, %v2490
      %v2492 = vshrl.u32 %v2419, 16
      %v2494 = vor.u32 %v2492, %v2478
      %v2496 = vshll.u32 %v2421, 16
      %v2498 = vrot.slane %v2496, 1
      %v2499 = vsel %vm2467, %v2494, %v2498
      %v2500 = vshrl.u32 %v2420, 16
      %v2502 = vor.u32 %v2500, %v2490
      %v2504 = vshll.u32 %v2422, 16
      %v2506 = vrot.slane %v2504, 1
      %v2507 = vsel %vm2467, %v2502, %v2506
      %v2508 = vshrl.u32 %v2421, 16
      %v2510 = vor.u32 %v2508, %v2498
      %v2512 = vshll.u32 %v2423, 16
      %v2514 = vrot.slane %v2512, 1
      %v2515 = vsel %vm2467, %v2510, %v2514
      %v2516 = vshrl.u32 %v2422, 16
      %v2518 = vor.u32 %v2516, %v2506
      %v2520 = vshll.u32 %v2424, 16
      %v2522 = vrot.slane %v2520, 1
      %v2523 = vsel %vm2467, %v2518, %v2522
      %v2524 = vshrl.u32 %v2423, 16
      %v2526 = vor.u32 %v2524, %v2514
      %v2528 = vshll.u32 %v2425, 16
      %v2530 = vrot.slane %v2528, 1
      %v2531 = vsel %vm2467, %v2526, %v2530
      %v2532 = vshrl.u32 %v2424, 16
      %v2534 = vor.u32 %v2532, %v2522
      %v2536 = vshll.u32 %v2426, 16
      %v2538 = vrot.slane %v2536, 1
      %v2539 = vsel %vm2467, %v2534, %v2538
      %v2540 = vshrl.u32 %v2425, 16
      %v2542 = vor.u32 %v2540, %v2530
      %v2544 = vshll.u32 %v2427, 16
      %v2546 = vrot.slane %v2544, 1
      %v2547 = vsel %vm2467, %v2542, %v2546
      %v2548 = vshrl.u32 %v2426, 16
      %v2550 = vor.u32 %v2548, %v2538
      %v2552 = vshll.u32 %v2428, 16
      %v2554 = vrot.slane %v2552, 1
      %v2555 = vsel %vm2467, %v2550, %v2554
      %v2556 = vshrl.u32 %v2427, 16
      %v2558 = vor.u32 %v2556, %v2546
      %v2560 = vshll.u32 %v2429, 16
      %v2562 = vrot.slane %v2560, 1
      %v2563 = vsel %vm2467, %v2558, %v2562
      %v2564 = vshrl.u32 %v2428, 16
      %v2566 = vor.u32 %v2564, %v2554
      %v2568 = vshll.u32 %v2430, 16
      %v2570 = vrot.slane %v2568, 1
      %v2571 = vsel %vm2467, %v2566, %v2570
      %v2572 = vshrl.u32 %v2429, 16
      %v2574 = vor.u32 %v2572, %v2562
      %v2576 = vshll.u32 %v2431, 16
      %v2578 = vrot.slane %v2576, 1
      %v2579 = vsel %vm2467, %v2574, %v2578
      %v2580 = vshrl.u32 %v2430, 16
      %v2582 = vor.u32 %v2580, %v2570
      %v2584 = vshll.u32 %v2432, 16
      %v2586 = vrot.slane %v2584, 1
      %v2587 = vsel %vm2467, %v2582, %v2586
      %v2588 = vshrl.u32 %v2431, 16
      %v2590 = vor.u32 %v2588, %v2578
      %v2592 = vshll.u32 %v2433, 16
      %v2594 = vrot.slane %v2592, 1
      %v2595 = vsel %vm2467, %v2590, %v2594
      %v2596 = vshrl.u32 %v2432, 16
      %v2598 = vor.u32 %v2596, %v2586
      %v2600 = vshll.u32 %v2434, 16
      %v2602 = vrot.slane %v2600, 1
      %v2603 = vsel %vm2467, %v2598, %v2602
      %v2604 = vshrl.u32 %v2433, 16
      %v2606 = vor.u32 %v2604, %v2594
      %v2608 = vshll.u32 %v2435, 16
      %v2610 = vrot.slane %v2608, 1
      %v2611 = vsel %vm2467, %v2606, %v2610
      %v2612 = vshrl.u32 %v2434, 16
      %v2614 = vor.u32 %v2612, %v2602
      %v2616 = vshll.u32 %v2436, 16
      %v2618 = vrot.slane %v2616, 1
      %v2619 = vsel %vm2467, %v2614, %v2618
      %v2620 = vshrl.u32 %v2435, 16
      %v2622 = vor.u32 %v2620, %v2610
      %v2624 = vshll.u32 %v2437, 16
      %v2626 = vrot.slane %v2624, 1
      %v2627 = vsel %vm2467, %v2622, %v2626
      %v2628 = vshrl.u32 %v2436, 16
      %v2630 = vor.u32 %v2628, %v2618
      %v2632 = vshll.u32 %v2438, 16
      %v2634 = vrot.slane %v2632, 1
      %v2635 = vsel %vm2467, %v2630, %v2634
      %v2636 = vshrl.u32 %v2437, 16
      %v2638 = vor.u32 %v2636, %v2626
      %v2640 = vshll.u32 %v2439, 16
      %v2642 = vrot.slane %v2640, 1
      %v2643 = vsel %vm2467, %v2638, %v2642
      %v2644 = vshrl.u32 %v2438, 16
      %v2646 = vor.u32 %v2644, %v2634
      %v2648 = vshll.u32 %v2440, 16
      %v2650 = vrot.slane %v2648, 1
      %v2651 = vsel %vm2467, %v2646, %v2650
      %v2652 = vshrl.u32 %v2439, 16
      %v2654 = vor.u32 %v2652, %v2642
      %v2656 = vshll.u32 %v2441, 16
      %v2658 = vrot.slane %v2656, 1
      %v2659 = vsel %vm2467, %v2654, %v2658
      %v2660 = vshrl.u32 %v2440, 16
      %v2662 = vor.u32 %v2660, %v2650
      %v2664 = vshll.u32 %v2442, 16
      %v2666 = vrot.slane %v2664, 1
      %v2667 = vsel %vm2467, %v2662, %v2666
      %v2668 = vshrl.u32 %v2441, 16
      %v2670 = vor.u32 %v2668, %v2658
      %v2672 = vshll.u32 %v2443, 16
      %v2674 = vrot.slane %v2672, 1
      %v2675 = vsel %vm2467, %v2670, %v2674
      %v2676 = vshrl.u32 %v2442, 16
      %v2678 = vor.u32 %v2676, %v2666
      %v2680 = vshll.u32 %v2444, 16
      %v2682 = vrot.slane %v2680, 1
      %v2683 = vsel %vm2467, %v2678, %v2682
      %v2684 = vshrl.u32 %v2443, 16
      %v2686 = vor.u32 %v2684, %v2674
      %v2688 = vshll.u32 %v2445, 16
      %v2690 = vrot.slane %v2688, 1
      %v2691 = vsel %vm2467, %v2686, %v2690
      %v2692 = vshrl.u32 %v2444, 16
      %v2694 = vor.u32 %v2692, %v2682
      %v2696 = vshll.u32 %v2446, 16
      %v2698 = vrot.slane %v2696, 1
      %v2699 = vsel %vm2467, %v2694, %v2698
      %v2700 = vshrl.u32 %v2445, 16
      %v2702 = vor.u32 %v2700, %v2690
      %v2704 = vshll.u32 %v2447, 16
      %v2706 = vrot.slane %v2704, 1
      %v2707 = vsel %vm2467, %v2702, %v2706
      %v2708 = vshrl.u32 %v2446, 16
      %v2710 = vor.u32 %v2708, %v2698
      %v2712 = vshll.u32 %v2448, 16
      %v2714 = vrot.slane %v2712, 1
      %v2715 = vsel %vm2467, %v2710, %v2714
      %v2716 = vshrl.u32 %v2447, 16
      %v2718 = vor.u32 %v2716, %v2706
      %v2720 = vshll.u32 %v2449, 16
      %v2722 = vrot.slane %v2720, 1
      %v2723 = vsel %vm2467, %v2718, %v2722
      %v2724 = vshrl.u32 %v2448, 16
      %v2726 = vor.u32 %v2724, %v2714
      %v2728 = vshll.u32 %v2450, 16
      %v2730 = vrot.slane %v2728, 1
      %v2731 = vsel %vm2467, %v2726, %v2730
      %v2732 = vshrl.u32 %v2449, 16
      %v2734 = vor.u32 %v2732, %v2722
      %v2736 = vshll.u32 %v2451, 16
      %v2738 = vrot.slane %v2736, 1
      %v2739 = vsel %vm2467, %v2734, %v2738
      %v2740 = vshrl.u32 %v2450, 16
      %v2742 = vor.u32 %v2740, %v2730
      %v2744 = vshll.u32 %v2452, 16
      %v2746 = vrot.slane %v2744, 1
      %v2747 = vsel %vm2467, %v2742, %v2746
      %v2748 = vshrl.u32 %v2451, 16
      %v2750 = vor.u32 %v2748, %v2738
      %v2752 = vshll.u32 %v2453, 16
      %v2754 = vrot.slane %v2752, 1
      %v2755 = vsel %vm2467, %v2750, %v2754
      %v2756 = vshrl.u32 %v2452, 16
      %v2758 = vor.u32 %v2756, %v2746
      %v2760 = vshll.u32 %v2454, 16
      %v2762 = vrot.slane %v2760, 1
      %v2763 = vsel %vm2467, %v2758, %v2762
      %v2764 = vshrl.u32 %v2453, 16
      %v2766 = vor.u32 %v2764, %v2754
      %v2768 = vshll.u32 %v2455, 16
      %v2770 = vrot.slane %v2768, 1
      %v2771 = vsel %vm2467, %v2766, %v2770
      %v2772 = vshrl.u32 %v2454, 16
      %v2774 = vor.u32 %v2772, %v2762
      %v2776 = vshll.u32 %v2456, 16
      %v2778 = vrot.slane %v2776, 1
      %v2779 = vsel %vm2467, %v2774, %v2778
      %v2780 = vshrl.u32 %v2455, 16
      %v2782 = vor.u32 %v2780, %v2770
      %v2784 = vshll.u32 %v2457, 16
      %v2786 = vrot.slane %v2784, 1
      %v2787 = vsel %vm2467, %v2782, %v2786
      %v2788 = vshrl.u32 %v2456, 16
      %v2790 = vor.u32 %v2788, %v2778
      %v2792 = vshll.u32 %v2458, 16
      %v2794 = vrot.slane %v2792, 1
      %v2795 = vsel %vm2467, %v2790, %v2794
      %v2796 = vshrl.u32 %v2457, 16
      %v2798 = vor.u32 %v2796, %v2786
      %v2800 = vshll.u32 %v2459, 16
      %v2802 = vrot.slane %v2800, 1
      %v2803 = vsel %vm2467, %v2798, %v2802
      %v2804 = vshrl.u32 %v2458, 16
      %v2806 = vor.u32 %v2804, %v2794
      %v2808 = vshll.u32 %v2460, 16
      %v2810 = vrot.slane %v2808, 1
      %v2811 = vsel %vm2467, %v2806, %v2810
      %v2812 = vshrl.u32 %v2459, 16
      %v2814 = vor.u32 %v2812, %v2802
      %v2816 = vshll.u32 %v2461, 16
      %v2818 = vrot.slane %v2816, 1
      %v2819 = vsel %vm2467, %v2814, %v2818
      %v2820 = vshrl.u32 %v2460, 16
      %v2822 = vor.u32 %v2820, %v2810
      %v2824 = vshll.u32 %v2462, 16
      %v2826 = vrot.slane %v2824, 1
      %v2827 = vsel %vm2467, %v2822, %v2826
      %v2828 = vshrl.u32 %v2461, 16
      %v2830 = vor.u32 %v2828, %v2818
      %v2832 = vshll.u32 %v2463, 16
      %v2834 = vrot.slane %v2832, 1
      %v2835 = vsel %vm2467, %v2830, %v2834
      %v2836 = vshrl.u32 %v2462, 16
      %v2838 = vor.u32 %v2836, %v2826
      %v2840 = vshll.u32 %v2464, 16
      %v2842 = vrot.slane %v2840, 1
      %v2843 = vsel %vm2467, %v2838, %v2842
      %v2844 = vshrl.u32 %v2463, 16
      %v2846 = vor.u32 %v2844, %v2834
      %v2848 = vshll.u32 %v2465, 16
      %v2850 = vrot.slane %v2848, 1
      %v2851 = vsel %vm2467, %v2846, %v2850
      %v2852 = vshrl.u32 %v2464, 16
      %v2854 = vor.u32 %v2852, %v2842
      %v2856 = vshll.u32 %v2466, 16
      %v2858 = vrot.slane %v2856, 1
      %v2859 = vsel %vm2467, %v2854, %v2858
      %v2940 = vunpack.c.l.b16 %v2238
      %v2941 = vunpack.c.h.b16 %v2238
      %v2942 = vunpack.c.l.b16 %v2239
      %v2943 = vunpack.c.h.b16 %v2239
      %v2944 = vunpack.c.l.b16 %v2240
      %v2945 = vunpack.c.h.b16 %v2240
      %v2946 = vunpack.c.l.b16 %v2241
      %v2947 = vunpack.c.h.b16 %v2241
      %v2948 = vunpack.c.l.b16 %v2242
      %v2949 = vunpack.c.h.b16 %v2242
      %v2950 = vunpack.c.l.b16 %v2243
      %v2951 = vunpack.c.h.b16 %v2243
      %v2952 = vunpack.c.l.b16 %v2244
      %v2953 = vunpack.c.h.b16 %v2244
      %v2954 = vunpack.c.l.b16 %v2245
      %v2955 = vunpack.c.h.b16 %v2245
      %v2956 = vunpack.c.l.b16 %v2246
      %v2957 = vunpack.c.h.b16 %v2246
      %v2958 = vunpack.c.l.b16 %v2247
      %v2959 = vunpack.c.h.b16 %v2247
      %v2960 = vunpack.c.l.b16 %v2248
      %v2961 = vunpack.c.h.b16 %v2248
      %v2962 = vunpack.c.l.b16 %v2249
      %v2963 = vunpack.c.h.b16 %v2249
      %v2964 = vunpack.c.l.b16 %v2250
      %v2965 = vunpack.c.h.b16 %v2250
      %v2966 = vunpack.c.l.b16 %v2251
      %v2967 = vunpack.c.h.b16 %v2251
      %v2968 = vunpack.c.l.b16 %v2252
      %v2969 = vunpack.c.h.b16 %v2252
      %v2970 = vunpack.c.l.b16 %v2253
      %v2971 = vunpack.c.h.b16 %v2253
      %v2972 = vunpack.c.l.b16 %v2254
      %v2973 = vunpack.c.h.b16 %v2254
      %v2974 = vunpack.c.l.b16 %v2255
      %v2975 = vunpack.c.h.b16 %v2255
      %v2976 = vunpack.c.l.b16 %v2256
      %v2977 = vunpack.c.h.b16 %v2256
      %v2978 = vunpack.c.l.b16 %v2257
      %v2979 = vunpack.c.h.b16 %v2257
      %v2980 = vunpack.c.l.b16 %v2258
      %v2981 = vunpack.c.h.b16 %v2258
      %v2982 = vunpack.c.l.b16 %v2259
      %v2983 = vunpack.c.h.b16 %v2259
      %v2984 = vunpack.c.l.b16 %v2260
      %v2985 = vunpack.c.h.b16 %v2260
      %v2986 = vunpack.c.l.b16 %v2261
      %v2987 = vunpack.c.h.b16 %v2261
      %v2988 = vunpack.c.l.b16 %v2262
      %v2989 = vunpack.c.h.b16 %v2262
      %v2990 = vunpack.c.l.b16 %v2263
      %v2991 = vunpack.c.h.b16 %v2263
      %v2992 = vunpack.c.l.b16 %v2264
      %v2993 = vunpack.c.h.b16 %v2264
      %v2994 = vunpack.c.l.b16 %v2265
      %v2995 = vunpack.c.h.b16 %v2265
      %v2996 = vunpack.c.l.b16 %v2266
      %v2997 = vunpack.c.h.b16 %v2266
      %v2998 = vunpack.c.l.b16 %v2267
      %v2999 = vunpack.c.h.b16 %v2267
      %v3000 = vunpack.c.l.b16 %v2268
      %v3001 = vunpack.c.h.b16 %v2268
      %v3002 = vunpack.c.l.b16 %v2269
      %v3003 = vunpack.c.h.b16 %v2269
      %v3004 = vpack.c.b16 %v2942, %v2940
      %v3005 = vpack.c.b16 %v2943, %v2941
      %v3006 = vpack.c.b16 %v2946, %v2944
      %v3007 = vpack.c.b16 %v2947, %v2945
      %v3008 = vpack.c.b16 %v2950, %v2948
      %v3009 = vpack.c.b16 %v2951, %v2949
      %v3010 = vpack.c.b16 %v2954, %v2952
      %v3011 = vpack.c.b16 %v2955, %v2953
      %v3012 = vpack.c.b16 %v2958, %v2956
      %v3013 = vpack.c.b16 %v2959, %v2957
      %v3014 = vpack.c.b16 %v2962, %v2960
      %v3015 = vpack.c.b16 %v2963, %v2961
      %v3016 = vpack.c.b16 %v2966, %v2964
      %v3017 = vpack.c.b16 %v2967, %v2965
      %v3018 = vpack.c.b16 %v2970, %v2968
      %v3019 = vpack.c.b16 %v2971, %v2969
      %v3020 = vpack.c.b16 %v2974, %v2972
      %v3021 = vpack.c.b16 %v2975, %v2973
      %v3022 = vpack.c.b16 %v2978, %v2976
      %v3023 = vpack.c.b16 %v2979, %v2977
      %v3024 = vpack.c.b16 %v2982, %v2980
      %v3025 = vpack.c.b16 %v2983, %v2981
      %v3026 = vpack.c.b16 %v2986, %v2984
      %v3027 = vpack.c.b16 %v2987, %v2985
      %v3028 = vpack.c.b16 %v2990, %v2988
      %v3029 = vpack.c.b16 %v2991, %v2989
      %v3030 = vpack.c.b16 %v2994, %v2992
      %v3031 = vpack.c.b16 %v2995, %v2993
      %v3032 = vpack.c.b16 %v2998, %v2996
      %v3033 = vpack.c.b16 %v2999, %v2997
      %v3034 = vpack.c.b16 %v3002, %v3000
      %v3035 = vpack.c.b16 %v3003, %v3001
      %3068 = vmatprep.subr.bf16.mxu0 %v3019
      %3069 = vmatpush1.bf16.msra.mxu0 %v3018
      %3070 = vmatprep.subr.bf16.mxu0 %v3017
      %3071 = vmatpush1.bf16.msra.mxu0 %v3016
      %3072 = vmatprep.subr.bf16.mxu0 %v3015
      %3073 = vmatpush1.bf16.msra.mxu0 %v3014
      %3074 = vmatprep.subr.bf16.mxu0 %v3013
      %3075 = vmatpush1.bf16.msra.mxu0 %v3012
      %3076 = vmatprep.subr.bf16.mxu0 %v3011
      %3077 = vmatpush1.bf16.msra.mxu0 %v3010
      %3078 = vmatprep.subr.bf16.mxu0 %v3009
      %3079 = vmatpush1.bf16.msra.mxu0 %v3008
      %3080 = vmatprep.subr.bf16.mxu0 %v3007
      %3081 = vmatpush1.bf16.msra.mxu0 %v3006
      %3082 = vmatprep.subr.bf16.mxu0 %v3005
      %3083 = vmatpush1.bf16.msra.mxu0 %v3004
      %3084 = vmatprep.subr.bf16.mxu0 %v3035
      %3085 = vmatpush2.bf16.msra.mxu0 %v3034
      %3086 = vmatprep.subr.bf16.mxu0 %v3033
      %3087 = vmatpush2.bf16.msra.mxu0 %v3032
      %3088 = vmatprep.subr.bf16.mxu0 %v3031
      %3089 = vmatpush2.bf16.msra.mxu0 %v3030
      %3090 = vmatprep.subr.bf16.mxu0 %v3029
      %3091 = vmatpush2.bf16.msra.mxu0 %v3028
      %3092 = vmatprep.subr.bf16.mxu0 %v3027
      %3093 = vmatpush2.bf16.msra.mxu0 %v3026
      %3094 = vmatprep.subr.bf16.mxu0 %v3025
      %3095 = vmatpush2.bf16.msra.mxu0 %v3024
      %3096 = vmatprep.subr.bf16.mxu0 %v3023
      %3097 = vmatpush2.bf16.msra.mxu0 %v3022
      %3098 = vmatprep.subr.bf16.mxu0 %v3021
      %3099 = vmatpush2.bf16.msra.mxu0 %v3020
      %3100 = vmatprep.mubr.bf16.mxu0 %v2491
      %3101 = vmatmul.mubr.bf16.gmra.mxu0 %v2479
      %v3102 = vpop.f32.mrf.mxu0
      %v3103 = vadd.f32 0.0, %v3102
      %v3104 = vpop.f32.mrf.mxu0
      %v3105 = vadd.f32 0.0, %v3104
      %v3106 = vpop.f32.mrf.mxu0
      %v3107 = vadd.f32 0.0, %v3106
      %v3108 = vpop.f32.mrf.mxu0
      %v3109 = vadd.f32 0.0, %v3108
      %3110 = vmatprep.mubr.bf16.mxu0 %v2507
      %3111 = vmatmul.mubr.bf16.gmra.mxu0 %v2499
      %v3112 = vpop.f32.mrf.mxu0
      %v3113 = vadd.f32 0.0, %v3112
      %v3114 = vpop.f32.mrf.mxu0
      %v3115 = vadd.f32 0.0, %v3114
      %v3116 = vpop.f32.mrf.mxu0
      %v3117 = vadd.f32 0.0, %v3116
      %v3118 = vpop.f32.mrf.mxu0
      %v3119 = vadd.f32 0.0, %v3118
      %3120 = vmatprep.mubr.bf16.mxu0 %v2523
      %3121 = vmatmul.mubr.bf16.gmra.mxu0 %v2515
      %v3122 = vpop.f32.mrf.mxu0
      %v3123 = vadd.f32 0.0, %v3122
      %v3124 = vpop.f32.mrf.mxu0
      %v3125 = vadd.f32 0.0, %v3124
      %v3126 = vpop.f32.mrf.mxu0
      %v3127 = vadd.f32 0.0, %v3126
      %v3128 = vpop.f32.mrf.mxu0
      %v3129 = vadd.f32 0.0, %v3128
      %3130 = vmatprep.mubr.bf16.mxu0 %v2539
      %3131 = vmatmul.mubr.bf16.gmra.mxu0 %v2531
      %v3132 = vpop.f32.mrf.mxu0
      %v3133 = vadd.f32 0.0, %v3132
      %v3134 = vpop.f32.mrf.mxu0
      %v3135 = vadd.f32 0.0, %v3134
      %v3136 = vpop.f32.mrf.mxu0
      %v3137 = vadd.f32 0.0, %v3136
      %v3138 = vpop.f32.mrf.mxu0
      %v3139 = vadd.f32 0.0, %v3138
      %3140 = vmatprep.mubr.bf16.mxu0 %v2555
      %3141 = vmatmul.mubr.bf16.gmra.mxu0 %v2547
      %v3142 = vpop.f32.mrf.mxu0
      %v3143 = vadd.f32 0.0, %v3142
      %v3144 = vpop.f32.mrf.mxu0
      %v3145 = vadd.f32 0.0, %v3144
      %v3146 = vpop.f32.mrf.mxu0
      %v3147 = vadd.f32 0.0, %v3146
      %v3148 = vpop.f32.mrf.mxu0
      %v3149 = vadd.f32 0.0, %v3148
      %3150 = vmatprep.mubr.bf16.mxu0 %v2571
      %3151 = vmatmul.mubr.bf16.gmra.mxu0 %v2563
      %v3152 = vpop.f32.mrf.mxu0
      %v3153 = vadd.f32 0.0, %v3152
      %v3154 = vpop.f32.mrf.mxu0
      %v3155 = vadd.f32 0.0, %v3154
      %v3156 = vpop.f32.mrf.mxu0
      %v3157 = vadd.f32 0.0, %v3156
      %v3158 = vpop.f32.mrf.mxu0
      %v3159 = vadd.f32 0.0, %v3158
      %3160 = vmatprep.mubr.bf16.mxu0 %v2587
      %3161 = vmatmul.mubr.bf16.gmra.mxu0 %v2579
      %v3162 = vpop.f32.mrf.mxu0
      %v3163 = vadd.f32 0.0, %v3162
      %v3164 = vpop.f32.mrf.mxu0
      %v3165 = vadd.f32 0.0, %v3164
      %v3166 = vpop.f32.mrf.mxu0
      %v3167 = vadd.f32 0.0, %v3166
      %v3168 = vpop.f32.mrf.mxu0
      %v3169 = vadd.f32 0.0, %v3168
      %3170 = vmatprep.mubr.bf16.mxu0 %v2603
      %3171 = vmatmul.mubr.bf16.gmra.mxu0 %v2595
      %v3172 = vpop.f32.mrf.mxu0
      %v3173 = vadd.f32 0.0, %v3172
      %v3174 = vpop.f32.mrf.mxu0
      %v3175 = vadd.f32 0.0, %v3174
      %v3176 = vpop.f32.mrf.mxu0
      %v3177 = vadd.f32 0.0, %v3176
      %v3178 = vpop.f32.mrf.mxu0
      %v3179 = vadd.f32 0.0, %v3178
      %3180 = vmatprep.mubr.bf16.mxu0 %v2619
      %3181 = vmatmul.mubr.bf16.gmra.mxu0 %v2611
      %v3182 = vpop.f32.mrf.mxu0
      %v3183 = vadd.f32 0.0, %v3182
      %v3184 = vpop.f32.mrf.mxu0
      %v3185 = vadd.f32 0.0, %v3184
      %v3186 = vpop.f32.mrf.mxu0
      %v3187 = vadd.f32 0.0, %v3186
      %v3188 = vpop.f32.mrf.mxu0
      %v3189 = vadd.f32 0.0, %v3188
      %3190 = vmatprep.mubr.bf16.mxu0 %v2635
      %3191 = vmatmul.mubr.bf16.gmra.mxu0 %v2627
      %v3192 = vpop.f32.mrf.mxu0
      %v3193 = vadd.f32 0.0, %v3192
      %v3194 = vpop.f32.mrf.mxu0
      %v3195 = vadd.f32 0.0, %v3194
      %v3196 = vpop.f32.mrf.mxu0
      %v3197 = vadd.f32 0.0, %v3196
      %v3198 = vpop.f32.mrf.mxu0
      %v3199 = vadd.f32 0.0, %v3198
      %3200 = vmatprep.mubr.bf16.mxu0 %v2651
      %3201 = vmatmul.mubr.bf16.gmra.mxu0 %v2643
      %v3202 = vpop.f32.mrf.mxu0
      %v3203 = vadd.f32 0.0, %v3202
      %v3204 = vpop.f32.mrf.mxu0
      %v3205 = vadd.f32 0.0, %v3204
      %v3206 = vpop.f32.mrf.mxu0
      %v3207 = vadd.f32 0.0, %v3206
      %v3208 = vpop.f32.mrf.mxu0
      %v3209 = vadd.f32 0.0, %v3208
      %3210 = vmatprep.mubr.bf16.mxu0 %v2667
      %3211 = vmatmul.mubr.bf16.gmra.mxu0 %v2659
      %v3212 = vpop.f32.mrf.mxu0
      %v3213 = vadd.f32 0.0, %v3212
      %v3214 = vpop.f32.mrf.mxu0
      %v3215 = vadd.f32 0.0, %v3214
      %v3216 = vpop.f32.mrf.mxu0
      %v3217 = vadd.f32 0.0, %v3216
      %v3218 = vpop.f32.mrf.mxu0
      %v3219 = vadd.f32 0.0, %v3218
      %3220 = vmatprep.mubr.bf16.mxu0 %v2683
      %3221 = vmatmul.mubr.bf16.gmra.mxu0 %v2675
      %v3222 = vpop.f32.mrf.mxu0
      %v3223 = vadd.f32 0.0, %v3222
      %v3224 = vpop.f32.mrf.mxu0
      %v3225 = vadd.f32 0.0, %v3224
      %v3226 = vpop.f32.mrf.mxu0
      %v3227 = vadd.f32 0.0, %v3226
      %v3228 = vpop.f32.mrf.mxu0
      %v3229 = vadd.f32 0.0, %v3228
      %3230 = vmatprep.mubr.bf16.mxu0 %v2699
      %3231 = vmatmul.mubr.bf16.gmra.mxu0 %v2691
      %v3232 = vpop.f32.mrf.mxu0
      %v3233 = vadd.f32 0.0, %v3232
      %v3234 = vpop.f32.mrf.mxu0
      %v3235 = vadd.f32 0.0, %v3234
      %v3236 = vpop.f32.mrf.mxu0
      %v3237 = vadd.f32 0.0, %v3236
      %v3238 = vpop.f32.mrf.mxu0
      %v3239 = vadd.f32 0.0, %v3238
      %3240 = vmatprep.mubr.bf16.mxu0 %v2715
      %3241 = vmatmul.mubr.bf16.gmra.mxu0 %v2707
      %v3242 = vpop.f32.mrf.mxu0
      %v3243 = vadd.f32 0.0, %v3242
      %v3244 = vpop.f32.mrf.mxu0
      %v3245 = vadd.f32 0.0, %v3244
      %v3246 = vpop.f32.mrf.mxu0
      %v3247 = vadd.f32 0.0, %v3246
      %v3248 = vpop.f32.mrf.mxu0
      %v3249 = vadd.f32 0.0, %v3248
      %3250 = vmatprep.mubr.bf16.mxu0 %v2731
      %3251 = vmatmul.mubr.bf16.gmra.mxu0 %v2723
      %v3252 = vpop.f32.mrf.mxu0
      %v3253 = vadd.f32 0.0, %v3252
      %v3254 = vpop.f32.mrf.mxu0
      %v3255 = vadd.f32 0.0, %v3254
      %v3256 = vpop.f32.mrf.mxu0
      %v3257 = vadd.f32 0.0, %v3256
      %v3258 = vpop.f32.mrf.mxu0
      %v3259 = vadd.f32 0.0, %v3258
      %3260 = vmatprep.mubr.bf16.mxu0 %v2747
      %3261 = vmatmul.mubr.bf16.gmra.mxu0 %v2739
      %v3262 = vpop.f32.mrf.mxu0
      %v3263 = vadd.f32 0.0, %v3262
      %v3264 = vpop.f32.mrf.mxu0
      %v3265 = vadd.f32 0.0, %v3264
      %v3266 = vpop.f32.mrf.mxu0
      %v3267 = vadd.f32 0.0, %v3266
      %v3268 = vpop.f32.mrf.mxu0
      %v3269 = vadd.f32 0.0, %v3268
      %3270 = vmatprep.mubr.bf16.mxu0 %v2763
      %3271 = vmatmul.mubr.bf16.gmra.mxu0 %v2755
      %v3272 = vpop.f32.mrf.mxu0
      %v3273 = vadd.f32 0.0, %v3272
      %v3274 = vpop.f32.mrf.mxu0
      %v3275 = vadd.f32 0.0, %v3274
      %v3276 = vpop.f32.mrf.mxu0
      %v3277 = vadd.f32 0.0, %v3276
      %v3278 = vpop.f32.mrf.mxu0
      %v3279 = vadd.f32 0.0, %v3278
      %3280 = vmatprep.mubr.bf16.mxu0 %v2779
      %3281 = vmatmul.mubr.bf16.gmra.mxu0 %v2771
      %v3282 = vpop.f32.mrf.mxu0
      %v3283 = vadd.f32 0.0, %v3282
      %v3284 = vpop.f32.mrf.mxu0
      %v3285 = vadd.f32 0.0, %v3284
      %v3286 = vpop.f32.mrf.mxu0
      %v3287 = vadd.f32 0.0, %v3286
      %v3288 = vpop.f32.mrf.mxu0
      %v3289 = vadd.f32 0.0, %v3288
      %3290 = vmatprep.mubr.bf16.mxu0 %v2795
      %3291 = vmatmul.mubr.bf16.gmra.mxu0 %v2787
      %v3292 = vpop.f32.mrf.mxu0
      %v3293 = vadd.f32 0.0, %v3292
      %v3294 = vpop.f32.mrf.mxu0
      %v3295 = vadd.f32 0.0, %v3294
      %v3296 = vpop.f32.mrf.mxu0
      %v3297 = vadd.f32 0.0, %v3296
      %v3298 = vpop.f32.mrf.mxu0
      %v3299 = vadd.f32 0.0, %v3298
      %3300 = vmatprep.mubr.bf16.mxu0 %v2811
      %3301 = vmatmul.mubr.bf16.gmra.mxu0 %v2803
      %v3302 = vpop.f32.mrf.mxu0
      %v3303 = vadd.f32 0.0, %v3302
      %v3304 = vpop.f32.mrf.mxu0
      %v3305 = vadd.f32 0.0, %v3304
      %v3306 = vpop.f32.mrf.mxu0
      %v3307 = vadd.f32 0.0, %v3306
      %v3308 = vpop.f32.mrf.mxu0
      %v3309 = vadd.f32 0.0, %v3308
      %3310 = vmatprep.mubr.bf16.mxu0 %v2827
      %3311 = vmatmul.mubr.bf16.gmra.mxu0 %v2819
      %v3312 = vpop.f32.mrf.mxu0
      %v3313 = vadd.f32 0.0, %v3312
      %v3314 = vpop.f32.mrf.mxu0
      %v3315 = vadd.f32 0.0, %v3314
      %v3316 = vpop.f32.mrf.mxu0
      %v3317 = vadd.f32 0.0, %v3316
      %v3318 = vpop.f32.mrf.mxu0
      %v3319 = vadd.f32 0.0, %v3318
      %3320 = vmatprep.mubr.bf16.mxu0 %v2843
      %3321 = vmatmul.mubr.bf16.gmra.mxu0 %v2835
      %v3322 = vpop.f32.mrf.mxu0
      %v3323 = vadd.f32 0.0, %v3322
      %v3324 = vpop.f32.mrf.mxu0
      %v3325 = vadd.f32 0.0, %v3324
      %v3326 = vpop.f32.mrf.mxu0
      %v3327 = vadd.f32 0.0, %v3326
      %v3328 = vpop.f32.mrf.mxu0
      %v3329 = vadd.f32 0.0, %v3328
      %3330 = vmatprep.mubr.bf16.mxu0 %v2859
      %3331 = vmatmul.mubr.bf16.gmra.mxu0 %v2851
      %v3332 = vpop.f32.mrf.mxu0
      %v3333 = vadd.f32 0.0, %v3332
      %v3334 = vpop.f32.mrf.mxu0
      %v3335 = vadd.f32 0.0, %v3334
      %v3336 = vpop.f32.mrf.mxu0
      %v3337 = vadd.f32 0.0, %v3336
      %v3338 = vpop.f32.mrf.mxu0
      %v3339 = vadd.f32 0.0, %v3338
      %3340 = vdwg.mxu0
      %v3421 = vunpack.c.l.b16 %v2204
      %v3422 = vunpack.c.h.b16 %v2204
      %v3423 = vunpack.c.l.b16 %v2205
      %v3424 = vunpack.c.h.b16 %v2205
      %v3425 = vunpack.c.l.b16 %v2206
      %v3426 = vunpack.c.h.b16 %v2206
      %v3427 = vunpack.c.l.b16 %v2207
      %v3428 = vunpack.c.h.b16 %v2207
      %v3429 = vunpack.c.l.b16 %v2208
      %v3430 = vunpack.c.h.b16 %v2208
      %v3431 = vunpack.c.l.b16 %v2209
      %v3432 = vunpack.c.h.b16 %v2209
      %v3433 = vunpack.c.l.b16 %v2210
      %v3434 = vunpack.c.h.b16 %v2210
      %v3435 = vunpack.c.l.b16 %v2211
      %v3436 = vunpack.c.h.b16 %v2211
      %v3437 = vunpack.c.l.b16 %v2212
      %v3438 = vunpack.c.h.b16 %v2212
      %v3439 = vunpack.c.l.b16 %v2213
      %v3440 = vunpack.c.h.b16 %v2213
      %v3441 = vunpack.c.l.b16 %v2214
      %v3442 = vunpack.c.h.b16 %v2214
      %v3443 = vunpack.c.l.b16 %v2215
      %v3444 = vunpack.c.h.b16 %v2215
      %v3445 = vunpack.c.l.b16 %v2216
      %v3446 = vunpack.c.h.b16 %v2216
      %v3447 = vunpack.c.l.b16 %v2217
      %v3448 = vunpack.c.h.b16 %v2217
      %v3449 = vunpack.c.l.b16 %v2218
      %v3450 = vunpack.c.h.b16 %v2218
      %v3451 = vunpack.c.l.b16 %v2219
      %v3452 = vunpack.c.h.b16 %v2219
      %v3453 = vunpack.c.l.b16 %v2220
      %v3454 = vunpack.c.h.b16 %v2220
      %v3455 = vunpack.c.l.b16 %v2221
      %v3456 = vunpack.c.h.b16 %v2221
      %v3457 = vunpack.c.l.b16 %v2222
      %v3458 = vunpack.c.h.b16 %v2222
      %v3459 = vunpack.c.l.b16 %v2223
      %v3460 = vunpack.c.h.b16 %v2223
      %v3461 = vunpack.c.l.b16 %v2224
      %v3462 = vunpack.c.h.b16 %v2224
      %v3463 = vunpack.c.l.b16 %v2225
      %v3464 = vunpack.c.h.b16 %v2225
      %v3465 = vunpack.c.l.b16 %v2226
      %v3466 = vunpack.c.h.b16 %v2226
      %v3467 = vunpack.c.l.b16 %v2227
      %v3468 = vunpack.c.h.b16 %v2227
      %v3469 = vunpack.c.l.b16 %v2228
      %v3470 = vunpack.c.h.b16 %v2228
      %v3471 = vunpack.c.l.b16 %v2229
      %v3472 = vunpack.c.h.b16 %v2229
      %v3473 = vunpack.c.l.b16 %v2230
      %v3474 = vunpack.c.h.b16 %v2230
      %v3475 = vunpack.c.l.b16 %v2231
      %v3476 = vunpack.c.h.b16 %v2231
      %v3477 = vunpack.c.l.b16 %v2232
      %v3478 = vunpack.c.h.b16 %v2232
      %v3479 = vunpack.c.l.b16 %v2233
      %v3480 = vunpack.c.h.b16 %v2233
      %v3481 = vunpack.c.l.b16 %v2234
      %v3482 = vunpack.c.h.b16 %v2234
      %v3483 = vunpack.c.l.b16 %v2235
      %v3484 = vunpack.c.h.b16 %v2235
      %v3485 = vpack.c.b16 %v3423, %v3421
      %v3486 = vpack.c.b16 %v3424, %v3422
      %v3487 = vpack.c.b16 %v3427, %v3425
      %v3488 = vpack.c.b16 %v3428, %v3426
      %v3489 = vpack.c.b16 %v3431, %v3429
      %v3490 = vpack.c.b16 %v3432, %v3430
      %v3491 = vpack.c.b16 %v3435, %v3433
      %v3492 = vpack.c.b16 %v3436, %v3434
      %v3493 = vpack.c.b16 %v3439, %v3437
      %v3494 = vpack.c.b16 %v3440, %v3438
      %v3495 = vpack.c.b16 %v3443, %v3441
      %v3496 = vpack.c.b16 %v3444, %v3442
      %v3497 = vpack.c.b16 %v3447, %v3445
      %v3498 = vpack.c.b16 %v3448, %v3446
      %v3499 = vpack.c.b16 %v3451, %v3449
      %v3500 = vpack.c.b16 %v3452, %v3450
      %v3501 = vpack.c.b16 %v3455, %v3453
      %v3502 = vpack.c.b16 %v3456, %v3454
      %v3503 = vpack.c.b16 %v3459, %v3457
      %v3504 = vpack.c.b16 %v3460, %v3458
      %v3505 = vpack.c.b16 %v3463, %v3461
      %v3506 = vpack.c.b16 %v3464, %v3462
      %v3507 = vpack.c.b16 %v3467, %v3465
      %v3508 = vpack.c.b16 %v3468, %v3466
      %v3509 = vpack.c.b16 %v3471, %v3469
      %v3510 = vpack.c.b16 %v3472, %v3470
      %v3511 = vpack.c.b16 %v3475, %v3473
      %v3512 = vpack.c.b16 %v3476, %v3474
      %v3513 = vpack.c.b16 %v3479, %v3477
      %v3514 = vpack.c.b16 %v3480, %v3478
      %v3515 = vpack.c.b16 %v3483, %v3481
      %v3516 = vpack.c.b16 %v3484, %v3482
      %3549 = vmatprep.subr.bf16.mxu0 %v3500
      %3550 = vmatpush1.bf16.msra.mxu0 %v3499
      %3551 = vmatprep.subr.bf16.mxu0 %v3498
      %3552 = vmatpush1.bf16.msra.mxu0 %v3497
      %3553 = vmatprep.subr.bf16.mxu0 %v3496
      %3554 = vmatpush1.bf16.msra.mxu0 %v3495
      %3555 = vmatprep.subr.bf16.mxu0 %v3494
      %3556 = vmatpush1.bf16.msra.mxu0 %v3493
      %3557 = vmatprep.subr.bf16.mxu0 %v3492
      %3558 = vmatpush1.bf16.msra.mxu0 %v3491
      %3559 = vmatprep.subr.bf16.mxu0 %v3490
      %3560 = vmatpush1.bf16.msra.mxu0 %v3489
      %3561 = vmatprep.subr.bf16.mxu0 %v3488
      %3562 = vmatpush1.bf16.msra.mxu0 %v3487
      %3563 = vmatprep.subr.bf16.mxu0 %v3486
      %3564 = vmatpush1.bf16.msra.mxu0 %v3485
      %3565 = vmatprep.subr.bf16.mxu0 %v3516
      %3566 = vmatpush2.bf16.msra.mxu0 %v3515
      %3567 = vmatprep.subr.bf16.mxu0 %v3514
      %3568 = vmatpush2.bf16.msra.mxu0 %v3513
      %3569 = vmatprep.subr.bf16.mxu0 %v3512
      %3570 = vmatpush2.bf16.msra.mxu0 %v3511
      %3571 = vmatprep.subr.bf16.mxu0 %v3510
      %3572 = vmatpush2.bf16.msra.mxu0 %v3509
      %3573 = vmatprep.subr.bf16.mxu0 %v3508
      %3574 = vmatpush2.bf16.msra.mxu0 %v3507
      %3575 = vmatprep.subr.bf16.mxu0 %v3506
      %3576 = vmatpush2.bf16.msra.mxu0 %v3505
      %3577 = vmatprep.subr.bf16.mxu0 %v3504
      %3578 = vmatpush2.bf16.msra.mxu0 %v3503
      %3579 = vmatprep.subr.bf16.mxu0 %v3502
      %3580 = vmatpush2.bf16.msra.mxu0 %v3501
      %3581 = vmatprep.mubr.bf16.mxu0 %v2418
      %3582 = vmatmul.mubr.bf16.gmra.mxu0 %v2417
      %v3583 = vpop.f32.mrf.mxu0
      %v3584 = vadd.f32 %v3103, %v3583
      %v3585 = vpop.f32.mrf.mxu0
      %v3586 = vadd.f32 %v3105, %v3585
      %v3587 = vpop.f32.mrf.mxu0
      %v3588 = vadd.f32 %v3107, %v3587
      %v3589 = vpop.f32.mrf.mxu0
      %v3590 = vadd.f32 %v3109, %v3589
      %3591 = vmatprep.mubr.bf16.mxu0 %v2420
      %3592 = vmatmul.mubr.bf16.gmra.mxu0 %v2419
      %v3593 = vpop.f32.mrf.mxu0
      %v3594 = vadd.f32 %v3113, %v3593
      %v3595 = vpop.f32.mrf.mxu0
      %v3596 = vadd.f32 %v3115, %v3595
      %v3597 = vpop.f32.mrf.mxu0
      %v3598 = vadd.f32 %v3117, %v3597
      %v3599 = vpop.f32.mrf.mxu0
      %v3600 = vadd.f32 %v3119, %v3599
      %3601 = vmatprep.mubr.bf16.mxu0 %v2422
      %3602 = vmatmul.mubr.bf16.gmra.mxu0 %v2421
      %v3603 = vpop.f32.mrf.mxu0
      %v3604 = vadd.f32 %v3123, %v3603
      %v3605 = vpop.f32.mrf.mxu0
      %v3606 = vadd.f32 %v3125, %v3605
      %v3607 = vpop.f32.mrf.mxu0
      %v3608 = vadd.f32 %v3127, %v3607
      %v3609 = vpop.f32.mrf.mxu0
      %v3610 = vadd.f32 %v3129, %v3609
      %3611 = vmatprep.mubr.bf16.mxu0 %v2424
      %3612 = vmatmul.mubr.bf16.gmra.mxu0 %v2423
      %v3613 = vpop.f32.mrf.mxu0
      %v3614 = vadd.f32 %v3133, %v3613
      %v3615 = vpop.f32.mrf.mxu0
      %v3616 = vadd.f32 %v3135, %v3615
      %v3617 = vpop.f32.mrf.mxu0
      %v3618 = vadd.f32 %v3137, %v3617
      %v3619 = vpop.f32.mrf.mxu0
      %v3620 = vadd.f32 %v3139, %v3619
      %3621 = vmatprep.mubr.bf16.mxu0 %v2426
      %3622 = vmatmul.mubr.bf16.gmra.mxu0 %v2425
      %v3623 = vpop.f32.mrf.mxu0
      %v3624 = vadd.f32 %v3143, %v3623
      %v3625 = vpop.f32.mrf.mxu0
      %v3626 = vadd.f32 %v3145, %v3625
      %v3627 = vpop.f32.mrf.mxu0
      %v3628 = vadd.f32 %v3147, %v3627
      %v3629 = vpop.f32.mrf.mxu0
      %v3630 = vadd.f32 %v3149, %v3629
      %3631 = vmatprep.mubr.bf16.mxu0 %v2428
      %3632 = vmatmul.mubr.bf16.gmra.mxu0 %v2427
      %v3633 = vpop.f32.mrf.mxu0
      %v3634 = vadd.f32 %v3153, %v3633
      %v3635 = vpop.f32.mrf.mxu0
      %v3636 = vadd.f32 %v3155, %v3635
      %v3637 = vpop.f32.mrf.mxu0
      %v3638 = vadd.f32 %v3157, %v3637
      %v3639 = vpop.f32.mrf.mxu0
      %v3640 = vadd.f32 %v3159, %v3639
      %3641 = vmatprep.mubr.bf16.mxu0 %v2430
      %3642 = vmatmul.mubr.bf16.gmra.mxu0 %v2429
      %v3643 = vpop.f32.mrf.mxu0
      %v3644 = vadd.f32 %v3163, %v3643
      %v3645 = vpop.f32.mrf.mxu0
      %v3646 = vadd.f32 %v3165, %v3645
      %v3647 = vpop.f32.mrf.mxu0
      %v3648 = vadd.f32 %v3167, %v3647
      %v3649 = vpop.f32.mrf.mxu0
      %v3650 = vadd.f32 %v3169, %v3649
      %3651 = vmatprep.mubr.bf16.mxu0 %v2432
      %3652 = vmatmul.mubr.bf16.gmra.mxu0 %v2431
      %v3653 = vpop.f32.mrf.mxu0
      %v3654 = vadd.f32 %v3173, %v3653
      %v3655 = vpop.f32.mrf.mxu0
      %v3656 = vadd.f32 %v3175, %v3655
      %v3657 = vpop.f32.mrf.mxu0
      %v3658 = vadd.f32 %v3177, %v3657
      %v3659 = vpop.f32.mrf.mxu0
      %v3660 = vadd.f32 %v3179, %v3659
      %3661 = vmatprep.mubr.bf16.mxu0 %v2434
      %3662 = vmatmul.mubr.bf16.gmra.mxu0 %v2433
      %v3663 = vpop.f32.mrf.mxu0
      %v3664 = vadd.f32 %v3183, %v3663
      %v3665 = vpop.f32.mrf.mxu0
      %v3666 = vadd.f32 %v3185, %v3665
      %v3667 = vpop.f32.mrf.mxu0
      %v3668 = vadd.f32 %v3187, %v3667
      %v3669 = vpop.f32.mrf.mxu0
      %v3670 = vadd.f32 %v3189, %v3669
      %3671 = vmatprep.mubr.bf16.mxu0 %v2436
      %3672 = vmatmul.mubr.bf16.gmra.mxu0 %v2435
      %v3673 = vpop.f32.mrf.mxu0
      %v3674 = vadd.f32 %v3193, %v3673
      %v3675 = vpop.f32.mrf.mxu0
      %v3676 = vadd.f32 %v3195, %v3675
      %v3677 = vpop.f32.mrf.mxu0
      %v3678 = vadd.f32 %v3197, %v3677
      %v3679 = vpop.f32.mrf.mxu0
      %v3680 = vadd.f32 %v3199, %v3679
      %3681 = vmatprep.mubr.bf16.mxu0 %v2438
      %3682 = vmatmul.mubr.bf16.gmra.mxu0 %v2437
      %v3683 = vpop.f32.mrf.mxu0
      %v3684 = vadd.f32 %v3203, %v3683
      %v3685 = vpop.f32.mrf.mxu0
      %v3686 = vadd.f32 %v3205, %v3685
      %v3687 = vpop.f32.mrf.mxu0
      %v3688 = vadd.f32 %v3207, %v3687
      %v3689 = vpop.f32.mrf.mxu0
      %v3690 = vadd.f32 %v3209, %v3689
      %3691 = vmatprep.mubr.bf16.mxu0 %v2440
      %3692 = vmatmul.mubr.bf16.gmra.mxu0 %v2439
      %v3693 = vpop.f32.mrf.mxu0
      %v3694 = vadd.f32 %v3213, %v3693
      %v3695 = vpop.f32.mrf.mxu0
      %v3696 = vadd.f32 %v3215, %v3695
      %v3697 = vpop.f32.mrf.mxu0
      %v3698 = vadd.f32 %v3217, %v3697
      %v3699 = vpop.f32.mrf.mxu0
      %v3700 = vadd.f32 %v3219, %v3699
      %3701 = vmatprep.mubr.bf16.mxu0 %v2442
      %3702 = vmatmul.mubr.bf16.gmra.mxu0 %v2441
      %v3703 = vpop.f32.mrf.mxu0
      %v3704 = vadd.f32 %v3223, %v3703
      %v3705 = vpop.f32.mrf.mxu0
      %v3706 = vadd.f32 %v3225, %v3705
      %v3707 = vpop.f32.mrf.mxu0
      %v3708 = vadd.f32 %v3227, %v3707
      %v3709 = vpop.f32.mrf.mxu0
      %v3710 = vadd.f32 %v3229, %v3709
      %3711 = vmatprep.mubr.bf16.mxu0 %v2444
      %3712 = vmatmul.mubr.bf16.gmra.mxu0 %v2443
      %v3713 = vpop.f32.mrf.mxu0
      %v3714 = vadd.f32 %v3233, %v3713
      %v3715 = vpop.f32.mrf.mxu0
      %v3716 = vadd.f32 %v3235, %v3715
      %v3717 = vpop.f32.mrf.mxu0
      %v3718 = vadd.f32 %v3237, %v3717
      %v3719 = vpop.f32.mrf.mxu0
      %v3720 = vadd.f32 %v3239, %v3719
      %3721 = vmatprep.mubr.bf16.mxu0 %v2446
      %3722 = vmatmul.mubr.bf16.gmra.mxu0 %v2445
      %v3723 = vpop.f32.mrf.mxu0
      %v3724 = vadd.f32 %v3243, %v3723
      %v3725 = vpop.f32.mrf.mxu0
      %v3726 = vadd.f32 %v3245, %v3725
      %v3727 = vpop.f32.mrf.mxu0
      %v3728 = vadd.f32 %v3247, %v3727
      %v3729 = vpop.f32.mrf.mxu0
      %v3730 = vadd.f32 %v3249, %v3729
      %3731 = vmatprep.mubr.bf16.mxu0 %v2448
      %3732 = vmatmul.mubr.bf16.gmra.mxu0 %v2447
      %v3733 = vpop.f32.mrf.mxu0
      %v3734 = vadd.f32 %v3253, %v3733
      %v3735 = vpop.f32.mrf.mxu0
      %v3736 = vadd.f32 %v3255, %v3735
      %v3737 = vpop.f32.mrf.mxu0
      %v3738 = vadd.f32 %v3257, %v3737
      %v3739 = vpop.f32.mrf.mxu0
      %v3740 = vadd.f32 %v3259, %v3739
      %3741 = vmatprep.mubr.bf16.mxu0 %v2450
      %3742 = vmatmul.mubr.bf16.gmra.mxu0 %v2449
      %v3743 = vpop.f32.mrf.mxu0
      %v3744 = vadd.f32 %v3263, %v3743
      %v3745 = vpop.f32.mrf.mxu0
      %v3746 = vadd.f32 %v3265, %v3745
      %v3747 = vpop.f32.mrf.mxu0
      %v3748 = vadd.f32 %v3267, %v3747
      %v3749 = vpop.f32.mrf.mxu0
      %v3750 = vadd.f32 %v3269, %v3749
      %3751 = vmatprep.mubr.bf16.mxu0 %v2452
      %3752 = vmatmul.mubr.bf16.gmra.mxu0 %v2451
      %v3753 = vpop.f32.mrf.mxu0
      %v3754 = vadd.f32 %v3273, %v3753
      %v3755 = vpop.f32.mrf.mxu0
      %v3756 = vadd.f32 %v3275, %v3755
      %v3757 = vpop.f32.mrf.mxu0
      %v3758 = vadd.f32 %v3277, %v3757
      %v3759 = vpop.f32.mrf.mxu0
      %v3760 = vadd.f32 %v3279, %v3759
      %3761 = vmatprep.mubr.bf16.mxu0 %v2454
      %3762 = vmatmul.mubr.bf16.gmra.mxu0 %v2453
      %v3763 = vpop.f32.mrf.mxu0
      %v3764 = vadd.f32 %v3283, %v3763
      %v3765 = vpop.f32.mrf.mxu0
      %v3766 = vadd.f32 %v3285, %v3765
      %v3767 = vpop.f32.mrf.mxu0
      %v3768 = vadd.f32 %v3287, %v3767
      %v3769 = vpop.f32.mrf.mxu0
      %v3770 = vadd.f32 %v3289, %v3769
      %3771 = vmatprep.mubr.bf16.mxu0 %v2456
      %3772 = vmatmul.mubr.bf16.gmra.mxu0 %v2455
      %v3773 = vpop.f32.mrf.mxu0
      %v3774 = vadd.f32 %v3293, %v3773
      %v3775 = vpop.f32.mrf.mxu0
      %v3776 = vadd.f32 %v3295, %v3775
      %v3777 = vpop.f32.mrf.mxu0
      %v3778 = vadd.f32 %v3297, %v3777
      %v3779 = vpop.f32.mrf.mxu0
      %v3780 = vadd.f32 %v3299, %v3779
      %3781 = vmatprep.mubr.bf16.mxu0 %v2458
      %3782 = vmatmul.mubr.bf16.gmra.mxu0 %v2457
      %v3783 = vpop.f32.mrf.mxu0
      %v3784 = vadd.f32 %v3303, %v3783
      %v3785 = vpop.f32.mrf.mxu0
      %v3786 = vadd.f32 %v3305, %v3785
      %v3787 = vpop.f32.mrf.mxu0
      %v3788 = vadd.f32 %v3307, %v3787
      %v3789 = vpop.f32.mrf.mxu0
      %v3790 = vadd.f32 %v3309, %v3789
      %3791 = vmatprep.mubr.bf16.mxu0 %v2460
      %3792 = vmatmul.mubr.bf16.gmra.mxu0 %v2459
      %v3793 = vpop.f32.mrf.mxu0
      %v3794 = vadd.f32 %v3313, %v3793
      %v3795 = vpop.f32.mrf.mxu0
      %v3796 = vadd.f32 %v3315, %v3795
      %v3797 = vpop.f32.mrf.mxu0
      %v3798 = vadd.f32 %v3317, %v3797
      %v3799 = vpop.f32.mrf.mxu0
      %v3800 = vadd.f32 %v3319, %v3799
      %3801 = vmatprep.mubr.bf16.mxu0 %v2462
      %3802 = vmatmul.mubr.bf16.gmra.mxu0 %v2461
      %v3803 = vpop.f32.mrf.mxu0
      %v3804 = vadd.f32 %v3323, %v3803
      %v3805 = vpop.f32.mrf.mxu0
      %v3806 = vadd.f32 %v3325, %v3805
      %v3807 = vpop.f32.mrf.mxu0
      %v3808 = vadd.f32 %v3327, %v3807
      %v3809 = vpop.f32.mrf.mxu0
      %v3810 = vadd.f32 %v3329, %v3809
      %3811 = vmatprep.mubr.bf16.mxu0 %v2464
      %3812 = vmatmul.mubr.bf16.gmra.mxu0 %v2463
      %v3813 = vpop.f32.mrf.mxu0
      %v3814 = vadd.f32 %v3333, %v3813
      %v3815 = vpop.f32.mrf.mxu0
      %v3816 = vadd.f32 %v3335, %v3815
      %v3817 = vpop.f32.mrf.mxu0
      %v3818 = vadd.f32 %v3337, %v3817
      %v3819 = vpop.f32.mrf.mxu0
      %v3820 = vadd.f32 %v3339, %v3819
      %3821 = vdwg.mxu0
      %v3822 = vld [vmem:[#allocation2] sm:$0xee]
      %s3823 = scalar_lea.vmem %s3, 512
      %v3824 = vld [vmem:[%s3823] sm:$0xff]
      %v3825 = vld [vmem:[%s3823 + $0x8] sm:$0xff]
      %v3826 = vld [vmem:[%s3823 + $0x10] sm:$0xff]
      %v3827 = vld [vmem:[%s3823 + $0x18] sm:$0xff]
      %v3828 = vld [vmem:[%s3823 + $0x20] sm:$0xff]
      %v3829 = vld [vmem:[%s3823 + $0x28] sm:$0xff]
      %v3830 = vld [vmem:[%s3823 + $0x30] sm:$0xff]
      %v3831 = vld [vmem:[%s3823 + $0x38] sm:$0xff]
      %v3832 = vld [vmem:[%s3823 + $0x40] sm:$0xff]
      %v3833 = vld [vmem:[%s3823 + $0x48] sm:$0xff]
      %v3834 = vld [vmem:[%s3823 + $0x50] sm:$0xff]
      %v3835 = vld [vmem:[%s3823 + $0x58] sm:$0xff]
      %v3836 = vld [vmem:[%s3823 + $0x60] sm:$0xff]
      %v3837 = vld [vmem:[%s3823 + $0x68] sm:$0xff]
      %v3838 = vld [vmem:[%s3823 + $0x70] sm:$0xff]
      %v3839 = vld [vmem:[%s3823 + $0x78] sm:$0xff]
      %v3840 = vld [vmem:[%s3823 + $0x80] sm:$0xff]
      %v3841 = vld [vmem:[%s3823 + $0x88] sm:$0xff]
      %v3842 = vld [vmem:[%s3823 + $0x90] sm:$0xff]
      %v3843 = vld [vmem:[%s3823 + $0x98] sm:$0xff]
      %v3844 = vld [vmem:[%s3823 + $0xa0] sm:$0xff]
      %v3845 = vld [vmem:[%s3823 + $0xa8] sm:$0xff]
      %v3846 = vld [vmem:[%s3823 + $0xb0] sm:$0xff]
      %v3847 = vld [vmem:[%s3823 + $0xb8] sm:$0xff]
      %v3848 = vld [vmem:[%s3823 + $0xc0] sm:$0xff]
      %v3849 = vld [vmem:[%s3823 + $0xc8] sm:$0xff]
      %v3850 = vld [vmem:[%s3823 + $0xd0] sm:$0xff]
      %v3851 = vld [vmem:[%s3823 + $0xd8] sm:$0xff]
      %v3852 = vld [vmem:[%s3823 + $0xe0] sm:$0xff]
      %v3853 = vld [vmem:[%s3823 + $0xe8] sm:$0xff]
      %v3854 = vld [vmem:[%s3823 + $0xf0] sm:$0xff]
      %v3855 = vld [vmem:[%s3823 + $0xf8] sm:$0xff]
      %v3857 = vunpack.c.l.b16 %v3822
      %v3858 = vunpack.c.h.b16 %v3822
      %v3859 = vpack.c.b16 %v2321, %v3857
      %v3860 = vpack.c.b16 %v2322, %v3858
      %vm3861 = vcmask 1046528
      %v3862 = vrot.slane %v3859, 1
      %v3863 = vrot.slane %v2419, 1
      %v3864 = vsel %vm3861, %v3862, %v3863
      %v3865 = vrot.slane %v3860, 1
      %v3866 = vrot.slane %v2420, 1
      %v3867 = vsel %vm3861, %v3865, %v3866
      %v3868 = vrot.slane %v2421, 1
      %v3869 = vsel %vm3861, %v3863, %v3868
      %v3870 = vrot.slane %v2422, 1
      %v3871 = vsel %vm3861, %v3866, %v3870
      %v3872 = vrot.slane %v2423, 1
      %v3873 = vsel %vm3861, %v3868, %v3872
      %v3874 = vrot.slane %v2424, 1
      %v3875 = vsel %vm3861, %v3870, %v3874
      %v3876 = vrot.slane %v2425, 1
      %v3877 = vsel %vm3861, %v3872, %v3876
      %v3878 = vrot.slane %v2426, 1
      %v3879 = vsel %vm3861, %v3874, %v3878
      %v3880 = vrot.slane %v2427, 1
      %v3881 = vsel %vm3861, %v3876, %v3880
      %v3882 = vrot.slane %v2428, 1
      %v3883 = vsel %vm3861, %v3878, %v3882
      %v3884 = vrot.slane %v2429, 1
      %v3885 = vsel %vm3861, %v3880, %v3884
      %v3886 = vrot.slane %v2430, 1
      %v3887 = vsel %vm3861, %v3882, %v3886
      %v3888 = vrot.slane %v2431, 1
      %v3889 = vsel %vm3861, %v3884, %v3888
      %v3890 = vrot.slane %v2432, 1
      %v3891 = vsel %vm3861, %v3886, %v3890
      %v3892 = vrot.slane %v2433, 1
      %v3893 = vsel %vm3861, %v3888, %v3892
      %v3894 = vrot.slane %v2434, 1
      %v3895 = vsel %vm3861, %v3890, %v3894
      %v3896 = vrot.slane %v2435, 1
      %v3897 = vsel %vm3861, %v3892, %v3896
      %v3898 = vrot.slane %v2436, 1
      %v3899 = vsel %vm3861, %v3894, %v3898
      %v3900 = vrot.slane %v2437, 1
      %v3901 = vsel %vm3861, %v3896, %v3900
      %v3902 = vrot.slane %v2438, 1
      %v3903 = vsel %vm3861, %v3898, %v3902
      %v3904 = vrot.slane %v2439, 1
      %v3905 = vsel %vm3861, %v3900, %v3904
      %v3906 = vrot.slane %v2440, 1
      %v3907 = vsel %vm3861, %v3902, %v3906
      %v3908 = vrot.slane %v2441, 1
      %v3909 = vsel %vm3861, %v3904, %v3908
      %v3910 = vrot.slane %v2442, 1
      %v3911 = vsel %vm3861, %v3906, %v3910
      %v3912 = vrot.slane %v2443, 1
      %v3913 = vsel %vm3861, %v3908, %v3912
      %v3914 = vrot.slane %v2444, 1
      %v3915 = vsel %vm3861, %v3910, %v3914
      %v3916 = vrot.slane %v2445, 1
      %v3917 = vsel %vm3861, %v3912, %v3916
      %v3918 = vrot.slane %v2446, 1
      %v3919 = vsel %vm3861, %v3914, %v3918
      %v3920 = vrot.slane %v2447, 1
      %v3921 = vsel %vm3861, %v3916, %v3920
      %v3922 = vrot.slane %v2448, 1
      %v3923 = vsel %vm3861, %v3918, %v3922
      %v3924 = vrot.slane %v2449, 1
      %v3925 = vsel %vm3861, %v3920, %v3924
      %v3926 = vrot.slane %v2450, 1
      %v3927 = vsel %vm3861, %v3922, %v3926
      %v3928 = vrot.slane %v2451, 1
      %v3929 = vsel %vm3861, %v3924, %v3928
      %v3930 = vrot.slane %v2452, 1
      %v3931 = vsel %vm3861, %v3926, %v3930
      %v3932 = vrot.slane %v2453, 1
      %v3933 = vsel %vm3861, %v3928, %v3932
      %v3934 = vrot.slane %v2454, 1
      %v3935 = vsel %vm3861, %v3930, %v3934
      %v3936 = vrot.slane %v2455, 1
      %v3937 = vsel %vm3861, %v3932, %v3936
      %v3938 = vrot.slane %v2456, 1
      %v3939 = vsel %vm3861, %v3934, %v3938
      %v3940 = vrot.slane %v2457, 1
      %v3941 = vsel %vm3861, %v3936, %v3940
      %v3942 = vrot.slane %v2458, 1
      %v3943 = vsel %vm3861, %v3938, %v3942
      %v3944 = vrot.slane %v2459, 1
      %v3945 = vsel %vm3861, %v3940, %v3944
      %v3946 = vrot.slane %v2460, 1
      %v3947 = vsel %vm3861, %v3942, %v3946
      %v3948 = vrot.slane %v2461, 1
      %v3949 = vsel %vm3861, %v3944, %v3948
      %v3950 = vrot.slane %v2462, 1
      %v3951 = vsel %vm3861, %v3946, %v3950
      %v3952 = vrot.slane %v2463, 1
      %v3953 = vsel %vm3861, %v3948, %v3952
      %v3954 = vrot.slane %v2464, 1
      %v3955 = vsel %vm3861, %v3950, %v3954
      %v3956 = vrot.slane %v2465, 1
      %v3957 = vsel %vm3861, %v3952, %v3956
      %v3958 = vrot.slane %v2466, 1
      %v3959 = vsel %vm3861, %v3954, %v3958
      %v4040 = vunpack.c.l.b16 %v3824
      %v4041 = vunpack.c.h.b16 %v3824
      %v4042 = vunpack.c.l.b16 %v3825
      %v4043 = vunpack.c.h.b16 %v3825
      %v4044 = vunpack.c.l.b16 %v3826
      %v4045 = vunpack.c.h.b16 %v3826
      %v4046 = vunpack.c.l.b16 %v3827
      %v4047 = vunpack.c.h.b16 %v3827
      %v4048 = vunpack.c.l.b16 %v3828
      %v4049 = vunpack.c.h.b16 %v3828
      %v4050 = vunpack.c.l.b16 %v3829
      %v4051 = vunpack.c.h.b16 %v3829
      %v4052 = vunpack.c.l.b16 %v3830
      %v4053 = vunpack.c.h.b16 %v3830
      %v4054 = vunpack.c.l.b16 %v3831
      %v4055 = vunpack.c.h.b16 %v3831
      %v4056 = vunpack.c.l.b16 %v3832
      %v4057 = vunpack.c.h.b16 %v3832
      %v4058 = vunpack.c.l.b16 %v3833
      %v4059 = vunpack.c.h.b16 %v3833
      %v4060 = vunpack.c.l.b16 %v3834
      %v4061 = vunpack.c.h.b16 %v3834
      %v4062 = vunpack.c.l.b16 %v3835
      %v4063 = vunpack.c.h.b16 %v3835
      %v4064 = vunpack.c.l.b16 %v3836
      %v4065 = vunpack.c.h.b16 %v3836
      %v4066 = vunpack.c.l.b16 %v3837
      %v4067 = vunpack.c.h.b16 %v3837
      %v4068 = vunpack.c.l.b16 %v3838
      %v4069 = vunpack.c.h.b16 %v3838
      %v4070 = vunpack.c.l.b16 %v3839
      %v4071 = vunpack.c.h.b16 %v3839
      %v4072 = vunpack.c.l.b16 %v3840
      %v4073 = vunpack.c.h.b16 %v3840
      %v4074 = vunpack.c.l.b16 %v3841
      %v4075 = vunpack.c.h.b16 %v3841
      %v4076 = vunpack.c.l.b16 %v3842
      %v4077 = vunpack.c.h.b16 %v3842
      %v4078 = vunpack.c.l.b16 %v3843
      %v4079 = vunpack.c.h.b16 %v3843
      %v4080 = vunpack.c.l.b16 %v3844
      %v4081 = vunpack.c.h.b16 %v3844
      %v4082 = vunpack.c.l.b16 %v3845
      %v4083 = vunpack.c.h.b16 %v3845
      %v4084 = vunpack.c.l.b16 %v3846
      %v4085 = vunpack.c.h.b16 %v3846
      %v4086 = vunpack.c.l.b16 %v3847
      %v4087 = vunpack.c.h.b16 %v3847
      %v4088 = vunpack.c.l.b16 %v3848
      %v4089 = vunpack.c.h.b16 %v3848
      %v4090 = vunpack.c.l.b16 %v3849
      %v4091 = vunpack.c.h.b16 %v3849
      %v4092 = vunpack.c.l.b16 %v3850
      %v4093 = vunpack.c.h.b16 %v3850
      %v4094 = vunpack.c.l.b16 %v3851
      %v4095 = vunpack.c.h.b16 %v3851
      %v4096 = vunpack.c.l.b16 %v3852
      %v4097 = vunpack.c.h.b16 %v3852
      %v4098 = vunpack.c.l.b16 %v3853
      %v4099 = vunpack.c.h.b16 %v3853
      %v4100 = vunpack.c.l.b16 %v3854
      %v4101 = vunpack.c.h.b16 %v3854
      %v4102 = vunpack.c.l.b16 %v3855
      %v4103 = vunpack.c.h.b16 %v3855
      %v4104 = vpack.c.b16 %v4042, %v4040
      %v4105 = vpack.c.b16 %v4043, %v4041
      %v4106 = vpack.c.b16 %v4046, %v4044
      %v4107 = vpack.c.b16 %v4047, %v4045
      %v4108 = vpack.c.b16 %v4050, %v4048
      %v4109 = vpack.c.b16 %v4051, %v4049
      %v4110 = vpack.c.b16 %v4054, %v4052
      %v4111 = vpack.c.b16 %v4055, %v4053
      %v4112 = vpack.c.b16 %v4058, %v4056
      %v4113 = vpack.c.b16 %v4059, %v4057
      %v4114 = vpack.c.b16 %v4062, %v4060
      %v4115 = vpack.c.b16 %v4063, %v4061
      %v4116 = vpack.c.b16 %v4066, %v4064
      %v4117 = vpack.c.b16 %v4067, %v4065
      %v4118 = vpack.c.b16 %v4070, %v4068
      %v4119 = vpack.c.b16 %v4071, %v4069
      %v4120 = vpack.c.b16 %v4074, %v4072
      %v4121 = vpack.c.b16 %v4075, %v4073
      %v4122 = vpack.c.b16 %v4078, %v4076
      %v4123 = vpack.c.b16 %v4079, %v4077
      %v4124 = vpack.c.b16 %v4082, %v4080
      %v4125 = vpack.c.b16 %v4083, %v4081
      %v4126 = vpack.c.b16 %v4086, %v4084
      %v4127 = vpack.c.b16 %v4087, %v4085
      %v4128 = vpack.c.b16 %v4090, %v4088
      %v4129 = vpack.c.b16 %v4091, %v4089
      %v4130 = vpack.c.b16 %v4094, %v4092
      %v4131 = vpack.c.b16 %v4095, %v4093
      %v4132 = vpack.c.b16 %v4098, %v4096
      %v4133 = vpack.c.b16 %v4099, %v4097
      %v4134 = vpack.c.b16 %v4102, %v4100
      %v4135 = vpack.c.b16 %v4103, %v4101
      %4168 = vmatprep.subr.bf16.mxu0 %v4119
      %4169 = vmatpush1.bf16.msra.mxu0 %v4118
      %4170 = vmatprep.subr.bf16.mxu0 %v4117
      %4171 = vmatpush1.bf16.msra.mxu0 %v4116
      %4172 = vmatprep.subr.bf16.mxu0 %v4115
      %4173 = vmatpush1.bf16.msra.mxu0 %v4114
      %4174 = vmatprep.subr.bf16.mxu0 %v4113
      %4175 = vmatpush1.bf16.msra.mxu0 %v4112
      %4176 = vmatprep.subr.bf16.mxu0 %v4111
      %4177 = vmatpush1.bf16.msra.mxu0 %v4110
      %4178 = vmatprep.subr.bf16.mxu0 %v4109
      %4179 = vmatpush1.bf16.msra.mxu0 %v4108
      %4180 = vmatprep.subr.bf16.mxu0 %v4107
      %4181 = vmatpush1.bf16.msra.mxu0 %v4106
      %4182 = vmatprep.subr.bf16.mxu0 %v4105
      %4183 = vmatpush1.bf16.msra.mxu0 %v4104
      %4184 = vmatprep.subr.bf16.mxu0 %v4135
      %4185 = vmatpush2.bf16.msra.mxu0 %v4134
      %4186 = vmatprep.subr.bf16.mxu0 %v4133
      %4187 = vmatpush2.bf16.msra.mxu0 %v4132
      %4188 = vmatprep.subr.bf16.mxu0 %v4131
      %4189 = vmatpush2.bf16.msra.mxu0 %v4130
      %4190 = vmatprep.subr.bf16.mxu0 %v4129
      %4191 = vmatpush2.bf16.msra.mxu0 %v4128
      %4192 = vmatprep.subr.bf16.mxu0 %v4127
      %4193 = vmatpush2.bf16.msra.mxu0 %v4126
      %4194 = vmatprep.subr.bf16.mxu0 %v4125
      %4195 = vmatpush2.bf16.msra.mxu0 %v4124
      %4196 = vmatprep.subr.bf16.mxu0 %v4123
      %4197 = vmatpush2.bf16.msra.mxu0 %v4122
      %4198 = vmatprep.subr.bf16.mxu0 %v4121
      %4199 = vmatpush2.bf16.msra.mxu0 %v4120
      %4200 = vmatprep.mubr.bf16.mxu0 %v3867
      %4201 = vmatmul.mubr.bf16.gmra.mxu0 %v3864
      %v4202 = vpop.f32.mrf.mxu0
      %v4203 = vadd.f32 0.0, %v4202
      %v4204 = vpop.f32.mrf.mxu0
      %v4205 = vadd.f32 0.0, %v4204
      %v4206 = vpop.f32.mrf.mxu0
      %v4207 = vadd.f32 0.0, %v4206
      %v4208 = vpop.f32.mrf.mxu0
      %v4209 = vadd.f32 0.0, %v4208
      %4210 = vmatprep.mubr.bf16.mxu0 %v3871
      %4211 = vmatmul.mubr.bf16.gmra.mxu0 %v3869
      %v4212 = vpop.f32.mrf.mxu0
      %v4213 = vadd.f32 0.0, %v4212
      %v4214 = vpop.f32.mrf.mxu0
      %v4215 = vadd.f32 0.0, %v4214
      %v4216 = vpop.f32.mrf.mxu0
      %v4217 = vadd.f32 0.0, %v4216
      %v4218 = vpop.f32.mrf.mxu0
      %v4219 = vadd.f32 0.0, %v4218
      %4220 = vmatprep.mubr.bf16.mxu0 %v3875
      %4221 = vmatmul.mubr.bf16.gmra.mxu0 %v3873
      %v4222 = vpop.f32.mrf.mxu0
      %v4223 = vadd.f32 0.0, %v4222
      %v4224 = vpop.f32.mrf.mxu0
      %v4225 = vadd.f32 0.0, %v4224
      %v4226 = vpop.f32.mrf.mxu0
      %v4227 = vadd.f32 0.0, %v4226
      %v4228 = vpop.f32.mrf.mxu0
      %v4229 = vadd.f32 0.0, %v4228
      %4230 = vmatprep.mubr.bf16.mxu0 %v3879
      %4231 = vmatmul.mubr.bf16.gmra.mxu0 %v3877
      %v4232 = vpop.f32.mrf.mxu0
      %v4233 = vadd.f32 0.0, %v4232
      %v4234 = vpop.f32.mrf.mxu0
      %v4235 = vadd.f32 0.0, %v4234
      %v4236 = vpop.f32.mrf.mxu0
      %v4237 = vadd.f32 0.0, %v4236
      %v4238 = vpop.f32.mrf.mxu0
      %v4239 = vadd.f32 0.0, %v4238
      %4240 = vmatprep.mubr.bf16.mxu0 %v3883
      %4241 = vmatmul.mubr.bf16.gmra.mxu0 %v3881
      %v4242 = vpop.f32.mrf.mxu0
      %v4243 = vadd.f32 0.0, %v4242
      %v4244 = vpop.f32.mrf.mxu0
      %v4245 = vadd.f32 0.0, %v4244
      %v4246 = vpop.f32.mrf.mxu0
      %v4247 = vadd.f32 0.0, %v4246
      %v4248 = vpop.f32.mrf.mxu0
      %v4249 = vadd.f32 0.0, %v4248
      %4250 = vmatprep.mubr.bf16.mxu0 %v3887
      %4251 = vmatmul.mubr.bf16.gmra.mxu0 %v3885
      %v4252 = vpop.f32.mrf.mxu0
      %v4253 = vadd.f32 0.0, %v4252
      %v4254 = vpop.f32.mrf.mxu0
      %v4255 = vadd.f32 0.0, %v4254
      %v4256 = vpop.f32.mrf.mxu0
      %v4257 = vadd.f32 0.0, %v4256
      %v4258 = vpop.f32.mrf.mxu0
      %v4259 = vadd.f32 0.0, %v4258
      %4260 = vmatprep.mubr.bf16.mxu0 %v3891
      %4261 = vmatmul.mubr.bf16.gmra.mxu0 %v3889
      %v4262 = vpop.f32.mrf.mxu0
      %v4263 = vadd.f32 0.0, %v4262
      %v4264 = vpop.f32.mrf.mxu0
      %v4265 = vadd.f32 0.0, %v4264
      %v4266 = vpop.f32.mrf.mxu0
      %v4267 = vadd.f32 0.0, %v4266
      %v4268 = vpop.f32.mrf.mxu0
      %v4269 = vadd.f32 0.0, %v4268
      %4270 = vmatprep.mubr.bf16.mxu0 %v3895
      %4271 = vmatmul.mubr.bf16.gmra.mxu0 %v3893
      %v4272 = vpop.f32.mrf.mxu0
      %v4273 = vadd.f32 0.0, %v4272
      %v4274 = vpop.f32.mrf.mxu0
      %v4275 = vadd.f32 0.0, %v4274
      %v4276 = vpop.f32.mrf.mxu0
      %v4277 = vadd.f32 0.0, %v4276
      %v4278 = vpop.f32.mrf.mxu0
      %v4279 = vadd.f32 0.0, %v4278
      %4280 = vmatprep.mubr.bf16.mxu0 %v3899
      %4281 = vmatmul.mubr.bf16.gmra.mxu0 %v3897
      %v4282 = vpop.f32.mrf.mxu0
      %v4283 = vadd.f32 0.0, %v4282
      %v4284 = vpop.f32.mrf.mxu0
      %v4285 = vadd.f32 0.0, %v4284
      %v4286 = vpop.f32.mrf.mxu0
      %v4287 = vadd.f32 0.0, %v4286
      %v4288 = vpop.f32.mrf.mxu0
      %v4289 = vadd.f32 0.0, %v4288
      %4290 = vmatprep.mubr.bf16.mxu0 %v3903
      %4291 = vmatmul.mubr.bf16.gmra.mxu0 %v3901
      %v4292 = vpop.f32.mrf.mxu0
      %v4293 = vadd.f32 0.0, %v4292
      %v4294 = vpop.f32.mrf.mxu0
      %v4295 = vadd.f32 0.0, %v4294
      %v4296 = vpop.f32.mrf.mxu0
      %v4297 = vadd.f32 0.0, %v4296
      %v4298 = vpop.f32.mrf.mxu0
      %v4299 = vadd.f32 0.0, %v4298
      %4300 = vmatprep.mubr.bf16.mxu0 %v3907
      %4301 = vmatmul.mubr.bf16.gmra.mxu0 %v3905
      %v4302 = vpop.f32.mrf.mxu0
      %v4303 = vadd.f32 0.0, %v4302
      %v4304 = vpop.f32.mrf.mxu0
      %v4305 = vadd.f32 0.0, %v4304
      %v4306 = vpop.f32.mrf.mxu0
      %v4307 = vadd.f32 0.0, %v4306
      %v4308 = vpop.f32.mrf.mxu0
      %v4309 = vadd.f32 0.0, %v4308
      %4310 = vmatprep.mubr.bf16.mxu0 %v3911
      %4311 = vmatmul.mubr.bf16.gmra.mxu0 %v3909
      %v4312 = vpop.f32.mrf.mxu0
      %v4313 = vadd.f32 0.0, %v4312
      %v4314 = vpop.f32.mrf.mxu0
      %v4315 = vadd.f32 0.0, %v4314
      %v4316 = vpop.f32.mrf.mxu0
      %v4317 = vadd.f32 0.0, %v4316
      %v4318 = vpop.f32.mrf.mxu0
      %v4319 = vadd.f32 0.0, %v4318
      %4320 = vmatprep.mubr.bf16.mxu0 %v3915
      %4321 = vmatmul.mubr.bf16.gmra.mxu0 %v3913
      %v4322 = vpop.f32.mrf.mxu0
      %v4323 = vadd.f32 0.0, %v4322
      %v4324 = vpop.f32.mrf.mxu0
      %v4325 = vadd.f32 0.0, %v4324
      %v4326 = vpop.f32.mrf.mxu0
      %v4327 = vadd.f32 0.0, %v4326
      %v4328 = vpop.f32.mrf.mxu0
      %v4329 = vadd.f32 0.0, %v4328
      %4330 = vmatprep.mubr.bf16.mxu0 %v3919
      %4331 = vmatmul.mubr.bf16.gmra.mxu0 %v3917
      %v4332 = vpop.f32.mrf.mxu0
      %v4333 = vadd.f32 0.0, %v4332
      %v4334 = vpop.f32.mrf.mxu0
      %v4335 = vadd.f32 0.0, %v4334
      %v4336 = vpop.f32.mrf.mxu0
      %v4337 = vadd.f32 0.0, %v4336
      %v4338 = vpop.f32.mrf.mxu0
      %v4339 = vadd.f32 0.0, %v4338
      %4340 = vmatprep.mubr.bf16.mxu0 %v3923
      %4341 = vmatmul.mubr.bf16.gmra.mxu0 %v3921
      %v4342 = vpop.f32.mrf.mxu0
      %v4343 = vadd.f32 0.0, %v4342
      %v4344 = vpop.f32.mrf.mxu0
      %v4345 = vadd.f32 0.0, %v4344
      %v4346 = vpop.f32.mrf.mxu0
      %v4347 = vadd.f32 0.0, %v4346
      %v4348 = vpop.f32.mrf.mxu0
      %v4349 = vadd.f32 0.0, %v4348
      %4350 = vmatprep.mubr.bf16.mxu0 %v3927
      %4351 = vmatmul.mubr.bf16.gmra.mxu0 %v3925
      %v4352 = vpop.f32.mrf.mxu0
      %v4353 = vadd.f32 0.0, %v4352
      %v4354 = vpop.f32.mrf.mxu0
      %v4355 = vadd.f32 0.0, %v4354
      %v4356 = vpop.f32.mrf.mxu0
      %v4357 = vadd.f32 0.0, %v4356
      %v4358 = vpop.f32.mrf.mxu0
      %v4359 = vadd.f32 0.0, %v4358
      %4360 = vmatprep.mubr.bf16.mxu0 %v3931
      %4361 = vmatmul.mubr.bf16.gmra.mxu0 %v3929
      %v4362 = vpop.f32.mrf.mxu0
      %v4363 = vadd.f32 0.0, %v4362
      %v4364 = vpop.f32.mrf.mxu0
      %v4365 = vadd.f32 0.0, %v4364
      %v4366 = vpop.f32.mrf.mxu0
      %v4367 = vadd.f32 0.0, %v4366
      %v4368 = vpop.f32.mrf.mxu0
      %v4369 = vadd.f32 0.0, %v4368
      %4370 = vmatprep.mubr.bf16.mxu0 %v3935
      %4371 = vmatmul.mubr.bf16.gmra.mxu0 %v3933
      %v4372 = vpop.f32.mrf.mxu0
      %v4373 = vadd.f32 0.0, %v4372
      %v4374 = vpop.f32.mrf.mxu0
      %v4375 = vadd.f32 0.0, %v4374
      %v4376 = vpop.f32.mrf.mxu0
      %v4377 = vadd.f32 0.0, %v4376
      %v4378 = vpop.f32.mrf.mxu0
      %v4379 = vadd.f32 0.0, %v4378
      %4380 = vmatprep.mubr.bf16.mxu0 %v3939
      %4381 = vmatmul.mubr.bf16.gmra.mxu0 %v3937
      %v4382 = vpop.f32.mrf.mxu0
      %v4383 = vadd.f32 0.0, %v4382
      %v4384 = vpop.f32.mrf.mxu0
      %v4385 = vadd.f32 0.0, %v4384
      %v4386 = vpop.f32.mrf.mxu0
      %v4387 = vadd.f32 0.0, %v4386
      %v4388 = vpop.f32.mrf.mxu0
      %v4389 = vadd.f32 0.0, %v4388
      %4390 = vmatprep.mubr.bf16.mxu0 %v3943
      %4391 = vmatmul.mubr.bf16.gmra.mxu0 %v3941
      %v4392 = vpop.f32.mrf.mxu0
      %v4393 = vadd.f32 0.0, %v4392
      %v4394 = vpop.f32.mrf.mxu0
      %v4395 = vadd.f32 0.0, %v4394
      %v4396 = vpop.f32.mrf.mxu0
      %v4397 = vadd.f32 0.0, %v4396
      %v4398 = vpop.f32.mrf.mxu0
      %v4399 = vadd.f32 0.0, %v4398
      %4400 = vmatprep.mubr.bf16.mxu0 %v3947
      %4401 = vmatmul.mubr.bf16.gmra.mxu0 %v3945
      %v4402 = vpop.f32.mrf.mxu0
      %v4403 = vadd.f32 0.0, %v4402
      %v4404 = vpop.f32.mrf.mxu0
      %v4405 = vadd.f32 0.0, %v4404
      %v4406 = vpop.f32.mrf.mxu0
      %v4407 = vadd.f32 0.0, %v4406
      %v4408 = vpop.f32.mrf.mxu0
      %v4409 = vadd.f32 0.0, %v4408
      %4410 = vmatprep.mubr.bf16.mxu0 %v3951
      %4411 = vmatmul.mubr.bf16.gmra.mxu0 %v3949
      %v4412 = vpop.f32.mrf.mxu0
      %v4413 = vadd.f32 0.0, %v4412
      %v4414 = vpop.f32.mrf.mxu0
      %v4415 = vadd.f32 0.0, %v4414
      %v4416 = vpop.f32.mrf.mxu0
      %v4417 = vadd.f32 0.0, %v4416
      %v4418 = vpop.f32.mrf.mxu0
      %v4419 = vadd.f32 0.0, %v4418
      %4420 = vmatprep.mubr.bf16.mxu0 %v3955
      %4421 = vmatmul.mubr.bf16.gmra.mxu0 %v3953
      %v4422 = vpop.f32.mrf.mxu0
      %v4423 = vadd.f32 0.0, %v4422
      %v4424 = vpop.f32.mrf.mxu0
      %v4425 = vadd.f32 0.0, %v4424
      %v4426 = vpop.f32.mrf.mxu0
      %v4427 = vadd.f32 0.0, %v4426
      %v4428 = vpop.f32.mrf.mxu0
      %v4429 = vadd.f32 0.0, %v4428
      %4430 = vmatprep.mubr.bf16.mxu0 %v3959
      %4431 = vmatmul.mubr.bf16.gmra.mxu0 %v3957
      %v4432 = vpop.f32.mrf.mxu0
      %v4433 = vadd.f32 0.0, %v4432
      %v4434 = vpop.f32.mrf.mxu0
      %v4435 = vadd.f32 0.0, %v4434
      %v4436 = vpop.f32.mrf.mxu0
      %v4437 = vadd.f32 0.0, %v4436
      %v4438 = vpop.f32.mrf.mxu0
      %v4439 = vadd.f32 0.0, %v4438
      %4440 = vdwg.mxu0
      %v4441 = vadd.f32 %v3584, %v4203
      %v4442 = vadd.f32 %v3586, %v4205
      %v4443 = vadd.f32 %v3588, %v4207
      %v4444 = vadd.f32 %v3590, %v4209
      %v4445 = vadd.f32 %v3594, %v4213
      %v4446 = vadd.f32 %v3596, %v4215
      %v4447 = vadd.f32 %v3598, %v4217
      %v4448 = vadd.f32 %v3600, %v4219
      %v4449 = vadd.f32 %v3604, %v4223
      %v4450 = vadd.f32 %v3606, %v4225
      %v4451 = vadd.f32 %v3608, %v4227
      %v4452 = vadd.f32 %v3610, %v4229
      %v4453 = vadd.f32 %v3614, %v4233
      %v4454 = vadd.f32 %v3616, %v4235
      %v4455 = vadd.f32 %v3618, %v4237
      %v4456 = vadd.f32 %v3620, %v4239
      %v4457 = vadd.f32 %v3624, %v4243
      %v4458 = vadd.f32 %v3626, %v4245
      %v4459 = vadd.f32 %v3628, %v4247
      %v4460 = vadd.f32 %v3630, %v4249
      %v4461 = vadd.f32 %v3634, %v4253
      %v4462 = vadd.f32 %v3636, %v4255
      %v4463 = vadd.f32 %v3638, %v4257
      %v4464 = vadd.f32 %v3640, %v4259
      %v4465 = vadd.f32 %v3644, %v4263
      %v4466 = vadd.f32 %v3646, %v4265
      %v4467 = vadd.f32 %v3648, %v4267
      %v4468 = vadd.f32 %v3650, %v4269
      %v4469 = vadd.f32 %v3654, %v4273
      %v4470 = vadd.f32 %v3656, %v4275
      %v4471 = vadd.f32 %v3658, %v4277
      %v4472 = vadd.f32 %v3660, %v4279
      %v4473 = vadd.f32 %v3664, %v4283
      %v4474 = vadd.f32 %v3666, %v4285
      %v4475 = vadd.f32 %v3668, %v4287
      %v4476 = vadd.f32 %v3670, %v4289
      %v4477 = vadd.f32 %v3674, %v4293
      %v4478 = vadd.f32 %v3676, %v4295
      %v4479 = vadd.f32 %v3678, %v4297
      %v4480 = vadd.f32 %v3680, %v4299
      %v4481 = vadd.f32 %v3684, %v4303
      %v4482 = vadd.f32 %v3686, %v4305
      %v4483 = vadd.f32 %v3688, %v4307
      %v4484 = vadd.f32 %v3690, %v4309
      %v4485 = vadd.f32 %v3694, %v4313
      %v4486 = vadd.f32 %v3696, %v4315
      %v4487 = vadd.f32 %v3698, %v4317
      %v4488 = vadd.f32 %v3700, %v4319
      %v4489 = vadd.f32 %v3704, %v4323
      %v4490 = vadd.f32 %v3706, %v4325
      %v4491 = vadd.f32 %v3708, %v4327
      %v4492 = vadd.f32 %v3710, %v4329
      %v4493 = vadd.f32 %v3714, %v4333
      %v4494 = vadd.f32 %v3716, %v4335
      %v4495 = vadd.f32 %v3718, %v4337
      %v4496 = vadd.f32 %v3720, %v4339
      %v4497 = vadd.f32 %v3724, %v4343
      %v4498 = vadd.f32 %v3726, %v4345
      %v4499 = vadd.f32 %v3728, %v4347
      %v4500 = vadd.f32 %v3730, %v4349
      %v4501 = vadd.f32 %v3734, %v4353
      %v4502 = vadd.f32 %v3736, %v4355
      %v4503 = vadd.f32 %v3738, %v4357
      %v4504 = vadd.f32 %v3740, %v4359
      %v4505 = vadd.f32 %v3744, %v4363
      %v4506 = vadd.f32 %v3746, %v4365
      %v4507 = vadd.f32 %v3748, %v4367
      %v4508 = vadd.f32 %v3750, %v4369
      %v4509 = vadd.f32 %v3754, %v4373
      %v4510 = vadd.f32 %v3756, %v4375
      %v4511 = vadd.f32 %v3758, %v4377
      %v4512 = vadd.f32 %v3760, %v4379
      %v4513 = vadd.f32 %v3764, %v4383
      %v4514 = vadd.f32 %v3766, %v4385
      %v4515 = vadd.f32 %v3768, %v4387
      %v4516 = vadd.f32 %v3770, %v4389
      %v4517 = vadd.f32 %v3774, %v4393
      %v4518 = vadd.f32 %v3776, %v4395
      %v4519 = vadd.f32 %v3778, %v4397
      %v4520 = vadd.f32 %v3780, %v4399
      %v4521 = vadd.f32 %v3784, %v4403
      %v4522 = vadd.f32 %v3786, %v4405
      %v4523 = vadd.f32 %v3788, %v4407
      %v4524 = vadd.f32 %v3790, %v4409
      %v4525 = vadd.f32 %v3794, %v4413
      %v4526 = vadd.f32 %v3796, %v4415
      %v4527 = vadd.f32 %v3798, %v4417
      %v4528 = vadd.f32 %v3800, %v4419
      %v4529 = vadd.f32 %v3804, %v4423
      %v4530 = vadd.f32 %v3806, %v4425
      %v4531 = vadd.f32 %v3808, %v4427
      %v4532 = vadd.f32 %v3810, %v4429
      %v4533 = vadd.f32 %v3814, %v4433
      %v4534 = vadd.f32 %v3816, %v4435
      %v4535 = vadd.f32 %v3818, %v4437
      %v4536 = vadd.f32 %v3820, %v4439
      %v4537 = vld [vmem:[#allocation2 + $0x18] sm:$0xff]
      %v4538 = vld [vmem:[#allocation2 + $0x20] sm:$0xff]
      %v4539 = vld [vmem:[#allocation2 + $0x28] sm:$0xff]
      %v4540 = vld [vmem:[#allocation2 + $0x30] sm:$0xff]
      %v4541 = vld [vmem:[#allocation2 + $0x38] sm:$0xff]
      %v4542 = vld [vmem:[#allocation2 + $0x40] sm:$0xff]
      %v4543 = vld [vmem:[#allocation2 + $0x48] sm:$0xff]
      %v4544 = vld [vmem:[#allocation2 + $0x50] sm:$0xff]
      %v4545 = vld [vmem:[#allocation2 + $0x58] sm:$0xff]
      %v4546 = vld [vmem:[#allocation2 + $0x60] sm:$0xff]
      %v4547 = vld [vmem:[#allocation2 + $0x68] sm:$0xff]
      %v4548 = vld [vmem:[#allocation2 + $0x70] sm:$0xff]
      %v4549 = vld [vmem:[#allocation2 + $0x78] sm:$0xff]
      %v4550 = vld [vmem:[#allocation2 + $0x80] sm:$0xff]
      %v4551 = vld [vmem:[#allocation2 + $0x88] sm:$0xff]
      %v4552 = vld [vmem:[#allocation2 + $0x90] sm:$0xff]
      %v4553 = vld [vmem:[#allocation2 + $0x98] sm:$0xff]
      %v4554 = vld [vmem:[#allocation2 + $0xa0] sm:$0xff]
      %v4555 = vld [vmem:[#allocation2 + $0xa8] sm:$0xff]
      %v4556 = vld [vmem:[#allocation2 + $0xb0] sm:$0xff]
      %v4557 = vld [vmem:[#allocation2 + $0xb8] sm:$0xff]
      %v4558 = vld [vmem:[#allocation2 + $0xc0] sm:$0xff]
      %v4559 = vld [vmem:[#allocation2 + $0xc8] sm:$0xff]
      %v4560 = vld [vmem:[#allocation2 + $0xd0] sm:$0xff]
      %v4561 = vld [vmem:[#allocation2 + $0xd8] sm:$0xff]
      %v4562 = vld [vmem:[#allocation2 + $0xe0] sm:$0xff]
      %v4563 = vld [vmem:[#allocation2 + $0xe8] sm:$0xff]
      %v4564 = vld [vmem:[#allocation2 + $0xf0] sm:$0xff]
      %v4565 = vld [vmem:[#allocation2 + $0xf8] sm:$0xff]
      %v4566 = vld [vmem:[#allocation2 + $0x100] sm:$0xff]
      %v4567 = vld [vmem:[#allocation2 + $0x108] sm:$0xff]
      %v4568 = vld [vmem:[#allocation2 + $0x110] sm:$0xff]
      %v4569 = vld [vmem:[#allocation2 + $0x118] sm:$0xff]
      %v4570 = vld [vmem:[#allocation2 + $0x120] sm:$0xff]
      %v4571 = vld [vmem:[#allocation2 + $0x128] sm:$0xff]
      %v4572 = vld [vmem:[#allocation2 + $0x130] sm:$0xff]
      %v4573 = vld [vmem:[#allocation2 + $0x138] sm:$0xff]
      %v4574 = vld [vmem:[#allocation2 + $0x140] sm:$0xff]
      %v4575 = vld [vmem:[#allocation2 + $0x148] sm:$0xff]
      %v4576 = vld [vmem:[#allocation2 + $0x150] sm:$0xff]
      %v4577 = vld [vmem:[#allocation2 + $0x158] sm:$0xff]
      %v4578 = vld [vmem:[#allocation2 + $0x160] sm:$0xff]
      %v4579 = vld [vmem:[#allocation2 + $0x168] sm:$0xff]
      %v4580 = vld [vmem:[#allocation2 + $0x170] sm:$0xff]
      %v4581 = vld [vmem:[#allocation2 + $0x178] sm:$0xff]
      %v4582 = vld [vmem:[#allocation2 + $0x180] sm:$0xff]
      %v4583 = vld [vmem:[#allocation2 + $0x188] sm:$0xff]
      %v4584 = vld [vmem:[#allocation2 + $0x190] sm:$0xff]
      %s4585 = scalar_lea.vmem %s3, 768
      %v4586 = vld [vmem:[%s4585] sm:$0xff]
      %v4587 = vld [vmem:[%s4585 + $0x8] sm:$0xff]
      %v4588 = vld [vmem:[%s4585 + $0x10] sm:$0xff]
      %v4589 = vld [vmem:[%s4585 + $0x18] sm:$0xff]
      %v4590 = vld [vmem:[%s4585 + $0x20] sm:$0xff]
      %v4591 = vld [vmem:[%s4585 + $0x28] sm:$0xff]
      %v4592 = vld [vmem:[%s4585 + $0x30] sm:$0xff]
      %v4593 = vld [vmem:[%s4585 + $0x38] sm:$0xff]
      %v4594 = vld [vmem:[%s4585 + $0x40] sm:$0xff]
      %v4595 = vld [vmem:[%s4585 + $0x48] sm:$0xff]
      %v4596 = vld [vmem:[%s4585 + $0x50] sm:$0xff]
      %v4597 = vld [vmem:[%s4585 + $0x58] sm:$0xff]
      %v4598 = vld [vmem:[%s4585 + $0x60] sm:$0xff]
      %v4599 = vld [vmem:[%s4585 + $0x68] sm:$0xff]
      %v4600 = vld [vmem:[%s4585 + $0x70] sm:$0xff]
      %v4601 = vld [vmem:[%s4585 + $0x78] sm:$0xff]
      %v4602 = vld [vmem:[%s4585 + $0x80] sm:$0xff]
      %v4603 = vld [vmem:[%s4585 + $0x88] sm:$0xff]
      %v4604 = vld [vmem:[%s4585 + $0x90] sm:$0xff]
      %v4605 = vld [vmem:[%s4585 + $0x98] sm:$0xff]
      %v4606 = vld [vmem:[%s4585 + $0xa0] sm:$0xff]
      %v4607 = vld [vmem:[%s4585 + $0xa8] sm:$0xff]
      %v4608 = vld [vmem:[%s4585 + $0xb0] sm:$0xff]
      %v4609 = vld [vmem:[%s4585 + $0xb8] sm:$0xff]
      %v4610 = vld [vmem:[%s4585 + $0xc0] sm:$0xff]
      %v4611 = vld [vmem:[%s4585 + $0xc8] sm:$0xff]
      %v4612 = vld [vmem:[%s4585 + $0xd0] sm:$0xff]
      %v4613 = vld [vmem:[%s4585 + $0xd8] sm:$0xff]
      %v4614 = vld [vmem:[%s4585 + $0xe0] sm:$0xff]
      %v4615 = vld [vmem:[%s4585 + $0xe8] sm:$0xff]
      %v4616 = vld [vmem:[%s4585 + $0xf0] sm:$0xff]
      %v4617 = vld [vmem:[%s4585 + $0xf8] sm:$0xff]
      %v4666 = vunpack.c.l.b16 %v4537
      %v4667 = vunpack.c.h.b16 %v4537
      %v4668 = vunpack.c.l.b16 %v4538
      %v4669 = vunpack.c.h.b16 %v4538
      %v4670 = vunpack.c.l.b16 %v4539
      %v4671 = vunpack.c.h.b16 %v4539
      %v4672 = vunpack.c.l.b16 %v4540
      %v4673 = vunpack.c.h.b16 %v4540
      %v4674 = vunpack.c.l.b16 %v4541
      %v4675 = vunpack.c.h.b16 %v4541
      %v4676 = vunpack.c.l.b16 %v4542
      %v4677 = vunpack.c.h.b16 %v4542
      %v4678 = vunpack.c.l.b16 %v4543
      %v4679 = vunpack.c.h.b16 %v4543
      %v4680 = vunpack.c.l.b16 %v4544
      %v4681 = vunpack.c.h.b16 %v4544
      %v4682 = vunpack.c.l.b16 %v4545
      %v4683 = vunpack.c.h.b16 %v4545
      %v4684 = vunpack.c.l.b16 %v4546
      %v4685 = vunpack.c.h.b16 %v4546
      %v4686 = vunpack.c.l.b16 %v4547
      %v4687 = vunpack.c.h.b16 %v4547
      %v4688 = vunpack.c.l.b16 %v4548
      %v4689 = vunpack.c.h.b16 %v4548
      %v4690 = vunpack.c.l.b16 %v4549
      %v4691 = vunpack.c.h.b16 %v4549
      %v4692 = vunpack.c.l.b16 %v4550
      %v4693 = vunpack.c.h.b16 %v4550
      %v4694 = vunpack.c.l.b16 %v4551
      %v4695 = vunpack.c.h.b16 %v4551
      %v4696 = vunpack.c.l.b16 %v4552
      %v4697 = vunpack.c.h.b16 %v4552
      %v4698 = vunpack.c.l.b16 %v4553
      %v4699 = vunpack.c.h.b16 %v4553
      %v4700 = vunpack.c.l.b16 %v4554
      %v4701 = vunpack.c.h.b16 %v4554
      %v4702 = vunpack.c.l.b16 %v4555
      %v4703 = vunpack.c.h.b16 %v4555
      %v4704 = vunpack.c.l.b16 %v4556
      %v4705 = vunpack.c.h.b16 %v4556
      %v4706 = vunpack.c.l.b16 %v4557
      %v4707 = vunpack.c.h.b16 %v4557
      %v4708 = vunpack.c.l.b16 %v4558
      %v4709 = vunpack.c.h.b16 %v4558
      %v4710 = vunpack.c.l.b16 %v4559
      %v4711 = vunpack.c.h.b16 %v4559
      %v4712 = vunpack.c.l.b16 %v4560
      %v4713 = vunpack.c.h.b16 %v4560
      %v4714 = vunpack.c.l.b16 %v4561
      %v4715 = vunpack.c.h.b16 %v4561
      %v4716 = vunpack.c.l.b16 %v4562
      %v4717 = vunpack.c.h.b16 %v4562
      %v4718 = vunpack.c.l.b16 %v4563
      %v4719 = vunpack.c.h.b16 %v4563
      %v4720 = vunpack.c.l.b16 %v4564
      %v4721 = vunpack.c.h.b16 %v4564
      %v4722 = vunpack.c.l.b16 %v4565
      %v4723 = vunpack.c.h.b16 %v4565
      %v4724 = vunpack.c.l.b16 %v4566
      %v4725 = vunpack.c.h.b16 %v4566
      %v4726 = vunpack.c.l.b16 %v4567
      %v4727 = vunpack.c.h.b16 %v4567
      %v4728 = vunpack.c.l.b16 %v4568
      %v4729 = vunpack.c.h.b16 %v4568
      %v4730 = vunpack.c.l.b16 %v4569
      %v4731 = vunpack.c.h.b16 %v4569
      %v4732 = vunpack.c.l.b16 %v4570
      %v4733 = vunpack.c.h.b16 %v4570
      %v4734 = vunpack.c.l.b16 %v4571
      %v4735 = vunpack.c.h.b16 %v4571
      %v4736 = vunpack.c.l.b16 %v4572
      %v4737 = vunpack.c.h.b16 %v4572
      %v4738 = vunpack.c.l.b16 %v4573
      %v4739 = vunpack.c.h.b16 %v4573
      %v4740 = vunpack.c.l.b16 %v4574
      %v4741 = vunpack.c.h.b16 %v4574
      %v4742 = vunpack.c.l.b16 %v4575
      %v4743 = vunpack.c.h.b16 %v4575
      %v4744 = vunpack.c.l.b16 %v4576
      %v4745 = vunpack.c.h.b16 %v4576
      %v4746 = vunpack.c.l.b16 %v4577
      %v4747 = vunpack.c.h.b16 %v4577
      %v4748 = vunpack.c.l.b16 %v4578
      %v4749 = vunpack.c.h.b16 %v4578
      %v4750 = vunpack.c.l.b16 %v4579
      %v4751 = vunpack.c.h.b16 %v4579
      %v4752 = vunpack.c.l.b16 %v4580
      %v4753 = vunpack.c.h.b16 %v4580
      %v4754 = vunpack.c.l.b16 %v4581
      %v4755 = vunpack.c.h.b16 %v4581
      %v4756 = vunpack.c.l.b16 %v4582
      %v4757 = vunpack.c.h.b16 %v4582
      %v4758 = vunpack.c.l.b16 %v4583
      %v4759 = vunpack.c.h.b16 %v4583
      %v4760 = vunpack.c.l.b16 %v4584
      %v4761 = vunpack.c.h.b16 %v4584
      %v4762 = vpack.c.b16 %v4668, %v4666
      %v4763 = vpack.c.b16 %v4669, %v4667
      %v4764 = vpack.c.b16 %v4672, %v4670
      %v4765 = vpack.c.b16 %v4673, %v4671
      %v4766 = vpack.c.b16 %v4676, %v4674
      %v4767 = vpack.c.b16 %v4677, %v4675
      %v4768 = vpack.c.b16 %v4680, %v4678
      %v4769 = vpack.c.b16 %v4681, %v4679
      %v4770 = vpack.c.b16 %v4684, %v4682
      %v4771 = vpack.c.b16 %v4685, %v4683
      %v4772 = vpack.c.b16 %v4688, %v4686
      %v4773 = vpack.c.b16 %v4689, %v4687
      %v4774 = vpack.c.b16 %v4692, %v4690
      %v4775 = vpack.c.b16 %v4693, %v4691
      %v4776 = vpack.c.b16 %v4696, %v4694
      %v4777 = vpack.c.b16 %v4697, %v4695
      %v4778 = vpack.c.b16 %v4700, %v4698
      %v4779 = vpack.c.b16 %v4701, %v4699
      %v4780 = vpack.c.b16 %v4704, %v4702
      %v4781 = vpack.c.b16 %v4705, %v4703
      %v4782 = vpack.c.b16 %v4708, %v4706
      %v4783 = vpack.c.b16 %v4709, %v4707
      %v4784 = vpack.c.b16 %v4712, %v4710
      %v4785 = vpack.c.b16 %v4713, %v4711
      %v4786 = vpack.c.b16 %v4716, %v4714
      %v4787 = vpack.c.b16 %v4717, %v4715
      %v4788 = vpack.c.b16 %v4720, %v4718
      %v4789 = vpack.c.b16 %v4721, %v4719
      %v4790 = vpack.c.b16 %v4724, %v4722
      %v4791 = vpack.c.b16 %v4725, %v4723
      %v4792 = vpack.c.b16 %v4728, %v4726
      %v4793 = vpack.c.b16 %v4729, %v4727
      %v4794 = vpack.c.b16 %v4732, %v4730
      %v4795 = vpack.c.b16 %v4733, %v4731
      %v4796 = vpack.c.b16 %v4736, %v4734
      %v4797 = vpack.c.b16 %v4737, %v4735
      %v4798 = vpack.c.b16 %v4740, %v4738
      %v4799 = vpack.c.b16 %v4741, %v4739
      %v4800 = vpack.c.b16 %v4744, %v4742
      %v4801 = vpack.c.b16 %v4745, %v4743
      %v4802 = vpack.c.b16 %v4748, %v4746
      %v4803 = vpack.c.b16 %v4749, %v4747
      %v4804 = vpack.c.b16 %v4752, %v4750
      %v4805 = vpack.c.b16 %v4753, %v4751
      %v4806 = vpack.c.b16 %v4756, %v4754
      %v4807 = vpack.c.b16 %v4757, %v4755
      %v4808 = vpack.c.b16 %v4760, %v4758
      %v4809 = vpack.c.b16 %v4761, %v4759
      %v4890 = vunpack.c.l.b16 %v4586
      %v4891 = vunpack.c.h.b16 %v4586
      %v4892 = vunpack.c.l.b16 %v4587
      %v4893 = vunpack.c.h.b16 %v4587
      %v4894 = vunpack.c.l.b16 %v4588
      %v4895 = vunpack.c.h.b16 %v4588
      %v4896 = vunpack.c.l.b16 %v4589
      %v4897 = vunpack.c.h.b16 %v4589
      %v4898 = vunpack.c.l.b16 %v4590
      %v4899 = vunpack.c.h.b16 %v4590
      %v4900 = vunpack.c.l.b16 %v4591
      %v4901 = vunpack.c.h.b16 %v4591
      %v4902 = vunpack.c.l.b16 %v4592
      %v4903 = vunpack.c.h.b16 %v4592
      %v4904 = vunpack.c.l.b16 %v4593
      %v4905 = vunpack.c.h.b16 %v4593
      %v4906 = vunpack.c.l.b16 %v4594
      %v4907 = vunpack.c.h.b16 %v4594
      %v4908 = vunpack.c.l.b16 %v4595
      %v4909 = vunpack.c.h.b16 %v4595
      %v4910 = vunpack.c.l.b16 %v4596
      %v4911 = vunpack.c.h.b16 %v4596
      %v4912 = vunpack.c.l.b16 %v4597
      %v4913 = vunpack.c.h.b16 %v4597
      %v4914 = vunpack.c.l.b16 %v4598
      %v4915 = vunpack.c.h.b16 %v4598
      %v4916 = vunpack.c.l.b16 %v4599
      %v4917 = vunpack.c.h.b16 %v4599
      %v4918 = vunpack.c.l.b16 %v4600
      %v4919 = vunpack.c.h.b16 %v4600
      %v4920 = vunpack.c.l.b16 %v4601
      %v4921 = vunpack.c.h.b16 %v4601
      %v4922 = vunpack.c.l.b16 %v4602
      %v4923 = vunpack.c.h.b16 %v4602
      %v4924 = vunpack.c.l.b16 %v4603
      %v4925 = vunpack.c.h.b16 %v4603
      %v4926 = vunpack.c.l.b16 %v4604
      %v4927 = vunpack.c.h.b16 %v4604
      %v4928 = vunpack.c.l.b16 %v4605
      %v4929 = vunpack.c.h.b16 %v4605
      %v4930 = vunpack.c.l.b16 %v4606
      %v4931 = vunpack.c.h.b16 %v4606
      %v4932 = vunpack.c.l.b16 %v4607
      %v4933 = vunpack.c.h.b16 %v4607
      %v4934 = vunpack.c.l.b16 %v4608
      %v4935 = vunpack.c.h.b16 %v4608
      %v4936 = vunpack.c.l.b16 %v4609
      %v4937 = vunpack.c.h.b16 %v4609
      %v4938 = vunpack.c.l.b16 %v4610
      %v4939 = vunpack.c.h.b16 %v4610
      %v4940 = vunpack.c.l.b16 %v4611
      %v4941 = vunpack.c.h.b16 %v4611
      %v4942 = vunpack.c.l.b16 %v4612
      %v4943 = vunpack.c.h.b16 %v4612
      %v4944 = vunpack.c.l.b16 %v4613
      %v4945 = vunpack.c.h.b16 %v4613
      %v4946 = vunpack.c.l.b16 %v4614
      %v4947 = vunpack.c.h.b16 %v4614
      %v4948 = vunpack.c.l.b16 %v4615
      %v4949 = vunpack.c.h.b16 %v4615
      %v4950 = vunpack.c.l.b16 %v4616
      %v4951 = vunpack.c.h.b16 %v4616
      %v4952 = vunpack.c.l.b16 %v4617
      %v4953 = vunpack.c.h.b16 %v4617
      %v4954 = vpack.c.b16 %v4892, %v4890
      %v4955 = vpack.c.b16 %v4893, %v4891
      %v4956 = vpack.c.b16 %v4896, %v4894
      %v4957 = vpack.c.b16 %v4897, %v4895
      %v4958 = vpack.c.b16 %v4900, %v4898
      %v4959 = vpack.c.b16 %v4901, %v4899
      %v4960 = vpack.c.b16 %v4904, %v4902
      %v4961 = vpack.c.b16 %v4905, %v4903
      %v4962 = vpack.c.b16 %v4908, %v4906
      %v4963 = vpack.c.b16 %v4909, %v4907
      %v4964 = vpack.c.b16 %v4912, %v4910
      %v4965 = vpack.c.b16 %v4913, %v4911
      %v4966 = vpack.c.b16 %v4916, %v4914
      %v4967 = vpack.c.b16 %v4917, %v4915
      %v4968 = vpack.c.b16 %v4920, %v4918
      %v4969 = vpack.c.b16 %v4921, %v4919
      %v4970 = vpack.c.b16 %v4924, %v4922
      %v4971 = vpack.c.b16 %v4925, %v4923
      %v4972 = vpack.c.b16 %v4928, %v4926
      %v4973 = vpack.c.b16 %v4929, %v4927
      %v4974 = vpack.c.b16 %v4932, %v4930
      %v4975 = vpack.c.b16 %v4933, %v4931
      %v4976 = vpack.c.b16 %v4936, %v4934
      %v4977 = vpack.c.b16 %v4937, %v4935
      %v4978 = vpack.c.b16 %v4940, %v4938
      %v4979 = vpack.c.b16 %v4941, %v4939
      %v4980 = vpack.c.b16 %v4944, %v4942
      %v4981 = vpack.c.b16 %v4945, %v4943
      %v4982 = vpack.c.b16 %v4948, %v4946
      %v4983 = vpack.c.b16 %v4949, %v4947
      %v4984 = vpack.c.b16 %v4952, %v4950
      %v4985 = vpack.c.b16 %v4953, %v4951
      %5018 = vmatprep.subr.bf16.mxu0 %v4969
      %5019 = vmatpush1.bf16.msra.mxu0 %v4968
      %5020 = vmatprep.subr.bf16.mxu0 %v4967
      %5021 = vmatpush1.bf16.msra.mxu0 %v4966
      %5022 = vmatprep.subr.bf16.mxu0 %v4965
      %5023 = vmatpush1.bf16.msra.mxu0 %v4964
      %5024 = vmatprep.subr.bf16.mxu0 %v4963
      %5025 = vmatpush1.bf16.msra.mxu0 %v4962
      %5026 = vmatprep.subr.bf16.mxu0 %v4961
      %5027 = vmatpush1.bf16.msra.mxu0 %v4960
      %5028 = vmatprep.subr.bf16.mxu0 %v4959
      %5029 = vmatpush1.bf16.msra.mxu0 %v4958
      %5030 = vmatprep.subr.bf16.mxu0 %v4957
      %5031 = vmatpush1.bf16.msra.mxu0 %v4956
      %5032 = vmatprep.subr.bf16.mxu0 %v4955
      %5033 = vmatpush1.bf16.msra.mxu0 %v4954
      %5034 = vmatprep.subr.bf16.mxu0 %v4985
      %5035 = vmatpush2.bf16.msra.mxu0 %v4984
      %5036 = vmatprep.subr.bf16.mxu0 %v4983
      %5037 = vmatpush2.bf16.msra.mxu0 %v4982
      %5038 = vmatprep.subr.bf16.mxu0 %v4981
      %5039 = vmatpush2.bf16.msra.mxu0 %v4980
      %5040 = vmatprep.subr.bf16.mxu0 %v4979
      %5041 = vmatpush2.bf16.msra.mxu0 %v4978
      %5042 = vmatprep.subr.bf16.mxu0 %v4977
      %5043 = vmatpush2.bf16.msra.mxu0 %v4976
      %5044 = vmatprep.subr.bf16.mxu0 %v4975
      %5045 = vmatpush2.bf16.msra.mxu0 %v4974
      %5046 = vmatprep.subr.bf16.mxu0 %v4973
      %5047 = vmatpush2.bf16.msra.mxu0 %v4972
      %5048 = vmatprep.subr.bf16.mxu0 %v4971
      %5049 = vmatpush2.bf16.msra.mxu0 %v4970
      %5050 = vmatprep.mubr.bf16.mxu0 %v4763
      %5051 = vmatmul.mubr.bf16.gmra.mxu0 %v4762
      %v5052 = vpop.f32.mrf.mxu0
      %v5053 = vadd.f32 0.0, %v5052
      %v5054 = vpop.f32.mrf.mxu0
      %v5055 = vadd.f32 0.0, %v5054
      %v5056 = vpop.f32.mrf.mxu0
      %v5057 = vadd.f32 0.0, %v5056
      %v5058 = vpop.f32.mrf.mxu0
      %v5059 = vadd.f32 0.0, %v5058
      %5060 = vmatprep.mubr.bf16.mxu0 %v4765
      %5061 = vmatmul.mubr.bf16.gmra.mxu0 %v4764
      %v5062 = vpop.f32.mrf.mxu0
      %v5063 = vadd.f32 0.0, %v5062
      %v5064 = vpop.f32.mrf.mxu0
      %v5065 = vadd.f32 0.0, %v5064
      %v5066 = vpop.f32.mrf.mxu0
      %v5067 = vadd.f32 0.0, %v5066
      %v5068 = vpop.f32.mrf.mxu0
      %v5069 = vadd.f32 0.0, %v5068
      %5070 = vmatprep.mubr.bf16.mxu0 %v4767
      %5071 = vmatmul.mubr.bf16.gmra.mxu0 %v4766
      %v5072 = vpop.f32.mrf.mxu0
      %v5073 = vadd.f32 0.0, %v5072
      %v5074 = vpop.f32.mrf.mxu0
      %v5075 = vadd.f32 0.0, %v5074
      %v5076 = vpop.f32.mrf.mxu0
      %v5077 = vadd.f32 0.0, %v5076
      %v5078 = vpop.f32.mrf.mxu0
      %v5079 = vadd.f32 0.0, %v5078
      %5080 = vmatprep.mubr.bf16.mxu0 %v4769
      %5081 = vmatmul.mubr.bf16.gmra.mxu0 %v4768
      %v5082 = vpop.f32.mrf.mxu0
      %v5083 = vadd.f32 0.0, %v5082
      %v5084 = vpop.f32.mrf.mxu0
      %v5085 = vadd.f32 0.0, %v5084
      %v5086 = vpop.f32.mrf.mxu0
      %v5087 = vadd.f32 0.0, %v5086
      %v5088 = vpop.f32.mrf.mxu0
      %v5089 = vadd.f32 0.0, %v5088
      %5090 = vmatprep.mubr.bf16.mxu0 %v4771
      %5091 = vmatmul.mubr.bf16.gmra.mxu0 %v4770
      %v5092 = vpop.f32.mrf.mxu0
      %v5093 = vadd.f32 0.0, %v5092
      %v5094 = vpop.f32.mrf.mxu0
      %v5095 = vadd.f32 0.0, %v5094
      %v5096 = vpop.f32.mrf.mxu0
      %v5097 = vadd.f32 0.0, %v5096
      %v5098 = vpop.f32.mrf.mxu0
      %v5099 = vadd.f32 0.0, %v5098
      %5100 = vmatprep.mubr.bf16.mxu0 %v4773
      %5101 = vmatmul.mubr.bf16.gmra.mxu0 %v4772
      %v5102 = vpop.f32.mrf.mxu0
      %v5103 = vadd.f32 0.0, %v5102
      %v5104 = vpop.f32.mrf.mxu0
      %v5105 = vadd.f32 0.0, %v5104
      %v5106 = vpop.f32.mrf.mxu0
      %v5107 = vadd.f32 0.0, %v5106
      %v5108 = vpop.f32.mrf.mxu0
      %v5109 = vadd.f32 0.0, %v5108
      %5110 = vmatprep.mubr.bf16.mxu0 %v4775
      %5111 = vmatmul.mubr.bf16.gmra.mxu0 %v4774
      %v5112 = vpop.f32.mrf.mxu0
      %v5113 = vadd.f32 0.0, %v5112
      %v5114 = vpop.f32.mrf.mxu0
      %v5115 = vadd.f32 0.0, %v5114
      %v5116 = vpop.f32.mrf.mxu0
      %v5117 = vadd.f32 0.0, %v5116
      %v5118 = vpop.f32.mrf.mxu0
      %v5119 = vadd.f32 0.0, %v5118
      %5120 = vmatprep.mubr.bf16.mxu0 %v4777
      %5121 = vmatmul.mubr.bf16.gmra.mxu0 %v4776
      %v5122 = vpop.f32.mrf.mxu0
      %v5123 = vadd.f32 0.0, %v5122
      %v5124 = vpop.f32.mrf.mxu0
      %v5125 = vadd.f32 0.0, %v5124
      %v5126 = vpop.f32.mrf.mxu0
      %v5127 = vadd.f32 0.0, %v5126
      %v5128 = vpop.f32.mrf.mxu0
      %v5129 = vadd.f32 0.0, %v5128
      %5130 = vmatprep.mubr.bf16.mxu0 %v4779
      %5131 = vmatmul.mubr.bf16.gmra.mxu0 %v4778
      %v5132 = vpop.f32.mrf.mxu0
      %v5133 = vadd.f32 0.0, %v5132
      %v5134 = vpop.f32.mrf.mxu0
      %v5135 = vadd.f32 0.0, %v5134
      %v5136 = vpop.f32.mrf.mxu0
      %v5137 = vadd.f32 0.0, %v5136
      %v5138 = vpop.f32.mrf.mxu0
      %v5139 = vadd.f32 0.0, %v5138
      %5140 = vmatprep.mubr.bf16.mxu0 %v4781
      %5141 = vmatmul.mubr.bf16.gmra.mxu0 %v4780
      %v5142 = vpop.f32.mrf.mxu0
      %v5143 = vadd.f32 0.0, %v5142
      %v5144 = vpop.f32.mrf.mxu0
      %v5145 = vadd.f32 0.0, %v5144
      %v5146 = vpop.f32.mrf.mxu0
      %v5147 = vadd.f32 0.0, %v5146
      %v5148 = vpop.f32.mrf.mxu0
      %v5149 = vadd.f32 0.0, %v5148
      %5150 = vmatprep.mubr.bf16.mxu0 %v4783
      %5151 = vmatmul.mubr.bf16.gmra.mxu0 %v4782
      %v5152 = vpop.f32.mrf.mxu0
      %v5153 = vadd.f32 0.0, %v5152
      %v5154 = vpop.f32.mrf.mxu0
      %v5155 = vadd.f32 0.0, %v5154
      %v5156 = vpop.f32.mrf.mxu0
      %v5157 = vadd.f32 0.0, %v5156
      %v5158 = vpop.f32.mrf.mxu0
      %v5159 = vadd.f32 0.0, %v5158
      %5160 = vmatprep.mubr.bf16.mxu0 %v4785
      %5161 = vmatmul.mubr.bf16.gmra.mxu0 %v4784
      %v5162 = vpop.f32.mrf.mxu0
      %v5163 = vadd.f32 0.0, %v5162
      %v5164 = vpop.f32.mrf.mxu0
      %v5165 = vadd.f32 0.0, %v5164
      %v5166 = vpop.f32.mrf.mxu0
      %v5167 = vadd.f32 0.0, %v5166
      %v5168 = vpop.f32.mrf.mxu0
      %v5169 = vadd.f32 0.0, %v5168
      %5170 = vmatprep.mubr.bf16.mxu0 %v4787
      %5171 = vmatmul.mubr.bf16.gmra.mxu0 %v4786
      %v5172 = vpop.f32.mrf.mxu0
      %v5173 = vadd.f32 0.0, %v5172
      %v5174 = vpop.f32.mrf.mxu0
      %v5175 = vadd.f32 0.0, %v5174
      %v5176 = vpop.f32.mrf.mxu0
      %v5177 = vadd.f32 0.0, %v5176
      %v5178 = vpop.f32.mrf.mxu0
      %v5179 = vadd.f32 0.0, %v5178
      %5180 = vmatprep.mubr.bf16.mxu0 %v4789
      %5181 = vmatmul.mubr.bf16.gmra.mxu0 %v4788
      %v5182 = vpop.f32.mrf.mxu0
      %v5183 = vadd.f32 0.0, %v5182
      %v5184 = vpop.f32.mrf.mxu0
      %v5185 = vadd.f32 0.0, %v5184
      %v5186 = vpop.f32.mrf.mxu0
      %v5187 = vadd.f32 0.0, %v5186
      %v5188 = vpop.f32.mrf.mxu0
      %v5189 = vadd.f32 0.0, %v5188
      %5190 = vmatprep.mubr.bf16.mxu0 %v4791
      %5191 = vmatmul.mubr.bf16.gmra.mxu0 %v4790
      %v5192 = vpop.f32.mrf.mxu0
      %v5193 = vadd.f32 0.0, %v5192
      %v5194 = vpop.f32.mrf.mxu0
      %v5195 = vadd.f32 0.0, %v5194
      %v5196 = vpop.f32.mrf.mxu0
      %v5197 = vadd.f32 0.0, %v5196
      %v5198 = vpop.f32.mrf.mxu0
      %v5199 = vadd.f32 0.0, %v5198
      %5200 = vmatprep.mubr.bf16.mxu0 %v4793
      %5201 = vmatmul.mubr.bf16.gmra.mxu0 %v4792
      %v5202 = vpop.f32.mrf.mxu0
      %v5203 = vadd.f32 0.0, %v5202
      %v5204 = vpop.f32.mrf.mxu0
      %v5205 = vadd.f32 0.0, %v5204
      %v5206 = vpop.f32.mrf.mxu0
      %v5207 = vadd.f32 0.0, %v5206
      %v5208 = vpop.f32.mrf.mxu0
      %v5209 = vadd.f32 0.0, %v5208
      %5210 = vmatprep.mubr.bf16.mxu0 %v4795
      %5211 = vmatmul.mubr.bf16.gmra.mxu0 %v4794
      %v5212 = vpop.f32.mrf.mxu0
      %v5213 = vadd.f32 0.0, %v5212
      %v5214 = vpop.f32.mrf.mxu0
      %v5215 = vadd.f32 0.0, %v5214
      %v5216 = vpop.f32.mrf.mxu0
      %v5217 = vadd.f32 0.0, %v5216
      %v5218 = vpop.f32.mrf.mxu0
      %v5219 = vadd.f32 0.0, %v5218
      %5220 = vmatprep.mubr.bf16.mxu0 %v4797
      %5221 = vmatmul.mubr.bf16.gmra.mxu0 %v4796
      %v5222 = vpop.f32.mrf.mxu0
      %v5223 = vadd.f32 0.0, %v5222
      %v5224 = vpop.f32.mrf.mxu0
      %v5225 = vadd.f32 0.0, %v5224
      %v5226 = vpop.f32.mrf.mxu0
      %v5227 = vadd.f32 0.0, %v5226
      %v5228 = vpop.f32.mrf.mxu0
      %v5229 = vadd.f32 0.0, %v5228
      %5230 = vmatprep.mubr.bf16.mxu0 %v4799
      %5231 = vmatmul.mubr.bf16.gmra.mxu0 %v4798
      %v5232 = vpop.f32.mrf.mxu0
      %v5233 = vadd.f32 0.0, %v5232
      %v5234 = vpop.f32.mrf.mxu0
      %v5235 = vadd.f32 0.0, %v5234
      %v5236 = vpop.f32.mrf.mxu0
      %v5237 = vadd.f32 0.0, %v5236
      %v5238 = vpop.f32.mrf.mxu0
      %v5239 = vadd.f32 0.0, %v5238
      %5240 = vmatprep.mubr.bf16.mxu0 %v4801
      %5241 = vmatmul.mubr.bf16.gmra.mxu0 %v4800
      %v5242 = vpop.f32.mrf.mxu0
      %v5243 = vadd.f32 0.0, %v5242
      %v5244 = vpop.f32.mrf.mxu0
      %v5245 = vadd.f32 0.0, %v5244
      %v5246 = vpop.f32.mrf.mxu0
      %v5247 = vadd.f32 0.0, %v5246
      %v5248 = vpop.f32.mrf.mxu0
      %v5249 = vadd.f32 0.0, %v5248
      %5250 = vmatprep.mubr.bf16.mxu0 %v4803
      %5251 = vmatmul.mubr.bf16.gmra.mxu0 %v4802
      %v5252 = vpop.f32.mrf.mxu0
      %v5253 = vadd.f32 0.0, %v5252
      %v5254 = vpop.f32.mrf.mxu0
      %v5255 = vadd.f32 0.0, %v5254
      %v5256 = vpop.f32.mrf.mxu0
      %v5257 = vadd.f32 0.0, %v5256
      %v5258 = vpop.f32.mrf.mxu0
      %v5259 = vadd.f32 0.0, %v5258
      %5260 = vmatprep.mubr.bf16.mxu0 %v4805
      %5261 = vmatmul.mubr.bf16.gmra.mxu0 %v4804
      %v5262 = vpop.f32.mrf.mxu0
      %v5263 = vadd.f32 0.0, %v5262
      %v5264 = vpop.f32.mrf.mxu0
      %v5265 = vadd.f32 0.0, %v5264
      %v5266 = vpop.f32.mrf.mxu0
      %v5267 = vadd.f32 0.0, %v5266
      %v5268 = vpop.f32.mrf.mxu0
      %v5269 = vadd.f32 0.0, %v5268
      %5270 = vmatprep.mubr.bf16.mxu0 %v4807
      %5271 = vmatmul.mubr.bf16.gmra.mxu0 %v4806
      %v5272 = vpop.f32.mrf.mxu0
      %v5273 = vadd.f32 0.0, %v5272
      %v5274 = vpop.f32.mrf.mxu0
      %v5275 = vadd.f32 0.0, %v5274
      %v5276 = vpop.f32.mrf.mxu0
      %v5277 = vadd.f32 0.0, %v5276
      %v5278 = vpop.f32.mrf.mxu0
      %v5279 = vadd.f32 0.0, %v5278
      %5280 = vmatprep.mubr.bf16.mxu0 %v4809
      %5281 = vmatmul.mubr.bf16.gmra.mxu0 %v4808
      %v5282 = vpop.f32.mrf.mxu0
      %v5283 = vadd.f32 0.0, %v5282
      %v5284 = vpop.f32.mrf.mxu0
      %v5285 = vadd.f32 0.0, %v5284
      %v5286 = vpop.f32.mrf.mxu0
      %v5287 = vadd.f32 0.0, %v5286
      %v5288 = vpop.f32.mrf.mxu0
      %v5289 = vadd.f32 0.0, %v5288
      %5290 = vdwg.mxu0
      %v5291 = vadd.f32 %v4441, %v5053
      %v5292 = vadd.f32 %v4442, %v5055
      %v5293 = vadd.f32 %v4443, %v5057
      %v5294 = vadd.f32 %v4444, %v5059
      %v5295 = vadd.f32 %v4445, %v5063
      %v5296 = vadd.f32 %v4446, %v5065
      %v5297 = vadd.f32 %v4447, %v5067
      %v5298 = vadd.f32 %v4448, %v5069
      %v5299 = vadd.f32 %v4449, %v5073
      %v5300 = vadd.f32 %v4450, %v5075
      %v5301 = vadd.f32 %v4451, %v5077
      %v5302 = vadd.f32 %v4452, %v5079
      %v5303 = vadd.f32 %v4453, %v5083
      %v5304 = vadd.f32 %v4454, %v5085
      %v5305 = vadd.f32 %v4455, %v5087
      %v5306 = vadd.f32 %v4456, %v5089
      %v5307 = vadd.f32 %v4457, %v5093
      %v5308 = vadd.f32 %v4458, %v5095
      %v5309 = vadd.f32 %v4459, %v5097
      %v5310 = vadd.f32 %v4460, %v5099
      %v5311 = vadd.f32 %v4461, %v5103
      %v5312 = vadd.f32 %v4462, %v5105
      %v5313 = vadd.f32 %v4463, %v5107
      %v5314 = vadd.f32 %v4464, %v5109
      %v5315 = vadd.f32 %v4465, %v5113
      %v5316 = vadd.f32 %v4466, %v5115
      %v5317 = vadd.f32 %v4467, %v5117
      %v5318 = vadd.f32 %v4468, %v5119
      %v5319 = vadd.f32 %v4469, %v5123
      %v5320 = vadd.f32 %v4470, %v5125
      %v5321 = vadd.f32 %v4471, %v5127
      %v5322 = vadd.f32 %v4472, %v5129
      %v5323 = vadd.f32 %v4473, %v5133
      %v5324 = vadd.f32 %v4474, %v5135
      %v5325 = vadd.f32 %v4475, %v5137
      %v5326 = vadd.f32 %v4476, %v5139
      %v5327 = vadd.f32 %v4477, %v5143
      %v5328 = vadd.f32 %v4478, %v5145
      %v5329 = vadd.f32 %v4479, %v5147
      %v5330 = vadd.f32 %v4480, %v5149
      %v5331 = vadd.f32 %v4481, %v5153
      %v5332 = vadd.f32 %v4482, %v5155
      %v5333 = vadd.f32 %v4483, %v5157
      %v5334 = vadd.f32 %v4484, %v5159
      %v5335 = vadd.f32 %v4485, %v5163
      %v5336 = vadd.f32 %v4486, %v5165
      %v5337 = vadd.f32 %v4487, %v5167
      %v5338 = vadd.f32 %v4488, %v5169
      %v5339 = vadd.f32 %v4489, %v5173
      %v5340 = vadd.f32 %v4490, %v5175
      %v5341 = vadd.f32 %v4491, %v5177
      %v5342 = vadd.f32 %v4492, %v5179
      %v5343 = vadd.f32 %v4493, %v5183
      %v5344 = vadd.f32 %v4494, %v5185
      %v5345 = vadd.f32 %v4495, %v5187
      %v5346 = vadd.f32 %v4496, %v5189
      %v5347 = vadd.f32 %v4497, %v5193
      %v5348 = vadd.f32 %v4498, %v5195
      %v5349 = vadd.f32 %v4499, %v5197
      %v5350 = vadd.f32 %v4500, %v5199
      %v5351 = vadd.f32 %v4501, %v5203
      %v5352 = vadd.f32 %v4502, %v5205
      %v5353 = vadd.f32 %v4503, %v5207
      %v5354 = vadd.f32 %v4504, %v5209
      %v5355 = vadd.f32 %v4505, %v5213
      %v5356 = vadd.f32 %v4506, %v5215
      %v5357 = vadd.f32 %v4507, %v5217
      %v5358 = vadd.f32 %v4508, %v5219
      %v5359 = vadd.f32 %v4509, %v5223
      %v5360 = vadd.f32 %v4510, %v5225
      %v5361 = vadd.f32 %v4511, %v5227
      %v5362 = vadd.f32 %v4512, %v5229
      %v5363 = vadd.f32 %v4513, %v5233
      %v5364 = vadd.f32 %v4514, %v5235
      %v5365 = vadd.f32 %v4515, %v5237
      %v5366 = vadd.f32 %v4516, %v5239
      %v5367 = vadd.f32 %v4517, %v5243
      %v5368 = vadd.f32 %v4518, %v5245
      %v5369 = vadd.f32 %v4519, %v5247
      %v5370 = vadd.f32 %v4520, %v5249
      %v5371 = vadd.f32 %v4521, %v5253
      %v5372 = vadd.f32 %v4522, %v5255
      %v5373 = vadd.f32 %v4523, %v5257
      %v5374 = vadd.f32 %v4524, %v5259
      %v5375 = vadd.f32 %v4525, %v5263
      %v5376 = vadd.f32 %v4526, %v5265
      %v5377 = vadd.f32 %v4527, %v5267
      %v5378 = vadd.f32 %v4528, %v5269
      %v5379 = vadd.f32 %v4529, %v5273
      %v5380 = vadd.f32 %v4530, %v5275
      %v5381 = vadd.f32 %v4531, %v5277
      %v5382 = vadd.f32 %v4532, %v5279
      %v5383 = vadd.f32 %v4533, %v5283
      %v5384 = vadd.f32 %v4534, %v5285
      %v5385 = vadd.f32 %v4535, %v5287
      %v5386 = vadd.f32 %v4536, %v5289
      %v5387 = vld [vmem:[#allocation2 + $0x18] sm:$0xff]
      %v5388 = vld [vmem:[#allocation2 + $0x20] sm:$0xff]
      %v5389 = vld [vmem:[#allocation2 + $0x28] sm:$0xff]
      %v5390 = vld [vmem:[#allocation2 + $0x30] sm:$0xff]
      %v5391 = vld [vmem:[#allocation2 + $0x38] sm:$0xff]
      %v5392 = vld [vmem:[#allocation2 + $0x40] sm:$0xff]
      %v5393 = vld [vmem:[#allocation2 + $0x48] sm:$0xff]
      %v5394 = vld [vmem:[#allocation2 + $0x50] sm:$0xff]
      %v5395 = vld [vmem:[#allocation2 + $0x58] sm:$0xff]
      %v5396 = vld [vmem:[#allocation2 + $0x60] sm:$0xff]
      %v5397 = vld [vmem:[#allocation2 + $0x68] sm:$0xff]
      %v5398 = vld [vmem:[#allocation2 + $0x70] sm:$0xff]
      %v5399 = vld [vmem:[#allocation2 + $0x78] sm:$0xff]
      %v5400 = vld [vmem:[#allocation2 + $0x80] sm:$0xff]
      %v5401 = vld [vmem:[#allocation2 + $0x88] sm:$0xff]
      %v5402 = vld [vmem:[#allocation2 + $0x90] sm:$0xff]
      %v5403 = vld [vmem:[#allocation2 + $0x98] sm:$0xff]
      %v5404 = vld [vmem:[#allocation2 + $0xa0] sm:$0xff]
      %v5405 = vld [vmem:[#allocation2 + $0xa8] sm:$0xff]
      %v5406 = vld [vmem:[#allocation2 + $0xb0] sm:$0xff]
      %v5407 = vld [vmem:[#allocation2 + $0xb8] sm:$0xff]
      %v5408 = vld [vmem:[#allocation2 + $0xc0] sm:$0xff]
      %v5409 = vld [vmem:[#allocation2 + $0xc8] sm:$0xff]
      %v5410 = vld [vmem:[#allocation2 + $0xd0] sm:$0xff]
      %v5411 = vld [vmem:[#allocation2 + $0xd8] sm:$0xff]
      %v5412 = vld [vmem:[#allocation2 + $0xe0] sm:$0xff]
      %v5413 = vld [vmem:[#allocation2 + $0xe8] sm:$0xff]
      %v5414 = vld [vmem:[#allocation2 + $0xf0] sm:$0xff]
      %v5415 = vld [vmem:[#allocation2 + $0xf8] sm:$0xff]
      %v5416 = vld [vmem:[#allocation2 + $0x100] sm:$0xff]
      %v5417 = vld [vmem:[#allocation2 + $0x108] sm:$0xff]
      %v5418 = vld [vmem:[#allocation2 + $0x110] sm:$0xff]
      %v5419 = vld [vmem:[#allocation2 + $0x118] sm:$0xff]
      %v5420 = vld [vmem:[#allocation2 + $0x120] sm:$0xff]
      %v5421 = vld [vmem:[#allocation2 + $0x128] sm:$0xff]
      %v5422 = vld [vmem:[#allocation2 + $0x130] sm:$0xff]
      %v5423 = vld [vmem:[#allocation2 + $0x138] sm:$0xff]
      %v5424 = vld [vmem:[#allocation2 + $0x140] sm:$0xff]
      %v5425 = vld [vmem:[#allocation2 + $0x148] sm:$0xff]
      %v5426 = vld [vmem:[#allocation2 + $0x150] sm:$0xff]
      %v5427 = vld [vmem:[#allocation2 + $0x158] sm:$0xff]
      %v5428 = vld [vmem:[#allocation2 + $0x160] sm:$0xff]
      %v5429 = vld [vmem:[#allocation2 + $0x168] sm:$0xff]
      %v5430 = vld [vmem:[#allocation2 + $0x170] sm:$0xff]
      %v5431 = vld [vmem:[#allocation2 + $0x178] sm:$0xff]
      %v5432 = vld [vmem:[#allocation2 + $0x180] sm:$0xff]
      %v5433 = vld [vmem:[#allocation2 + $0x188] sm:$0xff]
      %v5434 = vld [vmem:[#allocation2 + $0x190] sm:$0xff]
      %v5435 = vld [vmem:[#allocation2 + $0x198] sm:$0x11]
      %s5436 = scalar_lea.vmem %s3, 1024
      %v5437 = vld [vmem:[%s5436] sm:$0xff]
      %v5438 = vld [vmem:[%s5436 + $0x8] sm:$0xff]
      %v5439 = vld [vmem:[%s5436 + $0x10] sm:$0xff]
      %v5440 = vld [vmem:[%s5436 + $0x18] sm:$0xff]
      %v5441 = vld [vmem:[%s5436 + $0x20] sm:$0xff]
      %v5442 = vld [vmem:[%s5436 + $0x28] sm:$0xff]
      %v5443 = vld [vmem:[%s5436 + $0x30] sm:$0xff]
      %v5444 = vld [vmem:[%s5436 + $0x38] sm:$0xff]
      %v5445 = vld [vmem:[%s5436 + $0x40] sm:$0xff]
      %v5446 = vld [vmem:[%s5436 + $0x48] sm:$0xff]
      %v5447 = vld [vmem:[%s5436 + $0x50] sm:$0xff]
      %v5448 = vld [vmem:[%s5436 + $0x58] sm:$0xff]
      %v5449 = vld [vmem:[%s5436 + $0x60] sm:$0xff]
      %v5450 = vld [vmem:[%s5436 + $0x68] sm:$0xff]
      %v5451 = vld [vmem:[%s5436 + $0x70] sm:$0xff]
      %v5452 = vld [vmem:[%s5436 + $0x78] sm:$0xff]
      %v5453 = vld [vmem:[%s5436 + $0x80] sm:$0xff]
      %v5454 = vld [vmem:[%s5436 + $0x88] sm:$0xff]
      %v5455 = vld [vmem:[%s5436 + $0x90] sm:$0xff]
      %v5456 = vld [vmem:[%s5436 + $0x98] sm:$0xff]
      %v5457 = vld [vmem:[%s5436 + $0xa0] sm:$0xff]
      %v5458 = vld [vmem:[%s5436 + $0xa8] sm:$0xff]
      %v5459 = vld [vmem:[%s5436 + $0xb0] sm:$0xff]
      %v5460 = vld [vmem:[%s5436 + $0xb8] sm:$0xff]
      %v5461 = vld [vmem:[%s5436 + $0xc0] sm:$0xff]
      %v5462 = vld [vmem:[%s5436 + $0xc8] sm:$0xff]
      %v5463 = vld [vmem:[%s5436 + $0xd0] sm:$0xff]
      %v5464 = vld [vmem:[%s5436 + $0xd8] sm:$0xff]
      %v5465 = vld [vmem:[%s5436 + $0xe0] sm:$0xff]
      %v5466 = vld [vmem:[%s5436 + $0xe8] sm:$0xff]
      %v5467 = vld [vmem:[%s5436 + $0xf0] sm:$0xff]
      %v5468 = vld [vmem:[%s5436 + $0xf8] sm:$0xff]
      %v5518 = vunpack.c.l.b16 %v5387
      %v5519 = vunpack.c.h.b16 %v5387
      %v5520 = vunpack.c.l.b16 %v5388
      %v5521 = vunpack.c.h.b16 %v5388
      %v5522 = vunpack.c.l.b16 %v5389
      %v5523 = vunpack.c.h.b16 %v5389
      %v5524 = vunpack.c.l.b16 %v5390
      %v5525 = vunpack.c.h.b16 %v5390
      %v5526 = vunpack.c.l.b16 %v5391
      %v5527 = vunpack.c.h.b16 %v5391
      %v5528 = vunpack.c.l.b16 %v5392
      %v5529 = vunpack.c.h.b16 %v5392
      %v5530 = vunpack.c.l.b16 %v5393
      %v5531 = vunpack.c.h.b16 %v5393
      %v5532 = vunpack.c.l.b16 %v5394
      %v5533 = vunpack.c.h.b16 %v5394
      %v5534 = vunpack.c.l.b16 %v5395
      %v5535 = vunpack.c.h.b16 %v5395
      %v5536 = vunpack.c.l.b16 %v5396
      %v5537 = vunpack.c.h.b16 %v5396
      %v5538 = vunpack.c.l.b16 %v5397
      %v5539 = vunpack.c.h.b16 %v5397
      %v5540 = vunpack.c.l.b16 %v5398
      %v5541 = vunpack.c.h.b16 %v5398
      %v5542 = vunpack.c.l.b16 %v5399
      %v5543 = vunpack.c.h.b16 %v5399
      %v5544 = vunpack.c.l.b16 %v5400
      %v5545 = vunpack.c.h.b16 %v5400
      %v5546 = vunpack.c.l.b16 %v5401
      %v5547 = vunpack.c.h.b16 %v5401
      %v5548 = vunpack.c.l.b16 %v5402
      %v5549 = vunpack.c.h.b16 %v5402
      %v5550 = vunpack.c.l.b16 %v5403
      %v5551 = vunpack.c.h.b16 %v5403
      %v5552 = vunpack.c.l.b16 %v5404
      %v5553 = vunpack.c.h.b16 %v5404
      %v5554 = vunpack.c.l.b16 %v5405
      %v5555 = vunpack.c.h.b16 %v5405
      %v5556 = vunpack.c.l.b16 %v5406
      %v5557 = vunpack.c.h.b16 %v5406
      %v5558 = vunpack.c.l.b16 %v5407
      %v5559 = vunpack.c.h.b16 %v5407
      %v5560 = vunpack.c.l.b16 %v5408
      %v5561 = vunpack.c.h.b16 %v5408
      %v5562 = vunpack.c.l.b16 %v5409
      %v5563 = vunpack.c.h.b16 %v5409
      %v5564 = vunpack.c.l.b16 %v5410
      %v5565 = vunpack.c.h.b16 %v5410
      %v5566 = vunpack.c.l.b16 %v5411
      %v5567 = vunpack.c.h.b16 %v5411
      %v5568 = vunpack.c.l.b16 %v5412
      %v5569 = vunpack.c.h.b16 %v5412
      %v5570 = vunpack.c.l.b16 %v5413
      %v5571 = vunpack.c.h.b16 %v5413
      %v5572 = vunpack.c.l.b16 %v5414
      %v5573 = vunpack.c.h.b16 %v5414
      %v5574 = vunpack.c.l.b16 %v5415
      %v5575 = vunpack.c.h.b16 %v5415
      %v5576 = vunpack.c.l.b16 %v5416
      %v5577 = vunpack.c.h.b16 %v5416
      %v5578 = vunpack.c.l.b16 %v5417
      %v5579 = vunpack.c.h.b16 %v5417
      %v5580 = vunpack.c.l.b16 %v5418
      %v5581 = vunpack.c.h.b16 %v5418
      %v5582 = vunpack.c.l.b16 %v5419
      %v5583 = vunpack.c.h.b16 %v5419
      %v5584 = vunpack.c.l.b16 %v5420
      %v5585 = vunpack.c.h.b16 %v5420
      %v5586 = vunpack.c.l.b16 %v5421
      %v5587 = vunpack.c.h.b16 %v5421
      %v5588 = vunpack.c.l.b16 %v5422
      %v5589 = vunpack.c.h.b16 %v5422
      %v5590 = vunpack.c.l.b16 %v5423
      %v5591 = vunpack.c.h.b16 %v5423
      %v5592 = vunpack.c.l.b16 %v5424
      %v5593 = vunpack.c.h.b16 %v5424
      %v5594 = vunpack.c.l.b16 %v5425
      %v5595 = vunpack.c.h.b16 %v5425
      %v5596 = vunpack.c.l.b16 %v5426
      %v5597 = vunpack.c.h.b16 %v5426
      %v5598 = vunpack.c.l.b16 %v5427
      %v5599 = vunpack.c.h.b16 %v5427
      %v5600 = vunpack.c.l.b16 %v5428
      %v5601 = vunpack.c.h.b16 %v5428
      %v5602 = vunpack.c.l.b16 %v5429
      %v5603 = vunpack.c.h.b16 %v5429
      %v5604 = vunpack.c.l.b16 %v5430
      %v5605 = vunpack.c.h.b16 %v5430
      %v5606 = vunpack.c.l.b16 %v5431
      %v5607 = vunpack.c.h.b16 %v5431
      %v5608 = vunpack.c.l.b16 %v5432
      %v5609 = vunpack.c.h.b16 %v5432
      %v5610 = vunpack.c.l.b16 %v5433
      %v5611 = vunpack.c.h.b16 %v5433
      %v5612 = vunpack.c.l.b16 %v5434
      %v5613 = vunpack.c.h.b16 %v5434
      %v5614 = vunpack.c.l.b16 %v5435
      %v5615 = vunpack.c.h.b16 %v5435
      %v5616 = vpack.c.b16 %v5520, %v5518
      %v5617 = vpack.c.b16 %v5521, %v5519
      %v5618 = vpack.c.b16 %v5524, %v5522
      %v5619 = vpack.c.b16 %v5525, %v5523
      %v5620 = vpack.c.b16 %v5528, %v5526
      %v5621 = vpack.c.b16 %v5529, %v5527
      %v5622 = vpack.c.b16 %v5532, %v5530
      %v5623 = vpack.c.b16 %v5533, %v5531
      %v5624 = vpack.c.b16 %v5536, %v5534
      %v5625 = vpack.c.b16 %v5537, %v5535
      %v5626 = vpack.c.b16 %v5540, %v5538
      %v5627 = vpack.c.b16 %v5541, %v5539
      %v5628 = vpack.c.b16 %v5544, %v5542
      %v5629 = vpack.c.b16 %v5545, %v5543
      %v5630 = vpack.c.b16 %v5548, %v5546
      %v5631 = vpack.c.b16 %v5549, %v5547
      %v5632 = vpack.c.b16 %v5552, %v5550
      %v5633 = vpack.c.b16 %v5553, %v5551
      %v5634 = vpack.c.b16 %v5556, %v5554
      %v5635 = vpack.c.b16 %v5557, %v5555
      %v5636 = vpack.c.b16 %v5560, %v5558
      %v5637 = vpack.c.b16 %v5561, %v5559
      %v5638 = vpack.c.b16 %v5564, %v5562
      %v5639 = vpack.c.b16 %v5565, %v5563
      %v5640 = vpack.c.b16 %v5568, %v5566
      %v5641 = vpack.c.b16 %v5569, %v5567
      %v5642 = vpack.c.b16 %v5572, %v5570
      %v5643 = vpack.c.b16 %v5573, %v5571
      %v5644 = vpack.c.b16 %v5576, %v5574
      %v5645 = vpack.c.b16 %v5577, %v5575
      %v5646 = vpack.c.b16 %v5580, %v5578
      %v5647 = vpack.c.b16 %v5581, %v5579
      %v5648 = vpack.c.b16 %v5584, %v5582
      %v5649 = vpack.c.b16 %v5585, %v5583
      %v5650 = vpack.c.b16 %v5588, %v5586
      %v5651 = vpack.c.b16 %v5589, %v5587
      %v5652 = vpack.c.b16 %v5592, %v5590
      %v5653 = vpack.c.b16 %v5593, %v5591
      %v5654 = vpack.c.b16 %v5596, %v5594
      %v5655 = vpack.c.b16 %v5597, %v5595
      %v5656 = vpack.c.b16 %v5600, %v5598
      %v5657 = vpack.c.b16 %v5601, %v5599
      %v5658 = vpack.c.b16 %v5604, %v5602
      %v5659 = vpack.c.b16 %v5605, %v5603
      %v5660 = vpack.c.b16 %v5608, %v5606
      %v5661 = vpack.c.b16 %v5609, %v5607
      %v5662 = vpack.c.b16 %v5612, %v5610
      %v5663 = vpack.c.b16 %v5613, %v5611
      %v5664 = vpack.c.b16 %v5614, %v5614
      %v5665 = vpack.c.b16 %v5615, %v5615
      %v5667 = vshrl.u32 %v5616, 16
      %v5669 = vshll.u32 %v5616, 16
      %v5671 = vrot.slane %v5669, 1
      %v5672 = vor.u32 %v5667, %v5671
      %v5674 = vshll.u32 %v5618, 16
      %v5676 = vrot.slane %v5674, 1
      %v5677 = vsel %vm2467, %v5672, %v5676
      %v5679 = vshrl.u32 %v5617, 16
      %v5681 = vshll.u32 %v5617, 16
      %v5683 = vrot.slane %v5681, 1
      %v5684 = vor.u32 %v5679, %v5683
      %v5686 = vshll.u32 %v5619, 16
      %v5688 = vrot.slane %v5686, 1
      %v5689 = vsel %vm2467, %v5684, %v5688
      %v5690 = vshrl.u32 %v5618, 16
      %v5692 = vor.u32 %v5690, %v5676
      %v5694 = vshll.u32 %v5620, 16
      %v5696 = vrot.slane %v5694, 1
      %v5697 = vsel %vm2467, %v5692, %v5696
      %v5698 = vshrl.u32 %v5619, 16
      %v5700 = vor.u32 %v5698, %v5688
      %v5702 = vshll.u32 %v5621, 16
      %v5704 = vrot.slane %v5702, 1
      %v5705 = vsel %vm2467, %v5700, %v5704
      %v5706 = vshrl.u32 %v5620, 16
      %v5708 = vor.u32 %v5706, %v5696
      %v5710 = vshll.u32 %v5622, 16
      %v5712 = vrot.slane %v5710, 1
      %v5713 = vsel %vm2467, %v5708, %v5712
      %v5714 = vshrl.u32 %v5621, 16
      %v5716 = vor.u32 %v5714, %v5704
      %v5718 = vshll.u32 %v5623, 16
      %v5720 = vrot.slane %v5718, 1
      %v5721 = vsel %vm2467, %v5716, %v5720
      %v5722 = vshrl.u32 %v5622, 16
      %v5724 = vor.u32 %v5722, %v5712
      %v5726 = vshll.u32 %v5624, 16
      %v5728 = vrot.slane %v5726, 1
      %v5729 = vsel %vm2467, %v5724, %v5728
      %v5730 = vshrl.u32 %v5623, 16
      %v5732 = vor.u32 %v5730, %v5720
      %v5734 = vshll.u32 %v5625, 16
      %v5736 = vrot.slane %v5734, 1
      %v5737 = vsel %vm2467, %v5732, %v5736
      %v5738 = vshrl.u32 %v5624, 16
      %v5740 = vor.u32 %v5738, %v5728
      %v5742 = vshll.u32 %v5626, 16
      %v5744 = vrot.slane %v5742, 1
      %v5745 = vsel %vm2467, %v5740, %v5744
      %v5746 = vshrl.u32 %v5625, 16
      %v5748 = vor.u32 %v5746, %v5736
      %v5750 = vshll.u32 %v5627, 16
      %v5752 = vrot.slane %v5750, 1
      %v5753 = vsel %vm2467, %v5748, %v5752
      %v5754 = vshrl.u32 %v5626, 16
      %v5756 = vor.u32 %v5754, %v5744
      %v5758 = vshll.u32 %v5628, 16
      %v5760 = vrot.slane %v5758, 1
      %v5761 = vsel %vm2467, %v5756, %v5760
      %v5762 = vshrl.u32 %v5627, 16
      %v5764 = vor.u32 %v5762, %v5752
      %v5766 = vshll.u32 %v5629, 16
      %v5768 = vrot.slane %v5766, 1
      %v5769 = vsel %vm2467, %v5764, %v5768
      %v5770 = vshrl.u32 %v5628, 16
      %v5772 = vor.u32 %v5770, %v5760
      %v5774 = vshll.u32 %v5630, 16
      %v5776 = vrot.slane %v5774, 1
      %v5777 = vsel %vm2467, %v5772, %v5776
      %v5778 = vshrl.u32 %v5629, 16
      %v5780 = vor.u32 %v5778, %v5768
      %v5782 = vshll.u32 %v5631, 16
      %v5784 = vrot.slane %v5782, 1
      %v5785 = vsel %vm2467, %v5780, %v5784
      %v5786 = vshrl.u32 %v5630, 16
      %v5788 = vor.u32 %v5786, %v5776
      %v5790 = vshll.u32 %v5632, 16
      %v5792 = vrot.slane %v5790, 1
      %v5793 = vsel %vm2467, %v5788, %v5792
      %v5794 = vshrl.u32 %v5631, 16
      %v5796 = vor.u32 %v5794, %v5784
      %v5798 = vshll.u32 %v5633, 16
      %v5800 = vrot.slane %v5798, 1
      %v5801 = vsel %vm2467, %v5796, %v5800
      %v5802 = vshrl.u32 %v5632, 16
      %v5804 = vor.u32 %v5802, %v5792
      %v5806 = vshll.u32 %v5634, 16
      %v5808 = vrot.slane %v5806, 1
      %v5809 = vsel %vm2467, %v5804, %v5808
      %v5810 = vshrl.u32 %v5633, 16
      %v5812 = vor.u32 %v5810, %v5800
      %v5814 = vshll.u32 %v5635, 16
      %v5816 = vrot.slane %v5814, 1
      %v5817 = vsel %vm2467, %v5812, %v5816
      %v5818 = vshrl.u32 %v5634, 16
      %v5820 = vor.u32 %v5818, %v5808
      %v5822 = vshll.u32 %v5636, 16
      %v5824 = vrot.slane %v5822, 1
      %v5825 = vsel %vm2467, %v5820, %v5824
      %v5826 = vshrl.u32 %v5635, 16
      %v5828 = vor.u32 %v5826, %v5816
      %v5830 = vshll.u32 %v5637, 16
      %v5832 = vrot.slane %v5830, 1
      %v5833 = vsel %vm2467, %v5828, %v5832
      %v5834 = vshrl.u32 %v5636, 16
      %v5836 = vor.u32 %v5834, %v5824
      %v5838 = vshll.u32 %v5638, 16
      %v5840 = vrot.slane %v5838, 1
      %v5841 = vsel %vm2467, %v5836, %v5840
      %v5842 = vshrl.u32 %v5637, 16
      %v5844 = vor.u32 %v5842, %v5832
      %v5846 = vshll.u32 %v5639, 16
      %v5848 = vrot.slane %v5846, 1
      %v5849 = vsel %vm2467, %v5844, %v5848
      %v5850 = vshrl.u32 %v5638, 16
      %v5852 = vor.u32 %v5850, %v5840
      %v5854 = vshll.u32 %v5640, 16
      %v5856 = vrot.slane %v5854, 1
      %v5857 = vsel %vm2467, %v5852, %v5856
      %v5858 = vshrl.u32 %v5639, 16
      %v5860 = vor.u32 %v5858, %v5848
      %v5862 = vshll.u32 %v5641, 16
      %v5864 = vrot.slane %v5862, 1
      %v5865 = vsel %vm2467, %v5860, %v5864
      %v5866 = vshrl.u32 %v5640, 16
      %v5868 = vor.u32 %v5866, %v5856
      %v5870 = vshll.u32 %v5642, 16
      %v5872 = vrot.slane %v5870, 1
      %v5873 = vsel %vm2467, %v5868, %v5872
      %v5874 = vshrl.u32 %v5641, 16
      %v5876 = vor.u32 %v5874, %v5864
      %v5878 = vshll.u32 %v5643, 16
      %v5880 = vrot.slane %v5878, 1
      %v5881 = vsel %vm2467, %v5876, %v5880
      %v5882 = vshrl.u32 %v5642, 16
      %v5884 = vor.u32 %v5882, %v5872
      %v5886 = vshll.u32 %v5644, 16
      %v5888 = vrot.slane %v5886, 1
      %v5889 = vsel %vm2467, %v5884, %v5888
      %v5890 = vshrl.u32 %v5643, 16
      %v5892 = vor.u32 %v5890, %v5880
      %v5894 = vshll.u32 %v5645, 16
      %v5896 = vrot.slane %v5894, 1
      %v5897 = vsel %vm2467, %v5892, %v5896
      %v5898 = vshrl.u32 %v5644, 16
      %v5900 = vor.u32 %v5898, %v5888
      %v5902 = vshll.u32 %v5646, 16
      %v5904 = vrot.slane %v5902, 1
      %v5905 = vsel %vm2467, %v5900, %v5904
      %v5906 = vshrl.u32 %v5645, 16
      %v5908 = vor.u32 %v5906, %v5896
      %v5910 = vshll.u32 %v5647, 16
      %v5912 = vrot.slane %v5910, 1
      %v5913 = vsel %vm2467, %v5908, %v5912
      %v5914 = vshrl.u32 %v5646, 16
      %v5916 = vor.u32 %v5914, %v5904
      %v5918 = vshll.u32 %v5648, 16
      %v5920 = vrot.slane %v5918, 1
      %v5921 = vsel %vm2467, %v5916, %v5920
      %v5922 = vshrl.u32 %v5647, 16
      %v5924 = vor.u32 %v5922, %v5912
      %v5926 = vshll.u32 %v5649, 16
      %v5928 = vrot.slane %v5926, 1
      %v5929 = vsel %vm2467, %v5924, %v5928
      %v5930 = vshrl.u32 %v5648, 16
      %v5932 = vor.u32 %v5930, %v5920
      %v5934 = vshll.u32 %v5650, 16
      %v5936 = vrot.slane %v5934, 1
      %v5937 = vsel %vm2467, %v5932, %v5936
      %v5938 = vshrl.u32 %v5649, 16
      %v5940 = vor.u32 %v5938, %v5928
      %v5942 = vshll.u32 %v5651, 16
      %v5944 = vrot.slane %v5942, 1
      %v5945 = vsel %vm2467, %v5940, %v5944
      %v5946 = vshrl.u32 %v5650, 16
      %v5948 = vor.u32 %v5946, %v5936
      %v5950 = vshll.u32 %v5652, 16
      %v5952 = vrot.slane %v5950, 1
      %v5953 = vsel %vm2467, %v5948, %v5952
      %v5954 = vshrl.u32 %v5651, 16
      %v5956 = vor.u32 %v5954, %v5944
      %v5958 = vshll.u32 %v5653, 16
      %v5960 = vrot.slane %v5958, 1
      %v5961 = vsel %vm2467, %v5956, %v5960
      %v5962 = vshrl.u32 %v5652, 16
      %v5964 = vor.u32 %v5962, %v5952
      %v5966 = vshll.u32 %v5654, 16
      %v5968 = vrot.slane %v5966, 1
      %v5969 = vsel %vm2467, %v5964, %v5968
      %v5970 = vshrl.u32 %v5653, 16
      %v5972 = vor.u32 %v5970, %v5960
      %v5974 = vshll.u32 %v5655, 16
      %v5976 = vrot.slane %v5974, 1
      %v5977 = vsel %vm2467, %v5972, %v5976
      %v5978 = vshrl.u32 %v5654, 16
      %v5980 = vor.u32 %v5978, %v5968
      %v5982 = vshll.u32 %v5656, 16
      %v5984 = vrot.slane %v5982, 1
      %v5985 = vsel %vm2467, %v5980, %v5984
      %v5986 = vshrl.u32 %v5655, 16
      %v5988 = vor.u32 %v5986, %v5976
      %v5990 = vshll.u32 %v5657, 16
      %v5992 = vrot.slane %v5990, 1
      %v5993 = vsel %vm2467, %v5988, %v5992
      %v5994 = vshrl.u32 %v5656, 16
      %v5996 = vor.u32 %v5994, %v5984
      %v5998 = vshll.u32 %v5658, 16
      %v6000 = vrot.slane %v5998, 1
      %v6001 = vsel %vm2467, %v5996, %v6000
      %v6002 = vshrl.u32 %v5657, 16
      %v6004 = vor.u32 %v6002, %v5992
      %v6006 = vshll.u32 %v5659, 16
      %v6008 = vrot.slane %v6006, 1
      %v6009 = vsel %vm2467, %v6004, %v6008
      %v6010 = vshrl.u32 %v5658, 16
      %v6012 = vor.u32 %v6010, %v6000
      %v6014 = vshll.u32 %v5660, 16
      %v6016 = vrot.slane %v6014, 1
      %v6017 = vsel %vm2467, %v6012, %v6016
      %v6018 = vshrl.u32 %v5659, 16
      %v6020 = vor.u32 %v6018, %v6008
      %v6022 = vshll.u32 %v5661, 16
      %v6024 = vrot.slane %v6022, 1
      %v6025 = vsel %vm2467, %v6020, %v6024
      %v6026 = vshrl.u32 %v5660, 16
      %v6028 = vor.u32 %v6026, %v6016
      %v6030 = vshll.u32 %v5662, 16
      %v6032 = vrot.slane %v6030, 1
      %v6033 = vsel %vm2467, %v6028, %v6032
      %v6034 = vshrl.u32 %v5661, 16
      %v6036 = vor.u32 %v6034, %v6024
      %v6038 = vshll.u32 %v5663, 16
      %v6040 = vrot.slane %v6038, 1
      %v6041 = vsel %vm2467, %v6036, %v6040
      %v6042 = vshrl.u32 %v5662, 16
      %v6044 = vor.u32 %v6042, %v6032
      %v6046 = vshll.u32 %v5664, 16
      %v6048 = vrot.slane %v6046, 1
      %v6049 = vsel %vm2467, %v6044, %v6048
      %v6050 = vshrl.u32 %v5663, 16
      %v6052 = vor.u32 %v6050, %v6040
      %v6054 = vshll.u32 %v5665, 16
      %v6056 = vrot.slane %v6054, 1
      %v6057 = vsel %vm2467, %v6052, %v6056
      %v6138 = vunpack.c.l.b16 %v5437
      %v6139 = vunpack.c.h.b16 %v5437
      %v6140 = vunpack.c.l.b16 %v5438
      %v6141 = vunpack.c.h.b16 %v5438
      %v6142 = vunpack.c.l.b16 %v5439
      %v6143 = vunpack.c.h.b16 %v5439
      %v6144 = vunpack.c.l.b16 %v5440
      %v6145 = vunpack.c.h.b16 %v5440
      %v6146 = vunpack.c.l.b16 %v5441
      %v6147 = vunpack.c.h.b16 %v5441
      %v6148 = vunpack.c.l.b16 %v5442
      %v6149 = vunpack.c.h.b16 %v5442
      %v6150 = vunpack.c.l.b16 %v5443
      %v6151 = vunpack.c.h.b16 %v5443
      %v6152 = vunpack.c.l.b16 %v5444
      %v6153 = vunpack.c.h.b16 %v5444
      %v6154 = vunpack.c.l.b16 %v5445
      %v6155 = vunpack.c.h.b16 %v5445
      %v6156 = vunpack.c.l.b16 %v5446
      %v6157 = vunpack.c.h.b16 %v5446
      %v6158 = vunpack.c.l.b16 %v5447
      %v6159 = vunpack.c.h.b16 %v5447
      %v6160 = vunpack.c.l.b16 %v5448
      %v6161 = vunpack.c.h.b16 %v5448
      %v6162 = vunpack.c.l.b16 %v5449
      %v6163 = vunpack.c.h.b16 %v5449
      %v6164 = vunpack.c.l.b16 %v5450
      %v6165 = vunpack.c.h.b16 %v5450
      %v6166 = vunpack.c.l.b16 %v5451
      %v6167 = vunpack.c.h.b16 %v5451
      %v6168 = vunpack.c.l.b16 %v5452
      %v6169 = vunpack.c.h.b16 %v5452
      %v6170 = vunpack.c.l.b16 %v5453
      %v6171 = vunpack.c.h.b16 %v5453
      %v6172 = vunpack.c.l.b16 %v5454
      %v6173 = vunpack.c.h.b16 %v5454
      %v6174 = vunpack.c.l.b16 %v5455
      %v6175 = vunpack.c.h.b16 %v5455
      %v6176 = vunpack.c.l.b16 %v5456
      %v6177 = vunpack.c.h.b16 %v5456
      %v6178 = vunpack.c.l.b16 %v5457
      %v6179 = vunpack.c.h.b16 %v5457
      %v6180 = vunpack.c.l.b16 %v5458
      %v6181 = vunpack.c.h.b16 %v5458
      %v6182 = vunpack.c.l.b16 %v5459
      %v6183 = vunpack.c.h.b16 %v5459
      %v6184 = vunpack.c.l.b16 %v5460
      %v6185 = vunpack.c.h.b16 %v5460
      %v6186 = vunpack.c.l.b16 %v5461
      %v6187 = vunpack.c.h.b16 %v5461
      %v6188 = vunpack.c.l.b16 %v5462
      %v6189 = vunpack.c.h.b16 %v5462
      %v6190 = vunpack.c.l.b16 %v5463
      %v6191 = vunpack.c.h.b16 %v5463
      %v6192 = vunpack.c.l.b16 %v5464
      %v6193 = vunpack.c.h.b16 %v5464
      %v6194 = vunpack.c.l.b16 %v5465
      %v6195 = vunpack.c.h.b16 %v5465
      %v6196 = vunpack.c.l.b16 %v5466
      %v6197 = vunpack.c.h.b16 %v5466
      %v6198 = vunpack.c.l.b16 %v5467
      %v6199 = vunpack.c.h.b16 %v5467
      %v6200 = vunpack.c.l.b16 %v5468
      %v6201 = vunpack.c.h.b16 %v5468
      %v6202 = vpack.c.b16 %v6140, %v6138
      %v6203 = vpack.c.b16 %v6141, %v6139
      %v6204 = vpack.c.b16 %v6144, %v6142
      %v6205 = vpack.c.b16 %v6145, %v6143
      %v6206 = vpack.c.b16 %v6148, %v6146
      %v6207 = vpack.c.b16 %v6149, %v6147
      %v6208 = vpack.c.b16 %v6152, %v6150
      %v6209 = vpack.c.b16 %v6153, %v6151
      %v6210 = vpack.c.b16 %v6156, %v6154
      %v6211 = vpack.c.b16 %v6157, %v6155
      %v6212 = vpack.c.b16 %v6160, %v6158
      %v6213 = vpack.c.b16 %v6161, %v6159
      %v6214 = vpack.c.b16 %v6164, %v6162
      %v6215 = vpack.c.b16 %v6165, %v6163
      %v6216 = vpack.c.b16 %v6168, %v6166
      %v6217 = vpack.c.b16 %v6169, %v6167
      %v6218 = vpack.c.b16 %v6172, %v6170
      %v6219 = vpack.c.b16 %v6173, %v6171
      %v6220 = vpack.c.b16 %v6176, %v6174
      %v6221 = vpack.c.b16 %v6177, %v6175
      %v6222 = vpack.c.b16 %v6180, %v6178
      %v6223 = vpack.c.b16 %v6181, %v6179
      %v6224 = vpack.c.b16 %v6184, %v6182
      %v6225 = vpack.c.b16 %v6185, %v6183
      %v6226 = vpack.c.b16 %v6188, %v6186
      %v6227 = vpack.c.b16 %v6189, %v6187
      %v6228 = vpack.c.b16 %v6192, %v6190
      %v6229 = vpack.c.b16 %v6193, %v6191
      %v6230 = vpack.c.b16 %v6196, %v6194
      %v6231 = vpack.c.b16 %v6197, %v6195
      %v6232 = vpack.c.b16 %v6200, %v6198
      %v6233 = vpack.c.b16 %v6201, %v6199
      %6266 = vmatprep.subr.bf16.mxu0 %v6217
      %6267 = vmatpush1.bf16.msra.mxu0 %v6216
      %6268 = vmatprep.subr.bf16.mxu0 %v6215
      %6269 = vmatpush1.bf16.msra.mxu0 %v6214
      %6270 = vmatprep.subr.bf16.mxu0 %v6213
      %6271 = vmatpush1.bf16.msra.mxu0 %v6212
      %6272 = vmatprep.subr.bf16.mxu0 %v6211
      %6273 = vmatpush1.bf16.msra.mxu0 %v6210
      %6274 = vmatprep.subr.bf16.mxu0 %v6209
      %6275 = vmatpush1.bf16.msra.mxu0 %v6208
      %6276 = vmatprep.subr.bf16.mxu0 %v6207
      %6277 = vmatpush1.bf16.msra.mxu0 %v6206
      %6278 = vmatprep.subr.bf16.mxu0 %v6205
      %6279 = vmatpush1.bf16.msra.mxu0 %v6204
      %6280 = vmatprep.subr.bf16.mxu0 %v6203
      %6281 = vmatpush1.bf16.msra.mxu0 %v6202
      %6282 = vmatprep.subr.bf16.mxu0 %v6233
      %6283 = vmatpush2.bf16.msra.mxu0 %v6232
      %6284 = vmatprep.subr.bf16.mxu0 %v6231
      %6285 = vmatpush2.bf16.msra.mxu0 %v6230
      %6286 = vmatprep.subr.bf16.mxu0 %v6229
      %6287 = vmatpush2.bf16.msra.mxu0 %v6228
      %6288 = vmatprep.subr.bf16.mxu0 %v6227
      %6289 = vmatpush2.bf16.msra.mxu0 %v6226
      %6290 = vmatprep.subr.bf16.mxu0 %v6225
      %6291 = vmatpush2.bf16.msra.mxu0 %v6224
      %6292 = vmatprep.subr.bf16.mxu0 %v6223
      %6293 = vmatpush2.bf16.msra.mxu0 %v6222
      %6294 = vmatprep.subr.bf16.mxu0 %v6221
      %6295 = vmatpush2.bf16.msra.mxu0 %v6220
      %6296 = vmatprep.subr.bf16.mxu0 %v6219
      %6297 = vmatpush2.bf16.msra.mxu0 %v6218
      %6298 = vmatprep.mubr.bf16.mxu0 %v5689
      %6299 = vmatmul.mubr.bf16.gmra.mxu0 %v5677
      %v6300 = vpop.f32.mrf.mxu0
      %v6301 = vadd.f32 0.0, %v6300
      %v6302 = vpop.f32.mrf.mxu0
      %v6303 = vadd.f32 0.0, %v6302
      %v6304 = vpop.f32.mrf.mxu0
      %v6305 = vadd.f32 0.0, %v6304
      %v6306 = vpop.f32.mrf.mxu0
      %v6307 = vadd.f32 0.0, %v6306
      %6308 = vmatprep.mubr.bf16.mxu0 %v5705
      %6309 = vmatmul.mubr.bf16.gmra.mxu0 %v5697
      %v6310 = vpop.f32.mrf.mxu0
      %v6311 = vadd.f32 0.0, %v6310
      %v6312 = vpop.f32.mrf.mxu0
      %v6313 = vadd.f32 0.0, %v6312
      %v6314 = vpop.f32.mrf.mxu0
      %v6315 = vadd.f32 0.0, %v6314
      %v6316 = vpop.f32.mrf.mxu0
      %v6317 = vadd.f32 0.0, %v6316
      %6318 = vmatprep.mubr.bf16.mxu0 %v5721
      %6319 = vmatmul.mubr.bf16.gmra.mxu0 %v5713
      %v6320 = vpop.f32.mrf.mxu0
      %v6321 = vadd.f32 0.0, %v6320
      %v6322 = vpop.f32.mrf.mxu0
      %v6323 = vadd.f32 0.0, %v6322
      %v6324 = vpop.f32.mrf.mxu0
      %v6325 = vadd.f32 0.0, %v6324
      %v6326 = vpop.f32.mrf.mxu0
      %v6327 = vadd.f32 0.0, %v6326
      %6328 = vmatprep.mubr.bf16.mxu0 %v5737
      %6329 = vmatmul.mubr.bf16.gmra.mxu0 %v5729
      %v6330 = vpop.f32.mrf.mxu0
      %v6331 = vadd.f32 0.0, %v6330
      %v6332 = vpop.f32.mrf.mxu0
      %v6333 = vadd.f32 0.0, %v6332
      %v6334 = vpop.f32.mrf.mxu0
      %v6335 = vadd.f32 0.0, %v6334
      %v6336 = vpop.f32.mrf.mxu0
      %v6337 = vadd.f32 0.0, %v6336
      %6338 = vmatprep.mubr.bf16.mxu0 %v5753
      %6339 = vmatmul.mubr.bf16.gmra.mxu0 %v5745
      %v6340 = vpop.f32.mrf.mxu0
      %v6341 = vadd.f32 0.0, %v6340
      %v6342 = vpop.f32.mrf.mxu0
      %v6343 = vadd.f32 0.0, %v6342
      %v6344 = vpop.f32.mrf.mxu0
      %v6345 = vadd.f32 0.0, %v6344
      %v6346 = vpop.f32.mrf.mxu0
      %v6347 = vadd.f32 0.0, %v6346
      %6348 = vmatprep.mubr.bf16.mxu0 %v5769
      %6349 = vmatmul.mubr.bf16.gmra.mxu0 %v5761
      %v6350 = vpop.f32.mrf.mxu0
      %v6351 = vadd.f32 0.0, %v6350
      %v6352 = vpop.f32.mrf.mxu0
      %v6353 = vadd.f32 0.0, %v6352
      %v6354 = vpop.f32.mrf.mxu0
      %v6355 = vadd.f32 0.0, %v6354
      %v6356 = vpop.f32.mrf.mxu0
      %v6357 = vadd.f32 0.0, %v6356
      %6358 = vmatprep.mubr.bf16.mxu0 %v5785
      %6359 = vmatmul.mubr.bf16.gmra.mxu0 %v5777
      %v6360 = vpop.f32.mrf.mxu0
      %v6361 = vadd.f32 0.0, %v6360
      %v6362 = vpop.f32.mrf.mxu0
      %v6363 = vadd.f32 0.0, %v6362
      %v6364 = vpop.f32.mrf.mxu0
      %v6365 = vadd.f32 0.0, %v6364
      %v6366 = vpop.f32.mrf.mxu0
      %v6367 = vadd.f32 0.0, %v6366
      %6368 = vmatprep.mubr.bf16.mxu0 %v5801
      %6369 = vmatmul.mubr.bf16.gmra.mxu0 %v5793
      %v6370 = vpop.f32.mrf.mxu0
      %v6371 = vadd.f32 0.0, %v6370
      %v6372 = vpop.f32.mrf.mxu0
      %v6373 = vadd.f32 0.0, %v6372
      %v6374 = vpop.f32.mrf.mxu0
      %v6375 = vadd.f32 0.0, %v6374
      %v6376 = vpop.f32.mrf.mxu0
      %v6377 = vadd.f32 0.0, %v6376
      %6378 = vmatprep.mubr.bf16.mxu0 %v5817
      %6379 = vmatmul.mubr.bf16.gmra.mxu0 %v5809
      %v6380 = vpop.f32.mrf.mxu0
      %v6381 = vadd.f32 0.0, %v6380
      %v6382 = vpop.f32.mrf.mxu0
      %v6383 = vadd.f32 0.0, %v6382
      %v6384 = vpop.f32.mrf.mxu0
      %v6385 = vadd.f32 0.0, %v6384
      %v6386 = vpop.f32.mrf.mxu0
      %v6387 = vadd.f32 0.0, %v6386
      %6388 = vmatprep.mubr.bf16.mxu0 %v5833
      %6389 = vmatmul.mubr.bf16.gmra.mxu0 %v5825
      %v6390 = vpop.f32.mrf.mxu0
      %v6391 = vadd.f32 0.0, %v6390
      %v6392 = vpop.f32.mrf.mxu0
      %v6393 = vadd.f32 0.0, %v6392
      %v6394 = vpop.f32.mrf.mxu0
      %v6395 = vadd.f32 0.0, %v6394
      %v6396 = vpop.f32.mrf.mxu0
      %v6397 = vadd.f32 0.0, %v6396
      %6398 = vmatprep.mubr.bf16.mxu0 %v5849
      %6399 = vmatmul.mubr.bf16.gmra.mxu0 %v5841
      %v6400 = vpop.f32.mrf.mxu0
      %v6401 = vadd.f32 0.0, %v6400
      %v6402 = vpop.f32.mrf.mxu0
      %v6403 = vadd.f32 0.0, %v6402
      %v6404 = vpop.f32.mrf.mxu0
      %v6405 = vadd.f32 0.0, %v6404
      %v6406 = vpop.f32.mrf.mxu0
      %v6407 = vadd.f32 0.0, %v6406
      %6408 = vmatprep.mubr.bf16.mxu0 %v5865
      %6409 = vmatmul.mubr.bf16.gmra.mxu0 %v5857
      %v6410 = vpop.f32.mrf.mxu0
      %v6411 = vadd.f32 0.0, %v6410
      %v6412 = vpop.f32.mrf.mxu0
      %v6413 = vadd.f32 0.0, %v6412
      %v6414 = vpop.f32.mrf.mxu0
      %v6415 = vadd.f32 0.0, %v6414
      %v6416 = vpop.f32.mrf.mxu0
      %v6417 = vadd.f32 0.0, %v6416
      %6418 = vmatprep.mubr.bf16.mxu0 %v5881
      %6419 = vmatmul.mubr.bf16.gmra.mxu0 %v5873
      %v6420 = vpop.f32.mrf.mxu0
      %v6421 = vadd.f32 0.0, %v6420
      %v6422 = vpop.f32.mrf.mxu0
      %v6423 = vadd.f32 0.0, %v6422
      %v6424 = vpop.f32.mrf.mxu0
      %v6425 = vadd.f32 0.0, %v6424
      %v6426 = vpop.f32.mrf.mxu0
      %v6427 = vadd.f32 0.0, %v6426
      %6428 = vmatprep.mubr.bf16.mxu0 %v5897
      %6429 = vmatmul.mubr.bf16.gmra.mxu0 %v5889
      %v6430 = vpop.f32.mrf.mxu0
      %v6431 = vadd.f32 0.0, %v6430
      %v6432 = vpop.f32.mrf.mxu0
      %v6433 = vadd.f32 0.0, %v6432
      %v6434 = vpop.f32.mrf.mxu0
      %v6435 = vadd.f32 0.0, %v6434
      %v6436 = vpop.f32.mrf.mxu0
      %v6437 = vadd.f32 0.0, %v6436
      %6438 = vmatprep.mubr.bf16.mxu0 %v5913
      %6439 = vmatmul.mubr.bf16.gmra.mxu0 %v5905
      %v6440 = vpop.f32.mrf.mxu0
      %v6441 = vadd.f32 0.0, %v6440
      %v6442 = vpop.f32.mrf.mxu0
      %v6443 = vadd.f32 0.0, %v6442
      %v6444 = vpop.f32.mrf.mxu0
      %v6445 = vadd.f32 0.0, %v6444
      %v6446 = vpop.f32.mrf.mxu0
      %v6447 = vadd.f32 0.0, %v6446
      %6448 = vmatprep.mubr.bf16.mxu0 %v5929
      %6449 = vmatmul.mubr.bf16.gmra.mxu0 %v5921
      %v6450 = vpop.f32.mrf.mxu0
      %v6451 = vadd.f32 0.0, %v6450
      %v6452 = vpop.f32.mrf.mxu0
      %v6453 = vadd.f32 0.0, %v6452
      %v6454 = vpop.f32.mrf.mxu0
      %v6455 = vadd.f32 0.0, %v6454
      %v6456 = vpop.f32.mrf.mxu0
      %v6457 = vadd.f32 0.0, %v6456
      %6458 = vmatprep.mubr.bf16.mxu0 %v5945
      %6459 = vmatmul.mubr.bf16.gmra.mxu0 %v5937
      %v6460 = vpop.f32.mrf.mxu0
      %v6461 = vadd.f32 0.0, %v6460
      %v6462 = vpop.f32.mrf.mxu0
      %v6463 = vadd.f32 0.0, %v6462
      %v6464 = vpop.f32.mrf.mxu0
      %v6465 = vadd.f32 0.0, %v6464
      %v6466 = vpop.f32.mrf.mxu0
      %v6467 = vadd.f32 0.0, %v6466
      %6468 = vmatprep.mubr.bf16.mxu0 %v5961
      %6469 = vmatmul.mubr.bf16.gmra.mxu0 %v5953
      %v6470 = vpop.f32.mrf.mxu0
      %v6471 = vadd.f32 0.0, %v6470
      %v6472 = vpop.f32.mrf.mxu0
      %v6473 = vadd.f32 0.0, %v6472
      %v6474 = vpop.f32.mrf.mxu0
      %v6475 = vadd.f32 0.0, %v6474
      %v6476 = vpop.f32.mrf.mxu0
      %v6477 = vadd.f32 0.0, %v6476
      %6478 = vmatprep.mubr.bf16.mxu0 %v5977
      %6479 = vmatmul.mubr.bf16.gmra.mxu0 %v5969
      %v6480 = vpop.f32.mrf.mxu0
      %v6481 = vadd.f32 0.0, %v6480
      %v6482 = vpop.f32.mrf.mxu0
      %v6483 = vadd.f32 0.0, %v6482
      %v6484 = vpop.f32.mrf.mxu0
      %v6485 = vadd.f32 0.0, %v6484
      %v6486 = vpop.f32.mrf.mxu0
      %v6487 = vadd.f32 0.0, %v6486
      %6488 = vmatprep.mubr.bf16.mxu0 %v5993
      %6489 = vmatmul.mubr.bf16.gmra.mxu0 %v5985
      %v6490 = vpop.f32.mrf.mxu0
      %v6491 = vadd.f32 0.0, %v6490
      %v6492 = vpop.f32.mrf.mxu0
      %v6493 = vadd.f32 0.0, %v6492
      %v6494 = vpop.f32.mrf.mxu0
      %v6495 = vadd.f32 0.0, %v6494
      %v6496 = vpop.f32.mrf.mxu0
      %v6497 = vadd.f32 0.0, %v6496
      %6498 = vmatprep.mubr.bf16.mxu0 %v6009
      %6499 = vmatmul.mubr.bf16.gmra.mxu0 %v6001
      %v6500 = vpop.f32.mrf.mxu0
      %v6501 = vadd.f32 0.0, %v6500
      %v6502 = vpop.f32.mrf.mxu0
      %v6503 = vadd.f32 0.0, %v6502
      %v6504 = vpop.f32.mrf.mxu0
      %v6505 = vadd.f32 0.0, %v6504
      %v6506 = vpop.f32.mrf.mxu0
      %v6507 = vadd.f32 0.0, %v6506
      %6508 = vmatprep.mubr.bf16.mxu0 %v6025
      %6509 = vmatmul.mubr.bf16.gmra.mxu0 %v6017
      %v6510 = vpop.f32.mrf.mxu0
      %v6511 = vadd.f32 0.0, %v6510
      %v6512 = vpop.f32.mrf.mxu0
      %v6513 = vadd.f32 0.0, %v6512
      %v6514 = vpop.f32.mrf.mxu0
      %v6515 = vadd.f32 0.0, %v6514
      %v6516 = vpop.f32.mrf.mxu0
      %v6517 = vadd.f32 0.0, %v6516
      %6518 = vmatprep.mubr.bf16.mxu0 %v6041
      %6519 = vmatmul.mubr.bf16.gmra.mxu0 %v6033
      %v6520 = vpop.f32.mrf.mxu0
      %v6521 = vadd.f32 0.0, %v6520
      %v6522 = vpop.f32.mrf.mxu0
      %v6523 = vadd.f32 0.0, %v6522
      %v6524 = vpop.f32.mrf.mxu0
      %v6525 = vadd.f32 0.0, %v6524
      %v6526 = vpop.f32.mrf.mxu0
      %v6527 = vadd.f32 0.0, %v6526
      %6528 = vmatprep.mubr.bf16.mxu0 %v6057
      %6529 = vmatmul.mubr.bf16.gmra.mxu0 %v6049
      %v6530 = vpop.f32.mrf.mxu0
      %v6531 = vadd.f32 0.0, %v6530
      %v6532 = vpop.f32.mrf.mxu0
      %v6533 = vadd.f32 0.0, %v6532
      %v6534 = vpop.f32.mrf.mxu0
      %v6535 = vadd.f32 0.0, %v6534
      %v6536 = vpop.f32.mrf.mxu0
      %v6537 = vadd.f32 0.0, %v6536
      %6538 = vdwg.mxu0
      %v6539 = vadd.f32 %v5291, %v6301
      %v6540 = vadd.f32 %v5292, %v6303
      %v6541 = vadd.f32 %v5293, %v6305
      %v6542 = vadd.f32 %v5294, %v6307
      %v6543 = vadd.f32 %v5295, %v6311
      %v6544 = vadd.f32 %v5296, %v6313
      %v6545 = vadd.f32 %v5297, %v6315
      %v6546 = vadd.f32 %v5298, %v6317
      %v6547 = vadd.f32 %v5299, %v6321
      %v6548 = vadd.f32 %v5300, %v6323
      %v6549 = vadd.f32 %v5301, %v6325
      %v6550 = vadd.f32 %v5302, %v6327
      %v6551 = vadd.f32 %v5303, %v6331
      %v6552 = vadd.f32 %v5304, %v6333
      %v6553 = vadd.f32 %v5305, %v6335
      %v6554 = vadd.f32 %v5306, %v6337
      %v6555 = vadd.f32 %v5307, %v6341
      %v6556 = vadd.f32 %v5308, %v6343
      %v6557 = vadd.f32 %v5309, %v6345
      %v6558 = vadd.f32 %v5310, %v6347
      %v6559 = vadd.f32 %v5311, %v6351
      %v6560 = vadd.f32 %v5312, %v6353
      %v6561 = vadd.f32 %v5313, %v6355
      %v6562 = vadd.f32 %v5314, %v6357
      %v6563 = vadd.f32 %v5315, %v6361
      %v6564 = vadd.f32 %v5316, %v6363
      %v6565 = vadd.f32 %v5317, %v6365
      %v6566 = vadd.f32 %v5318, %v6367
      %v6567 = vadd.f32 %v5319, %v6371
      %v6568 = vadd.f32 %v5320, %v6373
      %v6569 = vadd.f32 %v5321, %v6375
      %v6570 = vadd.f32 %v5322, %v6377
      %v6571 = vadd.f32 %v5323, %v6381
      %v6572 = vadd.f32 %v5324, %v6383
      %v6573 = vadd.f32 %v5325, %v6385
      %v6574 = vadd.f32 %v5326, %v6387
      %v6575 = vadd.f32 %v5327, %v6391
      %v6576 = vadd.f32 %v5328, %v6393
      %v6577 = vadd.f32 %v5329, %v6395
      %v6578 = vadd.f32 %v5330, %v6397
      %v6579 = vadd.f32 %v5331, %v6401
      %v6580 = vadd.f32 %v5332, %v6403
      %v6581 = vadd.f32 %v5333, %v6405
      %v6582 = vadd.f32 %v5334, %v6407
      %v6583 = vadd.f32 %v5335, %v6411
      %v6584 = vadd.f32 %v5336, %v6413
      %v6585 = vadd.f32 %v5337, %v6415
      %v6586 = vadd.f32 %v5338, %v6417
      %v6587 = vadd.f32 %v5339, %v6421
      %v6588 = vadd.f32 %v5340, %v6423
      %v6589 = vadd.f32 %v5341, %v6425
      %v6590 = vadd.f32 %v5342, %v6427
      %v6591 = vadd.f32 %v5343, %v6431
      %v6592 = vadd.f32 %v5344, %v6433
      %v6593 = vadd.f32 %v5345, %v6435
      %v6594 = vadd.f32 %v5346, %v6437
      %v6595 = vadd.f32 %v5347, %v6441
      %v6596 = vadd.f32 %v5348, %v6443
      %v6597 = vadd.f32 %v5349, %v6445
      %v6598 = vadd.f32 %v5350, %v6447
      %v6599 = vadd.f32 %v5351, %v6451
      %v6600 = vadd.f32 %v5352, %v6453
      %v6601 = vadd.f32 %v5353, %v6455
      %v6602 = vadd.f32 %v5354, %v6457
      %v6603 = vadd.f32 %v5355, %v6461
      %v6604 = vadd.f32 %v5356, %v6463
      %v6605 = vadd.f32 %v5357, %v6465
      %v6606 = vadd.f32 %v5358, %v6467
      %v6607 = vadd.f32 %v5359, %v6471
      %v6608 = vadd.f32 %v5360, %v6473
      %v6609 = vadd.f32 %v5361, %v6475
      %v6610 = vadd.f32 %v5362, %v6477
      %v6611 = vadd.f32 %v5363, %v6481
      %v6612 = vadd.f32 %v5364, %v6483
      %v6613 = vadd.f32 %v5365, %v6485
      %v6614 = vadd.f32 %v5366, %v6487
      %v6615 = vadd.f32 %v5367, %v6491
      %v6616 = vadd.f32 %v5368, %v6493
      %v6617 = vadd.f32 %v5369, %v6495
      %v6618 = vadd.f32 %v5370, %v6497
      %v6619 = vadd.f32 %v5371, %v6501
      %v6620 = vadd.f32 %v5372, %v6503
      %v6621 = vadd.f32 %v5373, %v6505
      %v6622 = vadd.f32 %v5374, %v6507
      %v6623 = vadd.f32 %v5375, %v6511
      %v6624 = vadd.f32 %v5376, %v6513
      %v6625 = vadd.f32 %v5377, %v6515
      %v6626 = vadd.f32 %v5378, %v6517
      %v6627 = vadd.f32 %v5379, %v6521
      %v6628 = vadd.f32 %v5380, %v6523
      %v6629 = vadd.f32 %v5381, %v6525
      %v6630 = vadd.f32 %v5382, %v6527
      %v6631 = vadd.f32 %v5383, %v6531
      %v6632 = vadd.f32 %v5384, %v6533
      %v6633 = vadd.f32 %v5385, %v6535
      %v6634 = vadd.f32 %v5386, %v6537
      %v6635 = vld [vmem:[#allocation2 + $0x18] sm:$0xee]
      %s6636 = scalar_lea.vmem %s3, 1280
      %v6637 = vld [vmem:[%s6636] sm:$0xff]
      %v6638 = vld [vmem:[%s6636 + $0x8] sm:$0xff]
      %v6639 = vld [vmem:[%s6636 + $0x10] sm:$0xff]
      %v6640 = vld [vmem:[%s6636 + $0x18] sm:$0xff]
      %v6641 = vld [vmem:[%s6636 + $0x20] sm:$0xff]
      %v6642 = vld [vmem:[%s6636 + $0x28] sm:$0xff]
      %v6643 = vld [vmem:[%s6636 + $0x30] sm:$0xff]
      %v6644 = vld [vmem:[%s6636 + $0x38] sm:$0xff]
      %v6645 = vld [vmem:[%s6636 + $0x40] sm:$0xff]
      %v6646 = vld [vmem:[%s6636 + $0x48] sm:$0xff]
      %v6647 = vld [vmem:[%s6636 + $0x50] sm:$0xff]
      %v6648 = vld [vmem:[%s6636 + $0x58] sm:$0xff]
      %v6649 = vld [vmem:[%s6636 + $0x60] sm:$0xff]
      %v6650 = vld [vmem:[%s6636 + $0x68] sm:$0xff]
      %v6651 = vld [vmem:[%s6636 + $0x70] sm:$0xff]
      %v6652 = vld [vmem:[%s6636 + $0x78] sm:$0xff]
      %v6653 = vld [vmem:[%s6636 + $0x80] sm:$0xff]
      %v6654 = vld [vmem:[%s6636 + $0x88] sm:$0xff]
      %v6655 = vld [vmem:[%s6636 + $0x90] sm:$0xff]
      %v6656 = vld [vmem:[%s6636 + $0x98] sm:$0xff]
      %v6657 = vld [vmem:[%s6636 + $0xa0] sm:$0xff]
      %v6658 = vld [vmem:[%s6636 + $0xa8] sm:$0xff]
      %v6659 = vld [vmem:[%s6636 + $0xb0] sm:$0xff]
      %v6660 = vld [vmem:[%s6636 + $0xb8] sm:$0xff]
      %v6661 = vld [vmem:[%s6636 + $0xc0] sm:$0xff]
      %v6662 = vld [vmem:[%s6636 + $0xc8] sm:$0xff]
      %v6663 = vld [vmem:[%s6636 + $0xd0] sm:$0xff]
      %v6664 = vld [vmem:[%s6636 + $0xd8] sm:$0xff]
      %v6665 = vld [vmem:[%s6636 + $0xe0] sm:$0xff]
      %v6666 = vld [vmem:[%s6636 + $0xe8] sm:$0xff]
      %v6667 = vld [vmem:[%s6636 + $0xf0] sm:$0xff]
      %v6668 = vld [vmem:[%s6636 + $0xf8] sm:$0xff]
      %v6670 = vunpack.c.l.b16 %v6635
      %v6671 = vunpack.c.h.b16 %v6635
      %v6672 = vpack.c.b16 %v5520, %v6670
      %v6673 = vpack.c.b16 %v5521, %v6671
      %v6674 = vrot.slane %v6672, 1
      %v6675 = vrot.slane %v5618, 1
      %v6676 = vsel %vm3861, %v6674, %v6675
      %v6677 = vrot.slane %v6673, 1
      %v6678 = vrot.slane %v5619, 1
      %v6679 = vsel %vm3861, %v6677, %v6678
      %v6680 = vrot.slane %v5620, 1
      %v6681 = vsel %vm3861, %v6675, %v6680
      %v6682 = vrot.slane %v5621, 1
      %v6683 = vsel %vm3861, %v6678, %v6682
      %v6684 = vrot.slane %v5622, 1
      %v6685 = vsel %vm3861, %v6680, %v6684
      %v6686 = vrot.slane %v5623, 1
      %v6687 = vsel %vm3861, %v6682, %v6686
      %v6688 = vrot.slane %v5624, 1
      %v6689 = vsel %vm3861, %v6684, %v6688
      %v6690 = vrot.slane %v5625, 1
      %v6691 = vsel %vm3861, %v6686, %v6690
      %v6692 = vrot.slane %v5626, 1
      %v6693 = vsel %vm3861, %v6688, %v6692
      %v6694 = vrot.slane %v5627, 1
      %v6695 = vsel %vm3861, %v6690, %v6694
      %v6696 = vrot.slane %v5628, 1
      %v6697 = vsel %vm3861, %v6692, %v6696
      %v6698 = vrot.slane %v5629, 1
      %v6699 = vsel %vm3861, %v6694, %v6698
      %v6700 = vrot.slane %v5630, 1
      %v6701 = vsel %vm3861, %v6696, %v6700
      %v6702 = vrot.slane %v5631, 1
      %v6703 = vsel %vm3861, %v6698, %v6702
      %v6704 = vrot.slane %v5632, 1
      %v6705 = vsel %vm3861, %v6700, %v6704
      %v6706 = vrot.slane %v5633, 1
      %v6707 = vsel %vm3861, %v6702, %v6706
      %v6708 = vrot.slane %v5634, 1
      %v6709 = vsel %vm3861, %v6704, %v6708
      %v6710 = vrot.slane %v5635, 1
      %v6711 = vsel %vm3861, %v6706, %v6710
      %v6712 = vrot.slane %v5636, 1
      %v6713 = vsel %vm3861, %v6708, %v6712
      %v6714 = vrot.slane %v5637, 1
      %v6715 = vsel %vm3861, %v6710, %v6714
      %v6716 = vrot.slane %v5638, 1
      %v6717 = vsel %vm3861, %v6712, %v6716
      %v6718 = vrot.slane %v5639, 1
      %v6719 = vsel %vm3861, %v6714, %v6718
      %v6720 = vrot.slane %v5640, 1
      %v6721 = vsel %vm3861, %v6716, %v6720
      %v6722 = vrot.slane %v5641, 1
      %v6723 = vsel %vm3861, %v6718, %v6722
      %v6724 = vrot.slane %v5642, 1
      %v6725 = vsel %vm3861, %v6720, %v6724
      %v6726 = vrot.slane %v5643, 1
      %v6727 = vsel %vm3861, %v6722, %v6726
      %v6728 = vrot.slane %v5644, 1
      %v6729 = vsel %vm3861, %v6724, %v6728
      %v6730 = vrot.slane %v5645, 1
      %v6731 = vsel %vm3861, %v6726, %v6730
      %v6732 = vrot.slane %v5646, 1
      %v6733 = vsel %vm3861, %v6728, %v6732
      %v6734 = vrot.slane %v5647, 1
      %v6735 = vsel %vm3861, %v6730, %v6734
      %v6736 = vrot.slane %v5648, 1
      %v6737 = vsel %vm3861, %v6732, %v6736
      %v6738 = vrot.slane %v5649, 1
      %v6739 = vsel %vm3861, %v6734, %v6738
      %v6740 = vrot.slane %v5650, 1
      %v6741 = vsel %vm3861, %v6736, %v6740
      %v6742 = vrot.slane %v5651, 1
      %v6743 = vsel %vm3861, %v6738, %v6742
      %v6744 = vrot.slane %v5652, 1
      %v6745 = vsel %vm3861, %v6740, %v6744
      %v6746 = vrot.slane %v5653, 1
      %v6747 = vsel %vm3861, %v6742, %v6746
      %v6748 = vrot.slane %v5654, 1
      %v6749 = vsel %vm3861, %v6744, %v6748
      %v6750 = vrot.slane %v5655, 1
      %v6751 = vsel %vm3861, %v6746, %v6750
      %v6752 = vrot.slane %v5656, 1
      %v6753 = vsel %vm3861, %v6748, %v6752
      %v6754 = vrot.slane %v5657, 1
      %v6755 = vsel %vm3861, %v6750, %v6754
      %v6756 = vrot.slane %v5658, 1
      %v6757 = vsel %vm3861, %v6752, %v6756
      %v6758 = vrot.slane %v5659, 1
      %v6759 = vsel %vm3861, %v6754, %v6758
      %v6760 = vrot.slane %v5660, 1
      %v6761 = vsel %vm3861, %v6756, %v6760
      %v6762 = vrot.slane %v5661, 1
      %v6763 = vsel %vm3861, %v6758, %v6762
      %v6764 = vrot.slane %v5662, 1
      %v6765 = vsel %vm3861, %v6760, %v6764
      %v6766 = vrot.slane %v5663, 1
      %v6767 = vsel %vm3861, %v6762, %v6766
      %v6768 = vrot.slane %v5664, 1
      %v6769 = vsel %vm3861, %v6764, %v6768
      %v6770 = vrot.slane %v5665, 1
      %v6771 = vsel %vm3861, %v6766, %v6770
      %v6852 = vunpack.c.l.b16 %v6637
      %v6853 = vunpack.c.h.b16 %v6637
      %v6854 = vunpack.c.l.b16 %v6638
      %v6855 = vunpack.c.h.b16 %v6638
      %v6856 = vunpack.c.l.b16 %v6639
      %v6857 = vunpack.c.h.b16 %v6639
      %v6858 = vunpack.c.l.b16 %v6640
      %v6859 = vunpack.c.h.b16 %v6640
      %v6860 = vunpack.c.l.b16 %v6641
      %v6861 = vunpack.c.h.b16 %v6641
      %v6862 = vunpack.c.l.b16 %v6642
      %v6863 = vunpack.c.h.b16 %v6642
      %v6864 = vunpack.c.l.b16 %v6643
      %v6865 = vunpack.c.h.b16 %v6643
      %v6866 = vunpack.c.l.b16 %v6644
      %v6867 = vunpack.c.h.b16 %v6644
      %v6868 = vunpack.c.l.b16 %v6645
      %v6869 = vunpack.c.h.b16 %v6645
      %v6870 = vunpack.c.l.b16 %v6646
      %v6871 = vunpack.c.h.b16 %v6646
      %v6872 = vunpack.c.l.b16 %v6647
      %v6873 = vunpack.c.h.b16 %v6647
      %v6874 = vunpack.c.l.b16 %v6648
      %v6875 = vunpack.c.h.b16 %v6648
      %v6876 = vunpack.c.l.b16 %v6649
      %v6877 = vunpack.c.h.b16 %v6649
      %v6878 = vunpack.c.l.b16 %v6650
      %v6879 = vunpack.c.h.b16 %v6650
      %v6880 = vunpack.c.l.b16 %v6651
      %v6881 = vunpack.c.h.b16 %v6651
      %v6882 = vunpack.c.l.b16 %v6652
      %v6883 = vunpack.c.h.b16 %v6652
      %v6884 = vunpack.c.l.b16 %v6653
      %v6885 = vunpack.c.h.b16 %v6653
      %v6886 = vunpack.c.l.b16 %v6654
      %v6887 = vunpack.c.h.b16 %v6654
      %v6888 = vunpack.c.l.b16 %v6655
      %v6889 = vunpack.c.h.b16 %v6655
      %v6890 = vunpack.c.l.b16 %v6656
      %v6891 = vunpack.c.h.b16 %v6656
      %v6892 = vunpack.c.l.b16 %v6657
      %v6893 = vunpack.c.h.b16 %v6657
      %v6894 = vunpack.c.l.b16 %v6658
      %v6895 = vunpack.c.h.b16 %v6658
      %v6896 = vunpack.c.l.b16 %v6659
      %v6897 = vunpack.c.h.b16 %v6659
      %v6898 = vunpack.c.l.b16 %v6660
      %v6899 = vunpack.c.h.b16 %v6660
      %v6900 = vunpack.c.l.b16 %v6661
      %v6901 = vunpack.c.h.b16 %v6661
      %v6902 = vunpack.c.l.b16 %v6662
      %v6903 = vunpack.c.h.b16 %v6662
      %v6904 = vunpack.c.l.b16 %v6663
      %v6905 = vunpack.c.h.b16 %v6663
      %v6906 = vunpack.c.l.b16 %v6664
      %v6907 = vunpack.c.h.b16 %v6664
      %v6908 = vunpack.c.l.b16 %v6665
      %v6909 = vunpack.c.h.b16 %v6665
      %v6910 = vunpack.c.l.b16 %v6666
      %v6911 = vunpack.c.h.b16 %v6666
      %v6912 = vunpack.c.l.b16 %v6667
      %v6913 = vunpack.c.h.b16 %v6667
      %v6914 = vunpack.c.l.b16 %v6668
      %v6915 = vunpack.c.h.b16 %v6668
      %v6916 = vpack.c.b16 %v6854, %v6852
      %v6917 = vpack.c.b16 %v6855, %v6853
      %v6918 = vpack.c.b16 %v6858, %v6856
      %v6919 = vpack.c.b16 %v6859, %v6857
      %v6920 = vpack.c.b16 %v6862, %v6860
      %v6921 = vpack.c.b16 %v6863, %v6861
      %v6922 = vpack.c.b16 %v6866, %v6864
      %v6923 = vpack.c.b16 %v6867, %v6865
      %v6924 = vpack.c.b16 %v6870, %v6868
      %v6925 = vpack.c.b16 %v6871, %v6869
      %v6926 = vpack.c.b16 %v6874, %v6872
      %v6927 = vpack.c.b16 %v6875, %v6873
      %v6928 = vpack.c.b16 %v6878, %v6876
      %v6929 = vpack.c.b16 %v6879, %v6877
      %v6930 = vpack.c.b16 %v6882, %v6880
      %v6931 = vpack.c.b16 %v6883, %v6881
      %v6932 = vpack.c.b16 %v6886, %v6884
      %v6933 = vpack.c.b16 %v6887, %v6885
      %v6934 = vpack.c.b16 %v6890, %v6888
      %v6935 = vpack.c.b16 %v6891, %v6889
      %v6936 = vpack.c.b16 %v6894, %v6892
      %v6937 = vpack.c.b16 %v6895, %v6893
      %v6938 = vpack.c.b16 %v6898, %v6896
      %v6939 = vpack.c.b16 %v6899, %v6897
      %v6940 = vpack.c.b16 %v6902, %v6900
      %v6941 = vpack.c.b16 %v6903, %v6901
      %v6942 = vpack.c.b16 %v6906, %v6904
      %v6943 = vpack.c.b16 %v6907, %v6905
      %v6944 = vpack.c.b16 %v6910, %v6908
      %v6945 = vpack.c.b16 %v6911, %v6909
      %v6946 = vpack.c.b16 %v6914, %v6912
      %v6947 = vpack.c.b16 %v6915, %v6913
      %6980 = vmatprep.subr.bf16.mxu0 %v6931
      %6981 = vmatpush1.bf16.msra.mxu0 %v6930
      %6982 = vmatprep.subr.bf16.mxu0 %v6929
      %6983 = vmatpush1.bf16.msra.mxu0 %v6928
      %6984 = vmatprep.subr.bf16.mxu0 %v6927
      %6985 = vmatpush1.bf16.msra.mxu0 %v6926
      %6986 = vmatprep.subr.bf16.mxu0 %v6925
      %6987 = vmatpush1.bf16.msra.mxu0 %v6924
      %6988 = vmatprep.subr.bf16.mxu0 %v6923
      %6989 = vmatpush1.bf16.msra.mxu0 %v6922
      %6990 = vmatprep.subr.bf16.mxu0 %v6921
      %6991 = vmatpush1.bf16.msra.mxu0 %v6920
      %6992 = vmatprep.subr.bf16.mxu0 %v6919
      %6993 = vmatpush1.bf16.msra.mxu0 %v6918
      %6994 = vmatprep.subr.bf16.mxu0 %v6917
      %6995 = vmatpush1.bf16.msra.mxu0 %v6916
      %6996 = vmatprep.subr.bf16.mxu0 %v6947
      %6997 = vmatpush2.bf16.msra.mxu0 %v6946
      %6998 = vmatprep.subr.bf16.mxu0 %v6945
      %6999 = vmatpush2.bf16.msra.mxu0 %v6944
      %7000 = vmatprep.subr.bf16.mxu0 %v6943
      %7001 = vmatpush2.bf16.msra.mxu0 %v6942
      %7002 = vmatprep.subr.bf16.mxu0 %v6941
      %7003 = vmatpush2.bf16.msra.mxu0 %v6940
      %7004 = vmatprep.subr.bf16.mxu0 %v6939
      %7005 = vmatpush2.bf16.msra.mxu0 %v6938
      %7006 = vmatprep.subr.bf16.mxu0 %v6937
      %7007 = vmatpush2.bf16.msra.mxu0 %v6936
      %7008 = vmatprep.subr.bf16.mxu0 %v6935
      %7009 = vmatpush2.bf16.msra.mxu0 %v6934
      %7010 = vmatprep.subr.bf16.mxu0 %v6933
      %7011 = vmatpush2.bf16.msra.mxu0 %v6932
      %7012 = vmatprep.mubr.bf16.mxu0 %v6679
      %7013 = vmatmul.mubr.bf16.gmra.mxu0 %v6676
      %v7014 = vpop.f32.mrf.mxu0
      %v7015 = vadd.f32 0.0, %v7014
      %v7016 = vpop.f32.mrf.mxu0
      %v7017 = vadd.f32 0.0, %v7016
      %v7018 = vpop.f32.mrf.mxu0
      %v7019 = vadd.f32 0.0, %v7018
      %v7020 = vpop.f32.mrf.mxu0
      %v7021 = vadd.f32 0.0, %v7020
      %7022 = vmatprep.mubr.bf16.mxu0 %v6683
      %7023 = vmatmul.mubr.bf16.gmra.mxu0 %v6681
      %v7024 = vpop.f32.mrf.mxu0
      %v7025 = vadd.f32 0.0, %v7024
      %v7026 = vpop.f32.mrf.mxu0
      %v7027 = vadd.f32 0.0, %v7026
      %v7028 = vpop.f32.mrf.mxu0
      %v7029 = vadd.f32 0.0, %v7028
      %v7030 = vpop.f32.mrf.mxu0
      %v7031 = vadd.f32 0.0, %v7030
      %7032 = vmatprep.mubr.bf16.mxu0 %v6687
      %7033 = vmatmul.mubr.bf16.gmra.mxu0 %v6685
      %v7034 = vpop.f32.mrf.mxu0
      %v7035 = vadd.f32 0.0, %v7034
      %v7036 = vpop.f32.mrf.mxu0
      %v7037 = vadd.f32 0.0, %v7036
      %v7038 = vpop.f32.mrf.mxu0
      %v7039 = vadd.f32 0.0, %v7038
      %v7040 = vpop.f32.mrf.mxu0
      %v7041 = vadd.f32 0.0, %v7040
      %7042 = vmatprep.mubr.bf16.mxu0 %v6691
      %7043 = vmatmul.mubr.bf16.gmra.mxu0 %v6689
      %v7044 = vpop.f32.mrf.mxu0
      %v7045 = vadd.f32 0.0, %v7044
      %v7046 = vpop.f32.mrf.mxu0
      %v7047 = vadd.f32 0.0, %v7046
      %v7048 = vpop.f32.mrf.mxu0
      %v7049 = vadd.f32 0.0, %v7048
      %v7050 = vpop.f32.mrf.mxu0
      %v7051 = vadd.f32 0.0, %v7050
      %7052 = vmatprep.mubr.bf16.mxu0 %v6695
      %7053 = vmatmul.mubr.bf16.gmra.mxu0 %v6693
      %v7054 = vpop.f32.mrf.mxu0
      %v7055 = vadd.f32 0.0, %v7054
      %v7056 = vpop.f32.mrf.mxu0
      %v7057 = vadd.f32 0.0, %v7056
      %v7058 = vpop.f32.mrf.mxu0
      %v7059 = vadd.f32 0.0, %v7058
      %v7060 = vpop.f32.mrf.mxu0
      %v7061 = vadd.f32 0.0, %v7060
      %7062 = vmatprep.mubr.bf16.mxu0 %v6699
      %7063 = vmatmul.mubr.bf16.gmra.mxu0 %v6697
      %v7064 = vpop.f32.mrf.mxu0
      %v7065 = vadd.f32 0.0, %v7064
      %v7066 = vpop.f32.mrf.mxu0
      %v7067 = vadd.f32 0.0, %v7066
      %v7068 = vpop.f32.mrf.mxu0
      %v7069 = vadd.f32 0.0, %v7068
      %v7070 = vpop.f32.mrf.mxu0
      %v7071 = vadd.f32 0.0, %v7070
      %7072 = vmatprep.mubr.bf16.mxu0 %v6703
      %7073 = vmatmul.mubr.bf16.gmra.mxu0 %v6701
      %v7074 = vpop.f32.mrf.mxu0
      %v7075 = vadd.f32 0.0, %v7074
      %v7076 = vpop.f32.mrf.mxu0
      %v7077 = vadd.f32 0.0, %v7076
      %v7078 = vpop.f32.mrf.mxu0
      %v7079 = vadd.f32 0.0, %v7078
      %v7080 = vpop.f32.mrf.mxu0
      %v7081 = vadd.f32 0.0, %v7080
      %7082 = vmatprep.mubr.bf16.mxu0 %v6707
      %7083 = vmatmul.mubr.bf16.gmra.mxu0 %v6705
      %v7084 = vpop.f32.mrf.mxu0
      %v7085 = vadd.f32 0.0, %v7084
      %v7086 = vpop.f32.mrf.mxu0
      %v7087 = vadd.f32 0.0, %v7086
      %v7088 = vpop.f32.mrf.mxu0
      %v7089 = vadd.f32 0.0, %v7088
      %v7090 = vpop.f32.mrf.mxu0
      %v7091 = vadd.f32 0.0, %v7090
      %7092 = vmatprep.mubr.bf16.mxu0 %v6711
      %7093 = vmatmul.mubr.bf16.gmra.mxu0 %v6709
      %v7094 = vpop.f32.mrf.mxu0
      %v7095 = vadd.f32 0.0, %v7094
      %v7096 = vpop.f32.mrf.mxu0
      %v7097 = vadd.f32 0.0, %v7096
      %v7098 = vpop.f32.mrf.mxu0
      %v7099 = vadd.f32 0.0, %v7098
      %v7100 = vpop.f32.mrf.mxu0
      %v7101 = vadd.f32 0.0, %v7100
      %7102 = vmatprep.mubr.bf16.mxu0 %v6715
      %7103 = vmatmul.mubr.bf16.gmra.mxu0 %v6713
      %v7104 = vpop.f32.mrf.mxu0
      %v7105 = vadd.f32 0.0, %v7104
      %v7106 = vpop.f32.mrf.mxu0
      %v7107 = vadd.f32 0.0, %v7106
      %v7108 = vpop.f32.mrf.mxu0
      %v7109 = vadd.f32 0.0, %v7108
      %v7110 = vpop.f32.mrf.mxu0
      %v7111 = vadd.f32 0.0, %v7110
      %7112 = vmatprep.mubr.bf16.mxu0 %v6719
      %7113 = vmatmul.mubr.bf16.gmra.mxu0 %v6717
      %v7114 = vpop.f32.mrf.mxu0
      %v7115 = vadd.f32 0.0, %v7114
      %v7116 = vpop.f32.mrf.mxu0
      %v7117 = vadd.f32 0.0, %v7116
      %v7118 = vpop.f32.mrf.mxu0
      %v7119 = vadd.f32 0.0, %v7118
      %v7120 = vpop.f32.mrf.mxu0
      %v7121 = vadd.f32 0.0, %v7120
      %7122 = vmatprep.mubr.bf16.mxu0 %v6723
      %7123 = vmatmul.mubr.bf16.gmra.mxu0 %v6721
      %v7124 = vpop.f32.mrf.mxu0
      %v7125 = vadd.f32 0.0, %v7124
      %v7126 = vpop.f32.mrf.mxu0
      %v7127 = vadd.f32 0.0, %v7126
      %v7128 = vpop.f32.mrf.mxu0
      %v7129 = vadd.f32 0.0, %v7128
      %v7130 = vpop.f32.mrf.mxu0
      %v7131 = vadd.f32 0.0, %v7130
      %7132 = vmatprep.mubr.bf16.mxu0 %v6727
      %7133 = vmatmul.mubr.bf16.gmra.mxu0 %v6725
      %v7134 = vpop.f32.mrf.mxu0
      %v7135 = vadd.f32 0.0, %v7134
      %v7136 = vpop.f32.mrf.mxu0
      %v7137 = vadd.f32 0.0, %v7136
      %v7138 = vpop.f32.mrf.mxu0
      %v7139 = vadd.f32 0.0, %v7138
      %v7140 = vpop.f32.mrf.mxu0
      %v7141 = vadd.f32 0.0, %v7140
      %7142 = vmatprep.mubr.bf16.mxu0 %v6731
      %7143 = vmatmul.mubr.bf16.gmra.mxu0 %v6729
      %v7144 = vpop.f32.mrf.mxu0
      %v7145 = vadd.f32 0.0, %v7144
      %v7146 = vpop.f32.mrf.mxu0
      %v7147 = vadd.f32 0.0, %v7146
      %v7148 = vpop.f32.mrf.mxu0
      %v7149 = vadd.f32 0.0, %v7148
      %v7150 = vpop.f32.mrf.mxu0
      %v7151 = vadd.f32 0.0, %v7150
      %7152 = vmatprep.mubr.bf16.mxu0 %v6735
      %7153 = vmatmul.mubr.bf16.gmra.mxu0 %v6733
      %v7154 = vpop.f32.mrf.mxu0
      %v7155 = vadd.f32 0.0, %v7154
      %v7156 = vpop.f32.mrf.mxu0
      %v7157 = vadd.f32 0.0, %v7156
      %v7158 = vpop.f32.mrf.mxu0
      %v7159 = vadd.f32 0.0, %v7158
      %v7160 = vpop.f32.mrf.mxu0
      %v7161 = vadd.f32 0.0, %v7160
      %7162 = vmatprep.mubr.bf16.mxu0 %v6739
      %7163 = vmatmul.mubr.bf16.gmra.mxu0 %v6737
      %v7164 = vpop.f32.mrf.mxu0
      %v7165 = vadd.f32 0.0, %v7164
      %v7166 = vpop.f32.mrf.mxu0
      %v7167 = vadd.f32 0.0, %v7166
      %v7168 = vpop.f32.mrf.mxu0
      %v7169 = vadd.f32 0.0, %v7168
      %v7170 = vpop.f32.mrf.mxu0
      %v7171 = vadd.f32 0.0, %v7170
      %7172 = vmatprep.mubr.bf16.mxu0 %v6743
      %7173 = vmatmul.mubr.bf16.gmra.mxu0 %v6741
      %v7174 = vpop.f32.mrf.mxu0
      %v7175 = vadd.f32 0.0, %v7174
      %v7176 = vpop.f32.mrf.mxu0
      %v7177 = vadd.f32 0.0, %v7176
      %v7178 = vpop.f32.mrf.mxu0
      %v7179 = vadd.f32 0.0, %v7178
      %v7180 = vpop.f32.mrf.mxu0
      %v7181 = vadd.f32 0.0, %v7180
      %7182 = vmatprep.mubr.bf16.mxu0 %v6747
      %7183 = vmatmul.mubr.bf16.gmra.mxu0 %v6745
      %v7184 = vpop.f32.mrf.mxu0
      %v7185 = vadd.f32 0.0, %v7184
      %v7186 = vpop.f32.mrf.mxu0
      %v7187 = vadd.f32 0.0, %v7186
      %v7188 = vpop.f32.mrf.mxu0
      %v7189 = vadd.f32 0.0, %v7188
      %v7190 = vpop.f32.mrf.mxu0
      %v7191 = vadd.f32 0.0, %v7190
      %7192 = vmatprep.mubr.bf16.mxu0 %v6751
      %7193 = vmatmul.mubr.bf16.gmra.mxu0 %v6749
      %v7194 = vpop.f32.mrf.mxu0
      %v7195 = vadd.f32 0.0, %v7194
      %v7196 = vpop.f32.mrf.mxu0
      %v7197 = vadd.f32 0.0, %v7196
      %v7198 = vpop.f32.mrf.mxu0
      %v7199 = vadd.f32 0.0, %v7198
      %v7200 = vpop.f32.mrf.mxu0
      %v7201 = vadd.f32 0.0, %v7200
      %7202 = vmatprep.mubr.bf16.mxu0 %v6755
      %7203 = vmatmul.mubr.bf16.gmra.mxu0 %v6753
      %v7204 = vpop.f32.mrf.mxu0
      %v7205 = vadd.f32 0.0, %v7204
      %v7206 = vpop.f32.mrf.mxu0
      %v7207 = vadd.f32 0.0, %v7206
      %v7208 = vpop.f32.mrf.mxu0
      %v7209 = vadd.f32 0.0, %v7208
      %v7210 = vpop.f32.mrf.mxu0
      %v7211 = vadd.f32 0.0, %v7210
      %7212 = vmatprep.mubr.bf16.mxu0 %v6759
      %7213 = vmatmul.mubr.bf16.gmra.mxu0 %v6757
      %v7214 = vpop.f32.mrf.mxu0
      %v7215 = vadd.f32 0.0, %v7214
      %v7216 = vpop.f32.mrf.mxu0
      %v7217 = vadd.f32 0.0, %v7216
      %v7218 = vpop.f32.mrf.mxu0
      %v7219 = vadd.f32 0.0, %v7218
      %v7220 = vpop.f32.mrf.mxu0
      %v7221 = vadd.f32 0.0, %v7220
      %7222 = vmatprep.mubr.bf16.mxu0 %v6763
      %7223 = vmatmul.mubr.bf16.gmra.mxu0 %v6761
      %v7224 = vpop.f32.mrf.mxu0
      %v7225 = vadd.f32 0.0, %v7224
      %v7226 = vpop.f32.mrf.mxu0
      %v7227 = vadd.f32 0.0, %v7226
      %v7228 = vpop.f32.mrf.mxu0
      %v7229 = vadd.f32 0.0, %v7228
      %v7230 = vpop.f32.mrf.mxu0
      %v7231 = vadd.f32 0.0, %v7230
      %7232 = vmatprep.mubr.bf16.mxu0 %v6767
      %7233 = vmatmul.mubr.bf16.gmra.mxu0 %v6765
      %v7234 = vpop.f32.mrf.mxu0
      %v7235 = vadd.f32 0.0, %v7234
      %v7236 = vpop.f32.mrf.mxu0
      %v7237 = vadd.f32 0.0, %v7236
      %v7238 = vpop.f32.mrf.mxu0
      %v7239 = vadd.f32 0.0, %v7238
      %v7240 = vpop.f32.mrf.mxu0
      %v7241 = vadd.f32 0.0, %v7240
      %7242 = vmatprep.mubr.bf16.mxu0 %v6771
      %7243 = vmatmul.mubr.bf16.gmra.mxu0 %v6769
      %v7244 = vpop.f32.mrf.mxu0
      %v7245 = vadd.f32 0.0, %v7244
      %v7246 = vpop.f32.mrf.mxu0
      %v7247 = vadd.f32 0.0, %v7246
      %v7248 = vpop.f32.mrf.mxu0
      %v7249 = vadd.f32 0.0, %v7248
      %v7250 = vpop.f32.mrf.mxu0
      %v7251 = vadd.f32 0.0, %v7250
      %7252 = vdwg.mxu0
      %v7253 = vadd.f32 %v6539, %v7015
      %v7254 = vadd.f32 %v6540, %v7017
      %v7255 = vadd.f32 %v6541, %v7019
      %v7256 = vadd.f32 %v6542, %v7021
      %v7257 = vadd.f32 %v6543, %v7025
      %v7258 = vadd.f32 %v6544, %v7027
      %v7259 = vadd.f32 %v6545, %v7029
      %v7260 = vadd.f32 %v6546, %v7031
      %v7261 = vadd.f32 %v6547, %v7035
      %v7262 = vadd.f32 %v6548, %v7037
      %v7263 = vadd.f32 %v6549, %v7039
      %v7264 = vadd.f32 %v6550, %v7041
      %v7265 = vadd.f32 %v6551, %v7045
      %v7266 = vadd.f32 %v6552, %v7047
      %v7267 = vadd.f32 %v6553, %v7049
      %v7268 = vadd.f32 %v6554, %v7051
      %v7269 = vadd.f32 %v6555, %v7055
      %v7270 = vadd.f32 %v6556, %v7057
      %v7271 = vadd.f32 %v6557, %v7059
      %v7272 = vadd.f32 %v6558, %v7061
      %v7273 = vadd.f32 %v6559, %v7065
      %v7274 = vadd.f32 %v6560, %v7067
      %v7275 = vadd.f32 %v6561, %v7069
      %v7276 = vadd.f32 %v6562, %v7071
      %v7277 = vadd.f32 %v6563, %v7075
      %v7278 = vadd.f32 %v6564, %v7077
      %v7279 = vadd.f32 %v6565, %v7079
      %v7280 = vadd.f32 %v6566, %v7081
      %v7281 = vadd.f32 %v6567, %v7085
      %v7282 = vadd.f32 %v6568, %v7087
      %v7283 = vadd.f32 %v6569, %v7089
      %v7284 = vadd.f32 %v6570, %v7091
      %v7285 = vadd.f32 %v6571, %v7095
      %v7286 = vadd.f32 %v6572, %v7097
      %v7287 = vadd.f32 %v6573, %v7099
      %v7288 = vadd.f32 %v6574, %v7101
      %v7289 = vadd.f32 %v6575, %v7105
      %v7290 = vadd.f32 %v6576, %v7107
      %v7291 = vadd.f32 %v6577, %v7109
      %v7292 = vadd.f32 %v6578, %v7111
      %v7293 = vadd.f32 %v6579, %v7115
      %v7294 = vadd.f32 %v6580, %v7117
      %v7295 = vadd.f32 %v6581, %v7119
      %v7296 = vadd.f32 %v6582, %v7121
      %v7297 = vadd.f32 %v6583, %v7125
      %v7298 = vadd.f32 %v6584, %v7127
      %v7299 = vadd.f32 %v6585, %v7129
      %v7300 = vadd.f32 %v6586, %v7131
      %v7301 = vadd.f32 %v6587, %v7135
      %v7302 = vadd.f32 %v6588, %v7137
      %v7303 = vadd.f32 %v6589, %v7139
      %v7304 = vadd.f32 %v6590, %v7141
      %v7305 = vadd.f32 %v6591, %v7145
      %v7306 = vadd.f32 %v6592, %v7147
      %v7307 = vadd.f32 %v6593, %v7149
      %v7308 = vadd.f32 %v6594, %v7151
      %v7309 = vadd.f32 %v6595, %v7155
      %v7310 = vadd.f32 %v6596, %v7157
      %v7311 = vadd.f32 %v6597, %v7159
      %v7312 = vadd.f32 %v6598, %v7161
      %v7313 = vadd.f32 %v6599, %v7165
      %v7314 = vadd.f32 %v6600, %v7167
      %v7315 = vadd.f32 %v6601, %v7169
      %v7316 = vadd.f32 %v6602, %v7171
      %v7317 = vadd.f32 %v6603, %v7175
      %v7318 = vadd.f32 %v6604, %v7177
      %v7319 = vadd.f32 %v6605, %v7179
      %v7320 = vadd.f32 %v6606, %v7181
      %v7321 = vadd.f32 %v6607, %v7185
      %v7322 = vadd.f32 %v6608, %v7187
      %v7323 = vadd.f32 %v6609, %v7189
      %v7324 = vadd.f32 %v6610, %v7191
      %v7325 = vadd.f32 %v6611, %v7195
      %v7326 = vadd.f32 %v6612, %v7197
      %v7327 = vadd.f32 %v6613, %v7199
      %v7328 = vadd.f32 %v6614, %v7201
      %v7329 = vadd.f32 %v6615, %v7205
      %v7330 = vadd.f32 %v6616, %v7207
      %v7331 = vadd.f32 %v6617, %v7209
      %v7332 = vadd.f32 %v6618, %v7211
      %v7333 = vadd.f32 %v6619, %v7215
      %v7334 = vadd.f32 %v6620, %v7217
      %v7335 = vadd.f32 %v6621, %v7219
      %v7336 = vadd.f32 %v6622, %v7221
      %v7337 = vadd.f32 %v6623, %v7225
      %v7338 = vadd.f32 %v6624, %v7227
      %v7339 = vadd.f32 %v6625, %v7229
      %v7340 = vadd.f32 %v6626, %v7231
      %v7341 = vadd.f32 %v6627, %v7235
      %v7342 = vadd.f32 %v6628, %v7237
      %v7343 = vadd.f32 %v6629, %v7239
      %v7344 = vadd.f32 %v6630, %v7241
      %v7345 = vadd.f32 %v6631, %v7245
      %v7346 = vadd.f32 %v6632, %v7247
      %v7347 = vadd.f32 %v6633, %v7249
      %v7348 = vadd.f32 %v6634, %v7251
      %v7349 = vld [vmem:[#allocation2 + $0x30] sm:$0xff]
      %v7350 = vld [vmem:[#allocation2 + $0x38] sm:$0xff]
      %v7351 = vld [vmem:[#allocation2 + $0x40] sm:$0xff]
      %v7352 = vld [vmem:[#allocation2 + $0x48] sm:$0xff]
      %v7353 = vld [vmem:[#allocation2 + $0x50] sm:$0xff]
      %v7354 = vld [vmem:[#allocation2 + $0x58] sm:$0xff]
      %v7355 = vld [vmem:[#allocation2 + $0x60] sm:$0xff]
      %v7356 = vld [vmem:[#allocation2 + $0x68] sm:$0xff]
      %v7357 = vld [vmem:[#allocation2 + $0x70] sm:$0xff]
      %v7358 = vld [vmem:[#allocation2 + $0x78] sm:$0xff]
      %v7359 = vld [vmem:[#allocation2 + $0x80] sm:$0xff]
      %v7360 = vld [vmem:[#allocation2 + $0x88] sm:$0xff]
      %v7361 = vld [vmem:[#allocation2 + $0x90] sm:$0xff]
      %v7362 = vld [vmem:[#allocation2 + $0x98] sm:$0xff]
      %v7363 = vld [vmem:[#allocation2 + $0xa0] sm:$0xff]
      %v7364 = vld [vmem:[#allocation2 + $0xa8] sm:$0xff]
      %v7365 = vld [vmem:[#allocation2 + $0xb0] sm:$0xff]
      %v7366 = vld [vmem:[#allocation2 + $0xb8] sm:$0xff]
      %v7367 = vld [vmem:[#allocation2 + $0xc0] sm:$0xff]
      %v7368 = vld [vmem:[#allocation2 + $0xc8] sm:$0xff]
      %v7369 = vld [vmem:[#allocation2 + $0xd0] sm:$0xff]
      %v7370 = vld [vmem:[#allocation2 + $0xd8] sm:$0xff]
      %v7371 = vld [vmem:[#allocation2 + $0xe0] sm:$0xff]
      %v7372 = vld [vmem:[#allocation2 + $0xe8] sm:$0xff]
      %v7373 = vld [vmem:[#allocation2 + $0xf0] sm:$0xff]
      %v7374 = vld [vmem:[#allocation2 + $0xf8] sm:$0xff]
      %v7375 = vld [vmem:[#allocation2 + $0x100] sm:$0xff]
      %v7376 = vld [vmem:[#allocation2 + $0x108] sm:$0xff]
      %v7377 = vld [vmem:[#allocation2 + $0x110] sm:$0xff]
      %v7378 = vld [vmem:[#allocation2 + $0x118] sm:$0xff]
      %v7379 = vld [vmem:[#allocation2 + $0x120] sm:$0xff]
      %v7380 = vld [vmem:[#allocation2 + $0x128] sm:$0xff]
      %v7381 = vld [vmem:[#allocation2 + $0x130] sm:$0xff]
      %v7382 = vld [vmem:[#allocation2 + $0x138] sm:$0xff]
      %v7383 = vld [vmem:[#allocation2 + $0x140] sm:$0xff]
      %v7384 = vld [vmem:[#allocation2 + $0x148] sm:$0xff]
      %v7385 = vld [vmem:[#allocation2 + $0x150] sm:$0xff]
      %v7386 = vld [vmem:[#allocation2 + $0x158] sm:$0xff]
      %v7387 = vld [vmem:[#allocation2 + $0x160] sm:$0xff]
      %v7388 = vld [vmem:[#allocation2 + $0x168] sm:$0xff]
      %v7389 = vld [vmem:[#allocation2 + $0x170] sm:$0xff]
      %v7390 = vld [vmem:[#allocation2 + $0x178] sm:$0xff]
      %v7391 = vld [vmem:[#allocation2 + $0x180] sm:$0xff]
      %v7392 = vld [vmem:[#allocation2 + $0x188] sm:$0xff]
      %v7393 = vld [vmem:[#allocation2 + $0x190] sm:$0xff]
      %v7394 = vld [vmem:[#allocation2 + $0x198] sm:$0xff]
      %v7395 = vld [vmem:[#allocation2 + $0x1a0] sm:$0xff]
      %v7396 = vld [vmem:[#allocation2 + $0x1a8] sm:$0xff]
      %s7397 = scalar_lea.vmem %s3, 1536
      %v7398 = vld [vmem:[%s7397] sm:$0xff]
      %v7399 = vld [vmem:[%s7397 + $0x8] sm:$0xff]
      %v7400 = vld [vmem:[%s7397 + $0x10] sm:$0xff]
      %v7401 = vld [vmem:[%s7397 + $0x18] sm:$0xff]
      %v7402 = vld [vmem:[%s7397 + $0x20] sm:$0xff]
      %v7403 = vld [vmem:[%s7397 + $0x28] sm:$0xff]
      %v7404 = vld [vmem:[%s7397 + $0x30] sm:$0xff]
      %v7405 = vld [vmem:[%s7397 + $0x38] sm:$0xff]
      %v7406 = vld [vmem:[%s7397 + $0x40] sm:$0xff]
      %v7407 = vld [vmem:[%s7397 + $0x48] sm:$0xff]
      %v7408 = vld [vmem:[%s7397 + $0x50] sm:$0xff]
      %v7409 = vld [vmem:[%s7397 + $0x58] sm:$0xff]
      %v7410 = vld [vmem:[%s7397 + $0x60] sm:$0xff]
      %v7411 = vld [vmem:[%s7397 + $0x68] sm:$0xff]
      %v7412 = vld [vmem:[%s7397 + $0x70] sm:$0xff]
      %v7413 = vld [vmem:[%s7397 + $0x78] sm:$0xff]
      %v7414 = vld [vmem:[%s7397 + $0x80] sm:$0xff]
      %v7415 = vld [vmem:[%s7397 + $0x88] sm:$0xff]
      %v7416 = vld [vmem:[%s7397 + $0x90] sm:$0xff]
      %v7417 = vld [vmem:[%s7397 + $0x98] sm:$0xff]
      %v7418 = vld [vmem:[%s7397 + $0xa0] sm:$0xff]
      %v7419 = vld [vmem:[%s7397 + $0xa8] sm:$0xff]
      %v7420 = vld [vmem:[%s7397 + $0xb0] sm:$0xff]
      %v7421 = vld [vmem:[%s7397 + $0xb8] sm:$0xff]
      %v7422 = vld [vmem:[%s7397 + $0xc0] sm:$0xff]
      %v7423 = vld [vmem:[%s7397 + $0xc8] sm:$0xff]
      %v7424 = vld [vmem:[%s7397 + $0xd0] sm:$0xff]
      %v7425 = vld [vmem:[%s7397 + $0xd8] sm:$0xff]
      %v7426 = vld [vmem:[%s7397 + $0xe0] sm:$0xff]
      %v7427 = vld [vmem:[%s7397 + $0xe8] sm:$0xff]
      %v7428 = vld [vmem:[%s7397 + $0xf0] sm:$0xff]
      %v7429 = vld [vmem:[%s7397 + $0xf8] sm:$0xff]
      %v7478 = vunpack.c.l.b16 %v7349
      %v7479 = vunpack.c.h.b16 %v7349
      %v7480 = vunpack.c.l.b16 %v7350
      %v7481 = vunpack.c.h.b16 %v7350
      %v7482 = vunpack.c.l.b16 %v7351
      %v7483 = vunpack.c.h.b16 %v7351
      %v7484 = vunpack.c.l.b16 %v7352
      %v7485 = vunpack.c.h.b16 %v7352
      %v7486 = vunpack.c.l.b16 %v7353
      %v7487 = vunpack.c.h.b16 %v7353
      %v7488 = vunpack.c.l.b16 %v7354
      %v7489 = vunpack.c.h.b16 %v7354
      %v7490 = vunpack.c.l.b16 %v7355
      %v7491 = vunpack.c.h.b16 %v7355
      %v7492 = vunpack.c.l.b16 %v7356
      %v7493 = vunpack.c.h.b16 %v7356
      %v7494 = vunpack.c.l.b16 %v7357
      %v7495 = vunpack.c.h.b16 %v7357
      %v7496 = vunpack.c.l.b16 %v7358
      %v7497 = vunpack.c.h.b16 %v7358
      %v7498 = vunpack.c.l.b16 %v7359
      %v7499 = vunpack.c.h.b16 %v7359
      %v7500 = vunpack.c.l.b16 %v7360
      %v7501 = vunpack.c.h.b16 %v7360
      %v7502 = vunpack.c.l.b16 %v7361
      %v7503 = vunpack.c.h.b16 %v7361
      %v7504 = vunpack.c.l.b16 %v7362
      %v7505 = vunpack.c.h.b16 %v7362
      %v7506 = vunpack.c.l.b16 %v7363
      %v7507 = vunpack.c.h.b16 %v7363
      %v7508 = vunpack.c.l.b16 %v7364
      %v7509 = vunpack.c.h.b16 %v7364
      %v7510 = vunpack.c.l.b16 %v7365
      %v7511 = vunpack.c.h.b16 %v7365
      %v7512 = vunpack.c.l.b16 %v7366
      %v7513 = vunpack.c.h.b16 %v7366
      %v7514 = vunpack.c.l.b16 %v7367
      %v7515 = vunpack.c.h.b16 %v7367
      %v7516 = vunpack.c.l.b16 %v7368
      %v7517 = vunpack.c.h.b16 %v7368
      %v7518 = vunpack.c.l.b16 %v7369
      %v7519 = vunpack.c.h.b16 %v7369
      %v7520 = vunpack.c.l.b16 %v7370
      %v7521 = vunpack.c.h.b16 %v7370
      %v7522 = vunpack.c.l.b16 %v7371
      %v7523 = vunpack.c.h.b16 %v7371
      %v7524 = vunpack.c.l.b16 %v7372
      %v7525 = vunpack.c.h.b16 %v7372
      %v7526 = vunpack.c.l.b16 %v7373
      %v7527 = vunpack.c.h.b16 %v7373
      %v7528 = vunpack.c.l.b16 %v7374
      %v7529 = vunpack.c.h.b16 %v7374
      %v7530 = vunpack.c.l.b16 %v7375
      %v7531 = vunpack.c.h.b16 %v7375
      %v7532 = vunpack.c.l.b16 %v7376
      %v7533 = vunpack.c.h.b16 %v7376
      %v7534 = vunpack.c.l.b16 %v7377
      %v7535 = vunpack.c.h.b16 %v7377
      %v7536 = vunpack.c.l.b16 %v7378
      %v7537 = vunpack.c.h.b16 %v7378
      %v7538 = vunpack.c.l.b16 %v7379
      %v7539 = vunpack.c.h.b16 %v7379
      %v7540 = vunpack.c.l.b16 %v7380
      %v7541 = vunpack.c.h.b16 %v7380
      %v7542 = vunpack.c.l.b16 %v7381
      %v7543 = vunpack.c.h.b16 %v7381
      %v7544 = vunpack.c.l.b16 %v7382
      %v7545 = vunpack.c.h.b16 %v7382
      %v7546 = vunpack.c.l.b16 %v7383
      %v7547 = vunpack.c.h.b16 %v7383
      %v7548 = vunpack.c.l.b16 %v7384
      %v7549 = vunpack.c.h.b16 %v7384
      %v7550 = vunpack.c.l.b16 %v7385
      %v7551 = vunpack.c.h.b16 %v7385
      %v7552 = vunpack.c.l.b16 %v7386
      %v7553 = vunpack.c.h.b16 %v7386
      %v7554 = vunpack.c.l.b16 %v7387
      %v7555 = vunpack.c.h.b16 %v7387
      %v7556 = vunpack.c.l.b16 %v7388
      %v7557 = vunpack.c.h.b16 %v7388
      %v7558 = vunpack.c.l.b16 %v7389
      %v7559 = vunpack.c.h.b16 %v7389
      %v7560 = vunpack.c.l.b16 %v7390
      %v7561 = vunpack.c.h.b16 %v7390
      %v7562 = vunpack.c.l.b16 %v7391
      %v7563 = vunpack.c.h.b16 %v7391
      %v7564 = vunpack.c.l.b16 %v7392
      %v7565 = vunpack.c.h.b16 %v7392
      %v7566 = vunpack.c.l.b16 %v7393
      %v7567 = vunpack.c.h.b16 %v7393
      %v7568 = vunpack.c.l.b16 %v7394
      %v7569 = vunpack.c.h.b16 %v7394
      %v7570 = vunpack.c.l.b16 %v7395
      %v7571 = vunpack.c.h.b16 %v7395
      %v7572 = vunpack.c.l.b16 %v7396
      %v7573 = vunpack.c.h.b16 %v7396
      %v7574 = vpack.c.b16 %v7480, %v7478
      %v7575 = vpack.c.b16 %v7481, %v7479
      %v7576 = vpack.c.b16 %v7484, %v7482
      %v7577 = vpack.c.b16 %v7485, %v7483
      %v7578 = vpack.c.b16 %v7488, %v7486
      %v7579 = vpack.c.b16 %v7489, %v7487
      %v7580 = vpack.c.b16 %v7492, %v7490
      %v7581 = vpack.c.b16 %v7493, %v7491
      %v7582 = vpack.c.b16 %v7496, %v7494
      %v7583 = vpack.c.b16 %v7497, %v7495
      %v7584 = vpack.c.b16 %v7500, %v7498
      %v7585 = vpack.c.b16 %v7501, %v7499
      %v7586 = vpack.c.b16 %v7504, %v7502
      %v7587 = vpack.c.b16 %v7505, %v7503
      %v7588 = vpack.c.b16 %v7508, %v7506
      %v7589 = vpack.c.b16 %v7509, %v7507
      %v7590 = vpack.c.b16 %v7512, %v7510
      %v7591 = vpack.c.b16 %v7513, %v7511
      %v7592 = vpack.c.b16 %v7516, %v7514
      %v7593 = vpack.c.b16 %v7517, %v7515
      %v7594 = vpack.c.b16 %v7520, %v7518
      %v7595 = vpack.c.b16 %v7521, %v7519
      %v7596 = vpack.c.b16 %v7524, %v7522
      %v7597 = vpack.c.b16 %v7525, %v7523
      %v7598 = vpack.c.b16 %v7528, %v7526
      %v7599 = vpack.c.b16 %v7529, %v7527
      %v7600 = vpack.c.b16 %v7532, %v7530
      %v7601 = vpack.c.b16 %v7533, %v7531
      %v7602 = vpack.c.b16 %v7536, %v7534
      %v7603 = vpack.c.b16 %v7537, %v7535
      %v7604 = vpack.c.b16 %v7540, %v7538
      %v7605 = vpack.c.b16 %v7541, %v7539
      %v7606 = vpack.c.b16 %v7544, %v7542
      %v7607 = vpack.c.b16 %v7545, %v7543
      %v7608 = vpack.c.b16 %v7548, %v7546
      %v7609 = vpack.c.b16 %v7549, %v7547
      %v7610 = vpack.c.b16 %v7552, %v7550
      %v7611 = vpack.c.b16 %v7553, %v7551
      %v7612 = vpack.c.b16 %v7556, %v7554
      %v7613 = vpack.c.b16 %v7557, %v7555
      %v7614 = vpack.c.b16 %v7560, %v7558
      %v7615 = vpack.c.b16 %v7561, %v7559
      %v7616 = vpack.c.b16 %v7564, %v7562
      %v7617 = vpack.c.b16 %v7565, %v7563
      %v7618 = vpack.c.b16 %v7568, %v7566
      %v7619 = vpack.c.b16 %v7569, %v7567
      %v7620 = vpack.c.b16 %v7572, %v7570
      %v7621 = vpack.c.b16 %v7573, %v7571
      %v7702 = vunpack.c.l.b16 %v7398
      %v7703 = vunpack.c.h.b16 %v7398
      %v7704 = vunpack.c.l.b16 %v7399
      %v7705 = vunpack.c.h.b16 %v7399
      %v7706 = vunpack.c.l.b16 %v7400
      %v7707 = vunpack.c.h.b16 %v7400
      %v7708 = vunpack.c.l.b16 %v7401
      %v7709 = vunpack.c.h.b16 %v7401
      %v7710 = vunpack.c.l.b16 %v7402
      %v7711 = vunpack.c.h.b16 %v7402
      %v7712 = vunpack.c.l.b16 %v7403
      %v7713 = vunpack.c.h.b16 %v7403
      %v7714 = vunpack.c.l.b16 %v7404
      %v7715 = vunpack.c.h.b16 %v7404
      %v7716 = vunpack.c.l.b16 %v7405
      %v7717 = vunpack.c.h.b16 %v7405
      %v7718 = vunpack.c.l.b16 %v7406
      %v7719 = vunpack.c.h.b16 %v7406
      %v7720 = vunpack.c.l.b16 %v7407
      %v7721 = vunpack.c.h.b16 %v7407
      %v7722 = vunpack.c.l.b16 %v7408
      %v7723 = vunpack.c.h.b16 %v7408
      %v7724 = vunpack.c.l.b16 %v7409
      %v7725 = vunpack.c.h.b16 %v7409
      %v7726 = vunpack.c.l.b16 %v7410
      %v7727 = vunpack.c.h.b16 %v7410
      %v7728 = vunpack.c.l.b16 %v7411
      %v7729 = vunpack.c.h.b16 %v7411
      %v7730 = vunpack.c.l.b16 %v7412
      %v7731 = vunpack.c.h.b16 %v7412
      %v7732 = vunpack.c.l.b16 %v7413
      %v7733 = vunpack.c.h.b16 %v7413
      %v7734 = vunpack.c.l.b16 %v7414
      %v7735 = vunpack.c.h.b16 %v7414
      %v7736 = vunpack.c.l.b16 %v7415
      %v7737 = vunpack.c.h.b16 %v7415
      %v7738 = vunpack.c.l.b16 %v7416
      %v7739 = vunpack.c.h.b16 %v7416
      %v7740 = vunpack.c.l.b16 %v7417
      %v7741 = vunpack.c.h.b16 %v7417
      %v7742 = vunpack.c.l.b16 %v7418
      %v7743 = vunpack.c.h.b16 %v7418
      %v7744 = vunpack.c.l.b16 %v7419
      %v7745 = vunpack.c.h.b16 %v7419
      %v7746 = vunpack.c.l.b16 %v7420
      %v7747 = vunpack.c.h.b16 %v7420
      %v7748 = vunpack.c.l.b16 %v7421
      %v7749 = vunpack.c.h.b16 %v7421
      %v7750 = vunpack.c.l.b16 %v7422
      %v7751 = vunpack.c.h.b16 %v7422
      %v7752 = vunpack.c.l.b16 %v7423
      %v7753 = vunpack.c.h.b16 %v7423
      %v7754 = vunpack.c.l.b16 %v7424
      %v7755 = vunpack.c.h.b16 %v7424
      %v7756 = vunpack.c.l.b16 %v7425
      %v7757 = vunpack.c.h.b16 %v7425
      %v7758 = vunpack.c.l.b16 %v7426
      %v7759 = vunpack.c.h.b16 %v7426
      %v7760 = vunpack.c.l.b16 %v7427
      %v7761 = vunpack.c.h.b16 %v7427
      %v7762 = vunpack.c.l.b16 %v7428
      %v7763 = vunpack.c.h.b16 %v7428
      %v7764 = vunpack.c.l.b16 %v7429
      %v7765 = vunpack.c.h.b16 %v7429
      %v7766 = vpack.c.b16 %v7704, %v7702
      %v7767 = vpack.c.b16 %v7705, %v7703
      %v7768 = vpack.c.b16 %v7708, %v7706
      %v7769 = vpack.c.b16 %v7709, %v7707
      %v7770 = vpack.c.b16 %v7712, %v7710
      %v7771 = vpack.c.b16 %v7713, %v7711
      %v7772 = vpack.c.b16 %v7716, %v7714
      %v7773 = vpack.c.b16 %v7717, %v7715
      %v7774 = vpack.c.b16 %v7720, %v7718
      %v7775 = vpack.c.b16 %v7721, %v7719
      %v7776 = vpack.c.b16 %v7724, %v7722
      %v7777 = vpack.c.b16 %v7725, %v7723
      %v7778 = vpack.c.b16 %v7728, %v7726
      %v7779 = vpack.c.b16 %v7729, %v7727
      %v7780 = vpack.c.b16 %v7732, %v7730
      %v7781 = vpack.c.b16 %v7733, %v7731
      %v7782 = vpack.c.b16 %v7736, %v7734
      %v7783 = vpack.c.b16 %v7737, %v7735
      %v7784 = vpack.c.b16 %v7740, %v7738
      %v7785 = vpack.c.b16 %v7741, %v7739
      %v7786 = vpack.c.b16 %v7744, %v7742
      %v7787 = vpack.c.b16 %v7745, %v7743
      %v7788 = vpack.c.b16 %v7748, %v7746
      %v7789 = vpack.c.b16 %v7749, %v7747
      %v7790 = vpack.c.b16 %v7752, %v7750
      %v7791 = vpack.c.b16 %v7753, %v7751
      %v7792 = vpack.c.b16 %v7756, %v7754
      %v7793 = vpack.c.b16 %v7757, %v7755
      %v7794 = vpack.c.b16 %v7760, %v7758
      %v7795 = vpack.c.b16 %v7761, %v7759
      %v7796 = vpack.c.b16 %v7764, %v7762
      %v7797 = vpack.c.b16 %v7765, %v7763
      %7830 = vmatprep.subr.bf16.mxu0 %v7781
      %7831 = vmatpush1.bf16.msra.mxu0 %v7780
      %7832 = vmatprep.subr.bf16.mxu0 %v7779
      %7833 = vmatpush1.bf16.msra.mxu0 %v7778
      %7834 = vmatprep.subr.bf16.mxu0 %v7777
      %7835 = vmatpush1.bf16.msra.mxu0 %v7776
      %7836 = vmatprep.subr.bf16.mxu0 %v7775
      %7837 = vmatpush1.bf16.msra.mxu0 %v7774
      %7838 = vmatprep.subr.bf16.mxu0 %v7773
      %7839 = vmatpush1.bf16.msra.mxu0 %v7772
      %7840 = vmatprep.subr.bf16.mxu0 %v7771
      %7841 = vmatpush1.bf16.msra.mxu0 %v7770
      %7842 = vmatprep.subr.bf16.mxu0 %v7769
      %7843 = vmatpush1.bf16.msra.mxu0 %v7768
      %7844 = vmatprep.subr.bf16.mxu0 %v7767
      %7845 = vmatpush1.bf16.msra.mxu0 %v7766
      %7846 = vmatprep.subr.bf16.mxu0 %v7797
      %7847 = vmatpush2.bf16.msra.mxu0 %v7796
      %7848 = vmatprep.subr.bf16.mxu0 %v7795
      %7849 = vmatpush2.bf16.msra.mxu0 %v7794
      %7850 = vmatprep.subr.bf16.mxu0 %v7793
      %7851 = vmatpush2.bf16.msra.mxu0 %v7792
      %7852 = vmatprep.subr.bf16.mxu0 %v7791
      %7853 = vmatpush2.bf16.msra.mxu0 %v7790
      %7854 = vmatprep.subr.bf16.mxu0 %v7789
      %7855 = vmatpush2.bf16.msra.mxu0 %v7788
      %7856 = vmatprep.subr.bf16.mxu0 %v7787
      %7857 = vmatpush2.bf16.msra.mxu0 %v7786
      %7858 = vmatprep.subr.bf16.mxu0 %v7785
      %7859 = vmatpush2.bf16.msra.mxu0 %v7784
      %7860 = vmatprep.subr.bf16.mxu0 %v7783
      %7861 = vmatpush2.bf16.msra.mxu0 %v7782
      %7862 = vmatprep.mubr.bf16.mxu0 %v7575
      %7863 = vmatmul.mubr.bf16.gmra.mxu0 %v7574
      %v7864 = vpop.f32.mrf.mxu0
      %v7865 = vadd.f32 0.0, %v7864
      %v7866 = vpop.f32.mrf.mxu0
      %v7867 = vadd.f32 0.0, %v7866
      %v7868 = vpop.f32.mrf.mxu0
      %v7869 = vadd.f32 0.0, %v7868
      %v7870 = vpop.f32.mrf.mxu0
      %v7871 = vadd.f32 0.0, %v7870
      %7872 = vmatprep.mubr.bf16.mxu0 %v7577
      %7873 = vmatmul.mubr.bf16.gmra.mxu0 %v7576
      %v7874 = vpop.f32.mrf.mxu0
      %v7875 = vadd.f32 0.0, %v7874
      %v7876 = vpop.f32.mrf.mxu0
      %v7877 = vadd.f32 0.0, %v7876
      %v7878 = vpop.f32.mrf.mxu0
      %v7879 = vadd.f32 0.0, %v7878
      %v7880 = vpop.f32.mrf.mxu0
      %v7881 = vadd.f32 0.0, %v7880
      %7882 = vmatprep.mubr.bf16.mxu0 %v7579
      %7883 = vmatmul.mubr.bf16.gmra.mxu0 %v7578
      %v7884 = vpop.f32.mrf.mxu0
      %v7885 = vadd.f32 0.0, %v7884
      %v7886 = vpop.f32.mrf.mxu0
      %v7887 = vadd.f32 0.0, %v7886
      %v7888 = vpop.f32.mrf.mxu0
      %v7889 = vadd.f32 0.0, %v7888
      %v7890 = vpop.f32.mrf.mxu0
      %v7891 = vadd.f32 0.0, %v7890
      %7892 = vmatprep.mubr.bf16.mxu0 %v7581
      %7893 = vmatmul.mubr.bf16.gmra.mxu0 %v7580
      %v7894 = vpop.f32.mrf.mxu0
      %v7895 = vadd.f32 0.0, %v7894
      %v7896 = vpop.f32.mrf.mxu0
      %v7897 = vadd.f32 0.0, %v7896
      %v7898 = vpop.f32.mrf.mxu0
      %v7899 = vadd.f32 0.0, %v7898
      %v7900 = vpop.f32.mrf.mxu0
      %v7901 = vadd.f32 0.0, %v7900
      %7902 = vmatprep.mubr.bf16.mxu0 %v7583
      %7903 = vmatmul.mubr.bf16.gmra.mxu0 %v7582
      %v7904 = vpop.f32.mrf.mxu0
      %v7905 = vadd.f32 0.0, %v7904
      %v7906 = vpop.f32.mrf.mxu0
      %v7907 = vadd.f32 0.0, %v7906
      %v7908 = vpop.f32.mrf.mxu0
      %v7909 = vadd.f32 0.0, %v7908
      %v7910 = vpop.f32.mrf.mxu0
      %v7911 = vadd.f32 0.0, %v7910
      %7912 = vmatprep.mubr.bf16.mxu0 %v7585
      %7913 = vmatmul.mubr.bf16.gmra.mxu0 %v7584
      %v7914 = vpop.f32.mrf.mxu0
      %v7915 = vadd.f32 0.0, %v7914
      %v7916 = vpop.f32.mrf.mxu0
      %v7917 = vadd.f32 0.0, %v7916
      %v7918 = vpop.f32.mrf.mxu0
      %v7919 = vadd.f32 0.0, %v7918
      %v7920 = vpop.f32.mrf.mxu0
      %v7921 = vadd.f32 0.0, %v7920
      %7922 = vmatprep.mubr.bf16.mxu0 %v7587
      %7923 = vmatmul.mubr.bf16.gmra.mxu0 %v7586
      %v7924 = vpop.f32.mrf.mxu0
      %v7925 = vadd.f32 0.0, %v7924
      %v7926 = vpop.f32.mrf.mxu0
      %v7927 = vadd.f32 0.0, %v7926
      %v7928 = vpop.f32.mrf.mxu0
      %v7929 = vadd.f32 0.0, %v7928
      %v7930 = vpop.f32.mrf.mxu0
      %v7931 = vadd.f32 0.0, %v7930
      %7932 = vmatprep.mubr.bf16.mxu0 %v7589
      %7933 = vmatmul.mubr.bf16.gmra.mxu0 %v7588
      %v7934 = vpop.f32.mrf.mxu0
      %v7935 = vadd.f32 0.0, %v7934
      %v7936 = vpop.f32.mrf.mxu0
      %v7937 = vadd.f32 0.0, %v7936
      %v7938 = vpop.f32.mrf.mxu0
      %v7939 = vadd.f32 0.0, %v7938
      %v7940 = vpop.f32.mrf.mxu0
      %v7941 = vadd.f32 0.0, %v7940
      %7942 = vmatprep.mubr.bf16.mxu0 %v7591
      %7943 = vmatmul.mubr.bf16.gmra.mxu0 %v7590
      %v7944 = vpop.f32.mrf.mxu0
      %v7945 = vadd.f32 0.0, %v7944
      %v7946 = vpop.f32.mrf.mxu0
      %v7947 = vadd.f32 0.0, %v7946
      %v7948 = vpop.f32.mrf.mxu0
      %v7949 = vadd.f32 0.0, %v7948
      %v7950 = vpop.f32.mrf.mxu0
      %v7951 = vadd.f32 0.0, %v7950
      %7952 = vmatprep.mubr.bf16.mxu0 %v7593
      %7953 = vmatmul.mubr.bf16.gmra.mxu0 %v7592
      %v7954 = vpop.f32.mrf.mxu0
      %v7955 = vadd.f32 0.0, %v7954
      %v7956 = vpop.f32.mrf.mxu0
      %v7957 = vadd.f32 0.0, %v7956
      %v7958 = vpop.f32.mrf.mxu0
      %v7959 = vadd.f32 0.0, %v7958
      %v7960 = vpop.f32.mrf.mxu0
      %v7961 = vadd.f32 0.0, %v7960
      %7962 = vmatprep.mubr.bf16.mxu0 %v7595
      %7963 = vmatmul.mubr.bf16.gmra.mxu0 %v7594
      %v7964 = vpop.f32.mrf.mxu0
      %v7965 = vadd.f32 0.0, %v7964
      %v7966 = vpop.f32.mrf.mxu0
      %v7967 = vadd.f32 0.0, %v7966
      %v7968 = vpop.f32.mrf.mxu0
      %v7969 = vadd.f32 0.0, %v7968
      %v7970 = vpop.f32.mrf.mxu0
      %v7971 = vadd.f32 0.0, %v7970
      %7972 = vmatprep.mubr.bf16.mxu0 %v7597
      %7973 = vmatmul.mubr.bf16.gmra.mxu0 %v7596
      %v7974 = vpop.f32.mrf.mxu0
      %v7975 = vadd.f32 0.0, %v7974
      %v7976 = vpop.f32.mrf.mxu0
      %v7977 = vadd.f32 0.0, %v7976
      %v7978 = vpop.f32.mrf.mxu0
      %v7979 = vadd.f32 0.0, %v7978
      %v7980 = vpop.f32.mrf.mxu0
      %v7981 = vadd.f32 0.0, %v7980
      %7982 = vmatprep.mubr.bf16.mxu0 %v7599
      %7983 = vmatmul.mubr.bf16.gmra.mxu0 %v7598
      %v7984 = vpop.f32.mrf.mxu0
      %v7985 = vadd.f32 0.0, %v7984
      %v7986 = vpop.f32.mrf.mxu0
      %v7987 = vadd.f32 0.0, %v7986
      %v7988 = vpop.f32.mrf.mxu0
      %v7989 = vadd.f32 0.0, %v7988
      %v7990 = vpop.f32.mrf.mxu0
      %v7991 = vadd.f32 0.0, %v7990
      %7992 = vmatprep.mubr.bf16.mxu0 %v7601
      %7993 = vmatmul.mubr.bf16.gmra.mxu0 %v7600
      %v7994 = vpop.f32.mrf.mxu0
      %v7995 = vadd.f32 0.0, %v7994
      %v7996 = vpop.f32.mrf.mxu0
      %v7997 = vadd.f32 0.0, %v7996
      %v7998 = vpop.f32.mrf.mxu0
      %v7999 = vadd.f32 0.0, %v7998
      %v8000 = vpop.f32.mrf.mxu0
      %v8001 = vadd.f32 0.0, %v8000
      %8002 = vmatprep.mubr.bf16.mxu0 %v7603
      %8003 = vmatmul.mubr.bf16.gmra.mxu0 %v7602
      %v8004 = vpop.f32.mrf.mxu0
      %v8005 = vadd.f32 0.0, %v8004
      %v8006 = vpop.f32.mrf.mxu0
      %v8007 = vadd.f32 0.0, %v8006
      %v8008 = vpop.f32.mrf.mxu0
      %v8009 = vadd.f32 0.0, %v8008
      %v8010 = vpop.f32.mrf.mxu0
      %v8011 = vadd.f32 0.0, %v8010
      %8012 = vmatprep.mubr.bf16.mxu0 %v7605
      %8013 = vmatmul.mubr.bf16.gmra.mxu0 %v7604
      %v8014 = vpop.f32.mrf.mxu0
      %v8015 = vadd.f32 0.0, %v8014
      %v8016 = vpop.f32.mrf.mxu0
      %v8017 = vadd.f32 0.0, %v8016
      %v8018 = vpop.f32.mrf.mxu0
      %v8019 = vadd.f32 0.0, %v8018
      %v8020 = vpop.f32.mrf.mxu0
      %v8021 = vadd.f32 0.0, %v8020
      %8022 = vmatprep.mubr.bf16.mxu0 %v7607
      %8023 = vmatmul.mubr.bf16.gmra.mxu0 %v7606
      %v8024 = vpop.f32.mrf.mxu0
      %v8025 = vadd.f32 0.0, %v8024
      %v8026 = vpop.f32.mrf.mxu0
      %v8027 = vadd.f32 0.0, %v8026
      %v8028 = vpop.f32.mrf.mxu0
      %v8029 = vadd.f32 0.0, %v8028
      %v8030 = vpop.f32.mrf.mxu0
      %v8031 = vadd.f32 0.0, %v8030
      %8032 = vmatprep.mubr.bf16.mxu0 %v7609
      %8033 = vmatmul.mubr.bf16.gmra.mxu0 %v7608
      %v8034 = vpop.f32.mrf.mxu0
      %v8035 = vadd.f32 0.0, %v8034
      %v8036 = vpop.f32.mrf.mxu0
      %v8037 = vadd.f32 0.0, %v8036
      %v8038 = vpop.f32.mrf.mxu0
      %v8039 = vadd.f32 0.0, %v8038
      %v8040 = vpop.f32.mrf.mxu0
      %v8041 = vadd.f32 0.0, %v8040
      %8042 = vmatprep.mubr.bf16.mxu0 %v7611
      %8043 = vmatmul.mubr.bf16.gmra.mxu0 %v7610
      %v8044 = vpop.f32.mrf.mxu0
      %v8045 = vadd.f32 0.0, %v8044
      %v8046 = vpop.f32.mrf.mxu0
      %v8047 = vadd.f32 0.0, %v8046
      %v8048 = vpop.f32.mrf.mxu0
      %v8049 = vadd.f32 0.0, %v8048
      %v8050 = vpop.f32.mrf.mxu0
      %v8051 = vadd.f32 0.0, %v8050
      %8052 = vmatprep.mubr.bf16.mxu0 %v7613
      %8053 = vmatmul.mubr.bf16.gmra.mxu0 %v7612
      %v8054 = vpop.f32.mrf.mxu0
      %v8055 = vadd.f32 0.0, %v8054
      %v8056 = vpop.f32.mrf.mxu0
      %v8057 = vadd.f32 0.0, %v8056
      %v8058 = vpop.f32.mrf.mxu0
      %v8059 = vadd.f32 0.0, %v8058
      %v8060 = vpop.f32.mrf.mxu0
      %v8061 = vadd.f32 0.0, %v8060
      %8062 = vmatprep.mubr.bf16.mxu0 %v7615
      %8063 = vmatmul.mubr.bf16.gmra.mxu0 %v7614
      %v8064 = vpop.f32.mrf.mxu0
      %v8065 = vadd.f32 0.0, %v8064
      %v8066 = vpop.f32.mrf.mxu0
      %v8067 = vadd.f32 0.0, %v8066
      %v8068 = vpop.f32.mrf.mxu0
      %v8069 = vadd.f32 0.0, %v8068
      %v8070 = vpop.f32.mrf.mxu0
      %v8071 = vadd.f32 0.0, %v8070
      %8072 = vmatprep.mubr.bf16.mxu0 %v7617
      %8073 = vmatmul.mubr.bf16.gmra.mxu0 %v7616
      %v8074 = vpop.f32.mrf.mxu0
      %v8075 = vadd.f32 0.0, %v8074
      %v8076 = vpop.f32.mrf.mxu0
      %v8077 = vadd.f32 0.0, %v8076
      %v8078 = vpop.f32.mrf.mxu0
      %v8079 = vadd.f32 0.0, %v8078
      %v8080 = vpop.f32.mrf.mxu0
      %v8081 = vadd.f32 0.0, %v8080
      %8082 = vmatprep.mubr.bf16.mxu0 %v7619
      %8083 = vmatmul.mubr.bf16.gmra.mxu0 %v7618
      %v8084 = vpop.f32.mrf.mxu0
      %v8085 = vadd.f32 0.0, %v8084
      %v8086 = vpop.f32.mrf.mxu0
      %v8087 = vadd.f32 0.0, %v8086
      %v8088 = vpop.f32.mrf.mxu0
      %v8089 = vadd.f32 0.0, %v8088
      %v8090 = vpop.f32.mrf.mxu0
      %v8091 = vadd.f32 0.0, %v8090
      %8092 = vmatprep.mubr.bf16.mxu0 %v7621
      %8093 = vmatmul.mubr.bf16.gmra.mxu0 %v7620
      %v8094 = vpop.f32.mrf.mxu0
      %v8095 = vadd.f32 0.0, %v8094
      %v8096 = vpop.f32.mrf.mxu0
      %v8097 = vadd.f32 0.0, %v8096
      %v8098 = vpop.f32.mrf.mxu0
      %v8099 = vadd.f32 0.0, %v8098
      %v8100 = vpop.f32.mrf.mxu0
      %v8101 = vadd.f32 0.0, %v8100
      %8102 = vdwg.mxu0
      %v8103 = vadd.f32 %v7253, %v7865
      %v8104 = vadd.f32 %v7254, %v7867
      %v8105 = vadd.f32 %v7255, %v7869
      %v8106 = vadd.f32 %v7256, %v7871
      %v8107 = vadd.f32 %v7257, %v7875
      %v8108 = vadd.f32 %v7258, %v7877
      %v8109 = vadd.f32 %v7259, %v7879
      %v8110 = vadd.f32 %v7260, %v7881
      %v8111 = vadd.f32 %v7261, %v7885
      %v8112 = vadd.f32 %v7262, %v7887
      %v8113 = vadd.f32 %v7263, %v7889
      %v8114 = vadd.f32 %v7264, %v7891
      %v8115 = vadd.f32 %v7265, %v7895
      %v8116 = vadd.f32 %v7266, %v7897
      %v8117 = vadd.f32 %v7267, %v7899
      %v8118 = vadd.f32 %v7268, %v7901
      %v8119 = vadd.f32 %v7269, %v7905
      %v8120 = vadd.f32 %v7270, %v7907
      %v8121 = vadd.f32 %v7271, %v7909
      %v8122 = vadd.f32 %v7272, %v7911
      %v8123 = vadd.f32 %v7273, %v7915
      %v8124 = vadd.f32 %v7274, %v7917
      %v8125 = vadd.f32 %v7275, %v7919
      %v8126 = vadd.f32 %v7276, %v7921
      %v8127 = vadd.f32 %v7277, %v7925
      %v8128 = vadd.f32 %v7278, %v7927
      %v8129 = vadd.f32 %v7279, %v7929
      %v8130 = vadd.f32 %v7280, %v7931
      %v8131 = vadd.f32 %v7281, %v7935
      %v8132 = vadd.f32 %v7282, %v7937
      %v8133 = vadd.f32 %v7283, %v7939
      %v8134 = vadd.f32 %v7284, %v7941
      %v8135 = vadd.f32 %v7285, %v7945
      %v8136 = vadd.f32 %v7286, %v7947
      %v8137 = vadd.f32 %v7287, %v7949
      %v8138 = vadd.f32 %v7288, %v7951
      %v8139 = vadd.f32 %v7289, %v7955
      %v8140 = vadd.f32 %v7290, %v7957
      %v8141 = vadd.f32 %v7291, %v7959
      %v8142 = vadd.f32 %v7292, %v7961
      %v8143 = vadd.f32 %v7293, %v7965
      %v8144 = vadd.f32 %v7294, %v7967
      %v8145 = vadd.f32 %v7295, %v7969
      %v8146 = vadd.f32 %v7296, %v7971
      %v8147 = vadd.f32 %v7297, %v7975
      %v8148 = vadd.f32 %v7298, %v7977
      %v8149 = vadd.f32 %v7299, %v7979
      %v8150 = vadd.f32 %v7300, %v7981
      %v8151 = vadd.f32 %v7301, %v7985
      %v8152 = vadd.f32 %v7302, %v7987
      %v8153 = vadd.f32 %v7303, %v7989
      %v8154 = vadd.f32 %v7304, %v7991
      %v8155 = vadd.f32 %v7305, %v7995
      %v8156 = vadd.f32 %v7306, %v7997
      %v8157 = vadd.f32 %v7307, %v7999
      %v8158 = vadd.f32 %v7308, %v8001
      %v8159 = vadd.f32 %v7309, %v8005
      %v8160 = vadd.f32 %v7310, %v8007
      %v8161 = vadd.f32 %v7311, %v8009
      %v8162 = vadd.f32 %v7312, %v8011
      %v8163 = vadd.f32 %v7313, %v8015
      %v8164 = vadd.f32 %v7314, %v8017
      %v8165 = vadd.f32 %v7315, %v8019
      %v8166 = vadd.f32 %v7316, %v8021
      %v8167 = vadd.f32 %v7317, %v8025
      %v8168 = vadd.f32 %v7318, %v8027
      %v8169 = vadd.f32 %v7319, %v8029
      %v8170 = vadd.f32 %v7320, %v8031
      %v8171 = vadd.f32 %v7321, %v8035
      %v8172 = vadd.f32 %v7322, %v8037
      %v8173 = vadd.f32 %v7323, %v8039
      %v8174 = vadd.f32 %v7324, %v8041
      %v8175 = vadd.f32 %v7325, %v8045
      %v8176 = vadd.f32 %v7326, %v8047
      %v8177 = vadd.f32 %v7327, %v8049
      %v8178 = vadd.f32 %v7328, %v8051
      %v8179 = vadd.f32 %v7329, %v8055
      %v8180 = vadd.f32 %v7330, %v8057
      %v8181 = vadd.f32 %v7331, %v8059
      %v8182 = vadd.f32 %v7332, %v8061
      %v8183 = vadd.f32 %v7333, %v8065
      %v8184 = vadd.f32 %v7334, %v8067
      %v8185 = vadd.f32 %v7335, %v8069
      %v8186 = vadd.f32 %v7336, %v8071
      %v8187 = vadd.f32 %v7337, %v8075
      %v8188 = vadd.f32 %v7338, %v8077
      %v8189 = vadd.f32 %v7339, %v8079
      %v8190 = vadd.f32 %v7340, %v8081
      %v8191 = vadd.f32 %v7341, %v8085
      %v8192 = vadd.f32 %v7342, %v8087
      %v8193 = vadd.f32 %v7343, %v8089
      %v8194 = vadd.f32 %v7344, %v8091
      %v8195 = vadd.f32 %v7345, %v8095
      %v8196 = vadd.f32 %v7346, %v8097
      %v8197 = vadd.f32 %v7347, %v8099
      %v8198 = vadd.f32 %v7348, %v8101
      %v8199 = vld [vmem:[#allocation2 + $0x30] sm:$0xff]
      %v8200 = vld [vmem:[#allocation2 + $0x38] sm:$0xff]
      %v8201 = vld [vmem:[#allocation2 + $0x40] sm:$0xff]
      %v8202 = vld [vmem:[#allocation2 + $0x48] sm:$0xff]
      %v8203 = vld [vmem:[#allocation2 + $0x50] sm:$0xff]
      %v8204 = vld [vmem:[#allocation2 + $0x58] sm:$0xff]
      %v8205 = vld [vmem:[#allocation2 + $0x60] sm:$0xff]
      %v8206 = vld [vmem:[#allocation2 + $0x68] sm:$0xff]
      %v8207 = vld [vmem:[#allocation2 + $0x70] sm:$0xff]
      %v8208 = vld [vmem:[#allocation2 + $0x78] sm:$0xff]
      %v8209 = vld [vmem:[#allocation2 + $0x80] sm:$0xff]
      %v8210 = vld [vmem:[#allocation2 + $0x88] sm:$0xff]
      %v8211 = vld [vmem:[#allocation2 + $0x90] sm:$0xff]
      %v8212 = vld [vmem:[#allocation2 + $0x98] sm:$0xff]
      %v8213 = vld [vmem:[#allocation2 + $0xa0] sm:$0xff]
      %v8214 = vld [vmem:[#allocation2 + $0xa8] sm:$0xff]
      %v8215 = vld [vmem:[#allocation2 + $0xb0] sm:$0xff]
      %v8216 = vld [vmem:[#allocation2 + $0xb8] sm:$0xff]
      %v8217 = vld [vmem:[#allocation2 + $0xc0] sm:$0xff]
      %v8218 = vld [vmem:[#allocation2 + $0xc8] sm:$0xff]
      %v8219 = vld [vmem:[#allocation2 + $0xd0] sm:$0xff]
      %v8220 = vld [vmem:[#allocation2 + $0xd8] sm:$0xff]
      %v8221 = vld [vmem:[#allocation2 + $0xe0] sm:$0xff]
      %v8222 = vld [vmem:[#allocation2 + $0xe8] sm:$0xff]
      %v8223 = vld [vmem:[#allocation2 + $0xf0] sm:$0xff]
      %v8224 = vld [vmem:[#allocation2 + $0xf8] sm:$0xff]
      %v8225 = vld [vmem:[#allocation2 + $0x100] sm:$0xff]
      %v8226 = vld [vmem:[#allocation2 + $0x108] sm:$0xff]
      %v8227 = vld [vmem:[#allocation2 + $0x110] sm:$0xff]
      %v8228 = vld [vmem:[#allocation2 + $0x118] sm:$0xff]
      %v8229 = vld [vmem:[#allocation2 + $0x120] sm:$0xff]
      %v8230 = vld [vmem:[#allocation2 + $0x128] sm:$0xff]
      %v8231 = vld [vmem:[#allocation2 + $0x130] sm:$0xff]
      %v8232 = vld [vmem:[#allocation2 + $0x138] sm:$0xff]
      %v8233 = vld [vmem:[#allocation2 + $0x140] sm:$0xff]
      %v8234 = vld [vmem:[#allocation2 + $0x148] sm:$0xff]
      %v8235 = vld [vmem:[#allocation2 + $0x150] sm:$0xff]
      %v8236 = vld [vmem:[#allocation2 + $0x158] sm:$0xff]
      %v8237 = vld [vmem:[#allocation2 + $0x160] sm:$0xff]
      %v8238 = vld [vmem:[#allocation2 + $0x168] sm:$0xff]
      %v8239 = vld [vmem:[#allocation2 + $0x170] sm:$0xff]
      %v8240 = vld [vmem:[#allocation2 + $0x178] sm:$0xff]
      %v8241 = vld [vmem:[#allocation2 + $0x180] sm:$0xff]
      %v8242 = vld [vmem:[#allocation2 + $0x188] sm:$0xff]
      %v8243 = vld [vmem:[#allocation2 + $0x190] sm:$0xff]
      %v8244 = vld [vmem:[#allocation2 + $0x198] sm:$0xff]
      %v8245 = vld [vmem:[#allocation2 + $0x1a0] sm:$0xff]
      %v8246 = vld [vmem:[#allocation2 + $0x1a8] sm:$0xff]
      %v8247 = vld [vmem:[#allocation2 + $0x1b0] sm:$0x11]
      %s8248 = scalar_lea.vmem %s3, 1792
      %v8249 = vld [vmem:[%s8248] sm:$0xff]
      %v8250 = vld [vmem:[%s8248 + $0x8] sm:$0xff]
      %v8251 = vld [vmem:[%s8248 + $0x10] sm:$0xff]
      %v8252 = vld [vmem:[%s8248 + $0x18] sm:$0xff]
      %v8253 = vld [vmem:[%s8248 + $0x20] sm:$0xff]
      %v8254 = vld [vmem:[%s8248 + $0x28] sm:$0xff]
      %v8255 = vld [vmem:[%s8248 + $0x30] sm:$0xff]
      %v8256 = vld [vmem:[%s8248 + $0x38] sm:$0xff]
      %v8257 = vld [vmem:[%s8248 + $0x40] sm:$0xff]
      %v8258 = vld [vmem:[%s8248 + $0x48] sm:$0xff]
      %v8259 = vld [vmem:[%s8248 + $0x50] sm:$0xff]
      %v8260 = vld [vmem:[%s8248 + $0x58] sm:$0xff]
      %v8261 = vld [vmem:[%s8248 + $0x60] sm:$0xff]
      %v8262 = vld [vmem:[%s8248 + $0x68] sm:$0xff]
      %v8263 = vld [vmem:[%s8248 + $0x70] sm:$0xff]
      %v8264 = vld [vmem:[%s8248 + $0x78] sm:$0xff]
      %v8265 = vld [vmem:[%s8248 + $0x80] sm:$0xff]
      %v8266 = vld [vmem:[%s8248 + $0x88] sm:$0xff]
      %v8267 = vld [vmem:[%s8248 + $0x90] sm:$0xff]
      %v8268 = vld [vmem:[%s8248 + $0x98] sm:$0xff]
      %v8269 = vld [vmem:[%s8248 + $0xa0] sm:$0xff]
      %v8270 = vld [vmem:[%s8248 + $0xa8] sm:$0xff]
      %v8271 = vld [vmem:[%s8248 + $0xb0] sm:$0xff]
      %v8272 = vld [vmem:[%s8248 + $0xb8] sm:$0xff]
      %v8273 = vld [vmem:[%s8248 + $0xc0] sm:$0xff]
      %v8274 = vld [vmem:[%s8248 + $0xc8] sm:$0xff]
      %v8275 = vld [vmem:[%s8248 + $0xd0] sm:$0xff]
      %v8276 = vld [vmem:[%s8248 + $0xd8] sm:$0xff]
      %v8277 = vld [vmem:[%s8248 + $0xe0] sm:$0xff]
      %v8278 = vld [vmem:[%s8248 + $0xe8] sm:$0xff]
      %v8279 = vld [vmem:[%s8248 + $0xf0] sm:$0xff]
      %v8280 = vld [vmem:[%s8248 + $0xf8] sm:$0xff]
      %v8330 = vunpack.c.l.b16 %v8199
      %v8331 = vunpack.c.h.b16 %v8199
      %v8332 = vunpack.c.l.b16 %v8200
      %v8333 = vunpack.c.h.b16 %v8200
      %v8334 = vunpack.c.l.b16 %v8201
      %v8335 = vunpack.c.h.b16 %v8201
      %v8336 = vunpack.c.l.b16 %v8202
      %v8337 = vunpack.c.h.b16 %v8202
      %v8338 = vunpack.c.l.b16 %v8203
      %v8339 = vunpack.c.h.b16 %v8203
      %v8340 = vunpack.c.l.b16 %v8204
      %v8341 = vunpack.c.h.b16 %v8204
      %v8342 = vunpack.c.l.b16 %v8205
      %v8343 = vunpack.c.h.b16 %v8205
      %v8344 = vunpack.c.l.b16 %v8206
      %v8345 = vunpack.c.h.b16 %v8206
      %v8346 = vunpack.c.l.b16 %v8207
      %v8347 = vunpack.c.h.b16 %v8207
      %v8348 = vunpack.c.l.b16 %v8208
      %v8349 = vunpack.c.h.b16 %v8208
      %v8350 = vunpack.c.l.b16 %v8209
      %v8351 = vunpack.c.h.b16 %v8209
      %v8352 = vunpack.c.l.b16 %v8210
      %v8353 = vunpack.c.h.b16 %v8210
      %v8354 = vunpack.c.l.b16 %v8211
      %v8355 = vunpack.c.h.b16 %v8211
      %v8356 = vunpack.c.l.b16 %v8212
      %v8357 = vunpack.c.h.b16 %v8212
      %v8358 = vunpack.c.l.b16 %v8213
      %v8359 = vunpack.c.h.b16 %v8213
      %v8360 = vunpack.c.l.b16 %v8214
      %v8361 = vunpack.c.h.b16 %v8214
      %v8362 = vunpack.c.l.b16 %v8215
      %v8363 = vunpack.c.h.b16 %v8215
      %v8364 = vunpack.c.l.b16 %v8216
      %v8365 = vunpack.c.h.b16 %v8216
      %v8366 = vunpack.c.l.b16 %v8217
      %v8367 = vunpack.c.h.b16 %v8217
      %v8368 = vunpack.c.l.b16 %v8218
      %v8369 = vunpack.c.h.b16 %v8218
      %v8370 = vunpack.c.l.b16 %v8219
      %v8371 = vunpack.c.h.b16 %v8219
      %v8372 = vunpack.c.l.b16 %v8220
      %v8373 = vunpack.c.h.b16 %v8220
      %v8374 = vunpack.c.l.b16 %v8221
      %v8375 = vunpack.c.h.b16 %v8221
      %v8376 = vunpack.c.l.b16 %v8222
      %v8377 = vunpack.c.h.b16 %v8222
      %v8378 = vunpack.c.l.b16 %v8223
      %v8379 = vunpack.c.h.b16 %v8223
      %v8380 = vunpack.c.l.b16 %v8224
      %v8381 = vunpack.c.h.b16 %v8224
      %v8382 = vunpack.c.l.b16 %v8225
      %v8383 = vunpack.c.h.b16 %v8225
      %v8384 = vunpack.c.l.b16 %v8226
      %v8385 = vunpack.c.h.b16 %v8226
      %v8386 = vunpack.c.l.b16 %v8227
      %v8387 = vunpack.c.h.b16 %v8227
      %v8388 = vunpack.c.l.b16 %v8228
      %v8389 = vunpack.c.h.b16 %v8228
      %v8390 = vunpack.c.l.b16 %v8229
      %v8391 = vunpack.c.h.b16 %v8229
      %v8392 = vunpack.c.l.b16 %v8230
      %v8393 = vunpack.c.h.b16 %v8230
      %v8394 = vunpack.c.l.b16 %v8231
      %v8395 = vunpack.c.h.b16 %v8231
      %v8396 = vunpack.c.l.b16 %v8232
      %v8397 = vunpack.c.h.b16 %v8232
      %v8398 = vunpack.c.l.b16 %v8233
      %v8399 = vunpack.c.h.b16 %v8233
      %v8400 = vunpack.c.l.b16 %v8234
      %v8401 = vunpack.c.h.b16 %v8234
      %v8402 = vunpack.c.l.b16 %v8235
      %v8403 = vunpack.c.h.b16 %v8235
      %v8404 = vunpack.c.l.b16 %v8236
      %v8405 = vunpack.c.h.b16 %v8236
      %v8406 = vunpack.c.l.b16 %v8237
      %v8407 = vunpack.c.h.b16 %v8237
      %v8408 = vunpack.c.l.b16 %v8238
      %v8409 = vunpack.c.h.b16 %v8238
      %v8410 = vunpack.c.l.b16 %v8239
      %v8411 = vunpack.c.h.b16 %v8239
      %v8412 = vunpack.c.l.b16 %v8240
      %v8413 = vunpack.c.h.b16 %v8240
      %v8414 = vunpack.c.l.b16 %v8241
      %v8415 = vunpack.c.h.b16 %v8241
      %v8416 = vunpack.c.l.b16 %v8242
      %v8417 = vunpack.c.h.b16 %v8242
      %v8418 = vunpack.c.l.b16 %v8243
      %v8419 = vunpack.c.h.b16 %v8243
      %v8420 = vunpack.c.l.b16 %v8244
      %v8421 = vunpack.c.h.b16 %v8244
      %v8422 = vunpack.c.l.b16 %v8245
      %v8423 = vunpack.c.h.b16 %v8245
      %v8424 = vunpack.c.l.b16 %v8246
      %v8425 = vunpack.c.h.b16 %v8246
      %v8426 = vunpack.c.l.b16 %v8247
      %v8427 = vunpack.c.h.b16 %v8247
      %v8428 = vpack.c.b16 %v8332, %v8330
      %v8429 = vpack.c.b16 %v8333, %v8331
      %v8430 = vpack.c.b16 %v8336, %v8334
      %v8431 = vpack.c.b16 %v8337, %v8335
      %v8432 = vpack.c.b16 %v8340, %v8338
      %v8433 = vpack.c.b16 %v8341, %v8339
      %v8434 = vpack.c.b16 %v8344, %v8342
      %v8435 = vpack.c.b16 %v8345, %v8343
      %v8436 = vpack.c.b16 %v8348, %v8346
      %v8437 = vpack.c.b16 %v8349, %v8347
      %v8438 = vpack.c.b16 %v8352, %v8350
      %v8439 = vpack.c.b16 %v8353, %v8351
      %v8440 = vpack.c.b16 %v8356, %v8354
      %v8441 = vpack.c.b16 %v8357, %v8355
      %v8442 = vpack.c.b16 %v8360, %v8358
      %v8443 = vpack.c.b16 %v8361, %v8359
      %v8444 = vpack.c.b16 %v8364, %v8362
      %v8445 = vpack.c.b16 %v8365, %v8363
      %v8446 = vpack.c.b16 %v8368, %v8366
      %v8447 = vpack.c.b16 %v8369, %v8367
      %v8448 = vpack.c.b16 %v8372, %v8370
      %v8449 = vpack.c.b16 %v8373, %v8371
      %v8450 = vpack.c.b16 %v8376, %v8374
      %v8451 = vpack.c.b16 %v8377, %v8375
      %v8452 = vpack.c.b16 %v8380, %v8378
      %v8453 = vpack.c.b16 %v8381, %v8379
      %v8454 = vpack.c.b16 %v8384, %v8382
      %v8455 = vpack.c.b16 %v8385, %v8383
      %v8456 = vpack.c.b16 %v8388, %v8386
      %v8457 = vpack.c.b16 %v8389, %v8387
      %v8458 = vpack.c.b16 %v8392, %v8390
      %v8459 = vpack.c.b16 %v8393, %v8391
      %v8460 = vpack.c.b16 %v8396, %v8394
      %v8461 = vpack.c.b16 %v8397, %v8395
      %v8462 = vpack.c.b16 %v8400, %v8398
      %v8463 = vpack.c.b16 %v8401, %v8399
      %v8464 = vpack.c.b16 %v8404, %v8402
      %v8465 = vpack.c.b16 %v8405, %v8403
      %v8466 = vpack.c.b16 %v8408, %v8406
      %v8467 = vpack.c.b16 %v8409, %v8407
      %v8468 = vpack.c.b16 %v8412, %v8410
      %v8469 = vpack.c.b16 %v8413, %v8411
      %v8470 = vpack.c.b16 %v8416, %v8414
      %v8471 = vpack.c.b16 %v8417, %v8415
      %v8472 = vpack.c.b16 %v8420, %v8418
      %v8473 = vpack.c.b16 %v8421, %v8419
      %v8474 = vpack.c.b16 %v8424, %v8422
      %v8475 = vpack.c.b16 %v8425, %v8423
      %v8476 = vpack.c.b16 %v8426, %v8426
      %v8477 = vpack.c.b16 %v8427, %v8427
      %v8479 = vshrl.u32 %v8428, 16
      %v8481 = vshll.u32 %v8428, 16
      %v8483 = vrot.slane %v8481, 1
      %v8484 = vor.u32 %v8479, %v8483
      %v8486 = vshll.u32 %v8430, 16
      %v8488 = vrot.slane %v8486, 1
      %v8489 = vsel %vm2467, %v8484, %v8488
      %v8491 = vshrl.u32 %v8429, 16
      %v8493 = vshll.u32 %v8429, 16
      %v8495 = vrot.slane %v8493, 1
      %v8496 = vor.u32 %v8491, %v8495
      %v8498 = vshll.u32 %v8431, 16
      %v8500 = vrot.slane %v8498, 1
      %v8501 = vsel %vm2467, %v8496, %v8500
      %v8502 = vshrl.u32 %v8430, 16
      %v8504 = vor.u32 %v8502, %v8488
      %v8506 = vshll.u32 %v8432, 16
      %v8508 = vrot.slane %v8506, 1
      %v8509 = vsel %vm2467, %v8504, %v8508
      %v8510 = vshrl.u32 %v8431, 16
      %v8512 = vor.u32 %v8510, %v8500
      %v8514 = vshll.u32 %v8433, 16
      %v8516 = vrot.slane %v8514, 1
      %v8517 = vsel %vm2467, %v8512, %v8516
      %v8518 = vshrl.u32 %v8432, 16
      %v8520 = vor.u32 %v8518, %v8508
      %v8522 = vshll.u32 %v8434, 16
      %v8524 = vrot.slane %v8522, 1
      %v8525 = vsel %vm2467, %v8520, %v8524
      %v8526 = vshrl.u32 %v8433, 16
      %v8528 = vor.u32 %v8526, %v8516
      %v8530 = vshll.u32 %v8435, 16
      %v8532 = vrot.slane %v8530, 1
      %v8533 = vsel %vm2467, %v8528, %v8532
      %v8534 = vshrl.u32 %v8434, 16
      %v8536 = vor.u32 %v8534, %v8524
      %v8538 = vshll.u32 %v8436, 16
      %v8540 = vrot.slane %v8538, 1
      %v8541 = vsel %vm2467, %v8536, %v8540
      %v8542 = vshrl.u32 %v8435, 16
      %v8544 = vor.u32 %v8542, %v8532
      %v8546 = vshll.u32 %v8437, 16
      %v8548 = vrot.slane %v8546, 1
      %v8549 = vsel %vm2467, %v8544, %v8548
      %v8550 = vshrl.u32 %v8436, 16
      %v8552 = vor.u32 %v8550, %v8540
      %v8554 = vshll.u32 %v8438, 16
      %v8556 = vrot.slane %v8554, 1
      %v8557 = vsel %vm2467, %v8552, %v8556
      %v8558 = vshrl.u32 %v8437, 16
      %v8560 = vor.u32 %v8558, %v8548
      %v8562 = vshll.u32 %v8439, 16
      %v8564 = vrot.slane %v8562, 1
      %v8565 = vsel %vm2467, %v8560, %v8564
      %v8566 = vshrl.u32 %v8438, 16
      %v8568 = vor.u32 %v8566, %v8556
      %v8570 = vshll.u32 %v8440, 16
      %v8572 = vrot.slane %v8570, 1
      %v8573 = vsel %vm2467, %v8568, %v8572
      %v8574 = vshrl.u32 %v8439, 16
      %v8576 = vor.u32 %v8574, %v8564
      %v8578 = vshll.u32 %v8441, 16
      %v8580 = vrot.slane %v8578, 1
      %v8581 = vsel %vm2467, %v8576, %v8580
      %v8582 = vshrl.u32 %v8440, 16
      %v8584 = vor.u32 %v8582, %v8572
      %v8586 = vshll.u32 %v8442, 16
      %v8588 = vrot.slane %v8586, 1
      %v8589 = vsel %vm2467, %v8584, %v8588
      %v8590 = vshrl.u32 %v8441, 16
      %v8592 = vor.u32 %v8590, %v8580
      %v8594 = vshll.u32 %v8443, 16
      %v8596 = vrot.slane %v8594, 1
      %v8597 = vsel %vm2467, %v8592, %v8596
      %v8598 = vshrl.u32 %v8442, 16
      %v8600 = vor.u32 %v8598, %v8588
      %v8602 = vshll.u32 %v8444, 16
      %v8604 = vrot.slane %v8602, 1
      %v8605 = vsel %vm2467, %v8600, %v8604
      %v8606 = vshrl.u32 %v8443, 16
      %v8608 = vor.u32 %v8606, %v8596
      %v8610 = vshll.u32 %v8445, 16
      %v8612 = vrot.slane %v8610, 1
      %v8613 = vsel %vm2467, %v8608, %v8612
      %v8614 = vshrl.u32 %v8444, 16
      %v8616 = vor.u32 %v8614, %v8604
      %v8618 = vshll.u32 %v8446, 16
      %v8620 = vrot.slane %v8618, 1
      %v8621 = vsel %vm2467, %v8616, %v8620
      %v8622 = vshrl.u32 %v8445, 16
      %v8624 = vor.u32 %v8622, %v8612
      %v8626 = vshll.u32 %v8447, 16
      %v8628 = vrot.slane %v8626, 1
      %v8629 = vsel %vm2467, %v8624, %v8628
      %v8630 = vshrl.u32 %v8446, 16
      %v8632 = vor.u32 %v8630, %v8620
      %v8634 = vshll.u32 %v8448, 16
      %v8636 = vrot.slane %v8634, 1
      %v8637 = vsel %vm2467, %v8632, %v8636
      %v8638 = vshrl.u32 %v8447, 16
      %v8640 = vor.u32 %v8638, %v8628
      %v8642 = vshll.u32 %v8449, 16
      %v8644 = vrot.slane %v8642, 1
      %v8645 = vsel %vm2467, %v8640, %v8644
      %v8646 = vshrl.u32 %v8448, 16
      %v8648 = vor.u32 %v8646, %v8636
      %v8650 = vshll.u32 %v8450, 16
      %v8652 = vrot.slane %v8650, 1
      %v8653 = vsel %vm2467, %v8648, %v8652
      %v8654 = vshrl.u32 %v8449, 16
      %v8656 = vor.u32 %v8654, %v8644
      %v8658 = vshll.u32 %v8451, 16
      %v8660 = vrot.slane %v8658, 1
      %v8661 = vsel %vm2467, %v8656, %v8660
      %v8662 = vshrl.u32 %v8450, 16
      %v8664 = vor.u32 %v8662, %v8652
      %v8666 = vshll.u32 %v8452, 16
      %v8668 = vrot.slane %v8666, 1
      %v8669 = vsel %vm2467, %v8664, %v8668
      %v8670 = vshrl.u32 %v8451, 16
      %v8672 = vor.u32 %v8670, %v8660
      %v8674 = vshll.u32 %v8453, 16
      %v8676 = vrot.slane %v8674, 1
      %v8677 = vsel %vm2467, %v8672, %v8676
      %v8678 = vshrl.u32 %v8452, 16
      %v8680 = vor.u32 %v8678, %v8668
      %v8682 = vshll.u32 %v8454, 16
      %v8684 = vrot.slane %v8682, 1
      %v8685 = vsel %vm2467, %v8680, %v8684
      %v8686 = vshrl.u32 %v8453, 16
      %v8688 = vor.u32 %v8686, %v8676
      %v8690 = vshll.u32 %v8455, 16
      %v8692 = vrot.slane %v8690, 1
      %v8693 = vsel %vm2467, %v8688, %v8692
      %v8694 = vshrl.u32 %v8454, 16
      %v8696 = vor.u32 %v8694, %v8684
      %v8698 = vshll.u32 %v8456, 16
      %v8700 = vrot.slane %v8698, 1
      %v8701 = vsel %vm2467, %v8696, %v8700
      %v8702 = vshrl.u32 %v8455, 16
      %v8704 = vor.u32 %v8702, %v8692
      %v8706 = vshll.u32 %v8457, 16
      %v8708 = vrot.slane %v8706, 1
      %v8709 = vsel %vm2467, %v8704, %v8708
      %v8710 = vshrl.u32 %v8456, 16
      %v8712 = vor.u32 %v8710, %v8700
      %v8714 = vshll.u32 %v8458, 16
      %v8716 = vrot.slane %v8714, 1
      %v8717 = vsel %vm2467, %v8712, %v8716
      %v8718 = vshrl.u32 %v8457, 16
      %v8720 = vor.u32 %v8718, %v8708
      %v8722 = vshll.u32 %v8459, 16
      %v8724 = vrot.slane %v8722, 1
      %v8725 = vsel %vm2467, %v8720, %v8724
      %v8726 = vshrl.u32 %v8458, 16
      %v8728 = vor.u32 %v8726, %v8716
      %v8730 = vshll.u32 %v8460, 16
      %v8732 = vrot.slane %v8730, 1
      %v8733 = vsel %vm2467, %v8728, %v8732
      %v8734 = vshrl.u32 %v8459, 16
      %v8736 = vor.u32 %v8734, %v8724
      %v8738 = vshll.u32 %v8461, 16
      %v8740 = vrot.slane %v8738, 1
      %v8741 = vsel %vm2467, %v8736, %v8740
      %v8742 = vshrl.u32 %v8460, 16
      %v8744 = vor.u32 %v8742, %v8732
      %v8746 = vshll.u32 %v8462, 16
      %v8748 = vrot.slane %v8746, 1
      %v8749 = vsel %vm2467, %v8744, %v8748
      %v8750 = vshrl.u32 %v8461, 16
      %v8752 = vor.u32 %v8750, %v8740
      %v8754 = vshll.u32 %v8463, 16
      %v8756 = vrot.slane %v8754, 1
      %v8757 = vsel %vm2467, %v8752, %v8756
      %v8758 = vshrl.u32 %v8462, 16
      %v8760 = vor.u32 %v8758, %v8748
      %v8762 = vshll.u32 %v8464, 16
      %v8764 = vrot.slane %v8762, 1
      %v8765 = vsel %vm2467, %v8760, %v8764
      %v8766 = vshrl.u32 %v8463, 16
      %v8768 = vor.u32 %v8766, %v8756
      %v8770 = vshll.u32 %v8465, 16
      %v8772 = vrot.slane %v8770, 1
      %v8773 = vsel %vm2467, %v8768, %v8772
      %v8774 = vshrl.u32 %v8464, 16
      %v8776 = vor.u32 %v8774, %v8764
      %v8778 = vshll.u32 %v8466, 16
      %v8780 = vrot.slane %v8778, 1
      %v8781 = vsel %vm2467, %v8776, %v8780
      %v8782 = vshrl.u32 %v8465, 16
      %v8784 = vor.u32 %v8782, %v8772
      %v8786 = vshll.u32 %v8467, 16
      %v8788 = vrot.slane %v8786, 1
      %v8789 = vsel %vm2467, %v8784, %v8788
      %v8790 = vshrl.u32 %v8466, 16
      %v8792 = vor.u32 %v8790, %v8780
      %v8794 = vshll.u32 %v8468, 16
      %v8796 = vrot.slane %v8794, 1
      %v8797 = vsel %vm2467, %v8792, %v8796
      %v8798 = vshrl.u32 %v8467, 16
      %v8800 = vor.u32 %v8798, %v8788
      %v8802 = vshll.u32 %v8469, 16
      %v8804 = vrot.slane %v8802, 1
      %v8805 = vsel %vm2467, %v8800, %v8804
      %v8806 = vshrl.u32 %v8468, 16
      %v8808 = vor.u32 %v8806, %v8796
      %v8810 = vshll.u32 %v8470, 16
      %v8812 = vrot.slane %v8810, 1
      %v8813 = vsel %vm2467, %v8808, %v8812
      %v8814 = vshrl.u32 %v8469, 16
      %v8816 = vor.u32 %v8814, %v8804
      %v8818 = vshll.u32 %v8471, 16
      %v8820 = vrot.slane %v8818, 1
      %v8821 = vsel %vm2467, %v8816, %v8820
      %v8822 = vshrl.u32 %v8470, 16
      %v8824 = vor.u32 %v8822, %v8812
      %v8826 = vshll.u32 %v8472, 16
      %v8828 = vrot.slane %v8826, 1
      %v8829 = vsel %vm2467, %v8824, %v8828
      %v8830 = vshrl.u32 %v8471, 16
      %v8832 = vor.u32 %v8830, %v8820
      %v8834 = vshll.u32 %v8473, 16
      %v8836 = vrot.slane %v8834, 1
      %v8837 = vsel %vm2467, %v8832, %v8836
      %v8838 = vshrl.u32 %v8472, 16
      %v8840 = vor.u32 %v8838, %v8828
      %v8842 = vshll.u32 %v8474, 16
      %v8844 = vrot.slane %v8842, 1
      %v8845 = vsel %vm2467, %v8840, %v8844
      %v8846 = vshrl.u32 %v8473, 16
      %v8848 = vor.u32 %v8846, %v8836
      %v8850 = vshll.u32 %v8475, 16
      %v8852 = vrot.slane %v8850, 1
      %v8853 = vsel %vm2467, %v8848, %v8852
      %v8854 = vshrl.u32 %v8474, 16
      %v8856 = vor.u32 %v8854, %v8844
      %v8858 = vshll.u32 %v8476, 16
      %v8860 = vrot.slane %v8858, 1
      %v8861 = vsel %vm2467, %v8856, %v8860
      %v8862 = vshrl.u32 %v8475, 16
      %v8864 = vor.u32 %v8862, %v8852
      %v8866 = vshll.u32 %v8477, 16
      %v8868 = vrot.slane %v8866, 1
      %v8869 = vsel %vm2467, %v8864, %v8868
      %v8950 = vunpack.c.l.b16 %v8249
      %v8951 = vunpack.c.h.b16 %v8249
      %v8952 = vunpack.c.l.b16 %v8250
      %v8953 = vunpack.c.h.b16 %v8250
      %v8954 = vunpack.c.l.b16 %v8251
      %v8955 = vunpack.c.h.b16 %v8251
      %v8956 = vunpack.c.l.b16 %v8252
      %v8957 = vunpack.c.h.b16 %v8252
      %v8958 = vunpack.c.l.b16 %v8253
      %v8959 = vunpack.c.h.b16 %v8253
      %v8960 = vunpack.c.l.b16 %v8254
      %v8961 = vunpack.c.h.b16 %v8254
      %v8962 = vunpack.c.l.b16 %v8255
      %v8963 = vunpack.c.h.b16 %v8255
      %v8964 = vunpack.c.l.b16 %v8256
      %v8965 = vunpack.c.h.b16 %v8256
      %v8966 = vunpack.c.l.b16 %v8257
      %v8967 = vunpack.c.h.b16 %v8257
      %v8968 = vunpack.c.l.b16 %v8258
      %v8969 = vunpack.c.h.b16 %v8258
      %v8970 = vunpack.c.l.b16 %v8259
      %v8971 = vunpack.c.h.b16 %v8259
      %v8972 = vunpack.c.l.b16 %v8260
      %v8973 = vunpack.c.h.b16 %v8260
      %v8974 = vunpack.c.l.b16 %v8261
      %v8975 = vunpack.c.h.b16 %v8261
      %v8976 = vunpack.c.l.b16 %v8262
      %v8977 = vunpack.c.h.b16 %v8262
      %v8978 = vunpack.c.l.b16 %v8263
      %v8979 = vunpack.c.h.b16 %v8263
      %v8980 = vunpack.c.l.b16 %v8264
      %v8981 = vunpack.c.h.b16 %v8264
      %v8982 = vunpack.c.l.b16 %v8265
      %v8983 = vunpack.c.h.b16 %v8265
      %v8984 = vunpack.c.l.b16 %v8266
      %v8985 = vunpack.c.h.b16 %v8266
      %v8986 = vunpack.c.l.b16 %v8267
      %v8987 = vunpack.c.h.b16 %v8267
      %v8988 = vunpack.c.l.b16 %v8268
      %v8989 = vunpack.c.h.b16 %v8268
      %v8990 = vunpack.c.l.b16 %v8269
      %v8991 = vunpack.c.h.b16 %v8269
      %v8992 = vunpack.c.l.b16 %v8270
      %v8993 = vunpack.c.h.b16 %v8270
      %v8994 = vunpack.c.l.b16 %v8271
      %v8995 = vunpack.c.h.b16 %v8271
      %v8996 = vunpack.c.l.b16 %v8272
      %v8997 = vunpack.c.h.b16 %v8272
      %v8998 = vunpack.c.l.b16 %v8273
      %v8999 = vunpack.c.h.b16 %v8273
      %v9000 = vunpack.c.l.b16 %v8274
      %v9001 = vunpack.c.h.b16 %v8274
      %v9002 = vunpack.c.l.b16 %v8275
      %v9003 = vunpack.c.h.b16 %v8275
      %v9004 = vunpack.c.l.b16 %v8276
      %v9005 = vunpack.c.h.b16 %v8276
      %v9006 = vunpack.c.l.b16 %v8277
      %v9007 = vunpack.c.h.b16 %v8277
      %v9008 = vunpack.c.l.b16 %v8278
      %v9009 = vunpack.c.h.b16 %v8278
      %v9010 = vunpack.c.l.b16 %v8279
      %v9011 = vunpack.c.h.b16 %v8279
      %v9012 = vunpack.c.l.b16 %v8280
      %v9013 = vunpack.c.h.b16 %v8280
      %v9014 = vpack.c.b16 %v8952, %v8950
      %v9015 = vpack.c.b16 %v8953, %v8951
      %v9016 = vpack.c.b16 %v8956, %v8954
      %v9017 = vpack.c.b16 %v8957, %v8955
      %v9018 = vpack.c.b16 %v8960, %v8958
      %v9019 = vpack.c.b16 %v8961, %v8959
      %v9020 = vpack.c.b16 %v8964, %v8962
      %v9021 = vpack.c.b16 %v8965, %v8963
      %v9022 = vpack.c.b16 %v8968, %v8966
      %v9023 = vpack.c.b16 %v8969, %v8967
      %v9024 = vpack.c.b16 %v8972, %v8970
      %v9025 = vpack.c.b16 %v8973, %v8971
      %v9026 = vpack.c.b16 %v8976, %v8974
      %v9027 = vpack.c.b16 %v8977, %v8975
      %v9028 = vpack.c.b16 %v8980, %v8978
      %v9029 = vpack.c.b16 %v8981, %v8979
      %v9030 = vpack.c.b16 %v8984, %v8982
      %v9031 = vpack.c.b16 %v8985, %v8983
      %v9032 = vpack.c.b16 %v8988, %v8986
      %v9033 = vpack.c.b16 %v8989, %v8987
      %v9034 = vpack.c.b16 %v8992, %v8990
      %v9035 = vpack.c.b16 %v8993, %v8991
      %v9036 = vpack.c.b16 %v8996, %v8994
      %v9037 = vpack.c.b16 %v8997, %v8995
      %v9038 = vpack.c.b16 %v9000, %v8998
      %v9039 = vpack.c.b16 %v9001, %v8999
      %v9040 = vpack.c.b16 %v9004, %v9002
      %v9041 = vpack.c.b16 %v9005, %v9003
      %v9042 = vpack.c.b16 %v9008, %v9006
      %v9043 = vpack.c.b16 %v9009, %v9007
      %v9044 = vpack.c.b16 %v9012, %v9010
      %v9045 = vpack.c.b16 %v9013, %v9011
      %9078 = vmatprep.subr.bf16.mxu0 %v9029
      %9079 = vmatpush1.bf16.msra.mxu0 %v9028
      %9080 = vmatprep.subr.bf16.mxu0 %v9027
      %9081 = vmatpush1.bf16.msra.mxu0 %v9026
      %9082 = vmatprep.subr.bf16.mxu0 %v9025
      %9083 = vmatpush1.bf16.msra.mxu0 %v9024
      %9084 = vmatprep.subr.bf16.mxu0 %v9023
      %9085 = vmatpush1.bf16.msra.mxu0 %v9022
      %9086 = vmatprep.subr.bf16.mxu0 %v9021
      %9087 = vmatpush1.bf16.msra.mxu0 %v9020
      %9088 = vmatprep.subr.bf16.mxu0 %v9019
      %9089 = vmatpush1.bf16.msra.mxu0 %v9018
      %9090 = vmatprep.subr.bf16.mxu0 %v9017
      %9091 = vmatpush1.bf16.msra.mxu0 %v9016
      %9092 = vmatprep.subr.bf16.mxu0 %v9015
      %9093 = vmatpush1.bf16.msra.mxu0 %v9014
      %9094 = vmatprep.subr.bf16.mxu0 %v9045
      %9095 = vmatpush2.bf16.msra.mxu0 %v9044
      %9096 = vmatprep.subr.bf16.mxu0 %v9043
      %9097 = vmatpush2.bf16.msra.mxu0 %v9042
      %9098 = vmatprep.subr.bf16.mxu0 %v9041
      %9099 = vmatpush2.bf16.msra.mxu0 %v9040
      %9100 = vmatprep.subr.bf16.mxu0 %v9039
      %9101 = vmatpush2.bf16.msra.mxu0 %v9038
      %9102 = vmatprep.subr.bf16.mxu0 %v9037
      %9103 = vmatpush2.bf16.msra.mxu0 %v9036
      %9104 = vmatprep.subr.bf16.mxu0 %v9035
      %9105 = vmatpush2.bf16.msra.mxu0 %v9034
      %9106 = vmatprep.subr.bf16.mxu0 %v9033
      %9107 = vmatpush2.bf16.msra.mxu0 %v9032
      %9108 = vmatprep.subr.bf16.mxu0 %v9031
      %9109 = vmatpush2.bf16.msra.mxu0 %v9030
      %9110 = vmatprep.mubr.bf16.mxu0 %v8501
      %9111 = vmatmul.mubr.bf16.gmra.mxu0 %v8489
      %v9112 = vpop.f32.mrf.mxu0
      %v9113 = vadd.f32 0.0, %v9112
      %v9114 = vpop.f32.mrf.mxu0
      %v9115 = vadd.f32 0.0, %v9114
      %v9116 = vpop.f32.mrf.mxu0
      %v9117 = vadd.f32 0.0, %v9116
      %v9118 = vpop.f32.mrf.mxu0
      %v9119 = vadd.f32 0.0, %v9118
      %9120 = vmatprep.mubr.bf16.mxu0 %v8517
      %9121 = vmatmul.mubr.bf16.gmra.mxu0 %v8509
      %v9122 = vpop.f32.mrf.mxu0
      %v9123 = vadd.f32 0.0, %v9122
      %v9124 = vpop.f32.mrf.mxu0
      %v9125 = vadd.f32 0.0, %v9124
      %v9126 = vpop.f32.mrf.mxu0
      %v9127 = vadd.f32 0.0, %v9126
      %v9128 = vpop.f32.mrf.mxu0
      %v9129 = vadd.f32 0.0, %v9128
      %9130 = vmatprep.mubr.bf16.mxu0 %v8533
      %9131 = vmatmul.mubr.bf16.gmra.mxu0 %v8525
      %v9132 = vpop.f32.mrf.mxu0
      %v9133 = vadd.f32 0.0, %v9132
      %v9134 = vpop.f32.mrf.mxu0
      %v9135 = vadd.f32 0.0, %v9134
      %v9136 = vpop.f32.mrf.mxu0
      %v9137 = vadd.f32 0.0, %v9136
      %v9138 = vpop.f32.mrf.mxu0
      %v9139 = vadd.f32 0.0, %v9138
      %9140 = vmatprep.mubr.bf16.mxu0 %v8549
      %9141 = vmatmul.mubr.bf16.gmra.mxu0 %v8541
      %v9142 = vpop.f32.mrf.mxu0
      %v9143 = vadd.f32 0.0, %v9142
      %v9144 = vpop.f32.mrf.mxu0
      %v9145 = vadd.f32 0.0, %v9144
      %v9146 = vpop.f32.mrf.mxu0
      %v9147 = vadd.f32 0.0, %v9146
      %v9148 = vpop.f32.mrf.mxu0
      %v9149 = vadd.f32 0.0, %v9148
      %9150 = vmatprep.mubr.bf16.mxu0 %v8565
      %9151 = vmatmul.mubr.bf16.gmra.mxu0 %v8557
      %v9152 = vpop.f32.mrf.mxu0
      %v9153 = vadd.f32 0.0, %v9152
      %v9154 = vpop.f32.mrf.mxu0
      %v9155 = vadd.f32 0.0, %v9154
      %v9156 = vpop.f32.mrf.mxu0
      %v9157 = vadd.f32 0.0, %v9156
      %v9158 = vpop.f32.mrf.mxu0
      %v9159 = vadd.f32 0.0, %v9158
      %9160 = vmatprep.mubr.bf16.mxu0 %v8581
      %9161 = vmatmul.mubr.bf16.gmra.mxu0 %v8573
      %v9162 = vpop.f32.mrf.mxu0
      %v9163 = vadd.f32 0.0, %v9162
      %v9164 = vpop.f32.mrf.mxu0
      %v9165 = vadd.f32 0.0, %v9164
      %v9166 = vpop.f32.mrf.mxu0
      %v9167 = vadd.f32 0.0, %v9166
      %v9168 = vpop.f32.mrf.mxu0
      %v9169 = vadd.f32 0.0, %v9168
      %9170 = vmatprep.mubr.bf16.mxu0 %v8597
      %9171 = vmatmul.mubr.bf16.gmra.mxu0 %v8589
      %v9172 = vpop.f32.mrf.mxu0
      %v9173 = vadd.f32 0.0, %v9172
      %v9174 = vpop.f32.mrf.mxu0
      %v9175 = vadd.f32 0.0, %v9174
      %v9176 = vpop.f32.mrf.mxu0
      %v9177 = vadd.f32 0.0, %v9176
      %v9178 = vpop.f32.mrf.mxu0
      %v9179 = vadd.f32 0.0, %v9178
      %9180 = vmatprep.mubr.bf16.mxu0 %v8613
      %9181 = vmatmul.mubr.bf16.gmra.mxu0 %v8605
      %v9182 = vpop.f32.mrf.mxu0
      %v9183 = vadd.f32 0.0, %v9182
      %v9184 = vpop.f32.mrf.mxu0
      %v9185 = vadd.f32 0.0, %v9184
      %v9186 = vpop.f32.mrf.mxu0
      %v9187 = vadd.f32 0.0, %v9186
      %v9188 = vpop.f32.mrf.mxu0
      %v9189 = vadd.f32 0.0, %v9188
      %9190 = vmatprep.mubr.bf16.mxu0 %v8629
      %9191 = vmatmul.mubr.bf16.gmra.mxu0 %v8621
      %v9192 = vpop.f32.mrf.mxu0
      %v9193 = vadd.f32 0.0, %v9192
      %v9194 = vpop.f32.mrf.mxu0
      %v9195 = vadd.f32 0.0, %v9194
      %v9196 = vpop.f32.mrf.mxu0
      %v9197 = vadd.f32 0.0, %v9196
      %v9198 = vpop.f32.mrf.mxu0
      %v9199 = vadd.f32 0.0, %v9198
      %9200 = vmatprep.mubr.bf16.mxu0 %v8645
      %9201 = vmatmul.mubr.bf16.gmra.mxu0 %v8637
      %v9202 = vpop.f32.mrf.mxu0
      %v9203 = vadd.f32 0.0, %v9202
      %v9204 = vpop.f32.mrf.mxu0
      %v9205 = vadd.f32 0.0, %v9204
      %v9206 = vpop.f32.mrf.mxu0
      %v9207 = vadd.f32 0.0, %v9206
      %v9208 = vpop.f32.mrf.mxu0
      %v9209 = vadd.f32 0.0, %v9208
      %9210 = vmatprep.mubr.bf16.mxu0 %v8661
      %9211 = vmatmul.mubr.bf16.gmra.mxu0 %v8653
      %v9212 = vpop.f32.mrf.mxu0
      %v9213 = vadd.f32 0.0, %v9212
      %v9214 = vpop.f32.mrf.mxu0
      %v9215 = vadd.f32 0.0, %v9214
      %v9216 = vpop.f32.mrf.mxu0
      %v9217 = vadd.f32 0.0, %v9216
      %v9218 = vpop.f32.mrf.mxu0
      %v9219 = vadd.f32 0.0, %v9218
      %9220 = vmatprep.mubr.bf16.mxu0 %v8677
      %9221 = vmatmul.mubr.bf16.gmra.mxu0 %v8669
      %v9222 = vpop.f32.mrf.mxu0
      %v9223 = vadd.f32 0.0, %v9222
      %v9224 = vpop.f32.mrf.mxu0
      %v9225 = vadd.f32 0.0, %v9224
      %v9226 = vpop.f32.mrf.mxu0
      %v9227 = vadd.f32 0.0, %v9226
      %v9228 = vpop.f32.mrf.mxu0
      %v9229 = vadd.f32 0.0, %v9228
      %9230 = vmatprep.mubr.bf16.mxu0 %v8693
      %9231 = vmatmul.mubr.bf16.gmra.mxu0 %v8685
      %v9232 = vpop.f32.mrf.mxu0
      %v9233 = vadd.f32 0.0, %v9232
      %v9234 = vpop.f32.mrf.mxu0
      %v9235 = vadd.f32 0.0, %v9234
      %v9236 = vpop.f32.mrf.mxu0
      %v9237 = vadd.f32 0.0, %v9236
      %v9238 = vpop.f32.mrf.mxu0
      %v9239 = vadd.f32 0.0, %v9238
      %9240 = vmatprep.mubr.bf16.mxu0 %v8709
      %9241 = vmatmul.mubr.bf16.gmra.mxu0 %v8701
      %v9242 = vpop.f32.mrf.mxu0
      %v9243 = vadd.f32 0.0, %v9242
      %v9244 = vpop.f32.mrf.mxu0
      %v9245 = vadd.f32 0.0, %v9244
      %v9246 = vpop.f32.mrf.mxu0
      %v9247 = vadd.f32 0.0, %v9246
      %v9248 = vpop.f32.mrf.mxu0
      %v9249 = vadd.f32 0.0, %v9248
      %9250 = vmatprep.mubr.bf16.mxu0 %v8725
      %9251 = vmatmul.mubr.bf16.gmra.mxu0 %v8717
      %v9252 = vpop.f32.mrf.mxu0
      %v9253 = vadd.f32 0.0, %v9252
      %v9254 = vpop.f32.mrf.mxu0
      %v9255 = vadd.f32 0.0, %v9254
      %v9256 = vpop.f32.mrf.mxu0
      %v9257 = vadd.f32 0.0, %v9256
      %v9258 = vpop.f32.mrf.mxu0
      %v9259 = vadd.f32 0.0, %v9258
      %9260 = vmatprep.mubr.bf16.mxu0 %v8741
      %9261 = vmatmul.mubr.bf16.gmra.mxu0 %v8733
      %v9262 = vpop.f32.mrf.mxu0
      %v9263 = vadd.f32 0.0, %v9262
      %v9264 = vpop.f32.mrf.mxu0
      %v9265 = vadd.f32 0.0, %v9264
      %v9266 = vpop.f32.mrf.mxu0
      %v9267 = vadd.f32 0.0, %v9266
      %v9268 = vpop.f32.mrf.mxu0
      %v9269 = vadd.f32 0.0, %v9268
      %9270 = vmatprep.mubr.bf16.mxu0 %v8757
      %9271 = vmatmul.mubr.bf16.gmra.mxu0 %v8749
      %v9272 = vpop.f32.mrf.mxu0
      %v9273 = vadd.f32 0.0, %v9272
      %v9274 = vpop.f32.mrf.mxu0
      %v9275 = vadd.f32 0.0, %v9274
      %v9276 = vpop.f32.mrf.mxu0
      %v9277 = vadd.f32 0.0, %v9276
      %v9278 = vpop.f32.mrf.mxu0
      %v9279 = vadd.f32 0.0, %v9278
      %9280 = vmatprep.mubr.bf16.mxu0 %v8773
      %9281 = vmatmul.mubr.bf16.gmra.mxu0 %v8765
      %v9282 = vpop.f32.mrf.mxu0
      %v9283 = vadd.f32 0.0, %v9282
      %v9284 = vpop.f32.mrf.mxu0
      %v9285 = vadd.f32 0.0, %v9284
      %v9286 = vpop.f32.mrf.mxu0
      %v9287 = vadd.f32 0.0, %v9286
      %v9288 = vpop.f32.mrf.mxu0
      %v9289 = vadd.f32 0.0, %v9288
      %9290 = vmatprep.mubr.bf16.mxu0 %v8789
      %9291 = vmatmul.mubr.bf16.gmra.mxu0 %v8781
      %v9292 = vpop.f32.mrf.mxu0
      %v9293 = vadd.f32 0.0, %v9292
      %v9294 = vpop.f32.mrf.mxu0
      %v9295 = vadd.f32 0.0, %v9294
      %v9296 = vpop.f32.mrf.mxu0
      %v9297 = vadd.f32 0.0, %v9296
      %v9298 = vpop.f32.mrf.mxu0
      %v9299 = vadd.f32 0.0, %v9298
      %9300 = vmatprep.mubr.bf16.mxu0 %v8805
      %9301 = vmatmul.mubr.bf16.gmra.mxu0 %v8797
      %v9302 = vpop.f32.mrf.mxu0
      %v9303 = vadd.f32 0.0, %v9302
      %v9304 = vpop.f32.mrf.mxu0
      %v9305 = vadd.f32 0.0, %v9304
      %v9306 = vpop.f32.mrf.mxu0
      %v9307 = vadd.f32 0.0, %v9306
      %v9308 = vpop.f32.mrf.mxu0
      %v9309 = vadd.f32 0.0, %v9308
      %9310 = vmatprep.mubr.bf16.mxu0 %v8821
      %9311 = vmatmul.mubr.bf16.gmra.mxu0 %v8813
      %v9312 = vpop.f32.mrf.mxu0
      %v9313 = vadd.f32 0.0, %v9312
      %v9314 = vpop.f32.mrf.mxu0
      %v9315 = vadd.f32 0.0, %v9314
      %v9316 = vpop.f32.mrf.mxu0
      %v9317 = vadd.f32 0.0, %v9316
      %v9318 = vpop.f32.mrf.mxu0
      %v9319 = vadd.f32 0.0, %v9318
      %9320 = vmatprep.mubr.bf16.mxu0 %v8837
      %9321 = vmatmul.mubr.bf16.gmra.mxu0 %v8829
      %v9322 = vpop.f32.mrf.mxu0
      %v9323 = vadd.f32 0.0, %v9322
      %v9324 = vpop.f32.mrf.mxu0
      %v9325 = vadd.f32 0.0, %v9324
      %v9326 = vpop.f32.mrf.mxu0
      %v9327 = vadd.f32 0.0, %v9326
      %v9328 = vpop.f32.mrf.mxu0
      %v9329 = vadd.f32 0.0, %v9328
      %9330 = vmatprep.mubr.bf16.mxu0 %v8853
      %9331 = vmatmul.mubr.bf16.gmra.mxu0 %v8845
      %v9332 = vpop.f32.mrf.mxu0
      %v9333 = vadd.f32 0.0, %v9332
      %v9334 = vpop.f32.mrf.mxu0
      %v9335 = vadd.f32 0.0, %v9334
      %v9336 = vpop.f32.mrf.mxu0
      %v9337 = vadd.f32 0.0, %v9336
      %v9338 = vpop.f32.mrf.mxu0
      %v9339 = vadd.f32 0.0, %v9338
      %9340 = vmatprep.mubr.bf16.mxu0 %v8869
      %9341 = vmatmul.mubr.bf16.gmra.mxu0 %v8861
      %v9342 = vpop.f32.mrf.mxu0
      %v9343 = vadd.f32 0.0, %v9342
      %v9344 = vpop.f32.mrf.mxu0
      %v9345 = vadd.f32 0.0, %v9344
      %v9346 = vpop.f32.mrf.mxu0
      %v9347 = vadd.f32 0.0, %v9346
      %v9348 = vpop.f32.mrf.mxu0
      %v9349 = vadd.f32 0.0, %v9348
      %9350 = vdwg.mxu0
      %v9351 = vadd.f32 %v8103, %v9113
      %v9352 = vadd.f32 %v8104, %v9115
      %v9353 = vadd.f32 %v8105, %v9117
      %v9354 = vadd.f32 %v8106, %v9119
      %v9355 = vadd.f32 %v8107, %v9123
      %v9356 = vadd.f32 %v8108, %v9125
      %v9357 = vadd.f32 %v8109, %v9127
      %v9358 = vadd.f32 %v8110, %v9129
      %v9359 = vadd.f32 %v8111, %v9133
      %v9360 = vadd.f32 %v8112, %v9135
      %v9361 = vadd.f32 %v8113, %v9137
      %v9362 = vadd.f32 %v8114, %v9139
      %v9363 = vadd.f32 %v8115, %v9143
      %v9364 = vadd.f32 %v8116, %v9145
      %v9365 = vadd.f32 %v8117, %v9147
      %v9366 = vadd.f32 %v8118, %v9149
      %v9367 = vadd.f32 %v8119, %v9153
      %v9368 = vadd.f32 %v8120, %v9155
      %v9369 = vadd.f32 %v8121, %v9157
      %v9370 = vadd.f32 %v8122, %v9159
      %v9371 = vadd.f32 %v8123, %v9163
      %v9372 = vadd.f32 %v8124, %v9165
      %v9373 = vadd.f32 %v8125, %v9167
      %v9374 = vadd.f32 %v8126, %v9169
      %v9375 = vadd.f32 %v8127, %v9173
      %v9376 = vadd.f32 %v8128, %v9175
      %v9377 = vadd.f32 %v8129, %v9177
      %v9378 = vadd.f32 %v8130, %v9179
      %v9379 = vadd.f32 %v8131, %v9183
      %v9380 = vadd.f32 %v8132, %v9185
      %v9381 = vadd.f32 %v8133, %v9187
      %v9382 = vadd.f32 %v8134, %v9189
      %v9383 = vadd.f32 %v8135, %v9193
      %v9384 = vadd.f32 %v8136, %v9195
      %v9385 = vadd.f32 %v8137, %v9197
      %v9386 = vadd.f32 %v8138, %v9199
      %v9387 = vadd.f32 %v8139, %v9203
      %v9388 = vadd.f32 %v8140, %v9205
      %v9389 = vadd.f32 %v8141, %v9207
      %v9390 = vadd.f32 %v8142, %v9209
      %v9391 = vadd.f32 %v8143, %v9213
      %v9392 = vadd.f32 %v8144, %v9215
      %v9393 = vadd.f32 %v8145, %v9217
      %v9394 = vadd.f32 %v8146, %v9219
      %v9395 = vadd.f32 %v8147, %v9223
      %v9396 = vadd.f32 %v8148, %v9225
      %v9397 = vadd.f32 %v8149, %v9227
      %v9398 = vadd.f32 %v8150, %v9229
      %v9399 = vadd.f32 %v8151, %v9233
      %v9400 = vadd.f32 %v8152, %v9235
      %v9401 = vadd.f32 %v8153, %v9237
      %v9402 = vadd.f32 %v8154, %v9239
      %v9403 = vadd.f32 %v8155, %v9243
      %v9404 = vadd.f32 %v8156, %v9245
      %v9405 = vadd.f32 %v8157, %v9247
      %v9406 = vadd.f32 %v8158, %v9249
      %v9407 = vadd.f32 %v8159, %v9253
      %v9408 = vadd.f32 %v8160, %v9255
      %v9409 = vadd.f32 %v8161, %v9257
      %v9410 = vadd.f32 %v8162, %v9259
      %v9411 = vadd.f32 %v8163, %v9263
      %v9412 = vadd.f32 %v8164, %v9265
      %v9413 = vadd.f32 %v8165, %v9267
      %v9414 = vadd.f32 %v8166, %v9269
      %v9415 = vadd.f32 %v8167, %v9273
      %v9416 = vadd.f32 %v8168, %v9275
      %v9417 = vadd.f32 %v8169, %v9277
      %v9418 = vadd.f32 %v8170, %v9279
      %v9419 = vadd.f32 %v8171, %v9283
      %v9420 = vadd.f32 %v8172, %v9285
      %v9421 = vadd.f32 %v8173, %v9287
      %v9422 = vadd.f32 %v8174, %v9289
      %v9423 = vadd.f32 %v8175, %v9293
      %v9424 = vadd.f32 %v8176, %v9295
      %v9425 = vadd.f32 %v8177, %v9297
      %v9426 = vadd.f32 %v8178, %v9299
      %v9427 = vadd.f32 %v8179, %v9303
      %v9428 = vadd.f32 %v8180, %v9305
      %v9429 = vadd.f32 %v8181, %v9307
      %v9430 = vadd.f32 %v8182, %v9309
      %v9431 = vadd.f32 %v8183, %v9313
      %v9432 = vadd.f32 %v8184, %v9315
      %v9433 = vadd.f32 %v8185, %v9317
      %v9434 = vadd.f32 %v8186, %v9319
      %v9435 = vadd.f32 %v8187, %v9323
      %v9436 = vadd.f32 %v8188, %v9325
      %v9437 = vadd.f32 %v8189, %v9327
      %v9438 = vadd.f32 %v8190, %v9329
      %v9439 = vadd.f32 %v8191, %v9333
      %v9440 = vadd.f32 %v8192, %v9335
      %v9441 = vadd.f32 %v8193, %v9337
      %v9442 = vadd.f32 %v8194, %v9339
      %v9443 = vadd.f32 %v8195, %v9343
      %v9444 = vadd.f32 %v8196, %v9345
      %v9445 = vadd.f32 %v8197, %v9347
      %v9446 = vadd.f32 %v8198, %v9349
      %v9447 = vld [vmem:[#allocation2 + $0x30] sm:$0xee]
      %s9448 = scalar_lea.vmem %s3, 2048
      %v9449 = vld [vmem:[%s9448] sm:$0xff]
      %v9450 = vld [vmem:[%s9448 + $0x8] sm:$0xff]
      %v9451 = vld [vmem:[%s9448 + $0x10] sm:$0xff]
      %v9452 = vld [vmem:[%s9448 + $0x18] sm:$0xff]
      %v9453 = vld [vmem:[%s9448 + $0x20] sm:$0xff]
      %v9454 = vld [vmem:[%s9448 + $0x28] sm:$0xff]
      %v9455 = vld [vmem:[%s9448 + $0x30] sm:$0xff]
      %v9456 = vld [vmem:[%s9448 + $0x38] sm:$0xff]
      %v9457 = vld [vmem:[%s9448 + $0x40] sm:$0xff]
      %v9458 = vld [vmem:[%s9448 + $0x48] sm:$0xff]
      %v9459 = vld [vmem:[%s9448 + $0x50] sm:$0xff]
      %v9460 = vld [vmem:[%s9448 + $0x58] sm:$0xff]
      %v9461 = vld [vmem:[%s9448 + $0x60] sm:$0xff]
      %v9462 = vld [vmem:[%s9448 + $0x68] sm:$0xff]
      %v9463 = vld [vmem:[%s9448 + $0x70] sm:$0xff]
      %v9464 = vld [vmem:[%s9448 + $0x78] sm:$0xff]
      %v9465 = vld [vmem:[%s9448 + $0x80] sm:$0xff]
      %v9466 = vld [vmem:[%s9448 + $0x88] sm:$0xff]
      %v9467 = vld [vmem:[%s9448 + $0x90] sm:$0xff]
      %v9468 = vld [vmem:[%s9448 + $0x98] sm:$0xff]
      %v9469 = vld [vmem:[%s9448 + $0xa0] sm:$0xff]
      %v9470 = vld [vmem:[%s9448 + $0xa8] sm:$0xff]
      %v9471 = vld [vmem:[%s9448 + $0xb0] sm:$0xff]
      %v9472 = vld [vmem:[%s9448 + $0xb8] sm:$0xff]
      %v9473 = vld [vmem:[%s9448 + $0xc0] sm:$0xff]
      %v9474 = vld [vmem:[%s9448 + $0xc8] sm:$0xff]
      %v9475 = vld [vmem:[%s9448 + $0xd0] sm:$0xff]
      %v9476 = vld [vmem:[%s9448 + $0xd8] sm:$0xff]
      %v9477 = vld [vmem:[%s9448 + $0xe0] sm:$0xff]
      %v9478 = vld [vmem:[%s9448 + $0xe8] sm:$0xff]
      %v9479 = vld [vmem:[%s9448 + $0xf0] sm:$0xff]
      %v9480 = vld [vmem:[%s9448 + $0xf8] sm:$0xff]
      %v9482 = vunpack.c.l.b16 %v9447
      %v9483 = vunpack.c.h.b16 %v9447
      %v9484 = vpack.c.b16 %v8332, %v9482
      %v9485 = vpack.c.b16 %v8333, %v9483
      %v9486 = vrot.slane %v9484, 1
      %v9487 = vrot.slane %v8430, 1
      %v9488 = vsel %vm3861, %v9486, %v9487
      %v9489 = vrot.slane %v9485, 1
      %v9490 = vrot.slane %v8431, 1
      %v9491 = vsel %vm3861, %v9489, %v9490
      %v9492 = vrot.slane %v8432, 1
      %v9493 = vsel %vm3861, %v9487, %v9492
      %v9494 = vrot.slane %v8433, 1
      %v9495 = vsel %vm3861, %v9490, %v9494
      %v9496 = vrot.slane %v8434, 1
      %v9497 = vsel %vm3861, %v9492, %v9496
      %v9498 = vrot.slane %v8435, 1
      %v9499 = vsel %vm3861, %v9494, %v9498
      %v9500 = vrot.slane %v8436, 1
      %v9501 = vsel %vm3861, %v9496, %v9500
      %v9502 = vrot.slane %v8437, 1
      %v9503 = vsel %vm3861, %v9498, %v9502
      %v9504 = vrot.slane %v8438, 1
      %v9505 = vsel %vm3861, %v9500, %v9504
      %v9506 = vrot.slane %v8439, 1
      %v9507 = vsel %vm3861, %v9502, %v9506
      %v9508 = vrot.slane %v8440, 1
      %v9509 = vsel %vm3861, %v9504, %v9508
      %v9510 = vrot.slane %v8441, 1
      %v9511 = vsel %vm3861, %v9506, %v9510
      %v9512 = vrot.slane %v8442, 1
      %v9513 = vsel %vm3861, %v9508, %v9512
      %v9514 = vrot.slane %v8443, 1
      %v9515 = vsel %vm3861, %v9510, %v9514
      %v9516 = vrot.slane %v8444, 1
      %v9517 = vsel %vm3861, %v9512, %v9516
      %v9518 = vrot.slane %v8445, 1
      %v9519 = vsel %vm3861, %v9514, %v9518
      %v9520 = vrot.slane %v8446, 1
      %v9521 = vsel %vm3861, %v9516, %v9520
      %v9522 = vrot.slane %v8447, 1
      %v9523 = vsel %vm3861, %v9518, %v9522
      %v9524 = vrot.slane %v8448, 1
      %v9525 = vsel %vm3861, %v9520, %v9524
      %v9526 = vrot.slane %v8449, 1
      %v9527 = vsel %vm3861, %v9522, %v9526
      %v9528 = vrot.slane %v8450, 1
      %v9529 = vsel %vm3861, %v9524, %v9528
      %v9530 = vrot.slane %v8451, 1
      %v9531 = vsel %vm3861, %v9526, %v9530
      %v9532 = vrot.slane %v8452, 1
      %v9533 = vsel %vm3861, %v9528, %v9532
      %v9534 = vrot.slane %v8453, 1
      %v9535 = vsel %vm3861, %v9530, %v9534
      %v9536 = vrot.slane %v8454, 1
      %v9537 = vsel %vm3861, %v9532, %v9536
      %v9538 = vrot.slane %v8455, 1
      %v9539 = vsel %vm3861, %v9534, %v9538
      %v9540 = vrot.slane %v8456, 1
      %v9541 = vsel %vm3861, %v9536, %v9540
      %v9542 = vrot.slane %v8457, 1
      %v9543 = vsel %vm3861, %v9538, %v9542
      %v9544 = vrot.slane %v8458, 1
      %v9545 = vsel %vm3861, %v9540, %v9544
      %v9546 = vrot.slane %v8459, 1
      %v9547 = vsel %vm3861, %v9542, %v9546
      %v9548 = vrot.slane %v8460, 1
      %v9549 = vsel %vm3861, %v9544, %v9548
      %v9550 = vrot.slane %v8461, 1
      %v9551 = vsel %vm3861, %v9546, %v9550
      %v9552 = vrot.slane %v8462, 1
      %v9553 = vsel %vm3861, %v9548, %v9552
      %v9554 = vrot.slane %v8463, 1
      %v9555 = vsel %vm3861, %v9550, %v9554
      %v9556 = vrot.slane %v8464, 1
      %v9557 = vsel %vm3861, %v9552, %v9556
      %v9558 = vrot.slane %v8465, 1
      %v9559 = vsel %vm3861, %v9554, %v9558
      %v9560 = vrot.slane %v8466, 1
      %v9561 = vsel %vm3861, %v9556, %v9560
      %v9562 = vrot.slane %v8467, 1
      %v9563 = vsel %vm3861, %v9558, %v9562
      %v9564 = vrot.slane %v8468, 1
      %v9565 = vsel %vm3861, %v9560, %v9564
      %v9566 = vrot.slane %v8469, 1
      %v9567 = vsel %vm3861, %v9562, %v9566
      %v9568 = vrot.slane %v8470, 1
      %v9569 = vsel %vm3861, %v9564, %v9568
      %v9570 = vrot.slane %v8471, 1
      %v9571 = vsel %vm3861, %v9566, %v9570
      %v9572 = vrot.slane %v8472, 1
      %v9573 = vsel %vm3861, %v9568, %v9572
      %v9574 = vrot.slane %v8473, 1
      %v9575 = vsel %vm3861, %v9570, %v9574
      %v9576 = vrot.slane %v8474, 1
      %v9577 = vsel %vm3861, %v9572, %v9576
      %v9578 = vrot.slane %v8475, 1
      %v9579 = vsel %vm3861, %v9574, %v9578
      %v9580 = vrot.slane %v8476, 1
      %v9581 = vsel %vm3861, %v9576, %v9580
      %v9582 = vrot.slane %v8477, 1
      %v9583 = vsel %vm3861, %v9578, %v9582
      %v9664 = vunpack.c.l.b16 %v9449
      %v9665 = vunpack.c.h.b16 %v9449
      %v9666 = vunpack.c.l.b16 %v9450
      %v9667 = vunpack.c.h.b16 %v9450
      %v9668 = vunpack.c.l.b16 %v9451
      %v9669 = vunpack.c.h.b16 %v9451
      %v9670 = vunpack.c.l.b16 %v9452
      %v9671 = vunpack.c.h.b16 %v9452
      %v9672 = vunpack.c.l.b16 %v9453
      %v9673 = vunpack.c.h.b16 %v9453
      %v9674 = vunpack.c.l.b16 %v9454
      %v9675 = vunpack.c.h.b16 %v9454
      %v9676 = vunpack.c.l.b16 %v9455
      %v9677 = vunpack.c.h.b16 %v9455
      %v9678 = vunpack.c.l.b16 %v9456
      %v9679 = vunpack.c.h.b16 %v9456
      %v9680 = vunpack.c.l.b16 %v9457
      %v9681 = vunpack.c.h.b16 %v9457
      %v9682 = vunpack.c.l.b16 %v9458
      %v9683 = vunpack.c.h.b16 %v9458
      %v9684 = vunpack.c.l.b16 %v9459
      %v9685 = vunpack.c.h.b16 %v9459
      %v9686 = vunpack.c.l.b16 %v9460
      %v9687 = vunpack.c.h.b16 %v9460
      %v9688 = vunpack.c.l.b16 %v9461
      %v9689 = vunpack.c.h.b16 %v9461
      %v9690 = vunpack.c.l.b16 %v9462
      %v9691 = vunpack.c.h.b16 %v9462
      %v9692 = vunpack.c.l.b16 %v9463
      %v9693 = vunpack.c.h.b16 %v9463
      %v9694 = vunpack.c.l.b16 %v9464
      %v9695 = vunpack.c.h.b16 %v9464
      %v9696 = vunpack.c.l.b16 %v9465
      %v9697 = vunpack.c.h.b16 %v9465
      %v9698 = vunpack.c.l.b16 %v9466
      %v9699 = vunpack.c.h.b16 %v9466
      %v9700 = vunpack.c.l.b16 %v9467
      %v9701 = vunpack.c.h.b16 %v9467
      %v9702 = vunpack.c.l.b16 %v9468
      %v9703 = vunpack.c.h.b16 %v9468
      %v9704 = vunpack.c.l.b16 %v9469
      %v9705 = vunpack.c.h.b16 %v9469
      %v9706 = vunpack.c.l.b16 %v9470
      %v9707 = vunpack.c.h.b16 %v9470
      %v9708 = vunpack.c.l.b16 %v9471
      %v9709 = vunpack.c.h.b16 %v9471
      %v9710 = vunpack.c.l.b16 %v9472
      %v9711 = vunpack.c.h.b16 %v9472
      %v9712 = vunpack.c.l.b16 %v9473
      %v9713 = vunpack.c.h.b16 %v9473
      %v9714 = vunpack.c.l.b16 %v9474
      %v9715 = vunpack.c.h.b16 %v9474
      %v9716 = vunpack.c.l.b16 %v9475
      %v9717 = vunpack.c.h.b16 %v9475
      %v9718 = vunpack.c.l.b16 %v9476
      %v9719 = vunpack.c.h.b16 %v9476
      %v9720 = vunpack.c.l.b16 %v9477
      %v9721 = vunpack.c.h.b16 %v9477
      %v9722 = vunpack.c.l.b16 %v9478
      %v9723 = vunpack.c.h.b16 %v9478
      %v9724 = vunpack.c.l.b16 %v9479
      %v9725 = vunpack.c.h.b16 %v9479
      %v9726 = vunpack.c.l.b16 %v9480
      %v9727 = vunpack.c.h.b16 %v9480
      %v9728 = vpack.c.b16 %v9666, %v9664
      %v9729 = vpack.c.b16 %v9667, %v9665
      %v9730 = vpack.c.b16 %v9670, %v9668
      %v9731 = vpack.c.b16 %v9671, %v9669
      %v9732 = vpack.c.b16 %v9674, %v9672
      %v9733 = vpack.c.b16 %v9675, %v9673
      %v9734 = vpack.c.b16 %v9678, %v9676
      %v9735 = vpack.c.b16 %v9679, %v9677
      %v9736 = vpack.c.b16 %v9682, %v9680
      %v9737 = vpack.c.b16 %v9683, %v9681
      %v9738 = vpack.c.b16 %v9686, %v9684
      %v9739 = vpack.c.b16 %v9687, %v9685
      %v9740 = vpack.c.b16 %v9690, %v9688
      %v9741 = vpack.c.b16 %v9691, %v9689
      %v9742 = vpack.c.b16 %v9694, %v9692
      %v9743 = vpack.c.b16 %v9695, %v9693
      %v9744 = vpack.c.b16 %v9698, %v9696
      %v9745 = vpack.c.b16 %v9699, %v9697
      %v9746 = vpack.c.b16 %v9702, %v9700
      %v9747 = vpack.c.b16 %v9703, %v9701
      %v9748 = vpack.c.b16 %v9706, %v9704
      %v9749 = vpack.c.b16 %v9707, %v9705
      %v9750 = vpack.c.b16 %v9710, %v9708
      %v9751 = vpack.c.b16 %v9711, %v9709
      %v9752 = vpack.c.b16 %v9714, %v9712
      %v9753 = vpack.c.b16 %v9715, %v9713
      %v9754 = vpack.c.b16 %v9718, %v9716
      %v9755 = vpack.c.b16 %v9719, %v9717
      %v9756 = vpack.c.b16 %v9722, %v9720
      %v9757 = vpack.c.b16 %v9723, %v9721
      %v9758 = vpack.c.b16 %v9726, %v9724
      %v9759 = vpack.c.b16 %v9727, %v9725
      %9792 = vmatprep.subr.bf16.mxu0 %v9743
      %9793 = vmatpush1.bf16.msra.mxu0 %v9742
      %9794 = vmatprep.subr.bf16.mxu0 %v9741
      %9795 = vmatpush1.bf16.msra.mxu0 %v9740
      %9796 = vmatprep.subr.bf16.mxu0 %v9739
      %9797 = vmatpush1.bf16.msra.mxu0 %v9738
      %9798 = vmatprep.subr.bf16.mxu0 %v9737
      %9799 = vmatpush1.bf16.msra.mxu0 %v9736
      %9800 = vmatprep.subr.bf16.mxu0 %v9735
      %9801 = vmatpush1.bf16.msra.mxu0 %v9734
      %9802 = vmatprep.subr.bf16.mxu0 %v9733
      %9803 = vmatpush1.bf16.msra.mxu0 %v9732
      %9804 = vmatprep.subr.bf16.mxu0 %v9731
      %9805 = vmatpush1.bf16.msra.mxu0 %v9730
      %9806 = vmatprep.subr.bf16.mxu0 %v9729
      %9807 = vmatpush1.bf16.msra.mxu0 %v9728
      %9808 = vmatprep.subr.bf16.mxu0 %v9759
      %9809 = vmatpush2.bf16.msra.mxu0 %v9758
      %9810 = vmatprep.subr.bf16.mxu0 %v9757
      %9811 = vmatpush2.bf16.msra.mxu0 %v9756
      %9812 = vmatprep.subr.bf16.mxu0 %v9755
      %9813 = vmatpush2.bf16.msra.mxu0 %v9754
      %9814 = vmatprep.subr.bf16.mxu0 %v9753
      %9815 = vmatpush2.bf16.msra.mxu0 %v9752
      %9816 = vmatprep.subr.bf16.mxu0 %v9751
      %9817 = vmatpush2.bf16.msra.mxu0 %v9750
      %9818 = vmatprep.subr.bf16.mxu0 %v9749
      %9819 = vmatpush2.bf16.msra.mxu0 %v9748
      %9820 = vmatprep.subr.bf16.mxu0 %v9747
      %9821 = vmatpush2.bf16.msra.mxu0 %v9746
      %9822 = vmatprep.subr.bf16.mxu0 %v9745
      %9823 = vmatpush2.bf16.msra.mxu0 %v9744
      %9824 = vmatprep.mubr.bf16.mxu0 %v9491
      %9825 = vmatmul.mubr.bf16.gmra.mxu0 %v9488
      %v9826 = vpop.f32.mrf.mxu0
      %v9827 = vadd.f32 0.0, %v9826
      %v9828 = vpop.f32.mrf.mxu0
      %v9829 = vadd.f32 0.0, %v9828
      %v9830 = vpop.f32.mrf.mxu0
      %v9831 = vadd.f32 0.0, %v9830
      %v9832 = vpop.f32.mrf.mxu0
      %v9833 = vadd.f32 0.0, %v9832
      %9834 = vmatprep.mubr.bf16.mxu0 %v9495
      %9835 = vmatmul.mubr.bf16.gmra.mxu0 %v9493
      %v9836 = vpop.f32.mrf.mxu0
      %v9837 = vadd.f32 0.0, %v9836
      %v9838 = vpop.f32.mrf.mxu0
      %v9839 = vadd.f32 0.0, %v9838
      %v9840 = vpop.f32.mrf.mxu0
      %v9841 = vadd.f32 0.0, %v9840
      %v9842 = vpop.f32.mrf.mxu0
      %v9843 = vadd.f32 0.0, %v9842
      %9844 = vmatprep.mubr.bf16.mxu0 %v9499
      %9845 = vmatmul.mubr.bf16.gmra.mxu0 %v9497
      %v9846 = vpop.f32.mrf.mxu0
      %v9847 = vadd.f32 0.0, %v9846
      %v9848 = vpop.f32.mrf.mxu0
      %v9849 = vadd.f32 0.0, %v9848
      %v9850 = vpop.f32.mrf.mxu0
      %v9851 = vadd.f32 0.0, %v9850
      %v9852 = vpop.f32.mrf.mxu0
      %v9853 = vadd.f32 0.0, %v9852
      %9854 = vmatprep.mubr.bf16.mxu0 %v9503
      %9855 = vmatmul.mubr.bf16.gmra.mxu0 %v9501
      %v9856 = vpop.f32.mrf.mxu0
      %v9857 = vadd.f32 0.0, %v9856
      %v9858 = vpop.f32.mrf.mxu0
      %v9859 = vadd.f32 0.0, %v9858
      %v9860 = vpop.f32.mrf.mxu0
      %v9861 = vadd.f32 0.0, %v9860
      %v9862 = vpop.f32.mrf.mxu0
      %v9863 = vadd.f32 0.0, %v9862
      %9864 = vmatprep.mubr.bf16.mxu0 %v9507
      %9865 = vmatmul.mubr.bf16.gmra.mxu0 %v9505
      %v9866 = vpop.f32.mrf.mxu0
      %v9867 = vadd.f32 0.0, %v9866
      %v9868 = vpop.f32.mrf.mxu0
      %v9869 = vadd.f32 0.0, %v9868
      %v9870 = vpop.f32.mrf.mxu0
      %v9871 = vadd.f32 0.0, %v9870
      %v9872 = vpop.f32.mrf.mxu0
      %v9873 = vadd.f32 0.0, %v9872
      %9874 = vmatprep.mubr.bf16.mxu0 %v9511
      %9875 = vmatmul.mubr.bf16.gmra.mxu0 %v9509
      %v9876 = vpop.f32.mrf.mxu0
      %v9877 = vadd.f32 0.0, %v9876
      %v9878 = vpop.f32.mrf.mxu0
      %v9879 = vadd.f32 0.0, %v9878
      %v9880 = vpop.f32.mrf.mxu0
      %v9881 = vadd.f32 0.0, %v9880
      %v9882 = vpop.f32.mrf.mxu0
      %v9883 = vadd.f32 0.0, %v9882
      %9884 = vmatprep.mubr.bf16.mxu0 %v9515
      %9885 = vmatmul.mubr.bf16.gmra.mxu0 %v9513
      %v9886 = vpop.f32.mrf.mxu0
      %v9887 = vadd.f32 0.0, %v9886
      %v9888 = vpop.f32.mrf.mxu0
      %v9889 = vadd.f32 0.0, %v9888
      %v9890 = vpop.f32.mrf.mxu0
      %v9891 = vadd.f32 0.0, %v9890
      %v9892 = vpop.f32.mrf.mxu0
      %v9893 = vadd.f32 0.0, %v9892
      %9894 = vmatprep.mubr.bf16.mxu0 %v9519
      %9895 = vmatmul.mubr.bf16.gmra.mxu0 %v9517
      %v9896 = vpop.f32.mrf.mxu0
      %v9897 = vadd.f32 0.0, %v9896
      %v9898 = vpop.f32.mrf.mxu0
      %v9899 = vadd.f32 0.0, %v9898
      %v9900 = vpop.f32.mrf.mxu0
      %v9901 = vadd.f32 0.0, %v9900
      %v9902 = vpop.f32.mrf.mxu0
      %v9903 = vadd.f32 0.0, %v9902
      %9904 = vmatprep.mubr.bf16.mxu0 %v9523
      %9905 = vmatmul.mubr.bf16.gmra.mxu0 %v9521
      %v9906 = vpop.f32.mrf.mxu0
      %v9907 = vadd.f32 0.0, %v9906
      %v9908 = vpop.f32.mrf.mxu0
      %v9909 = vadd.f32 0.0, %v9908
      %v9910 = vpop.f32.mrf.mxu0
      %v9911 = vadd.f32 0.0, %v9910
      %v9912 = vpop.f32.mrf.mxu0
      %v9913 = vadd.f32 0.0, %v9912
      %9914 = vmatprep.mubr.bf16.mxu0 %v9527
      %9915 = vmatmul.mubr.bf16.gmra.mxu0 %v9525
      %v9916 = vpop.f32.mrf.mxu0
      %v9917 = vadd.f32 0.0, %v9916
      %v9918 = vpop.f32.mrf.mxu0
      %v9919 = vadd.f32 0.0, %v9918
      %v9920 = vpop.f32.mrf.mxu0
      %v9921 = vadd.f32 0.0, %v9920
      %v9922 = vpop.f32.mrf.mxu0
      %v9923 = vadd.f32 0.0, %v9922
      %9924 = vmatprep.mubr.bf16.mxu0 %v9531
      %9925 = vmatmul.mubr.bf16.gmra.mxu0 %v9529
      %v9926 = vpop.f32.mrf.mxu0
      %v9927 = vadd.f32 0.0, %v9926
      %v9928 = vpop.f32.mrf.mxu0
      %v9929 = vadd.f32 0.0, %v9928
      %v9930 = vpop.f32.mrf.mxu0
      %v9931 = vadd.f32 0.0, %v9930
      %v9932 = vpop.f32.mrf.mxu0
      %v9933 = vadd.f32 0.0, %v9932
      %9934 = vmatprep.mubr.bf16.mxu0 %v9535
      %9935 = vmatmul.mubr.bf16.gmra.mxu0 %v9533
      %v9936 = vpop.f32.mrf.mxu0
      %v9937 = vadd.f32 0.0, %v9936
      %v9938 = vpop.f32.mrf.mxu0
      %v9939 = vadd.f32 0.0, %v9938
      %v9940 = vpop.f32.mrf.mxu0
      %v9941 = vadd.f32 0.0, %v9940
      %v9942 = vpop.f32.mrf.mxu0
      %v9943 = vadd.f32 0.0, %v9942
      %9944 = vmatprep.mubr.bf16.mxu0 %v9539
      %9945 = vmatmul.mubr.bf16.gmra.mxu0 %v9537
      %v9946 = vpop.f32.mrf.mxu0
      %v9947 = vadd.f32 0.0, %v9946
      %v9948 = vpop.f32.mrf.mxu0
      %v9949 = vadd.f32 0.0, %v9948
      %v9950 = vpop.f32.mrf.mxu0
      %v9951 = vadd.f32 0.0, %v9950
      %v9952 = vpop.f32.mrf.mxu0
      %v9953 = vadd.f32 0.0, %v9952
      %9954 = vmatprep.mubr.bf16.mxu0 %v9543
      %9955 = vmatmul.mubr.bf16.gmra.mxu0 %v9541
      %v9956 = vpop.f32.mrf.mxu0
      %v9957 = vadd.f32 0.0, %v9956
      %v9958 = vpop.f32.mrf.mxu0
      %v9959 = vadd.f32 0.0, %v9958
      %v9960 = vpop.f32.mrf.mxu0
      %v9961 = vadd.f32 0.0, %v9960
      %v9962 = vpop.f32.mrf.mxu0
      %v9963 = vadd.f32 0.0, %v9962
      %9964 = vmatprep.mubr.bf16.mxu0 %v9547
      %9965 = vmatmul.mubr.bf16.gmra.mxu0 %v9545
      %v9966 = vpop.f32.mrf.mxu0
      %v9967 = vadd.f32 0.0, %v9966
      %v9968 = vpop.f32.mrf.mxu0
      %v9969 = vadd.f32 0.0, %v9968
      %v9970 = vpop.f32.mrf.mxu0
      %v9971 = vadd.f32 0.0, %v9970
      %v9972 = vpop.f32.mrf.mxu0
      %v9973 = vadd.f32 0.0, %v9972
      %9974 = vmatprep.mubr.bf16.mxu0 %v9551
      %9975 = vmatmul.mubr.bf16.gmra.mxu0 %v9549
      %v9976 = vpop.f32.mrf.mxu0
      %v9977 = vadd.f32 0.0, %v9976
      %v9978 = vpop.f32.mrf.mxu0
      %v9979 = vadd.f32 0.0, %v9978
      %v9980 = vpop.f32.mrf.mxu0
      %v9981 = vadd.f32 0.0, %v9980
      %v9982 = vpop.f32.mrf.mxu0
      %v9983 = vadd.f32 0.0, %v9982
      %9984 = vmatprep.mubr.bf16.mxu0 %v9555
      %9985 = vmatmul.mubr.bf16.gmra.mxu0 %v9553
      %v9986 = vpop.f32.mrf.mxu0
      %v9987 = vadd.f32 0.0, %v9986
      %v9988 = vpop.f32.mrf.mxu0
      %v9989 = vadd.f32 0.0, %v9988
      %v9990 = vpop.f32.mrf.mxu0
      %v9991 = vadd.f32 0.0, %v9990
      %v9992 = vpop.f32.mrf.mxu0
      %v9993 = vadd.f32 0.0, %v9992
      %9994 = vmatprep.mubr.bf16.mxu0 %v9559
      %9995 = vmatmul.mubr.bf16.gmra.mxu0 %v9557
      %v9996 = vpop.f32.mrf.mxu0
      %v9997 = vadd.f32 0.0, %v9996
      %v9998 = vpop.f32.mrf.mxu0
      %v9999 = vadd.f32 0.0, %v9998
      %v10000 = vpop.f32.mrf.mxu0
      %v10001 = vadd.f32 0.0, %v10000
      %v10002 = vpop.f32.mrf.mxu0
      %v10003 = vadd.f32 0.0, %v10002
      %10004 = vmatprep.mubr.bf16.mxu0 %v9563
      %10005 = vmatmul.mubr.bf16.gmra.mxu0 %v9561
      %v10006 = vpop.f32.mrf.mxu0
      %v10007 = vadd.f32 0.0, %v10006
      %v10008 = vpop.f32.mrf.mxu0
      %v10009 = vadd.f32 0.0, %v10008
      %v10010 = vpop.f32.mrf.mxu0
      %v10011 = vadd.f32 0.0, %v10010
      %v10012 = vpop.f32.mrf.mxu0
      %v10013 = vadd.f32 0.0, %v10012
      %10014 = vmatprep.mubr.bf16.mxu0 %v9567
      %10015 = vmatmul.mubr.bf16.gmra.mxu0 %v9565
      %v10016 = vpop.f32.mrf.mxu0
      %v10017 = vadd.f32 0.0, %v10016
      %v10018 = vpop.f32.mrf.mxu0
      %v10019 = vadd.f32 0.0, %v10018
      %v10020 = vpop.f32.mrf.mxu0
      %v10021 = vadd.f32 0.0, %v10020
      %v10022 = vpop.f32.mrf.mxu0
      %v10023 = vadd.f32 0.0, %v10022
      %10024 = vmatprep.mubr.bf16.mxu0 %v9571
      %10025 = vmatmul.mubr.bf16.gmra.mxu0 %v9569
      %v10026 = vpop.f32.mrf.mxu0
      %v10027 = vadd.f32 0.0, %v10026
      %v10028 = vpop.f32.mrf.mxu0
      %v10029 = vadd.f32 0.0, %v10028
      %v10030 = vpop.f32.mrf.mxu0
      %v10031 = vadd.f32 0.0, %v10030
      %v10032 = vpop.f32.mrf.mxu0
      %v10033 = vadd.f32 0.0, %v10032
      %10034 = vmatprep.mubr.bf16.mxu0 %v9575
      %10035 = vmatmul.mubr.bf16.gmra.mxu0 %v9573
      %v10036 = vpop.f32.mrf.mxu0
      %v10037 = vadd.f32 0.0, %v10036
      %v10038 = vpop.f32.mrf.mxu0
      %v10039 = vadd.f32 0.0, %v10038
      %v10040 = vpop.f32.mrf.mxu0
      %v10041 = vadd.f32 0.0, %v10040
      %v10042 = vpop.f32.mrf.mxu0
      %v10043 = vadd.f32 0.0, %v10042
      %10044 = vmatprep.mubr.bf16.mxu0 %v9579
      %10045 = vmatmul.mubr.bf16.gmra.mxu0 %v9577
      %v10046 = vpop.f32.mrf.mxu0
      %v10047 = vadd.f32 0.0, %v10046
      %v10048 = vpop.f32.mrf.mxu0
      %v10049 = vadd.f32 0.0, %v10048
      %v10050 = vpop.f32.mrf.mxu0
      %v10051 = vadd.f32 0.0, %v10050
      %v10052 = vpop.f32.mrf.mxu0
      %v10053 = vadd.f32 0.0, %v10052
      %10054 = vmatprep.mubr.bf16.mxu0 %v9583
      %10055 = vmatmul.mubr.bf16.gmra.mxu0 %v9581
      %v10056 = vpop.f32.mrf.mxu0
      %v10057 = vadd.f32 0.0, %v10056
      %v10058 = vpop.f32.mrf.mxu0
      %v10059 = vadd.f32 0.0, %v10058
      %v10060 = vpop.f32.mrf.mxu0
      %v10061 = vadd.f32 0.0, %v10060
      %v10062 = vpop.f32.mrf.mxu0
      %v10063 = vadd.f32 0.0, %v10062
      %10064 = vdwg.mxu0
      %v10065 = vadd.f32 %v9351, %v9827
      %v10066 = vadd.f32 %v9352, %v9829
      %v10067 = vadd.f32 %v9353, %v9831
      %v10068 = vadd.f32 %v9354, %v9833
      %v10069 = vadd.f32 %v9355, %v9837
      %v10070 = vadd.f32 %v9356, %v9839
      %v10071 = vadd.f32 %v9357, %v9841
      %v10072 = vadd.f32 %v9358, %v9843
      %v10073 = vadd.f32 %v9359, %v9847
      %v10074 = vadd.f32 %v9360, %v9849
      %v10075 = vadd.f32 %v9361, %v9851
      %v10076 = vadd.f32 %v9362, %v9853
      %v10077 = vadd.f32 %v9363, %v9857
      %v10078 = vadd.f32 %v9364, %v9859
      %v10079 = vadd.f32 %v9365, %v9861
      %v10080 = vadd.f32 %v9366, %v9863
      %v10081 = vadd.f32 %v9367, %v9867
      %v10082 = vadd.f32 %v9368, %v9869
      %v10083 = vadd.f32 %v9369, %v9871
      %v10084 = vadd.f32 %v9370, %v9873
      %v10085 = vadd.f32 %v9371, %v9877
      %v10086 = vadd.f32 %v9372, %v9879
      %v10087 = vadd.f32 %v9373, %v9881
      %v10088 = vadd.f32 %v9374, %v9883
      %v10089 = vadd.f32 %v9375, %v9887
      %v10090 = vadd.f32 %v9376, %v9889
      %v10091 = vadd.f32 %v9377, %v9891
      %v10092 = vadd.f32 %v9378, %v9893
      %v10093 = vadd.f32 %v9379, %v9897
      %v10094 = vadd.f32 %v9380, %v9899
      %v10095 = vadd.f32 %v9381, %v9901
      %v10096 = vadd.f32 %v9382, %v9903
      %v10097 = vadd.f32 %v9383, %v9907
      %v10098 = vadd.f32 %v9384, %v9909
      %v10099 = vadd.f32 %v9385, %v9911
      %v10100 = vadd.f32 %v9386, %v9913
      %v10101 = vadd.f32 %v9387, %v9917
      %v10102 = vadd.f32 %v9388, %v9919
      %v10103 = vadd.f32 %v9389, %v9921
      %v10104 = vadd.f32 %v9390, %v9923
      %v10105 = vadd.f32 %v9391, %v9927
      %v10106 = vadd.f32 %v9392, %v9929
      %v10107 = vadd.f32 %v9393, %v9931
      %v10108 = vadd.f32 %v9394, %v9933
      %v10109 = vadd.f32 %v9395, %v9937
      %v10110 = vadd.f32 %v9396, %v9939
      %v10111 = vadd.f32 %v9397, %v9941
      %v10112 = vadd.f32 %v9398, %v9943
      %v10113 = vadd.f32 %v9399, %v9947
      %v10114 = vadd.f32 %v9400, %v9949
      %v10115 = vadd.f32 %v9401, %v9951
      %v10116 = vadd.f32 %v9402, %v9953
      %v10117 = vadd.f32 %v9403, %v9957
      %v10118 = vadd.f32 %v9404, %v9959
      %v10119 = vadd.f32 %v9405, %v9961
      %v10120 = vadd.f32 %v9406, %v9963
      %v10121 = vadd.f32 %v9407, %v9967
      %v10122 = vadd.f32 %v9408, %v9969
      %v10123 = vadd.f32 %v9409, %v9971
      %v10124 = vadd.f32 %v9410, %v9973
      %v10125 = vadd.f32 %v9411, %v9977
      %v10126 = vadd.f32 %v9412, %v9979
      %v10127 = vadd.f32 %v9413, %v9981
      %v10128 = vadd.f32 %v9414, %v9983
      %v10129 = vadd.f32 %v9415, %v9987
      %v10130 = vadd.f32 %v9416, %v9989
      %v10131 = vadd.f32 %v9417, %v9991
      %v10132 = vadd.f32 %v9418, %v9993
      %v10133 = vadd.f32 %v9419, %v9997
      %v10134 = vadd.f32 %v9420, %v9999
      %v10135 = vadd.f32 %v9421, %v10001
      %v10136 = vadd.f32 %v9422, %v10003
      %v10137 = vadd.f32 %v9423, %v10007
      %v10138 = vadd.f32 %v9424, %v10009
      %v10139 = vadd.f32 %v9425, %v10011
      %v10140 = vadd.f32 %v9426, %v10013
      %v10141 = vadd.f32 %v9427, %v10017
      %v10142 = vadd.f32 %v9428, %v10019
      %v10143 = vadd.f32 %v9429, %v10021
      %v10144 = vadd.f32 %v9430, %v10023
      %v10145 = vadd.f32 %v9431, %v10027
      %v10146 = vadd.f32 %v9432, %v10029
      %v10147 = vadd.f32 %v9433, %v10031
      %v10148 = vadd.f32 %v9434, %v10033
      %v10149 = vadd.f32 %v9435, %v10037
      %v10150 = vadd.f32 %v9436, %v10039
      %v10151 = vadd.f32 %v9437, %v10041
      %v10152 = vadd.f32 %v9438, %v10043
      %v10153 = vadd.f32 %v9439, %v10047
      %v10154 = vadd.f32 %v9440, %v10049
      %v10155 = vadd.f32 %v9441, %v10051
      %v10156 = vadd.f32 %v9442, %v10053
      %v10157 = vadd.f32 %v9443, %v10057
      %v10158 = vadd.f32 %v9444, %v10059
      %v10159 = vadd.f32 %v9445, %v10061
      %v10160 = vadd.f32 %v9446, %v10063
      %v10161 = vld [vmem:[%s4] sm:$0x3]
      %v10163 = vlaneseq
      %v10164 = vshrl.u32 %v10163, 7
      %v10165 = vsub.s32 0, %v10164
      %v10166 = vrot.slane %v10161, %v10165
      %v10167 = vlaneseq
      %v10168 = vshrl.u32 %v10167, 7
      %v10169 = vsub.s32 1, %v10168
      %v10170 = vrot.slane %v10161, %v10169
      %v10173 = vadd.f32 %v10065, %v10166
      %v10174 = vadd.f32 %v10066, %v10170
      %v10175 = vadd.f32 %v10067, %v10166
      %v10176 = vadd.f32 %v10068, %v10170
      %v10177 = vadd.f32 %v10069, %v10166
      %v10178 = vadd.f32 %v10070, %v10170
      %v10179 = vadd.f32 %v10071, %v10166
      %v10180 = vadd.f32 %v10072, %v10170
      %v10181 = vadd.f32 %v10073, %v10166
      %v10182 = vadd.f32 %v10074, %v10170
      %v10183 = vadd.f32 %v10075, %v10166
      %v10184 = vadd.f32 %v10076, %v10170
      %v10185 = vadd.f32 %v10077, %v10166
      %v10186 = vadd.f32 %v10078, %v10170
      %v10187 = vadd.f32 %v10079, %v10166
      %v10188 = vadd.f32 %v10080, %v10170
      %v10189 = vadd.f32 %v10081, %v10166
      %v10190 = vadd.f32 %v10082, %v10170
      %v10191 = vadd.f32 %v10083, %v10166
      %v10192 = vadd.f32 %v10084, %v10170
      %v10193 = vadd.f32 %v10085, %v10166
      %v10194 = vadd.f32 %v10086, %v10170
      %v10195 = vadd.f32 %v10087, %v10166
      %v10196 = vadd.f32 %v10088, %v10170
      %v10197 = vadd.f32 %v10089, %v10166
      %v10198 = vadd.f32 %v10090, %v10170
      %v10199 = vadd.f32 %v10091, %v10166
      %v10200 = vadd.f32 %v10092, %v10170
      %v10201 = vadd.f32 %v10093, %v10166
      %v10202 = vadd.f32 %v10094, %v10170
      %v10203 = vadd.f32 %v10095, %v10166
      %v10204 = vadd.f32 %v10096, %v10170
      %v10205 = vadd.f32 %v10097, %v10166
      %v10206 = vadd.f32 %v10098, %v10170
      %v10207 = vadd.f32 %v10099, %v10166
      %v10208 = vadd.f32 %v10100, %v10170
      %v10209 = vadd.f32 %v10101, %v10166
      %v10210 = vadd.f32 %v10102, %v10170
      %v10211 = vadd.f32 %v10103, %v10166
      %v10212 = vadd.f32 %v10104, %v10170
      %v10213 = vadd.f32 %v10105, %v10166
      %v10214 = vadd.f32 %v10106, %v10170
      %v10215 = vadd.f32 %v10107, %v10166
      %v10216 = vadd.f32 %v10108, %v10170
      %v10217 = vadd.f32 %v10109, %v10166
      %v10218 = vadd.f32 %v10110, %v10170
      %v10219 = vadd.f32 %v10111, %v10166
      %v10220 = vadd.f32 %v10112, %v10170
      %v10221 = vadd.f32 %v10113, %v10166
      %v10222 = vadd.f32 %v10114, %v10170
      %v10223 = vadd.f32 %v10115, %v10166
      %v10224 = vadd.f32 %v10116, %v10170
      %v10225 = vadd.f32 %v10117, %v10166
      %v10226 = vadd.f32 %v10118, %v10170
      %v10227 = vadd.f32 %v10119, %v10166
      %v10228 = vadd.f32 %v10120, %v10170
      %v10229 = vadd.f32 %v10121, %v10166
      %v10230 = vadd.f32 %v10122, %v10170
      %v10231 = vadd.f32 %v10123, %v10166
      %v10232 = vadd.f32 %v10124, %v10170
      %v10233 = vadd.f32 %v10125, %v10166
      %v10234 = vadd.f32 %v10126, %v10170
      %v10235 = vadd.f32 %v10127, %v10166
      %v10236 = vadd.f32 %v10128, %v10170
      %v10237 = vadd.f32 %v10129, %v10166
      %v10238 = vadd.f32 %v10130, %v10170
      %v10239 = vadd.f32 %v10131, %v10166
      %v10240 = vadd.f32 %v10132, %v10170
      %v10241 = vadd.f32 %v10133, %v10166
      %v10242 = vadd.f32 %v10134, %v10170
      %v10243 = vadd.f32 %v10135, %v10166
      %v10244 = vadd.f32 %v10136, %v10170
      %v10245 = vadd.f32 %v10137, %v10166
      %v10246 = vadd.f32 %v10138, %v10170
      %v10247 = vadd.f32 %v10139, %v10166
      %v10248 = vadd.f32 %v10140, %v10170
      %v10249 = vadd.f32 %v10141, %v10166
      %v10250 = vadd.f32 %v10142, %v10170
      %v10251 = vadd.f32 %v10143, %v10166
      %v10252 = vadd.f32 %v10144, %v10170
      %v10253 = vadd.f32 %v10145, %v10166
      %v10254 = vadd.f32 %v10146, %v10170
      %v10255 = vadd.f32 %v10147, %v10166
      %v10256 = vadd.f32 %v10148, %v10170
      %v10257 = vadd.f32 %v10149, %v10166
      %v10258 = vadd.f32 %v10150, %v10170
      %v10259 = vadd.f32 %v10151, %v10166
      %v10260 = vadd.f32 %v10152, %v10170
      %v10261 = vadd.f32 %v10153, %v10166
      %v10262 = vadd.f32 %v10154, %v10170
      %v10263 = vadd.f32 %v10155, %v10166
      %v10264 = vadd.f32 %v10156, %v10170
      %v10265 = vadd.f32 %v10157, %v10166
      %v10266 = vadd.f32 %v10158, %v10170
      %v10267 = vadd.f32 %v10159, %v10166
      %v10268 = vadd.f32 %v10160, %v10170
      %v10269 = vmax.f32 %v10173, 0.0
      %v10270 = vmax.f32 %v10174, 0.0
      %v10271 = vmax.f32 %v10175, 0.0
      %v10272 = vmax.f32 %v10176, 0.0
      %v10273 = vmax.f32 %v10177, 0.0
      %v10274 = vmax.f32 %v10178, 0.0
      %v10275 = vmax.f32 %v10179, 0.0
      %v10276 = vmax.f32 %v10180, 0.0
      %v10277 = vmax.f32 %v10181, 0.0
      %v10278 = vmax.f32 %v10182, 0.0
      %v10279 = vmax.f32 %v10183, 0.0
      %v10280 = vmax.f32 %v10184, 0.0
      %v10281 = vmax.f32 %v10185, 0.0
      %v10282 = vmax.f32 %v10186, 0.0
      %v10283 = vmax.f32 %v10187, 0.0
      %v10284 = vmax.f32 %v10188, 0.0
      %v10285 = vmax.f32 %v10189, 0.0
      %v10286 = vmax.f32 %v10190, 0.0
      %v10287 = vmax.f32 %v10191, 0.0
      %v10288 = vmax.f32 %v10192, 0.0
      %v10289 = vmax.f32 %v10193, 0.0
      %v10290 = vmax.f32 %v10194, 0.0
      %v10291 = vmax.f32 %v10195, 0.0
      %v10292 = vmax.f32 %v10196, 0.0
      %v10293 = vmax.f32 %v10197, 0.0
      %v10294 = vmax.f32 %v10198, 0.0
      %v10295 = vmax.f32 %v10199, 0.0
      %v10296 = vmax.f32 %v10200, 0.0
      %v10297 = vmax.f32 %v10201, 0.0
      %v10298 = vmax.f32 %v10202, 0.0
      %v10299 = vmax.f32 %v10203, 0.0
      %v10300 = vmax.f32 %v10204, 0.0
      %v10301 = vmax.f32 %v10205, 0.0
      %v10302 = vmax.f32 %v10206, 0.0
      %v10303 = vmax.f32 %v10207, 0.0
      %v10304 = vmax.f32 %v10208, 0.0
      %v10305 = vmax.f32 %v10209, 0.0
      %v10306 = vmax.f32 %v10210, 0.0
      %v10307 = vmax.f32 %v10211, 0.0
      %v10308 = vmax.f32 %v10212, 0.0
      %v10309 = vmax.f32 %v10213, 0.0
      %v10310 = vmax.f32 %v10214, 0.0
      %v10311 = vmax.f32 %v10215, 0.0
      %v10312 = vmax.f32 %v10216, 0.0
      %v10313 = vmax.f32 %v10217, 0.0
      %v10314 = vmax.f32 %v10218, 0.0
      %v10315 = vmax.f32 %v10219, 0.0
      %v10316 = vmax.f32 %v10220, 0.0
      %v10317 = vmax.f32 %v10221, 0.0
      %v10318 = vmax.f32 %v10222, 0.0
      %v10319 = vmax.f32 %v10223, 0.0
      %v10320 = vmax.f32 %v10224, 0.0
      %v10321 = vmax.f32 %v10225, 0.0
      %v10322 = vmax.f32 %v10226, 0.0
      %v10323 = vmax.f32 %v10227, 0.0
      %v10324 = vmax.f32 %v10228, 0.0
      %v10325 = vmax.f32 %v10229, 0.0
      %v10326 = vmax.f32 %v10230, 0.0
      %v10327 = vmax.f32 %v10231, 0.0
      %v10328 = vmax.f32 %v10232, 0.0
      %v10329 = vmax.f32 %v10233, 0.0
      %v10330 = vmax.f32 %v10234, 0.0
      %v10331 = vmax.f32 %v10235, 0.0
      %v10332 = vmax.f32 %v10236, 0.0
      %v10333 = vmax.f32 %v10237, 0.0
      %v10334 = vmax.f32 %v10238, 0.0
      %v10335 = vmax.f32 %v10239, 0.0
      %v10336 = vmax.f32 %v10240, 0.0
      %v10337 = vmax.f32 %v10241, 0.0
      %v10338 = vmax.f32 %v10242, 0.0
      %v10339 = vmax.f32 %v10243, 0.0
      %v10340 = vmax.f32 %v10244, 0.0
      %v10341 = vmax.f32 %v10245, 0.0
      %v10342 = vmax.f32 %v10246, 0.0
      %v10343 = vmax.f32 %v10247, 0.0
      %v10344 = vmax.f32 %v10248, 0.0
      %v10345 = vmax.f32 %v10249, 0.0
      %v10346 = vmax.f32 %v10250, 0.0
      %v10347 = vmax.f32 %v10251, 0.0
      %v10348 = vmax.f32 %v10252, 0.0
      %v10349 = vmax.f32 %v10253, 0.0
      %v10350 = vmax.f32 %v10254, 0.0
      %v10351 = vmax.f32 %v10255, 0.0
      %v10352 = vmax.f32 %v10256, 0.0
      %v10353 = vmax.f32 %v10257, 0.0
      %v10354 = vmax.f32 %v10258, 0.0
      %v10355 = vmax.f32 %v10259, 0.0
      %v10356 = vmax.f32 %v10260, 0.0
      %v10357 = vmax.f32 %v10261, 0.0
      %v10358 = vmax.f32 %v10262, 0.0
      %v10359 = vmax.f32 %v10263, 0.0
      %v10360 = vmax.f32 %v10264, 0.0
      %v10361 = vmax.f32 %v10265, 0.0
      %v10362 = vmax.f32 %v10266, 0.0
      %v10363 = vmax.f32 %v10267, 0.0
      %v10364 = vmax.f32 %v10268, 0.0
      %10365 = vst [vmem:[%s248] sm:$0xff] %v10269
      %vm10366 = vcmask 7168
      %10367 = vst.msk [vmem:[%s248 + $0x8] sm:$0xff] %vm10366, %v10270
      %10368 = vst [vmem:[%s248 + $0x10] sm:$0xff] %v10271
      %10369 = vst.msk [vmem:[%s248 + $0x18] sm:$0xff] %vm10366, %v10272
      %10370 = vst [vmem:[%s248 + $0x20] sm:$0xff] %v10273
      %10371 = vst.msk [vmem:[%s248 + $0x28] sm:$0xff] %vm10366, %v10274
      %10372 = vst [vmem:[%s248 + $0x30] sm:$0xff] %v10275
      %10373 = vst.msk [vmem:[%s248 + $0x38] sm:$0xff] %vm10366, %v10276
      %10374 = vst [vmem:[%s248 + $0x40] sm:$0xff] %v10277
      %10375 = vst.msk [vmem:[%s248 + $0x48] sm:$0xff] %vm10366, %v10278
      %10376 = vst [vmem:[%s248 + $0x50] sm:$0xff] %v10279
      %10377 = vst.msk [vmem:[%s248 + $0x58] sm:$0xff] %vm10366, %v10280
      %10378 = vst [vmem:[%s248 + $0x60] sm:$0xff] %v10281
      %10379 = vst.msk [vmem:[%s248 + $0x68] sm:$0xff] %vm10366, %v10282
      %10380 = vst [vmem:[%s248 + $0x70] sm:$0xff] %v10283
      %10381 = vst.msk [vmem:[%s248 + $0x78] sm:$0xff] %vm10366, %v10284
      %10382 = vst [vmem:[%s248 + $0x80] sm:$0xff] %v10285
      %10383 = vst.msk [vmem:[%s248 + $0x88] sm:$0xff] %vm10366, %v10286
      %10384 = vst [vmem:[%s248 + $0x90] sm:$0xff] %v10287
      %10385 = vst.msk [vmem:[%s248 + $0x98] sm:$0xff] %vm10366, %v10288
      %10386 = vst [vmem:[%s248 + $0xa0] sm:$0xff] %v10289
      %10387 = vst.msk [vmem:[%s248 + $0xa8] sm:$0xff] %vm10366, %v10290
      %10388 = vst [vmem:[%s248 + $0xb0] sm:$0xff] %v10291
      %10389 = vst.msk [vmem:[%s248 + $0xb8] sm:$0xff] %vm10366, %v10292
      %10390 = vst [vmem:[%s248 + $0xc0] sm:$0xff] %v10293
      %10391 = vst.msk [vmem:[%s248 + $0xc8] sm:$0xff] %vm10366, %v10294
      %10392 = vst [vmem:[%s248 + $0xd0] sm:$0xff] %v10295
      %10393 = vst.msk [vmem:[%s248 + $0xd8] sm:$0xff] %vm10366, %v10296
      %10394 = vst [vmem:[%s248 + $0xe0] sm:$0xff] %v10297
      %10395 = vst.msk [vmem:[%s248 + $0xe8] sm:$0xff] %vm10366, %v10298
      %10396 = vst [vmem:[%s248 + $0xf0] sm:$0xff] %v10299
      %10397 = vst.msk [vmem:[%s248 + $0xf8] sm:$0xff] %vm10366, %v10300
      %10398 = vst [vmem:[%s248 + $0x100] sm:$0xff] %v10301
      %10399 = vst.msk [vmem:[%s248 + $0x108] sm:$0xff] %vm10366, %v10302
      %10400 = vst [vmem:[%s248 + $0x110] sm:$0xff] %v10303
      %10401 = vst.msk [vmem:[%s248 + $0x118] sm:$0xff] %vm10366, %v10304
      %10402 = vst [vmem:[%s248 + $0x120] sm:$0xff] %v10305
      %10403 = vst.msk [vmem:[%s248 + $0x128] sm:$0xff] %vm10366, %v10306
      %10404 = vst [vmem:[%s248 + $0x130] sm:$0xff] %v10307
      %10405 = vst.msk [vmem:[%s248 + $0x138] sm:$0xff] %vm10366, %v10308
      %10406 = vst [vmem:[%s248 + $0x140] sm:$0xff] %v10309
      %10407 = vst.msk [vmem:[%s248 + $0x148] sm:$0xff] %vm10366, %v10310
      %10408 = vst [vmem:[%s248 + $0x150] sm:$0xff] %v10311
      %10409 = vst.msk [vmem:[%s248 + $0x158] sm:$0xff] %vm10366, %v10312
      %10410 = vst [vmem:[%s248 + $0x160] sm:$0xff] %v10313
      %10411 = vst.msk [vmem:[%s248 + $0x168] sm:$0xff] %vm10366, %v10314
      %10412 = vst [vmem:[%s248 + $0x170] sm:$0xff] %v10315
      %10413 = vst.msk [vmem:[%s248 + $0x178] sm:$0xff] %vm10366, %v10316
      %10414 = vst [vmem:[%s248 + $0x180] sm:$0xff] %v10317
      %10415 = vst.msk [vmem:[%s248 + $0x188] sm:$0xff] %vm10366, %v10318
      %10416 = vst [vmem:[%s248 + $0x190] sm:$0xff] %v10319
      %10417 = vst.msk [vmem:[%s248 + $0x198] sm:$0xff] %vm10366, %v10320
      %10418 = vst [vmem:[%s248 + $0x1a0] sm:$0xff] %v10321
      %10419 = vst.msk [vmem:[%s248 + $0x1a8] sm:$0xff] %vm10366, %v10322
      %10420 = vst [vmem:[%s248 + $0x1b0] sm:$0xff] %v10323
      %10421 = vst.msk [vmem:[%s248 + $0x1b8] sm:$0xff] %vm10366, %v10324
      %10422 = vst [vmem:[%s248 + $0x1c0] sm:$0xff] %v10325
      %10423 = vst.msk [vmem:[%s248 + $0x1c8] sm:$0xff] %vm10366, %v10326
      %10424 = vst [vmem:[%s248 + $0x1d0] sm:$0xff] %v10327
      %10425 = vst.msk [vmem:[%s248 + $0x1d8] sm:$0xff] %vm10366, %v10328
      %10426 = vst [vmem:[%s248 + $0x1e0] sm:$0xff] %v10329
      %10427 = vst.msk [vmem:[%s248 + $0x1e8] sm:$0xff] %vm10366, %v10330
      %10428 = vst [vmem:[%s248 + $0x1f0] sm:$0xff] %v10331
      %10429 = vst.msk [vmem:[%s248 + $0x1f8] sm:$0xff] %vm10366, %v10332
      %10430 = vst [vmem:[%s248 + $0x200] sm:$0xff] %v10333
      %10431 = vst.msk [vmem:[%s248 + $0x208] sm:$0xff] %vm10366, %v10334
      %10432 = vst [vmem:[%s248 + $0x210] sm:$0xff] %v10335
      %10433 = vst.msk [vmem:[%s248 + $0x218] sm:$0xff] %vm10366, %v10336
      %10434 = vst [vmem:[%s248 + $0x220] sm:$0xff] %v10337
      %10435 = vst.msk [vmem:[%s248 + $0x228] sm:$0xff] %vm10366, %v10338
      %10436 = vst [vmem:[%s248 + $0x230] sm:$0xff] %v10339
      %10437 = vst.msk [vmem:[%s248 + $0x238] sm:$0xff] %vm10366, %v10340
      %10438 = vst [vmem:[%s248 + $0x240] sm:$0xff] %v10341
      %10439 = vst.msk [vmem:[%s248 + $0x248] sm:$0xff] %vm10366, %v10342
      %10440 = vst [vmem:[%s248 + $0x250] sm:$0xff] %v10343
      %10441 = vst.msk [vmem:[%s248 + $0x258] sm:$0xff] %vm10366, %v10344
      %10442 = vst [vmem:[%s248 + $0x260] sm:$0xff] %v10345
      %10443 = vst.msk [vmem:[%s248 + $0x268] sm:$0xff] %vm10366, %v10346
      %10444 = vst [vmem:[%s248 + $0x270] sm:$0xff] %v10347
      %10445 = vst.msk [vmem:[%s248 + $0x278] sm:$0xff] %vm10366, %v10348
      %10446 = vst [vmem:[%s248 + $0x280] sm:$0xff] %v10349
      %10447 = vst.msk [vmem:[%s248 + $0x288] sm:$0xff] %vm10366, %v10350
      %10448 = vst [vmem:[%s248 + $0x290] sm:$0xff] %v10351
      %10449 = vst.msk [vmem:[%s248 + $0x298] sm:$0xff] %vm10366, %v10352
      %10450 = vst [vmem:[%s248 + $0x2a0] sm:$0xff] %v10353
      %10451 = vst.msk [vmem:[%s248 + $0x2a8] sm:$0xff] %vm10366, %v10354
      %10452 = vst [vmem:[%s248 + $0x2b0] sm:$0xff] %v10355
      %10453 = vst.msk [vmem:[%s248 + $0x2b8] sm:$0xff] %vm10366, %v10356
      %10454 = vst [vmem:[%s248 + $0x2c0] sm:$0xff] %v10357
      %10455 = vst.msk [vmem:[%s248 + $0x2c8] sm:$0xff] %vm10366, %v10358
      %10456 = vst [vmem:[%s248 + $0x2d0] sm:$0xff] %v10359
      %10457 = vst.msk [vmem:[%s248 + $0x2d8] sm:$0xff] %vm10366, %v10360
      %10458 = vst [vmem:[%s248 + $0x2e0] sm:$0xff] %v10361
      %10459 = vst.msk [vmem:[%s248 + $0x2e8] sm:$0xff] %vm10366, %v10362
      %10460 = vst [vmem:[%s248 + $0x2f0] sm:$0xff] %v10363
      %10461 = vst.msk [vmem:[%s248 + $0x2f8] sm:$0xff] %vm10366, %v10364
      %s10462 = smul.u32 16, %s21
      %p10463 = scmp.lt.s32.totalorder %s20, 1
      %s10464 = scalar_select %p10463, %s20, 1
      %p10465 = scmp.lt.s32.totalorder %s10462, 15
      %s10466 = scalar_select %p10465, %s10462, 15
      %s10467 = smul.addr %s10466, 6
      %s10468 = smul.addr %s10464, 96
      %s10469 = sadd.s32 %s10467, %s10468
      %s10470 = smul.addr %s10469, 8
      %s10471 = scalar_lea.vmem %s5, %s10470
      // Predicated region
      $region41: #{fpttc_conv_corr_split.1} parent=39 // pred_check
        %p10472 = pneg %p158
      $region42: #{fpttc_conv_corr_split.1} parent=39 // pred_check_branch
        %10474 = sbr.rel (%p10472) target = $region44
      $region43: #{fpttc_conv_corr_split.1} parent=39 // pred_region
        %s10475 = smul.u32 16, %s21
      $region44: #{fpttc_conv_corr_split.1} parent=39 // pred_fallthru
        _
    $region40: #{fpttc_conv_corr_split.1} parent=5 // pred_fallthru
      _
    %p10476 = scmp.le.s32.totalorder 2, %s11
    // Predicated region
    $region45: #{fpttc_conv_corr_split.1} parent=5 // pred_check
      %p10477 = pneg %p10476
    $region46: #{fpttc_conv_corr_split.1} parent=5 // pred_check_branch
      %10479 = sbr.rel (%p10477) target = $region48
    $region47: #{fpttc_conv_corr_split.1} parent=5 // pred_region
      %s10480 = ssub.s32 %s11, 2
      // Predicated region
      $region49: #{fpttc_conv_corr_split.1} parent=47 // pred_check
        %p10481 = pneg %p164
      $region50: #{fpttc_conv_corr_split.1} parent=47 // pred_check_branch
        %10483 = sbr.rel (%p10481) target = $region52
      $region51: #{fpttc_conv_corr_split.1} parent=47 // pred_region
        %s10484 = smul.u32 16, %s23
        %p10485 = scmp.lt.s32.totalorder %s22, 1
        %s10486 = scalar_select %p10485, %s22, 1
        %p10487 = scmp.lt.s32.totalorder %s10484, 15
        %s10488 = scalar_select %p10487, %s10484, 15
        %s10489 = smul.addr %s10488, 6
        %s10490 = smul.addr %s10486, 96
        %s10491 = sadd.s32 %s10489, %s10490
        %s10492 = smul.addr %s10491, 8
        %s10493 = scalar_lea.vmem %s5, %s10492
      $region52: #{fpttc_conv_corr_split.1} parent=47 // pred_fallthru
        _
    $region48: #{fpttc_conv_corr_split.1} parent=5 // pred_fallthru
      _
  $region6: #{fpttc_conv_corr_split.1} parent=0 // loop_footer
    %s15 = sadd.s32 1, %s11
  $region7: #{fpttc_conv_corr_split.1} parent=0 // loop_footer_branch
    %10 = sbr.rel target = $region3
  $region8: #{fpttc_conv_corr_split.1} parent=0 // loop_exit
    _

</llo_original>
